<compile_context>
chip_gen: v7x
topology: tpu7x:2x2x1
jax: 0.10.0
libtpu: 0.0.40
codegen_flags: <defaults>
</compile_context>

<pallas_src>
import numpy as np
import jax
import jax.numpy as jnp
from jax.experimental import pallas as pl
from jax.experimental.pallas import tpu as pltpu


# ----------------------------------------------------------------------------
# Pallas kernel
# ----------------------------------------------------------------------------
def _make_policy_kernel(B, H, W):
    P = H * W
    N = B * P
    # tap k = kh*3 + kw reads the input at row offset delta = (kh-1)*W + (kw-1)
    deltas = [(kh - 1) * W + (kw - 1) for kh in range(3) for kw in range(3)]

    def kernel(x_ref, cmask_ref, w1_ref, b1_ref, w2_ref, b2_ref, w3_ref, b3_ref,
               pmask_ref, rsum_ref, wih_ref, bih_ref, whhT_ref, bhh_ref, hx_ref,
               whd_ref, bhd_ref, out_ref):
        f32, bf16 = jnp.float32, jnp.bfloat16

        def mm(a, w):
            # bf16 MXU operands, f32 accumulation (no Precision.HIGHEST multi-pass).
            return jnp.dot(a.astype(bf16), w, preferred_element_type=f32)

        def elu(v):
            return jnp.where(v > 0.0, v, jnp.exp(v) - 1.0)

        cmask = cmask_ref[...]                                  # (N, 9) tap validity

        def conv_elu(a, w_ref, b_ref):
            # a: (N, Cin) f32 -> one im2col matmul with the fused (9*Cin, 32) weights.
            cin = a.shape[1]
            z8 = jnp.zeros((8, cin), f32)
            a_pad = jnp.concatenate([z8, a, z8], axis=0)        # (N + 16, Cin)
            cols = []
            for k in range(9):
                d = deltas[k]
                shifted = a_pad[8 + d: 8 + d + N, :]            # rows r -> a[r + d]
                cols.append(shifted * cmask[:, k:k + 1])        # zero out-of-bounds taps
            im2col = jnp.concatenate(cols, axis=1)              # (N, 9*Cin)
            return elu(mm(im2col, w_ref[...]) + b_ref[...])     # (N, 32)

        a = conv_elu(x_ref[...], w1_ref, b1_ref)
        a = conv_elu(a, w2_ref, b2_ref)
        a = conv_elu(a, w3_ref, b3_ref)                         # (N, 32)

        # --- GRU input projection as a single matmul -------------------------
        # Lane-expand each row's channels into lane block p = row % P, multiply by the
        # host-reordered (P*32, 3M) W_ih block, then sum the P rows of each batch
        # element with the tiny 0/1 reduction matrix (B, N).
        pmask = pmask_ref[...]                                  # (N, P) 0/1
        pieces = [a * pmask[:, p:p + 1] for p in range(P)]
        a_exp = jnp.concatenate(pieces, axis=1)                 # (N, P*32)
        gi_rows = mm(a_exp, wih_ref[...])                       # (N, 3M)
        gi = jnp.dot(rsum_ref[...], gi_rows,
                     preferred_element_type=f32) + bih_ref[...]  # (B, 3M)

        hx = hx_ref[...]                                        # (B, M)
        M = hx.shape[1]
        gh = mm(hx, whhT_ref[...]) + bhh_ref[...]               # (B, 3M)

        sig = lambda t: 1.0 / (1.0 + jnp.exp(-t))
        r = sig(gi[:, 0:M] + gh[:, 0:M])
        z = sig(gi[:, M:2 * M] + gh[:, M:2 * M])
        n = jnp.tanh(gi[:, 2 * M:3 * M] + r * gh[:, 2 * M:3 * M])
        h_new = (1.0 - z) * n + z * hx                          # (B, M)

        # fused critic|actor head + single lane-padded packed output
        heads = mm(h_new, whd_ref[...]) + bhd_ref[...]          # (B, 1 + A)
        packed = jnp.concatenate([heads, h_new], axis=1)        # (B, 1 + A + M)
        pad = out_ref.shape[1] - packed.shape[1]
        if pad > 0:
            packed = jnp.concatenate([packed, jnp.zeros((B, pad), f32)], axis=1)
        out_ref[...] = packed

    return kernel


# ----------------------------------------------------------------------------
# Host-side tiny constant masks (O(B) / O(B*P) bytes; no dense shift matrices)
# ----------------------------------------------------------------------------
def _build_conv_masks(B, H, W):
    m = np.zeros((B * H * W, 9), np.float32)
    for b in range(B):
        for h in range(H):
            for w in range(W):
                r = b * H * W + h * W + w
                for kh in range(3):
                    for kw in range(3):
                        if 0 <= h + kh - 1 < H and 0 <= w + kw - 1 < W:
                            m[r, kh * 3 + kw] = 1.0
    return m


def _build_position_mask(B, P):
    m = np.zeros((B * P, P), np.float32)
    for r in range(B * P):
        m[r, r % P] = 1.0
    return m


def _build_row_sum(B, P):
    m = np.zeros((B, B * P), np.float32)
    for b in range(B):
        m[b, b * P:(b + 1) * P] = 1.0
    return m


# ----------------------------------------------------------------------------
# Glue / wrapper
# ----------------------------------------------------------------------------
def sokoban_policy_forward(params, x_nchw, hx, num_actions):
    B, C, H, W = x_nchw.shape
    M = hx.shape[1]
    P = H * W
    A = num_actions
    f32, bf16 = jnp.float32, jnp.bfloat16

    # NCHW -> (B*H*W, C) channels-last rows, row = b*H*W + h*W + w.
    x2d = jnp.transpose(x_nchw, (0, 2, 3, 1)).reshape(B * P, C).astype(f32)

    cmask = jnp.asarray(_build_conv_masks(B, H, W))         # (B*P, 9)
    pmask = jnp.asarray(_build_position_mask(B, P))         # (B*P, P)
    rsum = jnp.asarray(_build_row_sum(B, P))                # (B, B*P)

    def conv_block(w):   # (Co, Ci, 3, 3) -> (9*Ci, Co), row = (kh*3+kw)*Ci + ci
        ci, co = w.shape[1], w.shape[0]
        return jnp.transpose(w, (2, 3, 1, 0)).reshape(9 * ci, co).astype(bf16)

    w1 = conv_block(params['conv1_w']); b1 = params['conv1_b'].reshape(1, -1).astype(f32)
    w2 = conv_block(params['conv2_w']); b2 = params['conv2_b'].reshape(1, -1).astype(f32)
    w3 = conv_block(params['conv3_w']); b3 = params['conv3_b'].reshape(1, -1).astype(f32)

    # GRU W_ih is (3M, 32*P) with PyTorch NCHW-flatten column order (c*P + p);
    # reorder to (P*32, 3M) with row index p*32 + c (matches the lane expansion).
    wih = jnp.transpose(params['gru_w_ih'].reshape(3 * M, 32, P), (2, 1, 0)) \
             .reshape(P * 32, 3 * M).astype(bf16)
    bih = params['gru_b_ih'].reshape(1, 3 * M).astype(f32)
    whhT = params['gru_w_hh'].T.astype(bf16)
    bhh = params['gru_b_hh'].reshape(1, 3 * M).astype(f32)

    # fused critic|actor head
    whd = jnp.concatenate([params['critic_w'].T, params['actor_w'].T], axis=1).astype(bf16)
    bhd = jnp.concatenate([params['critic_b'], params['actor_b']]).reshape(1, 1 + A).astype(f32)

    out_w = ((1 + A + M + 127) // 128) * 128   # single lane-padded packed output

    args = (x2d, cmask, w1, b1, w2, b2, w3, b3, pmask, rsum, wih, bih, whhT, bhh,
            hx.astype(f32), whd, bhd)
    vmem = pl.BlockSpec(memory_space=pltpu.MemorySpace.VMEM)

    packed = pl.pallas_call(
        _make_policy_kernel(B, H, W),
        out_shape=jax.ShapeDtypeStruct((B, out_w), f32),
        in_specs=[vmem] * len(args),
        out_specs=vmem,
    )(*args)

    value = packed[:, 0:1]
    logits = packed[:, 1:1 + A]
    hx_new = packed[:, 1 + A:1 + A + M]
    return value, logits, hx_new


# ----------------------------------------------------------------------------
# Deterministic parameter init (synthetic; NOT a checkpoint load)
# ----------------------------------------------------------------------------
def init_params(key, channels, memsize, num_actions):
    H = W = 7

    def u(k, shape, fan_in):
        b = 1.0 / np.sqrt(fan_in)
        return jax.random.uniform(k, shape, jnp.float32, -b, b)

    ks = jax.random.split(key, 12)
    p = {}
    p['conv1_w'] = u(ks[0], (32, channels, 3, 3), channels * 9)
    p['conv1_b'] = u(ks[1], (32,), channels * 9)
    p['conv2_w'] = u(ks[2], (32, 32, 3, 3), 32 * 9)
    p['conv2_b'] = u(ks[3], (32,), 32 * 9)
    p['conv3_w'] = u(ks[4], (32, 32, 3, 3), 32 * 9)
    p['conv3_b'] = u(ks[5], (32,), 32 * 9)
    gin = 32 * H * W
    p['gru_w_ih'] = u(ks[6], (3 * memsize, gin), memsize)
    p['gru_w_hh'] = u(ks[7], (3 * memsize, memsize), memsize)
    p['gru_b_ih'] = u(ks[8], (3 * memsize,), memsize)
    p['gru_b_hh'] = u(ks[9], (3 * memsize,), memsize)
    p['critic_w'] = u(ks[10], (1, memsize), memsize)
    p['critic_b'] = jnp.zeros((1,), jnp.float32)
    p['actor_w'] = u(ks[11], (num_actions, memsize), memsize)
    p['actor_b'] = jnp.zeros((num_actions,), jnp.float32)
    return p
    # TODO(synk): try_load() checkpoint restore from *.tar has no Pallas equivalent; omitted.


# ----------------------------------------------------------------------------
# Pure-JAX full-f32 reference (mirrors the PyTorch forward exactly)
# ----------------------------------------------------------------------------
def reference_forward(params, x, hx):
    prec = jax.lax.Precision.HIGHEST
    elu = lambda v: jnp.where(v > 0.0, v, jnp.exp(v) - 1.0)
    sig = lambda t: 1.0 / (1.0 + jnp.exp(-t))

    def conv(v, w, b):
        y = jax.lax.conv_general_dilated(
            v, w, window_strides=(1, 1), padding=((1, 1), (1, 1)),
            dimension_numbers=('NCHW', 'OIHW', 'NCHW'), precision=prec)
        return y + b[None, :, None, None]

    h = elu(conv(x, params['conv1_w'], params['conv1_b']))
    h = elu(conv(h, params['conv2_w'], params['conv2_b']))
    h = elu(conv(h, params['conv3_w'], params['conv3_b']))

    B = x.shape[0]
    M = hx.shape[1]
    xf = h.reshape(B, -1)  # NCHW flatten, matches x.view(-1, 32*7*7)
    gi = jnp.dot(xf, params['gru_w_ih'].T, precision=prec) + params['gru_b_ih']
    gh = jnp.dot(hx, params['gru_w_hh'].T, precision=prec) + params['gru_b_hh']
    r = sig(gi[:, :M] + gh[:, :M])
    z = sig(gi[:, M:2 * M] + gh[:, M:2 * M])
    n = jnp.tanh(gi[:, 2 * M:] + r * gh[:, 2 * M:])
    h_new = (1.0 - z) * n + z * hx
    value = jnp.dot(h_new, params['critic_w'].T, precision=prec) + params['critic_b']
    logits = jnp.dot(h_new, params['actor_w'].T, precision=prec) + params['actor_b']
    return value, logits, h_new


if __name__ == "__main__":
    B, C, H, W = 2, 4, 7, 7          # spatial must be 7x7 (GRU input is 32*7*7)
    memsize, num_actions = 32, 5

    key = jax.random.PRNGKey(0)
    kp, kx, kh = jax.random.split(key, 3)
    params = init_params(kp, C, memsize, num_actions)
    x = jax.random.normal(kx, (B, C, H, W), jnp.float32)
    hx = 0.1 * jax.random.normal(kh, (B, memsize), jnp.float32)

    value, logits, hx_new = sokoban_policy_forward(params, x, hx, num_actions)
    jax.block_until_ready((value, logits, hx_new))

    # Kernel runs its matmuls with bf16 MXU operands + f32 accumulation (per perf
    # guidance); the reference is full f32, hence the bf16-class tolerance.
    rv, rl, rh = reference_forward(params, x, hx)
    np.testing.assert_allclose(np.asarray(value), np.asarray(rv), rtol=3e-2, atol=3e-2)
    np.testing.assert_allclose(np.asarray(logits), np.asarray(rl), rtol=3e-2, atol=3e-2)
    np.testing.assert_allclose(np.asarray(hx_new), np.asarray(rh), rtol=3e-2, atol=3e-2)

    print("KERNEL_OK")
</pallas_src>

<mosaic_0001>
module attributes {stable_mosaic.version = 11 : i64} {
  func.func @kernel(%arg0: memref<98x4xf32, #tpu.memory_space<vmem>>, %arg1: memref<98x9xf32, #tpu.memory_space<vmem>>, %arg2: memref<36x32xbf16, #tpu.memory_space<vmem>>, %arg3: memref<1x32xf32, #tpu.memory_space<vmem>>, %arg4: memref<288x32xbf16, #tpu.memory_space<vmem>>, %arg5: memref<1x32xf32, #tpu.memory_space<vmem>>, %arg6: memref<288x32xbf16, #tpu.memory_space<vmem>>, %arg7: memref<1x32xf32, #tpu.memory_space<vmem>>, %arg8: memref<98x49xf32, #tpu.memory_space<vmem>>, %arg9: memref<2x98xf32, #tpu.memory_space<vmem>>, %arg10: memref<1568x96xbf16, #tpu.memory_space<vmem>>, %arg11: memref<1x96xf32, #tpu.memory_space<vmem>>, %arg12: memref<32x96xbf16, #tpu.memory_space<vmem>>, %arg13: memref<1x96xf32, #tpu.memory_space<vmem>>, %arg14: memref<2x32xf32, #tpu.memory_space<vmem>>, %arg15: memref<32x6xbf16, #tpu.memory_space<vmem>>, %arg16: memref<1x6xf32, #tpu.memory_space<vmem>>, %arg17: memref<2x128xf32, #tpu.memory_space<vmem>>) attributes {dimension_semantics = [], scalar_prefetch = 0 : i64, scratch_operands = 0 : i64, tpu.core_type = #tpu.core_type<tc>} {
    %c0 = arith.constant 0 : index
    %c0_0 = arith.constant 0 : index
    %0 = vector.load %arg1[%c0, %c0_0] : memref<98x9xf32, #tpu.memory_space<vmem>>, vector<98x9xf32>
    %c0_1 = arith.constant 0 : index
    %c0_2 = arith.constant 0 : index
    %1 = vector.load %arg0[%c0_1, %c0_2] : memref<98x4xf32, #tpu.memory_space<vmem>>, vector<98x4xf32>
    %cst = arith.constant 0.000000e+00 : f32
    %2 = vector.broadcast %cst : f32 to vector<8x4xf32>
    %3 = tpu.concatenate %2, %1, %2 in 0 : vector<8x4xf32>, vector<98x4xf32>, vector<8x4xf32> -> vector<114x4xf32>
    %4 = vector.extract_strided_slice %3 {offsets = [0, 0], sizes = [98, 4], strides = [1, 1]} : vector<114x4xf32> to vector<98x4xf32>
    %5 = vector.extract_strided_slice %0 {offsets = [0, 0], sizes = [98, 1], strides = [1, 1]} : vector<98x9xf32> to vector<98x1xf32>
    %6 = vector.broadcast %5 : vector<98x1xf32> to vector<98x4xf32>
    %7 = arith.mulf %4, %6 : vector<98x4xf32>
    %8 = vector.extract_strided_slice %3 {offsets = [1, 0], sizes = [98, 4], strides = [1, 1]} : vector<114x4xf32> to vector<98x4xf32>
    %9 = vector.extract_strided_slice %0 {offsets = [0, 1], sizes = [98, 1], strides = [1, 1]} : vector<98x9xf32> to vector<98x1xf32>
    %10 = vector.broadcast %9 : vector<98x1xf32> to vector<98x4xf32>
    %11 = arith.mulf %8, %10 : vector<98x4xf32>
    %12 = vector.extract_strided_slice %3 {offsets = [2, 0], sizes = [98, 4], strides = [1, 1]} : vector<114x4xf32> to vector<98x4xf32>
    %13 = vector.extract_strided_slice %0 {offsets = [0, 2], sizes = [98, 1], strides = [1, 1]} : vector<98x9xf32> to vector<98x1xf32>
    %14 = vector.broadcast %13 : vector<98x1xf32> to vector<98x4xf32>
    %15 = arith.mulf %12, %14 : vector<98x4xf32>
    %16 = vector.extract_strided_slice %3 {offsets = [7, 0], sizes = [98, 4], strides = [1, 1]} : vector<114x4xf32> to vector<98x4xf32>
    %17 = vector.extract_strided_slice %0 {offsets = [0, 3], sizes = [98, 1], strides = [1, 1]} : vector<98x9xf32> to vector<98x1xf32>
    %18 = vector.broadcast %17 : vector<98x1xf32> to vector<98x4xf32>
    %19 = arith.mulf %16, %18 : vector<98x4xf32>
    %20 = vector.extract_strided_slice %3 {offsets = [8, 0], sizes = [98, 4], strides = [1, 1]} : vector<114x4xf32> to vector<98x4xf32>
    %21 = vector.extract_strided_slice %0 {offsets = [0, 4], sizes = [98, 1], strides = [1, 1]} : vector<98x9xf32> to vector<98x1xf32>
    %22 = vector.broadcast %21 : vector<98x1xf32> to vector<98x4xf32>
    %23 = arith.mulf %20, %22 : vector<98x4xf32>
    %24 = vector.extract_strided_slice %3 {offsets = [9, 0], sizes = [98, 4], strides = [1, 1]} : vector<114x4xf32> to vector<98x4xf32>
    %25 = vector.extract_strided_slice %0 {offsets = [0, 5], sizes = [98, 1], strides = [1, 1]} : vector<98x9xf32> to vector<98x1xf32>
    %26 = vector.broadcast %25 : vector<98x1xf32> to vector<98x4xf32>
    %27 = arith.mulf %24, %26 : vector<98x4xf32>
    %28 = vector.extract_strided_slice %3 {offsets = [14, 0], sizes = [98, 4], strides = [1, 1]} : vector<114x4xf32> to vector<98x4xf32>
    %29 = vector.extract_strided_slice %0 {offsets = [0, 6], sizes = [98, 1], strides = [1, 1]} : vector<98x9xf32> to vector<98x1xf32>
    %30 = vector.broadcast %29 : vector<98x1xf32> to vector<98x4xf32>
    %31 = arith.mulf %28, %30 : vector<98x4xf32>
    %32 = vector.extract_strided_slice %3 {offsets = [15, 0], sizes = [98, 4], strides = [1, 1]} : vector<114x4xf32> to vector<98x4xf32>
    %33 = vector.extract_strided_slice %0 {offsets = [0, 7], sizes = [98, 1], strides = [1, 1]} : vector<98x9xf32> to vector<98x1xf32>
    %34 = vector.broadcast %33 : vector<98x1xf32> to vector<98x4xf32>
    %35 = arith.mulf %32, %34 : vector<98x4xf32>
    %36 = vector.extract_strided_slice %3 {offsets = [16, 0], sizes = [98, 4], strides = [1, 1]} : vector<114x4xf32> to vector<98x4xf32>
    %37 = vector.extract_strided_slice %0 {offsets = [0, 8], sizes = [98, 1], strides = [1, 1]} : vector<98x9xf32> to vector<98x1xf32>
    %38 = vector.broadcast %37 : vector<98x1xf32> to vector<98x4xf32>
    %39 = arith.mulf %36, %38 : vector<98x4xf32>
    %40 = tpu.concatenate %7, %11, %15, %19, %23, %27, %31, %35, %39 in 1 : vector<98x4xf32>, vector<98x4xf32>, vector<98x4xf32>, vector<98x4xf32>, vector<98x4xf32>, vector<98x4xf32>, vector<98x4xf32>, vector<98x4xf32>, vector<98x4xf32> -> vector<98x36xf32>
    %c0_3 = arith.constant 0 : index
    %c0_4 = arith.constant 0 : index
    %41 = vector.load %arg2[%c0_3, %c0_4] : memref<36x32xbf16, #tpu.memory_space<vmem>>, vector<36x32xbf16>
    %42 = arith.truncf %40 : vector<98x36xf32> to vector<98x36xbf16>
    %cst_5 = arith.constant dense<0.000000e+00> : vector<98x32xf32>
    %43 = tpu.matmul %42, %41, %cst_5 {dimension_numbers = #tpu.dot_dimension_numbers<[1], [0], [0], [1], [0, 0, 1, 1], [], []>} : vector<98x36xbf16>, vector<36x32xbf16>, vector<98x32xf32> -> vector<98x32xf32>
    %c0_6 = arith.constant 0 : index
    %c0_7 = arith.constant 0 : index
    %44 = vector.load %arg3[%c0_6, %c0_7] : memref<1x32xf32, #tpu.memory_space<vmem>>, vector<1x32xf32>
    %45 = vector.broadcast %44 : vector<1x32xf32> to vector<98x32xf32>
    %46 = arith.addf %43, %45 : vector<98x32xf32>
    %cst_8 = arith.constant 0.000000e+00 : f32
    %47 = vector.broadcast %cst_8 : f32 to vector<98x32xf32>
    %48 = arith.cmpf ogt, %46, %47 : vector<98x32xf32>
    %49 = math.exp %46 : vector<98x32xf32>
    %cst_9 = arith.constant 1.000000e+00 : f32
    %50 = vector.broadcast %cst_9 : f32 to vector<98x32xf32>
    %51 = arith.subf %49, %50 : vector<98x32xf32>
    %52 = arith.select %48, %46, %51 : vector<98x32xi1>, vector<98x32xf32>
    %cst_10 = arith.constant 0.000000e+00 : f32
    %53 = vector.broadcast %cst_10 : f32 to vector<8x32xf32>
    %54 = tpu.concatenate %53, %52, %53 in 0 : vector<8x32xf32>, vector<98x32xf32>, vector<8x32xf32> -> vector<114x32xf32>
    %55 = vector.extract_strided_slice %54 {offsets = [0, 0], sizes = [98, 32], strides = [1, 1]} : vector<114x32xf32> to vector<98x32xf32>
    %56 = vector.extract_strided_slice %0 {offsets = [0, 0], sizes = [98, 1], strides = [1, 1]} : vector<98x9xf32> to vector<98x1xf32>
    %57 = vector.broadcast %56 : vector<98x1xf32> to vector<98x32xf32>
    %58 = arith.mulf %55, %57 : vector<98x32xf32>
    %59 = vector.extract_strided_slice %54 {offsets = [1, 0], sizes = [98, 32], strides = [1, 1]} : vector<114x32xf32> to vector<98x32xf32>
    %60 = vector.extract_strided_slice %0 {offsets = [0, 1], sizes = [98, 1], strides = [1, 1]} : vector<98x9xf32> to vector<98x1xf32>
    %61 = vector.broadcast %60 : vector<98x1xf32> to vector<98x32xf32>
    %62 = arith.mulf %59, %61 : vector<98x32xf32>
    %63 = vector.extract_strided_slice %54 {offsets = [2, 0], sizes = [98, 32], strides = [1, 1]} : vector<114x32xf32> to vector<98x32xf32>
    %64 = vector.extract_strided_slice %0 {offsets = [0, 2], sizes = [98, 1], strides = [1, 1]} : vector<98x9xf32> to vector<98x1xf32>
    %65 = vector.broadcast %64 : vector<98x1xf32> to vector<98x32xf32>
    %66 = arith.mulf %63, %65 : vector<98x32xf32>
    %67 = vector.extract_strided_slice %54 {offsets = [7, 0], sizes = [98, 32], strides = [1, 1]} : vector<114x32xf32> to vector<98x32xf32>
    %68 = vector.extract_strided_slice %0 {offsets = [0, 3], sizes = [98, 1], strides = [1, 1]} : vector<98x9xf32> to vector<98x1xf32>
    %69 = vector.broadcast %68 : vector<98x1xf32> to vector<98x32xf32>
    %70 = arith.mulf %67, %69 : vector<98x32xf32>
    %71 = vector.extract_strided_slice %54 {offsets = [8, 0], sizes = [98, 32], strides = [1, 1]} : vector<114x32xf32> to vector<98x32xf32>
    %72 = vector.extract_strided_slice %0 {offsets = [0, 4], sizes = [98, 1], strides = [1, 1]} : vector<98x9xf32> to vector<98x1xf32>
    %73 = vector.broadcast %72 : vector<98x1xf32> to vector<98x32xf32>
    %74 = arith.mulf %71, %73 : vector<98x32xf32>
    %75 = vector.extract_strided_slice %54 {offsets = [9, 0], sizes = [98, 32], strides = [1, 1]} : vector<114x32xf32> to vector<98x32xf32>
    %76 = vector.extract_strided_slice %0 {offsets = [0, 5], sizes = [98, 1], strides = [1, 1]} : vector<98x9xf32> to vector<98x1xf32>
    %77 = vector.broadcast %76 : vector<98x1xf32> to vector<98x32xf32>
    %78 = arith.mulf %75, %77 : vector<98x32xf32>
    %79 = vector.extract_strided_slice %54 {offsets = [14, 0], sizes = [98, 32], strides = [1, 1]} : vector<114x32xf32> to vector<98x32xf32>
    %80 = vector.extract_strided_slice %0 {offsets = [0, 6], sizes = [98, 1], strides = [1, 1]} : vector<98x9xf32> to vector<98x1xf32>
    %81 = vector.broadcast %80 : vector<98x1xf32> to vector<98x32xf32>
    %82 = arith.mulf %79, %81 : vector<98x32xf32>
    %83 = vector.extract_strided_slice %54 {offsets = [15, 0], sizes = [98, 32], strides = [1, 1]} : vector<114x32xf32> to vector<98x32xf32>
    %84 = vector.extract_strided_slice %0 {offsets = [0, 7], sizes = [98, 1], strides = [1, 1]} : vector<98x9xf32> to vector<98x1xf32>
    %85 = vector.broadcast %84 : vector<98x1xf32> to vector<98x32xf32>
    %86 = arith.mulf %83, %85 : vector<98x32xf32>
    %87 = vector.extract_strided_slice %54 {offsets = [16, 0], sizes = [98, 32], strides = [1, 1]} : vector<114x32xf32> to vector<98x32xf32>
    %88 = vector.extract_strided_slice %0 {offsets = [0, 8], sizes = [98, 1], strides = [1, 1]} : vector<98x9xf32> to vector<98x1xf32>
    %89 = vector.broadcast %88 : vector<98x1xf32> to vector<98x32xf32>
    %90 = arith.mulf %87, %89 : vector<98x32xf32>
    %91 = tpu.concatenate %58, %62, %66, %70, %74, %78, %82, %86, %90 in 1 : vector<98x32xf32>, vector<98x32xf32>, vector<98x32xf32>, vector<98x32xf32>, vector<98x32xf32>, vector<98x32xf32>, vector<98x32xf32>, vector<98x32xf32>, vector<98x32xf32> -> vector<98x288xf32>
    %c0_11 = arith.constant 0 : index
    %c0_12 = arith.constant 0 : index
    %92 = vector.load %arg4[%c0_11, %c0_12] : memref<288x32xbf16, #tpu.memory_space<vmem>>, vector<288x32xbf16>
    %93 = arith.truncf %91 : vector<98x288xf32> to vector<98x288xbf16>
    %cst_13 = arith.constant dense<0.000000e+00> : vector<98x32xf32>
    %94 = tpu.matmul %93, %92, %cst_13 {dimension_numbers = #tpu.dot_dimension_numbers<[1], [0], [0], [1], [0, 0, 1, 1], [], []>} : vector<98x288xbf16>, vector<288x32xbf16>, vector<98x32xf32> -> vector<98x32xf32>
    %c0_14 = arith.constant 0 : index
    %c0_15 = arith.constant 0 : index
    %95 = vector.load %arg5[%c0_14, %c0_15] : memref<1x32xf32, #tpu.memory_space<vmem>>, vector<1x32xf32>
    %96 = vector.broadcast %95 : vector<1x32xf32> to vector<98x32xf32>
    %97 = arith.addf %94, %96 : vector<98x32xf32>
    %cst_16 = arith.constant 0.000000e+00 : f32
    %98 = vector.broadcast %cst_16 : f32 to vector<98x32xf32>
    %99 = arith.cmpf ogt, %97, %98 : vector<98x32xf32>
    %100 = math.exp %97 : vector<98x32xf32>
    %cst_17 = arith.constant 1.000000e+00 : f32
    %101 = vector.broadcast %cst_17 : f32 to vector<98x32xf32>
    %102 = arith.subf %100, %101 : vector<98x32xf32>
    %103 = arith.select %99, %97, %102 : vector<98x32xi1>, vector<98x32xf32>
    %cst_18 = arith.constant 0.000000e+00 : f32
    %104 = vector.broadcast %cst_18 : f32 to vector<8x32xf32>
    %105 = tpu.concatenate %104, %103, %104 in 0 : vector<8x32xf32>, vector<98x32xf32>, vector<8x32xf32> -> vector<114x32xf32>
    %106 = vector.extract_strided_slice %105 {offsets = [0, 0], sizes = [98, 32], strides = [1, 1]} : vector<114x32xf32> to vector<98x32xf32>
    %107 = vector.extract_strided_slice %0 {offsets = [0, 0], sizes = [98, 1], strides = [1, 1]} : vector<98x9xf32> to vector<98x1xf32>
    %108 = vector.broadcast %107 : vector<98x1xf32> to vector<98x32xf32>
    %109 = arith.mulf %106, %108 : vector<98x32xf32>
    %110 = vector.extract_strided_slice %105 {offsets = [1, 0], sizes = [98, 32], strides = [1, 1]} : vector<114x32xf32> to vector<98x32xf32>
    %111 = vector.extract_strided_slice %0 {offsets = [0, 1], sizes = [98, 1], strides = [1, 1]} : vector<98x9xf32> to vector<98x1xf32>
    %112 = vector.broadcast %111 : vector<98x1xf32> to vector<98x32xf32>
    %113 = arith.mulf %110, %112 : vector<98x32xf32>
    %114 = vector.extract_strided_slice %105 {offsets = [2, 0], sizes = [98, 32], strides = [1, 1]} : vector<114x32xf32> to vector<98x32xf32>
    %115 = vector.extract_strided_slice %0 {offsets = [0, 2], sizes = [98, 1], strides = [1, 1]} : vector<98x9xf32> to vector<98x1xf32>
    %116 = vector.broadcast %115 : vector<98x1xf32> to vector<98x32xf32>
    %117 = arith.mulf %114, %116 : vector<98x32xf32>
    %118 = vector.extract_strided_slice %105 {offsets = [7, 0], sizes = [98, 32], strides = [1, 1]} : vector<114x32xf32> to vector<98x32xf32>
    %119 = vector.extract_strided_slice %0 {offsets = [0, 3], sizes = [98, 1], strides = [1, 1]} : vector<98x9xf32> to vector<98x1xf32>
    %120 = vector.broadcast %119 : vector<98x1xf32> to vector<98x32xf32>
    %121 = arith.mulf %118, %120 : vector<98x32xf32>
    %122 = vector.extract_strided_slice %105 {offsets = [8, 0], sizes = [98, 32], strides = [1, 1]} : vector<114x32xf32> to vector<98x32xf32>
    %123 = vector.extract_strided_slice %0 {offsets = [0, 4], sizes = [98, 1], strides = [1, 1]} : vector<98x9xf32> to vector<98x1xf32>
    %124 = vector.broadcast %123 : vector<98x1xf32> to vector<98x32xf32>
    %125 = arith.mulf %122, %124 : vector<98x32xf32>
    %126 = vector.extract_strided_slice %105 {offsets = [9, 0], sizes = [98, 32], strides = [1, 1]} : vector<114x32xf32> to vector<98x32xf32>
    %127 = vector.extract_strided_slice %0 {offsets = [0, 5], sizes = [98, 1], strides = [1, 1]} : vector<98x9xf32> to vector<98x1xf32>
    %128 = vector.broadcast %127 : vector<98x1xf32> to vector<98x32xf32>
    %129 = arith.mulf %126, %128 : vector<98x32xf32>
    %130 = vector.extract_strided_slice %105 {offsets = [14, 0], sizes = [98, 32], strides = [1, 1]} : vector<114x32xf32> to vector<98x32xf32>
    %131 = vector.extract_strided_slice %0 {offsets = [0, 6], sizes = [98, 1], strides = [1, 1]} : vector<98x9xf32> to vector<98x1xf32>
    %132 = vector.broadcast %131 : vector<98x1xf32> to vector<98x32xf32>
    %133 = arith.mulf %130, %132 : vector<98x32xf32>
    %134 = vector.extract_strided_slice %105 {offsets = [15, 0], sizes = [98, 32], strides = [1, 1]} : vector<114x32xf32> to vector<98x32xf32>
    %135 = vector.extract_strided_slice %0 {offsets = [0, 7], sizes = [98, 1], strides = [1, 1]} : vector<98x9xf32> to vector<98x1xf32>
    %136 = vector.broadcast %135 : vector<98x1xf32> to vector<98x32xf32>
    %137 = arith.mulf %134, %136 : vector<98x32xf32>
    %138 = vector.extract_strided_slice %105 {offsets = [16, 0], sizes = [98, 32], strides = [1, 1]} : vector<114x32xf32> to vector<98x32xf32>
    %139 = vector.extract_strided_slice %0 {offsets = [0, 8], sizes = [98, 1], strides = [1, 1]} : vector<98x9xf32> to vector<98x1xf32>
    %140 = vector.broadcast %139 : vector<98x1xf32> to vector<98x32xf32>
    %141 = arith.mulf %138, %140 : vector<98x32xf32>
    %142 = tpu.concatenate %109, %113, %117, %121, %125, %129, %133, %137, %141 in 1 : vector<98x32xf32>, vector<98x32xf32>, vector<98x32xf32>, vector<98x32xf32>, vector<98x32xf32>, vector<98x32xf32>, vector<98x32xf32>, vector<98x32xf32>, vector<98x32xf32> -> vector<98x288xf32>
    %c0_19 = arith.constant 0 : index
    %c0_20 = arith.constant 0 : index
    %143 = vector.load %arg6[%c0_19, %c0_20] : memref<288x32xbf16, #tpu.memory_space<vmem>>, vector<288x32xbf16>
    %144 = arith.truncf %142 : vector<98x288xf32> to vector<98x288xbf16>
    %cst_21 = arith.constant dense<0.000000e+00> : vector<98x32xf32>
    %145 = tpu.matmul %144, %143, %cst_21 {dimension_numbers = #tpu.dot_dimension_numbers<[1], [0], [0], [1], [0, 0, 1, 1], [], []>} : vector<98x288xbf16>, vector<288x32xbf16>, vector<98x32xf32> -> vector<98x32xf32>
    %c0_22 = arith.constant 0 : index
    %c0_23 = arith.constant 0 : index
    %146 = vector.load %arg7[%c0_22, %c0_23] : memref<1x32xf32, #tpu.memory_space<vmem>>, vector<1x32xf32>
    %147 = vector.broadcast %146 : vector<1x32xf32> to vector<98x32xf32>
    %148 = arith.addf %145, %147 : vector<98x32xf32>
    %cst_24 = arith.constant 0.000000e+00 : f32
    %149 = vector.broadcast %cst_24 : f32 to vector<98x32xf32>
    %150 = arith.cmpf ogt, %148, %149 : vector<98x32xf32>
    %151 = math.exp %148 : vector<98x32xf32>
    %cst_25 = arith.constant 1.000000e+00 : f32
    %152 = vector.broadcast %cst_25 : f32 to vector<98x32xf32>
    %153 = arith.subf %151, %152 : vector<98x32xf32>
    %154 = arith.select %150, %148, %153 : vector<98x32xi1>, vector<98x32xf32>
    %c0_26 = arith.constant 0 : index
    %c0_27 = arith.constant 0 : index
    %155 = vector.load %arg8[%c0_26, %c0_27] : memref<98x49xf32, #tpu.memory_space<vmem>>, vector<98x49xf32>
    %156 = vector.extract_strided_slice %155 {offsets = [0, 0], sizes = [98, 1], strides = [1, 1]} : vector<98x49xf32> to vector<98x1xf32>
    %157 = vector.broadcast %156 : vector<98x1xf32> to vector<98x32xf32>
    %158 = arith.mulf %154, %157 : vector<98x32xf32>
    %159 = vector.extract_strided_slice %155 {offsets = [0, 1], sizes = [98, 1], strides = [1, 1]} : vector<98x49xf32> to vector<98x1xf32>
    %160 = vector.broadcast %159 : vector<98x1xf32> to vector<98x32xf32>
    %161 = arith.mulf %154, %160 : vector<98x32xf32>
    %162 = vector.extract_strided_slice %155 {offsets = [0, 2], sizes = [98, 1], strides = [1, 1]} : vector<98x49xf32> to vector<98x1xf32>
    %163 = vector.broadcast %162 : vector<98x1xf32> to vector<98x32xf32>
    %164 = arith.mulf %154, %163 : vector<98x32xf32>
    %165 = vector.extract_strided_slice %155 {offsets = [0, 3], sizes = [98, 1], strides = [1, 1]} : vector<98x49xf32> to vector<98x1xf32>
    %166 = vector.broadcast %165 : vector<98x1xf32> to vector<98x32xf32>
    %167 = arith.mulf %154, %166 : vector<98x32xf32>
    %168 = vector.extract_strided_slice %155 {offsets = [0, 4], sizes = [98, 1], strides = [1, 1]} : vector<98x49xf32> to vector<98x1xf32>
    %169 = vector.broadcast %168 : vector<98x1xf32> to vector<98x32xf32>
    %170 = arith.mulf %154, %169 : vector<98x32xf32>
    %171 = vector.extract_strided_slice %155 {offsets = [0, 5], sizes = [98, 1], strides = [1, 1]} : vector<98x49xf32> to vector<98x1xf32>
    %172 = vector.broadcast %171 : vector<98x1xf32> to vector<98x32xf32>
    %173 = arith.mulf %154, %172 : vector<98x32xf32>
    %174 = vector.extract_strided_slice %155 {offsets = [0, 6], sizes = [98, 1], strides = [1, 1]} : vector<98x49xf32> to vector<98x1xf32>
    %175 = vector.broadcast %174 : vector<98x1xf32> to vector<98x32xf32>
    %176 = arith.mulf %154, %175 : vector<98x32xf32>
    %177 = vector.extract_strided_slice %155 {offsets = [0, 7], sizes = [98, 1], strides = [1, 1]} : vector<98x49xf32> to vector<98x1xf32>
    %178 = vector.broadcast %177 : vector<98x1xf32> to vector<98x32xf32>
    %179 = arith.mulf %154, %178 : vector<98x32xf32>
    %180 = vector.extract_strided_slice %155 {offsets = [0, 8], sizes = [98, 1], strides = [1, 1]} : vector<98x49xf32> to vector<98x1xf32>
    %181 = vector.broadcast %180 : vector<98x1xf32> to vector<98x32xf32>
    %182 = arith.mulf %154, %181 : vector<98x32xf32>
    %183 = vector.extract_strided_slice %155 {offsets = [0, 9], sizes = [98, 1], strides = [1, 1]} : vector<98x49xf32> to vector<98x1xf32>
    %184 = vector.broadcast %183 : vector<98x1xf32> to vector<98x32xf32>
    %185 = arith.mulf %154, %184 : vector<98x32xf32>
    %186 = vector.extract_strided_slice %155 {offsets = [0, 10], sizes = [98, 1], strides = [1, 1]} : vector<98x49xf32> to vector<98x1xf32>
    %187 = vector.broadcast %186 : vector<98x1xf32> to vector<98x32xf32>
    %188 = arith.mulf %154, %187 : vector<98x32xf32>
    %189 = vector.extract_strided_slice %155 {offsets = [0, 11], sizes = [98, 1], strides = [1, 1]} : vector<98x49xf32> to vector<98x1xf32>
    %190 = vector.broadcast %189 : vector<98x1xf32> to vector<98x32xf32>
    %191 = arith.mulf %154, %190 : vector<98x32xf32>
    %192 = vector.extract_strided_slice %155 {offsets = [0, 12], sizes = [98, 1], strides = [1, 1]} : vector<98x49xf32> to vector<98x1xf32>
    %193 = vector.broadcast %192 : vector<98x1xf32> to vector<98x32xf32>
    %194 = arith.mulf %154, %193 : vector<98x32xf32>
    %195 = vector.extract_strided_slice %155 {offsets = [0, 13], sizes = [98, 1], strides = [1, 1]} : vector<98x49xf32> to vector<98x1xf32>
    %196 = vector.broadcast %195 : vector<98x1xf32> to vector<98x32xf32>
    %197 = arith.mulf %154, %196 : vector<98x32xf32>
    %198 = vector.extract_strided_slice %155 {offsets = [0, 14], sizes = [98, 1], strides = [1, 1]} : vector<98x49xf32> to vector<98x1xf32>
    %199 = vector.broadcast %198 : vector<98x1xf32> to vector<98x32xf32>
    %200 = arith.mulf %154, %199 : vector<98x32xf32>
    %201 = vector.extract_strided_slice %155 {offsets = [0, 15], sizes = [98, 1], strides = [1, 1]} : vector<98x49xf32> to vector<98x1xf32>
    %202 = vector.broadcast %201 : vector<98x1xf32> to vector<98x32xf32>
    %203 = arith.mulf %154, %202 : vector<98x32xf32>
    %204 = vector.extract_strided_slice %155 {offsets = [0, 16], sizes = [98, 1], strides = [1, 1]} : vector<98x49xf32> to vector<98x1xf32>
    %205 = vector.broadcast %204 : vector<98x1xf32> to vector<98x32xf32>
    %206 = arith.mulf %154, %205 : vector<98x32xf32>
    %207 = vector.extract_strided_slice %155 {offsets = [0, 17], sizes = [98, 1], strides = [1, 1]} : vector<98x49xf32> to vector<98x1xf32>
    %208 = vector.broadcast %207 : vector<98x1xf32> to vector<98x32xf32>
    %209 = arith.mulf %154, %208 : vector<98x32xf32>
    %210 = vector.extract_strided_slice %155 {offsets = [0, 18], sizes = [98, 1], strides = [1, 1]} : vector<98x49xf32> to vector<98x1xf32>
    %211 = vector.broadcast %210 : vector<98x1xf32> to vector<98x32xf32>
    %212 = arith.mulf %154, %211 : vector<98x32xf32>
    %213 = vector.extract_strided_slice %155 {offsets = [0, 19], sizes = [98, 1], strides = [1, 1]} : vector<98x49xf32> to vector<98x1xf32>
    %214 = vector.broadcast %213 : vector<98x1xf32> to vector<98x32xf32>
    %215 = arith.mulf %154, %214 : vector<98x32xf32>
    %216 = vector.extract_strided_slice %155 {offsets = [0, 20], sizes = [98, 1], strides = [1, 1]} : vector<98x49xf32> to vector<98x1xf32>
    %217 = vector.broadcast %216 : vector<98x1xf32> to vector<98x32xf32>
    %218 = arith.mulf %154, %217 : vector<98x32xf32>
    %219 = vector.extract_strided_slice %155 {offsets = [0, 21], sizes = [98, 1], strides = [1, 1]} : vector<98x49xf32> to vector<98x1xf32>
    %220 = vector.broadcast %219 : vector<98x1xf32> to vector<98x32xf32>
    %221 = arith.mulf %154, %220 : vector<98x32xf32>
    %222 = vector.extract_strided_slice %155 {offsets = [0, 22], sizes = [98, 1], strides = [1, 1]} : vector<98x49xf32> to vector<98x1xf32>
    %223 = vector.broadcast %222 : vector<98x1xf32> to vector<98x32xf32>
    %224 = arith.mulf %154, %223 : vector<98x32xf32>
    %225 = vector.extract_strided_slice %155 {offsets = [0, 23], sizes = [98, 1], strides = [1, 1]} : vector<98x49xf32> to vector<98x1xf32>
    %226 = vector.broadcast %225 : vector<98x1xf32> to vector<98x32xf32>
    %227 = arith.mulf %154, %226 : vector<98x32xf32>
    %228 = vector.extract_strided_slice %155 {offsets = [0, 24], sizes = [98, 1], strides = [1, 1]} : vector<98x49xf32> to vector<98x1xf32>
    %229 = vector.broadcast %228 : vector<98x1xf32> to vector<98x32xf32>
    %230 = arith.mulf %154, %229 : vector<98x32xf32>
    %231 = vector.extract_strided_slice %155 {offsets = [0, 25], sizes = [98, 1], strides = [1, 1]} : vector<98x49xf32> to vector<98x1xf32>
    %232 = vector.broadcast %231 : vector<98x1xf32> to vector<98x32xf32>
    %233 = arith.mulf %154, %232 : vector<98x32xf32>
    %234 = vector.extract_strided_slice %155 {offsets = [0, 26], sizes = [98, 1], strides = [1, 1]} : vector<98x49xf32> to vector<98x1xf32>
    %235 = vector.broadcast %234 : vector<98x1xf32> to vector<98x32xf32>
    %236 = arith.mulf %154, %235 : vector<98x32xf32>
    %237 = vector.extract_strided_slice %155 {offsets = [0, 27], sizes = [98, 1], strides = [1, 1]} : vector<98x49xf32> to vector<98x1xf32>
    %238 = vector.broadcast %237 : vector<98x1xf32> to vector<98x32xf32>
    %239 = arith.mulf %154, %238 : vector<98x32xf32>
    %240 = vector.extract_strided_slice %155 {offsets = [0, 28], sizes = [98, 1], strides = [1, 1]} : vector<98x49xf32> to vector<98x1xf32>
    %241 = vector.broadcast %240 : vector<98x1xf32> to vector<98x32xf32>
    %242 = arith.mulf %154, %241 : vector<98x32xf32>
    %243 = vector.extract_strided_slice %155 {offsets = [0, 29], sizes = [98, 1], strides = [1, 1]} : vector<98x49xf32> to vector<98x1xf32>
    %244 = vector.broadcast %243 : vector<98x1xf32> to vector<98x32xf32>
    %245 = arith.mulf %154, %244 : vector<98x32xf32>
    %246 = vector.extract_strided_slice %155 {offsets = [0, 30], sizes = [98, 1], strides = [1, 1]} : vector<98x49xf32> to vector<98x1xf32>
    %247 = vector.broadcast %246 : vector<98x1xf32> to vector<98x32xf32>
    %248 = arith.mulf %154, %247 : vector<98x32xf32>
    %249 = vector.extract_strided_slice %155 {offsets = [0, 31], sizes = [98, 1], strides = [1, 1]} : vector<98x49xf32> to vector<98x1xf32>
    %250 = vector.broadcast %249 : vector<98x1xf32> to vector<98x32xf32>
    %251 = arith.mulf %154, %250 : vector<98x32xf32>
    %252 = vector.extract_strided_slice %155 {offsets = [0, 32], sizes = [98, 1], strides = [1, 1]} : vector<98x49xf32> to vector<98x1xf32>
    %253 = vector.broadcast %252 : vector<98x1xf32> to vector<98x32xf32>
    %254 = arith.mulf %154, %253 : vector<98x32xf32>
    %255 = vector.extract_strided_slice %155 {offsets = [0, 33], sizes = [98, 1], strides = [1, 1]} : vector<98x49xf32> to vector<98x1xf32>
    %256 = vector.broadcast %255 : vector<98x1xf32> to vector<98x32xf32>
    %257 = arith.mulf %154, %256 : vector<98x32xf32>
    %258 = vector.extract_strided_slice %155 {offsets = [0, 34], sizes = [98, 1], strides = [1, 1]} : vector<98x49xf32> to vector<98x1xf32>
    %259 = vector.broadcast %258 : vector<98x1xf32> to vector<98x32xf32>
    %260 = arith.mulf %154, %259 : vector<98x32xf32>
    %261 = vector.extract_strided_slice %155 {offsets = [0, 35], sizes = [98, 1], strides = [1, 1]} : vector<98x49xf32> to vector<98x1xf32>
    %262 = vector.broadcast %261 : vector<98x1xf32> to vector<98x32xf32>
    %263 = arith.mulf %154, %262 : vector<98x32xf32>
    %264 = vector.extract_strided_slice %155 {offsets = [0, 36], sizes = [98, 1], strides = [1, 1]} : vector<98x49xf32> to vector<98x1xf32>
    %265 = vector.broadcast %264 : vector<98x1xf32> to vector<98x32xf32>
    %266 = arith.mulf %154, %265 : vector<98x32xf32>
    %267 = vector.extract_strided_slice %155 {offsets = [0, 37], sizes = [98, 1], strides = [1, 1]} : vector<98x49xf32> to vector<98x1xf32>
    %268 = vector.broadcast %267 : vector<98x1xf32> to vector<98x32xf32>
    %269 = arith.mulf %154, %268 : vector<98x32xf32>
    %270 = vector.extract_strided_slice %155 {offsets = [0, 38], sizes = [98, 1], strides = [1, 1]} : vector<98x49xf32> to vector<98x1xf32>
    %271 = vector.broadcast %270 : vector<98x1xf32> to vector<98x32xf32>
    %272 = arith.mulf %154, %271 : vector<98x32xf32>
    %273 = vector.extract_strided_slice %155 {offsets = [0, 39], sizes = [98, 1], strides = [1, 1]} : vector<98x49xf32> to vector<98x1xf32>
    %274 = vector.broadcast %273 : vector<98x1xf32> to vector<98x32xf32>
    %275 = arith.mulf %154, %274 : vector<98x32xf32>
    %276 = vector.extract_strided_slice %155 {offsets = [0, 40], sizes = [98, 1], strides = [1, 1]} : vector<98x49xf32> to vector<98x1xf32>
    %277 = vector.broadcast %276 : vector<98x1xf32> to vector<98x32xf32>
    %278 = arith.mulf %154, %277 : vector<98x32xf32>
    %279 = vector.extract_strided_slice %155 {offsets = [0, 41], sizes = [98, 1], strides = [1, 1]} : vector<98x49xf32> to vector<98x1xf32>
    %280 = vector.broadcast %279 : vector<98x1xf32> to vector<98x32xf32>
    %281 = arith.mulf %154, %280 : vector<98x32xf32>
    %282 = vector.extract_strided_slice %155 {offsets = [0, 42], sizes = [98, 1], strides = [1, 1]} : vector<98x49xf32> to vector<98x1xf32>
    %283 = vector.broadcast %282 : vector<98x1xf32> to vector<98x32xf32>
    %284 = arith.mulf %154, %283 : vector<98x32xf32>
    %285 = vector.extract_strided_slice %155 {offsets = [0, 43], sizes = [98, 1], strides = [1, 1]} : vector<98x49xf32> to vector<98x1xf32>
    %286 = vector.broadcast %285 : vector<98x1xf32> to vector<98x32xf32>
    %287 = arith.mulf %154, %286 : vector<98x32xf32>
    %288 = vector.extract_strided_slice %155 {offsets = [0, 44], sizes = [98, 1], strides = [1, 1]} : vector<98x49xf32> to vector<98x1xf32>
    %289 = vector.broadcast %288 : vector<98x1xf32> to vector<98x32xf32>
    %290 = arith.mulf %154, %289 : vector<98x32xf32>
    %291 = vector.extract_strided_slice %155 {offsets = [0, 45], sizes = [98, 1], strides = [1, 1]} : vector<98x49xf32> to vector<98x1xf32>
    %292 = vector.broadcast %291 : vector<98x1xf32> to vector<98x32xf32>
    %293 = arith.mulf %154, %292 : vector<98x32xf32>
    %294 = vector.extract_strided_slice %155 {offsets = [0, 46], sizes = [98, 1], strides = [1, 1]} : vector<98x49xf32> to vector<98x1xf32>
    %295 = vector.broadcast %294 : vector<98x1xf32> to vector<98x32xf32>
    %296 = arith.mulf %154, %295 : vector<98x32xf32>
    %297 = vector.extract_strided_slice %155 {offsets = [0, 47], sizes = [98, 1], strides = [1, 1]} : vector<98x49xf32> to vector<98x1xf32>
    %298 = vector.broadcast %297 : vector<98x1xf32> to vector<98x32xf32>
    %299 = arith.mulf %154, %298 : vector<98x32xf32>
    %300 = vector.extract_strided_slice %155 {offsets = [0, 48], sizes = [98, 1], strides = [1, 1]} : vector<98x49xf32> to vector<98x1xf32>
    %301 = vector.broadcast %300 : vector<98x1xf32> to vector<98x32xf32>
    %302 = arith.mulf %154, %301 : vector<98x32xf32>
    %303 = tpu.concatenate %158, %161, %164, %167, %170, %173, %176, %179, %182, %185, %188, %191, %194, %197, %200, %203 in 1 : vector<98x32xf32>, vector<98x32xf32>, vector<98x32xf32>, vector<98x32xf32>, vector<98x32xf32>, vector<98x32xf32>, vector<98x32xf32>, vector<98x32xf32>, vector<98x32xf32>, vector<98x32xf32>, vector<98x32xf32>, vector<98x32xf32>, vector<98x32xf32>, vector<98x32xf32>, vector<98x32xf32>, vector<98x32xf32> -> vector<98x512xf32>
    %304 = tpu.concatenate %206, %209, %212, %215, %218, %221, %224, %227, %230, %233, %236, %239, %242, %245, %248, %251 in 1 : vector<98x32xf32>, vector<98x32xf32>, vector<98x32xf32>, vector<98x32xf32>, vector<98x32xf32>, vector<98x32xf32>, vector<98x32xf32>, vector<98x32xf32>, vector<98x32xf32>, vector<98x32xf32>, vector<98x32xf32>, vector<98x32xf32>, vector<98x32xf32>, vector<98x32xf32>, vector<98x32xf32>, vector<98x32xf32> -> vector<98x512xf32>
    %305 = tpu.concatenate %254, %257, %260, %263, %266, %269, %272, %275, %278, %281, %284, %287, %290, %293, %296, %299 in 1 : vector<98x32xf32>, vector<98x32xf32>, vector<98x32xf32>, vector<98x32xf32>, vector<98x32xf32>, vector<98x32xf32>, vector<98x32xf32>, vector<98x32xf32>, vector<98x32xf32>, vector<98x32xf32>, vector<98x32xf32>, vector<98x32xf32>, vector<98x32xf32>, vector<98x32xf32>, vector<98x32xf32>, vector<98x32xf32> -> vector<98x512xf32>
    %306 = tpu.concatenate %303, %304, %305, %302 in 1 : vector<98x512xf32>, vector<98x512xf32>, vector<98x512xf32>, vector<98x32xf32> -> vector<98x1568xf32>
    %c0_28 = arith.constant 0 : index
    %c0_29 = arith.constant 0 : index
    %307 = vector.load %arg10[%c0_28, %c0_29] : memref<1568x96xbf16, #tpu.memory_space<vmem>>, vector<1568x96xbf16>
    %308 = arith.truncf %306 : vector<98x1568xf32> to vector<98x1568xbf16>
    %cst_30 = arith.constant dense<0.000000e+00> : vector<98x96xf32>
    %309 = tpu.matmul %308, %307, %cst_30 {dimension_numbers = #tpu.dot_dimension_numbers<[1], [0], [0], [1], [0, 0, 1, 1], [], []>} : vector<98x1568xbf16>, vector<1568x96xbf16>, vector<98x96xf32> -> vector<98x96xf32>
    %c0_31 = arith.constant 0 : index
    %c0_32 = arith.constant 0 : index
    %310 = vector.load %arg9[%c0_31, %c0_32] : memref<2x98xf32, #tpu.memory_space<vmem>>, vector<2x98xf32>
    %cst_33 = arith.constant dense<0.000000e+00> : vector<2x96xf32>
    %311 = tpu.matmul %310, %309, %cst_33 {dimension_numbers = #tpu.dot_dimension_numbers<[1], [0], [0], [1], [0, 0, 1, 1], [], []>} : vector<2x98xf32>, vector<98x96xf32>, vector<2x96xf32> -> vector<2x96xf32>
    %c0_34 = arith.constant 0 : index
    %c0_35 = arith.constant 0 : index
    %312 = vector.load %arg11[%c0_34, %c0_35] : memref<1x96xf32, #tpu.memory_space<vmem>>, vector<1x96xf32>
    %313 = vector.broadcast %312 : vector<1x96xf32> to vector<2x96xf32>
    %314 = arith.addf %311, %313 : vector<2x96xf32>
    %c0_36 = arith.constant 0 : index
    %c0_37 = arith.constant 0 : index
    %315 = vector.load %arg14[%c0_36, %c0_37] : memref<2x32xf32, #tpu.memory_space<vmem>>, vector<2x32xf32>
    %c0_38 = arith.constant 0 : index
    %c0_39 = arith.constant 0 : index
    %316 = vector.load %arg12[%c0_38, %c0_39] : memref<32x96xbf16, #tpu.memory_space<vmem>>, vector<32x96xbf16>
    %317 = arith.truncf %315 : vector<2x32xf32> to vector<2x32xbf16>
    %cst_40 = arith.constant dense<0.000000e+00> : vector<2x96xf32>
    %318 = tpu.matmul %317, %316, %cst_40 {dimension_numbers = #tpu.dot_dimension_numbers<[1], [0], [0], [1], [0, 0, 1, 1], [], []>} : vector<2x32xbf16>, vector<32x96xbf16>, vector<2x96xf32> -> vector<2x96xf32>
    %c0_41 = arith.constant 0 : index
    %c0_42 = arith.constant 0 : index
    %319 = vector.load %arg13[%c0_41, %c0_42] : memref<1x96xf32, #tpu.memory_space<vmem>>, vector<1x96xf32>
    %320 = vector.broadcast %319 : vector<1x96xf32> to vector<2x96xf32>
    %321 = arith.addf %318, %320 : vector<2x96xf32>
    %322 = vector.extract_strided_slice %314 {offsets = [0, 0], sizes = [2, 32], strides = [1, 1]} : vector<2x96xf32> to vector<2x32xf32>
    %323 = vector.extract_strided_slice %321 {offsets = [0, 0], sizes = [2, 32], strides = [1, 1]} : vector<2x96xf32> to vector<2x32xf32>
    %324 = arith.addf %322, %323 : vector<2x32xf32>
    %cst_43 = arith.constant 0.000000e+00 : f32
    %325 = vector.broadcast %cst_43 : f32 to vector<2x32xf32>
    %326 = arith.subf %325, %324 : vector<2x32xf32>
    %327 = math.exp %326 : vector<2x32xf32>
    %cst_44 = arith.constant 1.000000e+00 : f32
    %328 = vector.broadcast %cst_44 : f32 to vector<2x32xf32>
    %329 = arith.addf %328, %327 : vector<2x32xf32>
    %cst_45 = arith.constant 1.000000e+00 : f32
    %330 = vector.broadcast %cst_45 : f32 to vector<2x32xf32>
    %331 = arith.divf %330, %329 : vector<2x32xf32>
    %332 = vector.extract_strided_slice %314 {offsets = [0, 32], sizes = [2, 32], strides = [1, 1]} : vector<2x96xf32> to vector<2x32xf32>
    %333 = vector.extract_strided_slice %321 {offsets = [0, 32], sizes = [2, 32], strides = [1, 1]} : vector<2x96xf32> to vector<2x32xf32>
    %334 = arith.addf %332, %333 : vector<2x32xf32>
    %cst_46 = arith.constant 0.000000e+00 : f32
    %335 = vector.broadcast %cst_46 : f32 to vector<2x32xf32>
    %336 = arith.subf %335, %334 : vector<2x32xf32>
    %337 = math.exp %336 : vector<2x32xf32>
    %cst_47 = arith.constant 1.000000e+00 : f32
    %338 = vector.broadcast %cst_47 : f32 to vector<2x32xf32>
    %339 = arith.addf %338, %337 : vector<2x32xf32>
    %cst_48 = arith.constant 1.000000e+00 : f32
    %340 = vector.broadcast %cst_48 : f32 to vector<2x32xf32>
    %341 = arith.divf %340, %339 : vector<2x32xf32>
    %342 = vector.extract_strided_slice %314 {offsets = [0, 64], sizes = [2, 32], strides = [1, 1]} : vector<2x96xf32> to vector<2x32xf32>
    %343 = vector.extract_strided_slice %321 {offsets = [0, 64], sizes = [2, 32], strides = [1, 1]} : vector<2x96xf32> to vector<2x32xf32>
    %344 = arith.mulf %331, %343 : vector<2x32xf32>
    %345 = arith.addf %342, %344 : vector<2x32xf32>
    %346 = math.tanh %345 : vector<2x32xf32>
    %cst_49 = arith.constant 1.000000e+00 : f32
    %347 = vector.broadcast %cst_49 : f32 to vector<2x32xf32>
    %348 = arith.subf %347, %341 : vector<2x32xf32>
    %349 = arith.mulf %348, %346 : vector<2x32xf32>
    %350 = arith.mulf %341, %315 : vector<2x32xf32>
    %351 = arith.addf %349, %350 : vector<2x32xf32>
    %c0_50 = arith.constant 0 : index
    %c0_51 = arith.constant 0 : index
    %352 = vector.load %arg15[%c0_50, %c0_51] : memref<32x6xbf16, #tpu.memory_space<vmem>>, vector<32x6xbf16>
    %353 = arith.truncf %351 : vector<2x32xf32> to vector<2x32xbf16>
    %cst_52 = arith.constant dense<0.000000e+00> : vector<2x6xf32>
    %354 = tpu.matmul %353, %352, %cst_52 {dimension_numbers = #tpu.dot_dimension_numbers<[1], [0], [0], [1], [0, 0, 1, 1], [], []>} : vector<2x32xbf16>, vector<32x6xbf16>, vector<2x6xf32> -> vector<2x6xf32>
    %c0_53 = arith.constant 0 : index
    %c0_54 = arith.constant 0 : index
    %355 = vector.load %arg16[%c0_53, %c0_54] : memref<1x6xf32, #tpu.memory_space<vmem>>, vector<1x6xf32>
    %356 = vector.broadcast %355 : vector<1x6xf32> to vector<2x6xf32>
    %357 = arith.addf %354, %356 : vector<2x6xf32>
    %358 = tpu.concatenate %357, %351 in 1 : vector<2x6xf32>, vector<2x32xf32> -> vector<2x38xf32>
    %cst_55 = arith.constant 0.000000e+00 : f32
    %359 = vector.broadcast %cst_55 : f32 to vector<2x90xf32>
    %360 = tpu.concatenate %358, %359 in 1 : vector<2x38xf32>, vector<2x90xf32> -> vector<2x128xf32>
    %c0_56 = arith.constant 0 : index
    %c0_57 = arith.constant 0 : index
    %361 = vector.load %arg17[%c0_56, %c0_57] : memref<2x128xf32, #tpu.memory_space<vmem>>, vector<2x128xf32>
    tpu.vector_store %arg17[%c0_56, %c0_57], %360 {strides = array<i32>} : memref<2x128xf32, #tpu.memory_space<vmem>>, vector<2x128xf32>,
    return
  }
}

</mosaic_0001>

<llo_original>
// kernel: tpu_custom_call.1
$region0: #{tpu_custom_call.1}
  #allocation0 [shape = 'u32[]', space=smem, size = 0x4, offset = 0x4, fixed_abs, tag = 'smem constant byte address 0x4 - core index']
  #allocation1 [shape = 'u32[144,128]{1,0:T(1,128)}', space=vmem, size = 0x12000, scoped, tag = 'internal scratch']
  %s0 = inlined_call_operand.vmem [shape: f32[98,4], index: 0, kind: input, shape index: {}]
  %s1 = inlined_call_operand.vmem [shape: f32[98,9], index: 1, kind: input, shape index: {}]
  %s2 = inlined_call_operand.vmem [shape: bf16[36,32], index: 2, kind: input, shape index: {}]
  %s3 = inlined_call_operand.vmem [shape: f32[1,32], index: 3, kind: input, shape index: {}]
  %s4 = inlined_call_operand.vmem [shape: bf16[288,32], index: 4, kind: input, shape index: {}]
  %s5 = inlined_call_operand.vmem [shape: f32[1,32], index: 5, kind: input, shape index: {}]
  %s6 = inlined_call_operand.vmem [shape: bf16[288,32], index: 6, kind: input, shape index: {}]
  %s7 = inlined_call_operand.vmem [shape: f32[1,32], index: 7, kind: input, shape index: {}]
  %s8 = inlined_call_operand.vmem [shape: f32[98,49], index: 8, kind: input, shape index: {}]
  %s9 = inlined_call_operand.vmem [shape: f32[2,98], index: 9, kind: input, shape index: {}]
  %s10 = inlined_call_operand.vmem [shape: bf16[1568,96], index: 10, kind: input, shape index: {}]
  %s11 = inlined_call_operand.vmem [shape: f32[1,96], index: 11, kind: input, shape index: {}]
  %s12 = inlined_call_operand.vmem [shape: bf16[32,96], index: 12, kind: input, shape index: {}]
  %s13 = inlined_call_operand.vmem [shape: f32[1,96], index: 13, kind: input, shape index: {}]
  %s14 = inlined_call_operand.vmem [shape: f32[2,32], index: 14, kind: input, shape index: {}]
  %s15 = inlined_call_operand.vmem [shape: bf16[32,6], index: 15, kind: input, shape index: {}]
  %s16 = inlined_call_operand.vmem [shape: f32[1,6], index: 16, kind: input, shape index: {}]
  %s17 = inlined_call_operand.hbm [shape: f32[2,128], index: 17, kind: output, shape index: {}]
  %s18 = sld [smem:[#allocation0]]
  $region78: #{tpu_custom_call.1} parent=0
    _
  %s20 = ssub.s32 1, %s18
  %s21 = scalar_select 0, %s20, %s18
  $region1: #{tpu_custom_call.1} parent=0
    #allocation2 [shape = 'u8[1024]{0}', space=vmem, size = 0x400, scoped, tag = 'output window, operand 0, single buffered']
    #allocation3 [shape = 's32[1]{0}', space=sflag, size = 0x4, scoped, tag = 'scoped memory for tpu_custom_call.1']
    %22 = vsyncpa [#allocation3], 0
    // Predicated region
    $region2: #{tpu_custom_call.1} parent=1 // pred_check
      _
    $region3: #{tpu_custom_call.1} parent=1 // pred_check_branch
      %24 = sbr.rel (0) target = $region5
    $region4: #{tpu_custom_call.1} parent=1 // pred_region
      _
    $region5: #{tpu_custom_call.1} parent=1 // pred_fallthru
      _
    // Predicated region
    $region6: #{tpu_custom_call.1} parent=1 // pred_check
      _
    $region7: #{tpu_custom_call.1} parent=1 // pred_check_branch
      %26 = sbr.rel (0) target = $region9
    $region8: #{tpu_custom_call.1} parent=1 // pred_region
      _
    $region9: #{tpu_custom_call.1} parent=1 // pred_fallthru
      _
    // Predicated region
    $region10: #{tpu_custom_call.1} parent=1 // pred_check
      _
    $region11: #{tpu_custom_call.1} parent=1 // pred_check_branch
      %28 = sbr.rel (0) target = $region13
    $region12: #{tpu_custom_call.1} parent=1 // pred_region
      _
    $region13: #{tpu_custom_call.1} parent=1 // pred_fallthru
      _
    // Predicated region
    $region14: #{tpu_custom_call.1} parent=1 // pred_check
      _
    $region15: #{tpu_custom_call.1} parent=1 // pred_check_branch
      %30 = sbr.rel (0) target = $region17
    $region16: #{tpu_custom_call.1} parent=1 // pred_region
      _
    $region17: #{tpu_custom_call.1} parent=1 // pred_fallthru
      _
    // Predicated region
    $region18: #{tpu_custom_call.1} parent=1 // pred_check
      _
    $region19: #{tpu_custom_call.1} parent=1 // pred_check_branch
      %32 = sbr.rel (0) target = $region21
    $region20: #{tpu_custom_call.1} parent=1 // pred_region
      _
    $region21: #{tpu_custom_call.1} parent=1 // pred_fallthru
      _
    // Predicated region
    $region22: #{tpu_custom_call.1} parent=1 // pred_check
      _
    $region23: #{tpu_custom_call.1} parent=1 // pred_check_branch
      %34 = sbr.rel (0) target = $region25
    $region24: #{tpu_custom_call.1} parent=1 // pred_region
      _
    $region25: #{tpu_custom_call.1} parent=1 // pred_fallthru
      _
    // Predicated region
    $region26: #{tpu_custom_call.1} parent=1 // pred_check
      _
    $region27: #{tpu_custom_call.1} parent=1 // pred_check_branch
      %36 = sbr.rel (0) target = $region29
    $region28: #{tpu_custom_call.1} parent=1 // pred_region
      _
    $region29: #{tpu_custom_call.1} parent=1 // pred_fallthru
      _
    // Predicated region
    $region30: #{tpu_custom_call.1} parent=1 // pred_check
      _
    $region31: #{tpu_custom_call.1} parent=1 // pred_check_branch
      %38 = sbr.rel (0) target = $region33
    $region32: #{tpu_custom_call.1} parent=1 // pred_region
      _
    $region33: #{tpu_custom_call.1} parent=1 // pred_fallthru
      _
    // Predicated region
    $region34: #{tpu_custom_call.1} parent=1 // pred_check
      _
    $region35: #{tpu_custom_call.1} parent=1 // pred_check_branch
      %40 = sbr.rel (0) target = $region37
    $region36: #{tpu_custom_call.1} parent=1 // pred_region
      _
    $region37: #{tpu_custom_call.1} parent=1 // pred_fallthru
      _
    // Predicated region
    $region38: #{tpu_custom_call.1} parent=1 // pred_check
      _
    $region39: #{tpu_custom_call.1} parent=1 // pred_check_branch
      %42 = sbr.rel (0) target = $region41
    $region40: #{tpu_custom_call.1} parent=1 // pred_region
      _
    $region41: #{tpu_custom_call.1} parent=1 // pred_fallthru
      _
    // Predicated region
    $region42: #{tpu_custom_call.1} parent=1 // pred_check
      _
    $region43: #{tpu_custom_call.1} parent=1 // pred_check_branch
      %44 = sbr.rel (0) target = $region45
    $region44: #{tpu_custom_call.1} parent=1 // pred_region
      _
    $region45: #{tpu_custom_call.1} parent=1 // pred_fallthru
      _
    // Predicated region
    $region46: #{tpu_custom_call.1} parent=1 // pred_check
      _
    $region47: #{tpu_custom_call.1} parent=1 // pred_check_branch
      %46 = sbr.rel (0) target = $region49
    $region48: #{tpu_custom_call.1} parent=1 // pred_region
      _
    $region49: #{tpu_custom_call.1} parent=1 // pred_fallthru
      _
    // Predicated region
    $region50: #{tpu_custom_call.1} parent=1 // pred_check
      _
    $region51: #{tpu_custom_call.1} parent=1 // pred_check_branch
      %48 = sbr.rel (0) target = $region53
    $region52: #{tpu_custom_call.1} parent=1 // pred_region
      _
    $region53: #{tpu_custom_call.1} parent=1 // pred_fallthru
      _
    // Predicated region
    $region54: #{tpu_custom_call.1} parent=1 // pred_check
      _
    $region55: #{tpu_custom_call.1} parent=1 // pred_check_branch
      %50 = sbr.rel (0) target = $region57
    $region56: #{tpu_custom_call.1} parent=1 // pred_region
      _
    $region57: #{tpu_custom_call.1} parent=1 // pred_fallthru
      _
    // Predicated region
    $region58: #{tpu_custom_call.1} parent=1 // pred_check
      _
    $region59: #{tpu_custom_call.1} parent=1 // pred_check_branch
      %52 = sbr.rel (0) target = $region61
    $region60: #{tpu_custom_call.1} parent=1 // pred_region
      _
    $region61: #{tpu_custom_call.1} parent=1 // pred_fallthru
      _
    // Predicated region
    $region62: #{tpu_custom_call.1} parent=1 // pred_check
      _
    $region63: #{tpu_custom_call.1} parent=1 // pred_check_branch
      %54 = sbr.rel (0) target = $region65
    $region64: #{tpu_custom_call.1} parent=1 // pred_region
      _
    $region65: #{tpu_custom_call.1} parent=1 // pred_fallthru
      _
    // Predicated region
    $region66: #{tpu_custom_call.1} parent=1 // pred_check
      _
    $region67: #{tpu_custom_call.1} parent=1 // pred_check_branch
      %56 = sbr.rel (0) target = $region69
    $region68: #{tpu_custom_call.1} parent=1 // pred_region
      _
    $region69: #{tpu_custom_call.1} parent=1 // pred_fallthru
      _
    %v58 = vld [vmem:[%s1] sm:$0xff]
    %v59 = vld [vmem:[%s1 + $0x8] sm:$0xff]
    %v60 = vld [vmem:[%s1 + $0x10] sm:$0xff]
    %v61 = vld [vmem:[%s1 + $0x18] sm:$0xff]
    %v62 = vld [vmem:[%s1 + $0x20] sm:$0xff]
    %v63 = vld [vmem:[%s1 + $0x28] sm:$0xff]
    %v64 = vld [vmem:[%s1 + $0x30] sm:$0xff]
    %v65 = vld [vmem:[%s1 + $0x38] sm:$0xff]
    %v66 = vld [vmem:[%s1 + $0x40] sm:$0xff]
    %v67 = vld [vmem:[%s1 + $0x48] sm:$0xff]
    %v68 = vld [vmem:[%s1 + $0x50] sm:$0xff]
    %v69 = vld [vmem:[%s1 + $0x58] sm:$0xff]
    %v70 = vld [vmem:[%s1 + $0x60] sm:$0x3]
    %v71 = vld [vmem:[%s0] sm:$0xff]
    %v72 = vld [vmem:[%s0 + $0x8] sm:$0xff]
    %v73 = vld [vmem:[%s0 + $0x10] sm:$0xff]
    %v74 = vld [vmem:[%s0 + $0x18] sm:$0xff]
    %v75 = vld [vmem:[%s0 + $0x20] sm:$0xff]
    %v76 = vld [vmem:[%s0 + $0x28] sm:$0xff]
    %v77 = vld [vmem:[%s0 + $0x30] sm:$0xff]
    %v78 = vld [vmem:[%s0 + $0x38] sm:$0xff]
    %v79 = vld [vmem:[%s0 + $0x40] sm:$0xff]
    %v80 = vld [vmem:[%s0 + $0x48] sm:$0xff]
    %v81 = vld [vmem:[%s0 + $0x50] sm:$0xff]
    %v82 = vld [vmem:[%s0 + $0x58] sm:$0xff]
    %v83 = vld [vmem:[%s0 + $0x60] sm:$0x3]
    %vm84 = vcmask 1041408
    %v85 = vsel %vm84, %v83, 0.0
    %87 = vset.pattern.permute.xlu0 0
    %88 = vperm.xlu0 %87, %v58
    %v89 = vpop.permute.xlu0 %88
    %92 = vset.pattern.permute.xlu0 0
    %93 = vperm.xlu0 %92, %v59
    %v94 = vpop.permute.xlu0 %93
    %97 = vset.pattern.permute.xlu0 0
    %98 = vperm.xlu0 %97, %v60
    %v99 = vpop.permute.xlu0 %98
    %102 = vset.pattern.permute.xlu0 0
    %103 = vperm.xlu0 %102, %v61
    %v104 = vpop.permute.xlu0 %103
    %107 = vset.pattern.permute.xlu0 0
    %108 = vperm.xlu0 %107, %v62
    %v109 = vpop.permute.xlu0 %108
    %112 = vset.pattern.permute.xlu0 0
    %113 = vperm.xlu0 %112, %v63
    %v114 = vpop.permute.xlu0 %113
    %117 = vset.pattern.permute.xlu0 0
    %118 = vperm.xlu0 %117, %v64
    %v119 = vpop.permute.xlu0 %118
    %122 = vset.pattern.permute.xlu0 0
    %123 = vperm.xlu0 %122, %v65
    %v124 = vpop.permute.xlu0 %123
    %127 = vset.pattern.permute.xlu0 0
    %128 = vperm.xlu0 %127, %v66
    %v129 = vpop.permute.xlu0 %128
    %132 = vset.pattern.permute.xlu0 0
    %133 = vperm.xlu0 %132, %v67
    %v134 = vpop.permute.xlu0 %133
    %137 = vset.pattern.permute.xlu0 0
    %138 = vperm.xlu0 %137, %v68
    %v139 = vpop.permute.xlu0 %138
    %142 = vset.pattern.permute.xlu0 0
    %143 = vperm.xlu0 %142, %v69
    %v144 = vpop.permute.xlu0 %143
    %147 = vset.pattern.permute.xlu0 0
    %148 = vperm.xlu0 %147, %v70
    %v149 = vpop.permute.xlu0 %148
    %v151 = vmul.f32 %v89, 0.0
    %v152 = vmul.f32 %v71, %v94
    %v153 = vmul.f32 %v72, %v99
    %v154 = vmul.f32 %v73, %v104
    %v155 = vmul.f32 %v74, %v109
    %v156 = vmul.f32 %v75, %v114
    %v157 = vmul.f32 %v76, %v119
    %v158 = vmul.f32 %v77, %v124
    %v159 = vmul.f32 %v78, %v129
    %v160 = vmul.f32 %v79, %v134
    %v161 = vmul.f32 %v80, %v139
    %v162 = vmul.f32 %v81, %v144
    %v163 = vmul.f32 %v82, %v149
    %164 = vset.pattern.permute.xlu0 1
    %165 = vperm.xlu0 %164, %v58
    %v166 = vpop.permute.xlu0 %165
    %167 = vset.pattern.permute.xlu0 1
    %168 = vperm.xlu0 %167, %v59
    %v169 = vpop.permute.xlu0 %168
    %170 = vset.pattern.permute.xlu0 1
    %171 = vperm.xlu0 %170, %v60
    %v172 = vpop.permute.xlu0 %171
    %173 = vset.pattern.permute.xlu0 1
    %174 = vperm.xlu0 %173, %v61
    %v175 = vpop.permute.xlu0 %174
    %176 = vset.pattern.permute.xlu0 1
    %177 = vperm.xlu0 %176, %v62
    %v178 = vpop.permute.xlu0 %177
    %179 = vset.pattern.permute.xlu0 1
    %180 = vperm.xlu0 %179, %v63
    %v181 = vpop.permute.xlu0 %180
    %182 = vset.pattern.permute.xlu0 1
    %183 = vperm.xlu0 %182, %v64
    %v184 = vpop.permute.xlu0 %183
    %185 = vset.pattern.permute.xlu0 1
    %186 = vperm.xlu0 %185, %v65
    %v187 = vpop.permute.xlu0 %186
    %188 = vset.pattern.permute.xlu0 1
    %189 = vperm.xlu0 %188, %v66
    %v190 = vpop.permute.xlu0 %189
    %191 = vset.pattern.permute.xlu0 1
    %192 = vperm.xlu0 %191, %v67
    %v193 = vpop.permute.xlu0 %192
    %194 = vset.pattern.permute.xlu0 1
    %195 = vperm.xlu0 %194, %v68
    %v196 = vpop.permute.xlu0 %195
    %197 = vset.pattern.permute.xlu0 1
    %198 = vperm.xlu0 %197, %v69
    %v199 = vpop.permute.xlu0 %198
    %200 = vset.pattern.permute.xlu0 1
    %201 = vperm.xlu0 %200, %v70
    %v202 = vpop.permute.xlu0 %201
    %vm203 = vcmask 1040384
    %v204 = vrot.slane %v166, 7
    %v205 = vrot.slane %v169, 7
    %v206 = vsel %vm203, %v204, %v205
    %v207 = vrot.slane %v172, 7
    %v208 = vsel %vm203, %v205, %v207
    %v209 = vrot.slane %v175, 7
    %v210 = vsel %vm203, %v207, %v209
    %v211 = vrot.slane %v178, 7
    %v212 = vsel %vm203, %v209, %v211
    %v213 = vrot.slane %v181, 7
    %v214 = vsel %vm203, %v211, %v213
    %v215 = vrot.slane %v184, 7
    %v216 = vsel %vm203, %v213, %v215
    %v217 = vrot.slane %v187, 7
    %v218 = vsel %vm203, %v215, %v217
    %v219 = vrot.slane %v190, 7
    %v220 = vsel %vm203, %v217, %v219
    %v221 = vrot.slane %v193, 7
    %v222 = vsel %vm203, %v219, %v221
    %v223 = vrot.slane %v196, 7
    %v224 = vsel %vm203, %v221, %v223
    %v225 = vrot.slane %v199, 7
    %v226 = vsel %vm203, %v223, %v225
    %v227 = vrot.slane %v202, 7
    %v228 = vsel %vm203, %v225, %v227
    %v242 = vmul.f32 %v204, 0.0
    %v243 = vmul.f32 %v71, %v206
    %v244 = vmul.f32 %v72, %v208
    %v245 = vmul.f32 %v73, %v210
    %v246 = vmul.f32 %v74, %v212
    %v247 = vmul.f32 %v75, %v214
    %v248 = vmul.f32 %v76, %v216
    %v249 = vmul.f32 %v77, %v218
    %v250 = vmul.f32 %v78, %v220
    %v251 = vmul.f32 %v79, %v222
    %v252 = vmul.f32 %v80, %v224
    %v253 = vmul.f32 %v81, %v226
    %v254 = vmul.f32 %v82, %v228
    %255 = vset.pattern.permute.xlu0 2
    %256 = vperm.xlu0 %255, %v58
    %v257 = vpop.permute.xlu0 %256
    %258 = vset.pattern.permute.xlu0 2
    %259 = vperm.xlu0 %258, %v59
    %v260 = vpop.permute.xlu0 %259
    %261 = vset.pattern.permute.xlu0 2
    %262 = vperm.xlu0 %261, %v60
    %v263 = vpop.permute.xlu0 %262
    %264 = vset.pattern.permute.xlu0 2
    %265 = vperm.xlu0 %264, %v61
    %v266 = vpop.permute.xlu0 %265
    %267 = vset.pattern.permute.xlu0 2
    %268 = vperm.xlu0 %267, %v62
    %v269 = vpop.permute.xlu0 %268
    %270 = vset.pattern.permute.xlu0 2
    %271 = vperm.xlu0 %270, %v63
    %v272 = vpop.permute.xlu0 %271
    %273 = vset.pattern.permute.xlu0 2
    %274 = vperm.xlu0 %273, %v64
    %v275 = vpop.permute.xlu0 %274
    %276 = vset.pattern.permute.xlu0 2
    %277 = vperm.xlu0 %276, %v65
    %v278 = vpop.permute.xlu0 %277
    %279 = vset.pattern.permute.xlu0 2
    %280 = vperm.xlu0 %279, %v66
    %v281 = vpop.permute.xlu0 %280
    %282 = vset.pattern.permute.xlu0 2
    %283 = vperm.xlu0 %282, %v67
    %v284 = vpop.permute.xlu0 %283
    %285 = vset.pattern.permute.xlu0 2
    %286 = vperm.xlu0 %285, %v68
    %v287 = vpop.permute.xlu0 %286
    %288 = vset.pattern.permute.xlu0 2
    %289 = vperm.xlu0 %288, %v69
    %v290 = vpop.permute.xlu0 %289
    %291 = vset.pattern.permute.xlu0 2
    %292 = vperm.xlu0 %291, %v70
    %v293 = vpop.permute.xlu0 %292
    %v294 = vrot.slane %v257, 6
    %v295 = vrot.slane %v260, 6
    %v296 = vsel %vm84, %v294, %v295
    %v297 = vrot.slane %v263, 6
    %v298 = vsel %vm84, %v295, %v297
    %v299 = vrot.slane %v266, 6
    %v300 = vsel %vm84, %v297, %v299
    %v301 = vrot.slane %v269, 6
    %v302 = vsel %vm84, %v299, %v301
    %v303 = vrot.slane %v272, 6
    %v304 = vsel %vm84, %v301, %v303
    %v305 = vrot.slane %v275, 6
    %v306 = vsel %vm84, %v303, %v305
    %v307 = vrot.slane %v278, 6
    %v308 = vsel %vm84, %v305, %v307
    %v309 = vrot.slane %v281, 6
    %v310 = vsel %vm84, %v307, %v309
    %v311 = vrot.slane %v284, 6
    %v312 = vsel %vm84, %v309, %v311
    %v313 = vrot.slane %v287, 6
    %v314 = vsel %vm84, %v311, %v313
    %v315 = vrot.slane %v290, 6
    %v316 = vsel %vm84, %v313, %v315
    %v317 = vrot.slane %v293, 6
    %v318 = vsel %vm84, %v315, %v317
    %v332 = vmul.f32 %v294, 0.0
    %v333 = vmul.f32 %v71, %v296
    %v334 = vmul.f32 %v72, %v298
    %v335 = vmul.f32 %v73, %v300
    %v336 = vmul.f32 %v74, %v302
    %v337 = vmul.f32 %v75, %v304
    %v338 = vmul.f32 %v76, %v306
    %v339 = vmul.f32 %v77, %v308
    %v340 = vmul.f32 %v78, %v310
    %v341 = vmul.f32 %v79, %v312
    %v342 = vmul.f32 %v80, %v314
    %v343 = vmul.f32 %v81, %v316
    %v344 = vmul.f32 %v82, %v318
    %345 = vset.pattern.permute.xlu0 3
    %346 = vperm.xlu0 %345, %v58
    %v347 = vpop.permute.xlu0 %346
    %348 = vset.pattern.permute.xlu0 3
    %349 = vperm.xlu0 %348, %v59
    %v350 = vpop.permute.xlu0 %349
    %351 = vset.pattern.permute.xlu0 3
    %352 = vperm.xlu0 %351, %v60
    %v353 = vpop.permute.xlu0 %352
    %354 = vset.pattern.permute.xlu0 3
    %355 = vperm.xlu0 %354, %v61
    %v356 = vpop.permute.xlu0 %355
    %357 = vset.pattern.permute.xlu0 3
    %358 = vperm.xlu0 %357, %v62
    %v359 = vpop.permute.xlu0 %358
    %360 = vset.pattern.permute.xlu0 3
    %361 = vperm.xlu0 %360, %v63
    %v362 = vpop.permute.xlu0 %361
    %363 = vset.pattern.permute.xlu0 3
    %364 = vperm.xlu0 %363, %v64
    %v365 = vpop.permute.xlu0 %364
    %366 = vset.pattern.permute.xlu0 3
    %367 = vperm.xlu0 %366, %v65
    %v368 = vpop.permute.xlu0 %367
    %369 = vset.pattern.permute.xlu0 3
    %370 = vperm.xlu0 %369, %v66
    %v371 = vpop.permute.xlu0 %370
    %372 = vset.pattern.permute.xlu0 3
    %373 = vperm.xlu0 %372, %v67
    %v374 = vpop.permute.xlu0 %373
    %375 = vset.pattern.permute.xlu0 3
    %376 = vperm.xlu0 %375, %v68
    %v377 = vpop.permute.xlu0 %376
    %378 = vset.pattern.permute.xlu0 3
    %379 = vperm.xlu0 %378, %v69
    %v380 = vpop.permute.xlu0 %379
    %381 = vset.pattern.permute.xlu0 3
    %382 = vperm.xlu0 %381, %v70
    %v383 = vpop.permute.xlu0 %382
    %vm384 = vcmask 1046528
    %v385 = vrot.slane %v347, 1
    %v386 = vrot.slane %v350, 1
    %v387 = vsel %vm384, %v385, %v386
    %v388 = vrot.slane %v353, 1
    %v389 = vsel %vm384, %v386, %v388
    %v390 = vrot.slane %v356, 1
    %v391 = vsel %vm384, %v388, %v390
    %v392 = vrot.slane %v359, 1
    %v393 = vsel %vm384, %v390, %v392
    %v394 = vrot.slane %v362, 1
    %v395 = vsel %vm384, %v392, %v394
    %v396 = vrot.slane %v365, 1
    %v397 = vsel %vm384, %v394, %v396
    %v398 = vrot.slane %v368, 1
    %v399 = vsel %vm384, %v396, %v398
    %v400 = vrot.slane %v371, 1
    %v401 = vsel %vm384, %v398, %v400
    %v402 = vrot.slane %v374, 1
    %v403 = vsel %vm384, %v400, %v402
    %v404 = vrot.slane %v377, 1
    %v405 = vsel %vm384, %v402, %v404
    %v406 = vrot.slane %v380, 1
    %v407 = vsel %vm384, %v404, %v406
    %v408 = vrot.slane %v383, 1
    %v409 = vsel %vm384, %v406, %v408
    %v424 = vmul.f32 %v385, 0.0
    %v425 = vmul.f32 %v71, %v387
    %v426 = vmul.f32 %v72, %v389
    %v427 = vmul.f32 %v73, %v391
    %v428 = vmul.f32 %v74, %v393
    %v429 = vmul.f32 %v75, %v395
    %v430 = vmul.f32 %v76, %v397
    %v431 = vmul.f32 %v77, %v399
    %v432 = vmul.f32 %v78, %v401
    %v433 = vmul.f32 %v79, %v403
    %v434 = vmul.f32 %v80, %v405
    %v435 = vmul.f32 %v81, %v407
    %v436 = vmul.f32 %v82, %v409
    %v437 = vmul.f32 %v85, %v408
    %438 = vset.pattern.permute.xlu0 4
    %439 = vperm.xlu0 %438, %v58
    %v440 = vpop.permute.xlu0 %439
    %442 = vset.pattern.permute.xlu0 4
    %443 = vperm.xlu0 %442, %v59
    %v444 = vpop.permute.xlu0 %443
    %446 = vset.pattern.permute.xlu0 4
    %447 = vperm.xlu0 %446, %v60
    %v448 = vpop.permute.xlu0 %447
    %450 = vset.pattern.permute.xlu0 4
    %451 = vperm.xlu0 %450, %v61
    %v452 = vpop.permute.xlu0 %451
    %454 = vset.pattern.permute.xlu0 4
    %455 = vperm.xlu0 %454, %v62
    %v456 = vpop.permute.xlu0 %455
    %458 = vset.pattern.permute.xlu0 4
    %459 = vperm.xlu0 %458, %v63
    %v460 = vpop.permute.xlu0 %459
    %462 = vset.pattern.permute.xlu0 4
    %463 = vperm.xlu0 %462, %v64
    %v464 = vpop.permute.xlu0 %463
    %466 = vset.pattern.permute.xlu0 4
    %467 = vperm.xlu0 %466, %v65
    %v468 = vpop.permute.xlu0 %467
    %470 = vset.pattern.permute.xlu0 4
    %471 = vperm.xlu0 %470, %v66
    %v472 = vpop.permute.xlu0 %471
    %474 = vset.pattern.permute.xlu0 4
    %475 = vperm.xlu0 %474, %v67
    %v476 = vpop.permute.xlu0 %475
    %478 = vset.pattern.permute.xlu0 4
    %479 = vperm.xlu0 %478, %v68
    %v480 = vpop.permute.xlu0 %479
    %482 = vset.pattern.permute.xlu0 4
    %483 = vperm.xlu0 %482, %v69
    %v484 = vpop.permute.xlu0 %483
    %486 = vset.pattern.permute.xlu0 4
    %487 = vperm.xlu0 %486, %v70
    %v488 = vpop.permute.xlu0 %487
    %v490 = vmul.f32 %v71, %v440
    %v491 = vmul.f32 %v72, %v444
    %v492 = vmul.f32 %v73, %v448
    %v493 = vmul.f32 %v74, %v452
    %v494 = vmul.f32 %v75, %v456
    %v495 = vmul.f32 %v76, %v460
    %v496 = vmul.f32 %v77, %v464
    %v497 = vmul.f32 %v78, %v468
    %v498 = vmul.f32 %v79, %v472
    %v499 = vmul.f32 %v80, %v476
    %v500 = vmul.f32 %v81, %v480
    %v501 = vmul.f32 %v82, %v484
    %v502 = vmul.f32 %v85, %v488
    %503 = vset.pattern.permute.xlu0 5
    %504 = vperm.xlu0 %503, %v58
    %v505 = vpop.permute.xlu0 %504
    %506 = vset.pattern.permute.xlu0 5
    %507 = vperm.xlu0 %506, %v59
    %v508 = vpop.permute.xlu0 %507
    %509 = vset.pattern.permute.xlu0 5
    %510 = vperm.xlu0 %509, %v60
    %v511 = vpop.permute.xlu0 %510
    %512 = vset.pattern.permute.xlu0 5
    %513 = vperm.xlu0 %512, %v61
    %v514 = vpop.permute.xlu0 %513
    %515 = vset.pattern.permute.xlu0 5
    %516 = vperm.xlu0 %515, %v62
    %v517 = vpop.permute.xlu0 %516
    %518 = vset.pattern.permute.xlu0 5
    %519 = vperm.xlu0 %518, %v63
    %v520 = vpop.permute.xlu0 %519
    %521 = vset.pattern.permute.xlu0 5
    %522 = vperm.xlu0 %521, %v64
    %v523 = vpop.permute.xlu0 %522
    %524 = vset.pattern.permute.xlu0 5
    %525 = vperm.xlu0 %524, %v65
    %v526 = vpop.permute.xlu0 %525
    %527 = vset.pattern.permute.xlu0 5
    %528 = vperm.xlu0 %527, %v66
    %v529 = vpop.permute.xlu0 %528
    %530 = vset.pattern.permute.xlu0 5
    %531 = vperm.xlu0 %530, %v67
    %v532 = vpop.permute.xlu0 %531
    %533 = vset.pattern.permute.xlu0 5
    %534 = vperm.xlu0 %533, %v68
    %v535 = vpop.permute.xlu0 %534
    %536 = vset.pattern.permute.xlu0 5
    %537 = vperm.xlu0 %536, %v69
    %v538 = vpop.permute.xlu0 %537
    %539 = vset.pattern.permute.xlu0 5
    %540 = vperm.xlu0 %539, %v70
    %v541 = vpop.permute.xlu0 %540
    %v542 = vrot.slane %v505, 7
    %v543 = vrot.slane %v508, 7
    %v544 = vsel %vm203, %v542, %v543
    %v545 = vrot.slane %v511, 7
    %v546 = vsel %vm203, %v543, %v545
    %v547 = vrot.slane %v514, 7
    %v548 = vsel %vm203, %v545, %v547
    %v549 = vrot.slane %v517, 7
    %v550 = vsel %vm203, %v547, %v549
    %v551 = vrot.slane %v520, 7
    %v552 = vsel %vm203, %v549, %v551
    %v553 = vrot.slane %v523, 7
    %v554 = vsel %vm203, %v551, %v553
    %v555 = vrot.slane %v526, 7
    %v556 = vsel %vm203, %v553, %v555
    %v557 = vrot.slane %v529, 7
    %v558 = vsel %vm203, %v555, %v557
    %v559 = vrot.slane %v532, 7
    %v560 = vsel %vm203, %v557, %v559
    %v561 = vrot.slane %v535, 7
    %v562 = vsel %vm203, %v559, %v561
    %v563 = vrot.slane %v538, 7
    %v564 = vsel %vm203, %v561, %v563
    %v565 = vrot.slane %v541, 7
    %v566 = vsel %vm203, %v563, %v565
    %v580 = vmul.f32 %v71, %v542
    %v581 = vmul.f32 %v72, %v544
    %v582 = vmul.f32 %v73, %v546
    %v583 = vmul.f32 %v74, %v548
    %v584 = vmul.f32 %v75, %v550
    %v585 = vmul.f32 %v76, %v552
    %v586 = vmul.f32 %v77, %v554
    %v587 = vmul.f32 %v78, %v556
    %v588 = vmul.f32 %v79, %v558
    %v589 = vmul.f32 %v80, %v560
    %v590 = vmul.f32 %v81, %v562
    %v591 = vmul.f32 %v82, %v564
    %v592 = vmul.f32 %v85, %v566
    %593 = vset.pattern.permute.xlu0 6
    %594 = vperm.xlu0 %593, %v58
    %v595 = vpop.permute.xlu0 %594
    %596 = vset.pattern.permute.xlu0 6
    %597 = vperm.xlu0 %596, %v59
    %v598 = vpop.permute.xlu0 %597
    %599 = vset.pattern.permute.xlu0 6
    %600 = vperm.xlu0 %599, %v60
    %v601 = vpop.permute.xlu0 %600
    %602 = vset.pattern.permute.xlu0 6
    %603 = vperm.xlu0 %602, %v61
    %v604 = vpop.permute.xlu0 %603
    %605 = vset.pattern.permute.xlu0 6
    %606 = vperm.xlu0 %605, %v62
    %v607 = vpop.permute.xlu0 %606
    %608 = vset.pattern.permute.xlu0 6
    %609 = vperm.xlu0 %608, %v63
    %v610 = vpop.permute.xlu0 %609
    %611 = vset.pattern.permute.xlu0 6
    %612 = vperm.xlu0 %611, %v64
    %v613 = vpop.permute.xlu0 %612
    %614 = vset.pattern.permute.xlu0 6
    %615 = vperm.xlu0 %614, %v65
    %v616 = vpop.permute.xlu0 %615
    %617 = vset.pattern.permute.xlu0 6
    %618 = vperm.xlu0 %617, %v66
    %v619 = vpop.permute.xlu0 %618
    %620 = vset.pattern.permute.xlu0 6
    %621 = vperm.xlu0 %620, %v67
    %v622 = vpop.permute.xlu0 %621
    %623 = vset.pattern.permute.xlu0 6
    %624 = vperm.xlu0 %623, %v68
    %v625 = vpop.permute.xlu0 %624
    %626 = vset.pattern.permute.xlu0 6
    %627 = vperm.xlu0 %626, %v69
    %v628 = vpop.permute.xlu0 %627
    %629 = vset.pattern.permute.xlu0 6
    %630 = vperm.xlu0 %629, %v70
    %v631 = vpop.permute.xlu0 %630
    %vm632 = vcmask 1045504
    %v633 = vrot.slane %v595, 2
    %v634 = vrot.slane %v598, 2
    %v635 = vsel %vm632, %v633, %v634
    %v636 = vrot.slane %v601, 2
    %v637 = vsel %vm632, %v634, %v636
    %v638 = vrot.slane %v604, 2
    %v639 = vsel %vm632, %v636, %v638
    %v640 = vrot.slane %v607, 2
    %v641 = vsel %vm632, %v638, %v640
    %v642 = vrot.slane %v610, 2
    %v643 = vsel %vm632, %v640, %v642
    %v644 = vrot.slane %v613, 2
    %v645 = vsel %vm632, %v642, %v644
    %v646 = vrot.slane %v616, 2
    %v647 = vsel %vm632, %v644, %v646
    %v648 = vrot.slane %v619, 2
    %v649 = vsel %vm632, %v646, %v648
    %v650 = vrot.slane %v622, 2
    %v651 = vsel %vm632, %v648, %v650
    %v652 = vrot.slane %v625, 2
    %v653 = vsel %vm632, %v650, %v652
    %v654 = vrot.slane %v628, 2
    %v655 = vsel %vm632, %v652, %v654
    %v656 = vrot.slane %v631, 2
    %v657 = vsel %vm632, %v654, %v656
    %v671 = vmul.f32 %v71, %v633
    %v672 = vmul.f32 %v72, %v635
    %v673 = vmul.f32 %v73, %v637
    %v674 = vmul.f32 %v74, %v639
    %v675 = vmul.f32 %v75, %v641
    %v676 = vmul.f32 %v76, %v643
    %v677 = vmul.f32 %v77, %v645
    %v678 = vmul.f32 %v78, %v647
    %v679 = vmul.f32 %v79, %v649
    %v680 = vmul.f32 %v80, %v651
    %v681 = vmul.f32 %v81, %v653
    %v682 = vmul.f32 %v82, %v655
    %v683 = vmul.f32 %v85, %v657
    %684 = vset.pattern.permute.xlu0 7
    %685 = vperm.xlu0 %684, %v58
    %v686 = vpop.permute.xlu0 %685
    %687 = vset.pattern.permute.xlu0 7
    %688 = vperm.xlu0 %687, %v59
    %v689 = vpop.permute.xlu0 %688
    %690 = vset.pattern.permute.xlu0 7
    %691 = vperm.xlu0 %690, %v60
    %v692 = vpop.permute.xlu0 %691
    %693 = vset.pattern.permute.xlu0 7
    %694 = vperm.xlu0 %693, %v61
    %v695 = vpop.permute.xlu0 %694
    %696 = vset.pattern.permute.xlu0 7
    %697 = vperm.xlu0 %696, %v62
    %v698 = vpop.permute.xlu0 %697
    %699 = vset.pattern.permute.xlu0 7
    %700 = vperm.xlu0 %699, %v63
    %v701 = vpop.permute.xlu0 %700
    %702 = vset.pattern.permute.xlu0 7
    %703 = vperm.xlu0 %702, %v64
    %v704 = vpop.permute.xlu0 %703
    %705 = vset.pattern.permute.xlu0 7
    %706 = vperm.xlu0 %705, %v65
    %v707 = vpop.permute.xlu0 %706
    %708 = vset.pattern.permute.xlu0 7
    %709 = vperm.xlu0 %708, %v66
    %v710 = vpop.permute.xlu0 %709
    %711 = vset.pattern.permute.xlu0 7
    %712 = vperm.xlu0 %711, %v67
    %v713 = vpop.permute.xlu0 %712
    %714 = vset.pattern.permute.xlu0 7
    %715 = vperm.xlu0 %714, %v68
    %v716 = vpop.permute.xlu0 %715
    %717 = vset.pattern.permute.xlu0 7
    %718 = vperm.xlu0 %717, %v69
    %v719 = vpop.permute.xlu0 %718
    %720 = vset.pattern.permute.xlu0 7
    %721 = vperm.xlu0 %720, %v70
    %v722 = vpop.permute.xlu0 %721
    %v723 = vrot.slane %v686, 1
    %v724 = vrot.slane %v689, 1
    %v725 = vsel %vm384, %v723, %v724
    %v726 = vrot.slane %v692, 1
    %v727 = vsel %vm384, %v724, %v726
    %v728 = vrot.slane %v695, 1
    %v729 = vsel %vm384, %v726, %v728
    %v730 = vrot.slane %v698, 1
    %v731 = vsel %vm384, %v728, %v730
    %v732 = vrot.slane %v701, 1
    %v733 = vsel %vm384, %v730, %v732
    %v734 = vrot.slane %v704, 1
    %v735 = vsel %vm384, %v732, %v734
    %v736 = vrot.slane %v707, 1
    %v737 = vsel %vm384, %v734, %v736
    %v738 = vrot.slane %v710, 1
    %v739 = vsel %vm384, %v736, %v738
    %v740 = vrot.slane %v713, 1
    %v741 = vsel %vm384, %v738, %v740
    %v742 = vrot.slane %v716, 1
    %v743 = vsel %vm384, %v740, %v742
    %v744 = vrot.slane %v719, 1
    %v745 = vsel %vm384, %v742, %v744
    %v746 = vrot.slane %v722, 1
    %v747 = vsel %vm384, %v744, %v746
    %v762 = vmul.f32 %v71, %v723
    %v763 = vmul.f32 %v72, %v725
    %v764 = vmul.f32 %v73, %v727
    %v765 = vmul.f32 %v74, %v729
    %v766 = vmul.f32 %v75, %v731
    %v767 = vmul.f32 %v76, %v733
    %v768 = vmul.f32 %v77, %v735
    %v769 = vmul.f32 %v78, %v737
    %v770 = vmul.f32 %v79, %v739
    %v771 = vmul.f32 %v80, %v741
    %v772 = vmul.f32 %v81, %v743
    %v773 = vmul.f32 %v82, %v745
    %v774 = vmul.f32 %v85, %v747
    %v775 = vmul.f32 %v746, 0.0
    %776 = vset.pattern.permute.xlu0 8
    %777 = vperm.xlu0 %776, %v58
    %v778 = vpop.permute.xlu0 %777
    %780 = vset.pattern.permute.xlu0 8
    %781 = vperm.xlu0 %780, %v59
    %v782 = vpop.permute.xlu0 %781
    %784 = vset.pattern.permute.xlu0 8
    %785 = vperm.xlu0 %784, %v60
    %v786 = vpop.permute.xlu0 %785
    %788 = vset.pattern.permute.xlu0 8
    %789 = vperm.xlu0 %788, %v61
    %v790 = vpop.permute.xlu0 %789
    %792 = vset.pattern.permute.xlu0 8
    %793 = vperm.xlu0 %792, %v62
    %v794 = vpop.permute.xlu0 %793
    %796 = vset.pattern.permute.xlu0 8
    %797 = vperm.xlu0 %796, %v63
    %v798 = vpop.permute.xlu0 %797
    %800 = vset.pattern.permute.xlu0 8
    %801 = vperm.xlu0 %800, %v64
    %v802 = vpop.permute.xlu0 %801
    %804 = vset.pattern.permute.xlu0 8
    %805 = vperm.xlu0 %804, %v65
    %v806 = vpop.permute.xlu0 %805
    %808 = vset.pattern.permute.xlu0 8
    %809 = vperm.xlu0 %808, %v66
    %v810 = vpop.permute.xlu0 %809
    %812 = vset.pattern.permute.xlu0 8
    %813 = vperm.xlu0 %812, %v67
    %v814 = vpop.permute.xlu0 %813
    %816 = vset.pattern.permute.xlu0 8
    %817 = vperm.xlu0 %816, %v68
    %v818 = vpop.permute.xlu0 %817
    %820 = vset.pattern.permute.xlu0 8
    %821 = vperm.xlu0 %820, %v69
    %v822 = vpop.permute.xlu0 %821
    %824 = vset.pattern.permute.xlu0 8
    %825 = vperm.xlu0 %824, %v70
    %v826 = vpop.permute.xlu0 %825
    %v828 = vmul.f32 %v72, %v778
    %v829 = vmul.f32 %v73, %v782
    %v830 = vmul.f32 %v74, %v786
    %v831 = vmul.f32 %v75, %v790
    %v832 = vmul.f32 %v76, %v794
    %v833 = vmul.f32 %v77, %v798
    %v834 = vmul.f32 %v78, %v802
    %v835 = vmul.f32 %v79, %v806
    %v836 = vmul.f32 %v80, %v810
    %v837 = vmul.f32 %v81, %v814
    %v838 = vmul.f32 %v82, %v818
    %v839 = vmul.f32 %v85, %v822
    %v840 = vmul.f32 %v826, 0.0
    %v854 = vrot.slane %v242, 1
    %v855 = vrot.slane %v243, 1
    %v856 = vsel %vm384, %v854, %v855
    %v857 = vrot.slane %v244, 1
    %v858 = vsel %vm384, %v855, %v857
    %v859 = vrot.slane %v245, 1
    %v860 = vsel %vm384, %v857, %v859
    %v861 = vrot.slane %v246, 1
    %v862 = vsel %vm384, %v859, %v861
    %v863 = vrot.slane %v247, 1
    %v864 = vsel %vm384, %v861, %v863
    %v865 = vrot.slane %v248, 1
    %v866 = vsel %vm384, %v863, %v865
    %v867 = vrot.slane %v249, 1
    %v868 = vsel %vm384, %v865, %v867
    %v869 = vrot.slane %v250, 1
    %v870 = vsel %vm384, %v867, %v869
    %v871 = vrot.slane %v251, 1
    %v872 = vsel %vm384, %v869, %v871
    %v873 = vrot.slane %v252, 1
    %v874 = vsel %vm384, %v871, %v873
    %v875 = vrot.slane %v253, 1
    %v876 = vsel %vm384, %v873, %v875
    %v877 = vrot.slane %v254, 1
    %v878 = vsel %vm384, %v875, %v877
    %879 = vrot.lane.b32.xlu0 %v856, 4
    %v880 = vpop.permute.xlu0 %879
    %881 = vrot.lane.b32.xlu0 %v858, 4
    %v882 = vpop.permute.xlu0 %881
    %883 = vrot.lane.b32.xlu0 %v860, 4
    %v884 = vpop.permute.xlu0 %883
    %885 = vrot.lane.b32.xlu0 %v862, 4
    %v886 = vpop.permute.xlu0 %885
    %887 = vrot.lane.b32.xlu0 %v864, 4
    %v888 = vpop.permute.xlu0 %887
    %889 = vrot.lane.b32.xlu0 %v866, 4
    %v890 = vpop.permute.xlu0 %889
    %891 = vrot.lane.b32.xlu0 %v868, 4
    %v892 = vpop.permute.xlu0 %891
    %893 = vrot.lane.b32.xlu0 %v870, 4
    %v894 = vpop.permute.xlu0 %893
    %895 = vrot.lane.b32.xlu0 %v872, 4
    %v896 = vpop.permute.xlu0 %895
    %897 = vrot.lane.b32.xlu0 %v874, 4
    %v898 = vpop.permute.xlu0 %897
    %899 = vrot.lane.b32.xlu0 %v876, 4
    %v900 = vpop.permute.xlu0 %899
    %901 = vrot.lane.b32.xlu0 %v878, 4
    %v902 = vpop.permute.xlu0 %901
    %903 = vrot.lane.b32.xlu0 %v877, 4
    %v904 = vpop.permute.xlu0 %903
    %v931 = vrot.slane %v332, 2
    %v932 = vrot.slane %v333, 2
    %v933 = vsel %vm632, %v931, %v932
    %v934 = vrot.slane %v334, 2
    %v935 = vsel %vm632, %v932, %v934
    %v936 = vrot.slane %v335, 2
    %v937 = vsel %vm632, %v934, %v936
    %v938 = vrot.slane %v336, 2
    %v939 = vsel %vm632, %v936, %v938
    %v940 = vrot.slane %v337, 2
    %v941 = vsel %vm632, %v938, %v940
    %v942 = vrot.slane %v338, 2
    %v943 = vsel %vm632, %v940, %v942
    %v944 = vrot.slane %v339, 2
    %v945 = vsel %vm632, %v942, %v944
    %v946 = vrot.slane %v340, 2
    %v947 = vsel %vm632, %v944, %v946
    %v948 = vrot.slane %v341, 2
    %v949 = vsel %vm632, %v946, %v948
    %v950 = vrot.slane %v342, 2
    %v951 = vsel %vm632, %v948, %v950
    %v952 = vrot.slane %v343, 2
    %v953 = vsel %vm632, %v950, %v952
    %v954 = vrot.slane %v344, 2
    %v955 = vsel %vm632, %v952, %v954
    %956 = vrot.lane.b32.xlu0 %v933, 8
    %v957 = vpop.permute.xlu0 %956
    %958 = vrot.lane.b32.xlu0 %v935, 8
    %v959 = vpop.permute.xlu0 %958
    %960 = vrot.lane.b32.xlu0 %v937, 8
    %v961 = vpop.permute.xlu0 %960
    %962 = vrot.lane.b32.xlu0 %v939, 8
    %v963 = vpop.permute.xlu0 %962
    %964 = vrot.lane.b32.xlu0 %v941, 8
    %v965 = vpop.permute.xlu0 %964
    %966 = vrot.lane.b32.xlu0 %v943, 8
    %v967 = vpop.permute.xlu0 %966
    %968 = vrot.lane.b32.xlu0 %v945, 8
    %v969 = vpop.permute.xlu0 %968
    %970 = vrot.lane.b32.xlu0 %v947, 8
    %v971 = vpop.permute.xlu0 %970
    %972 = vrot.lane.b32.xlu0 %v949, 8
    %v973 = vpop.permute.xlu0 %972
    %974 = vrot.lane.b32.xlu0 %v951, 8
    %v975 = vpop.permute.xlu0 %974
    %976 = vrot.lane.b32.xlu0 %v953, 8
    %v977 = vpop.permute.xlu0 %976
    %978 = vrot.lane.b32.xlu0 %v955, 8
    %v979 = vpop.permute.xlu0 %978
    %980 = vrot.lane.b32.xlu0 %v954, 8
    %v981 = vpop.permute.xlu0 %980
    %v1009 = vrot.slane %v424, 7
    %v1010 = vrot.slane %v425, 7
    %v1011 = vsel %vm203, %v1009, %v1010
    %v1012 = vrot.slane %v426, 7
    %v1013 = vsel %vm203, %v1010, %v1012
    %v1014 = vrot.slane %v427, 7
    %v1015 = vsel %vm203, %v1012, %v1014
    %v1016 = vrot.slane %v428, 7
    %v1017 = vsel %vm203, %v1014, %v1016
    %v1018 = vrot.slane %v429, 7
    %v1019 = vsel %vm203, %v1016, %v1018
    %v1020 = vrot.slane %v430, 7
    %v1021 = vsel %vm203, %v1018, %v1020
    %v1022 = vrot.slane %v431, 7
    %v1023 = vsel %vm203, %v1020, %v1022
    %v1024 = vrot.slane %v432, 7
    %v1025 = vsel %vm203, %v1022, %v1024
    %v1026 = vrot.slane %v433, 7
    %v1027 = vsel %vm203, %v1024, %v1026
    %v1028 = vrot.slane %v434, 7
    %v1029 = vsel %vm203, %v1026, %v1028
    %v1030 = vrot.slane %v435, 7
    %v1031 = vsel %vm203, %v1028, %v1030
    %v1032 = vrot.slane %v436, 7
    %v1033 = vsel %vm203, %v1030, %v1032
    %v1034 = vrot.slane %v437, 7
    %v1035 = vsel %vm203, %v1032, %v1034
    %1036 = vrot.lane.b32.xlu0 %v1011, 12
    %v1037 = vpop.permute.xlu0 %1036
    %1038 = vrot.lane.b32.xlu0 %v1013, 12
    %v1039 = vpop.permute.xlu0 %1038
    %1040 = vrot.lane.b32.xlu0 %v1015, 12
    %v1041 = vpop.permute.xlu0 %1040
    %1042 = vrot.lane.b32.xlu0 %v1017, 12
    %v1043 = vpop.permute.xlu0 %1042
    %1044 = vrot.lane.b32.xlu0 %v1019, 12
    %v1045 = vpop.permute.xlu0 %1044
    %1046 = vrot.lane.b32.xlu0 %v1021, 12
    %v1047 = vpop.permute.xlu0 %1046
    %1048 = vrot.lane.b32.xlu0 %v1023, 12
    %v1049 = vpop.permute.xlu0 %1048
    %1050 = vrot.lane.b32.xlu0 %v1025, 12
    %v1051 = vpop.permute.xlu0 %1050
    %1052 = vrot.lane.b32.xlu0 %v1027, 12
    %v1053 = vpop.permute.xlu0 %1052
    %1054 = vrot.lane.b32.xlu0 %v1029, 12
    %v1055 = vpop.permute.xlu0 %1054
    %1056 = vrot.lane.b32.xlu0 %v1031, 12
    %v1057 = vpop.permute.xlu0 %1056
    %1058 = vrot.lane.b32.xlu0 %v1033, 12
    %v1059 = vpop.permute.xlu0 %1058
    %1060 = vrot.lane.b32.xlu0 %v1035, 12
    %v1061 = vpop.permute.xlu0 %1060
    %1088 = vrot.lane.b32.xlu0 %v490, 16
    %v1089 = vpop.permute.xlu0 %1088
    %1090 = vrot.lane.b32.xlu0 %v491, 16
    %v1091 = vpop.permute.xlu0 %1090
    %1092 = vrot.lane.b32.xlu0 %v492, 16
    %v1093 = vpop.permute.xlu0 %1092
    %1094 = vrot.lane.b32.xlu0 %v493, 16
    %v1095 = vpop.permute.xlu0 %1094
    %1096 = vrot.lane.b32.xlu0 %v494, 16
    %v1097 = vpop.permute.xlu0 %1096
    %1098 = vrot.lane.b32.xlu0 %v495, 16
    %v1099 = vpop.permute.xlu0 %1098
    %1100 = vrot.lane.b32.xlu0 %v496, 16
    %v1101 = vpop.permute.xlu0 %1100
    %1102 = vrot.lane.b32.xlu0 %v497, 16
    %v1103 = vpop.permute.xlu0 %1102
    %1104 = vrot.lane.b32.xlu0 %v498, 16
    %v1105 = vpop.permute.xlu0 %1104
    %1106 = vrot.lane.b32.xlu0 %v499, 16
    %v1107 = vpop.permute.xlu0 %1106
    %1108 = vrot.lane.b32.xlu0 %v500, 16
    %v1109 = vpop.permute.xlu0 %1108
    %1110 = vrot.lane.b32.xlu0 %v501, 16
    %v1111 = vpop.permute.xlu0 %1110
    %1112 = vrot.lane.b32.xlu0 %v502, 16
    %v1113 = vpop.permute.xlu0 %1112
    %v1140 = vrot.slane %v580, 1
    %v1141 = vrot.slane %v581, 1
    %v1142 = vsel %vm384, %v1140, %v1141
    %v1143 = vrot.slane %v582, 1
    %v1144 = vsel %vm384, %v1141, %v1143
    %v1145 = vrot.slane %v583, 1
    %v1146 = vsel %vm384, %v1143, %v1145
    %v1147 = vrot.slane %v584, 1
    %v1148 = vsel %vm384, %v1145, %v1147
    %v1149 = vrot.slane %v585, 1
    %v1150 = vsel %vm384, %v1147, %v1149
    %v1151 = vrot.slane %v586, 1
    %v1152 = vsel %vm384, %v1149, %v1151
    %v1153 = vrot.slane %v587, 1
    %v1154 = vsel %vm384, %v1151, %v1153
    %v1155 = vrot.slane %v588, 1
    %v1156 = vsel %vm384, %v1153, %v1155
    %v1157 = vrot.slane %v589, 1
    %v1158 = vsel %vm384, %v1155, %v1157
    %v1159 = vrot.slane %v590, 1
    %v1160 = vsel %vm384, %v1157, %v1159
    %v1161 = vrot.slane %v591, 1
    %v1162 = vsel %vm384, %v1159, %v1161
    %v1163 = vrot.slane %v592, 1
    %v1164 = vsel %vm384, %v1161, %v1163
    %1165 = vrot.lane.b32.xlu0 %v1142, 20
    %v1166 = vpop.permute.xlu0 %1165
    %1167 = vrot.lane.b32.xlu0 %v1144, 20
    %v1168 = vpop.permute.xlu0 %1167
    %1169 = vrot.lane.b32.xlu0 %v1146, 20
    %v1170 = vpop.permute.xlu0 %1169
    %1171 = vrot.lane.b32.xlu0 %v1148, 20
    %v1172 = vpop.permute.xlu0 %1171
    %1173 = vrot.lane.b32.xlu0 %v1150, 20
    %v1174 = vpop.permute.xlu0 %1173
    %1175 = vrot.lane.b32.xlu0 %v1152, 20
    %v1176 = vpop.permute.xlu0 %1175
    %1177 = vrot.lane.b32.xlu0 %v1154, 20
    %v1178 = vpop.permute.xlu0 %1177
    %1179 = vrot.lane.b32.xlu0 %v1156, 20
    %v1180 = vpop.permute.xlu0 %1179
    %1181 = vrot.lane.b32.xlu0 %v1158, 20
    %v1182 = vpop.permute.xlu0 %1181
    %1183 = vrot.lane.b32.xlu0 %v1160, 20
    %v1184 = vpop.permute.xlu0 %1183
    %1185 = vrot.lane.b32.xlu0 %v1162, 20
    %v1186 = vpop.permute.xlu0 %1185
    %1187 = vrot.lane.b32.xlu0 %v1164, 20
    %v1188 = vpop.permute.xlu0 %1187
    %1189 = vrot.lane.b32.xlu0 %v1163, 20
    %v1190 = vpop.permute.xlu0 %1189
    %v1217 = vrot.slane %v671, 6
    %v1218 = vrot.slane %v672, 6
    %v1219 = vsel %vm84, %v1217, %v1218
    %v1220 = vrot.slane %v673, 6
    %v1221 = vsel %vm84, %v1218, %v1220
    %v1222 = vrot.slane %v674, 6
    %v1223 = vsel %vm84, %v1220, %v1222
    %v1224 = vrot.slane %v675, 6
    %v1225 = vsel %vm84, %v1222, %v1224
    %v1226 = vrot.slane %v676, 6
    %v1227 = vsel %vm84, %v1224, %v1226
    %v1228 = vrot.slane %v677, 6
    %v1229 = vsel %vm84, %v1226, %v1228
    %v1230 = vrot.slane %v678, 6
    %v1231 = vsel %vm84, %v1228, %v1230
    %v1232 = vrot.slane %v679, 6
    %v1233 = vsel %vm84, %v1230, %v1232
    %v1234 = vrot.slane %v680, 6
    %v1235 = vsel %vm84, %v1232, %v1234
    %v1236 = vrot.slane %v681, 6
    %v1237 = vsel %vm84, %v1234, %v1236
    %v1238 = vrot.slane %v682, 6
    %v1239 = vsel %vm84, %v1236, %v1238
    %v1240 = vrot.slane %v683, 6
    %v1241 = vsel %vm84, %v1238, %v1240
    %1242 = vrot.lane.b32.xlu0 %v1219, 24
    %v1243 = vpop.permute.xlu0 %1242
    %1244 = vrot.lane.b32.xlu0 %v1221, 24
    %v1245 = vpop.permute.xlu0 %1244
    %1246 = vrot.lane.b32.xlu0 %v1223, 24
    %v1247 = vpop.permute.xlu0 %1246
    %1248 = vrot.lane.b32.xlu0 %v1225, 24
    %v1249 = vpop.permute.xlu0 %1248
    %1250 = vrot.lane.b32.xlu0 %v1227, 24
    %v1251 = vpop.permute.xlu0 %1250
    %1252 = vrot.lane.b32.xlu0 %v1229, 24
    %v1253 = vpop.permute.xlu0 %1252
    %1254 = vrot.lane.b32.xlu0 %v1231, 24
    %v1255 = vpop.permute.xlu0 %1254
    %1256 = vrot.lane.b32.xlu0 %v1233, 24
    %v1257 = vpop.permute.xlu0 %1256
    %1258 = vrot.lane.b32.xlu0 %v1235, 24
    %v1259 = vpop.permute.xlu0 %1258
    %1260 = vrot.lane.b32.xlu0 %v1237, 24
    %v1261 = vpop.permute.xlu0 %1260
    %1262 = vrot.lane.b32.xlu0 %v1239, 24
    %v1263 = vpop.permute.xlu0 %1262
    %1264 = vrot.lane.b32.xlu0 %v1241, 24
    %v1265 = vpop.permute.xlu0 %1264
    %1266 = vrot.lane.b32.xlu0 %v1240, 24
    %v1267 = vpop.permute.xlu0 %1266
    %v1295 = vrot.slane %v762, 7
    %v1296 = vrot.slane %v763, 7
    %v1297 = vsel %vm203, %v1295, %v1296
    %v1298 = vrot.slane %v764, 7
    %v1299 = vsel %vm203, %v1296, %v1298
    %v1300 = vrot.slane %v765, 7
    %v1301 = vsel %vm203, %v1298, %v1300
    %v1302 = vrot.slane %v766, 7
    %v1303 = vsel %vm203, %v1300, %v1302
    %v1304 = vrot.slane %v767, 7
    %v1305 = vsel %vm203, %v1302, %v1304
    %v1306 = vrot.slane %v768, 7
    %v1307 = vsel %vm203, %v1304, %v1306
    %v1308 = vrot.slane %v769, 7
    %v1309 = vsel %vm203, %v1306, %v1308
    %v1310 = vrot.slane %v770, 7
    %v1311 = vsel %vm203, %v1308, %v1310
    %v1312 = vrot.slane %v771, 7
    %v1313 = vsel %vm203, %v1310, %v1312
    %v1314 = vrot.slane %v772, 7
    %v1315 = vsel %vm203, %v1312, %v1314
    %v1316 = vrot.slane %v773, 7
    %v1317 = vsel %vm203, %v1314, %v1316
    %v1318 = vrot.slane %v774, 7
    %v1319 = vsel %vm203, %v1316, %v1318
    %v1320 = vrot.slane %v775, 7
    %v1321 = vsel %vm203, %v1318, %v1320
    %1322 = vrot.lane.b32.xlu0 %v1297, 28
    %v1323 = vpop.permute.xlu0 %1322
    %1324 = vrot.lane.b32.xlu0 %v1299, 28
    %v1325 = vpop.permute.xlu0 %1324
    %1326 = vrot.lane.b32.xlu0 %v1301, 28
    %v1327 = vpop.permute.xlu0 %1326
    %1328 = vrot.lane.b32.xlu0 %v1303, 28
    %v1329 = vpop.permute.xlu0 %1328
    %1330 = vrot.lane.b32.xlu0 %v1305, 28
    %v1331 = vpop.permute.xlu0 %1330
    %1332 = vrot.lane.b32.xlu0 %v1307, 28
    %v1333 = vpop.permute.xlu0 %1332
    %1334 = vrot.lane.b32.xlu0 %v1309, 28
    %v1335 = vpop.permute.xlu0 %1334
    %1336 = vrot.lane.b32.xlu0 %v1311, 28
    %v1337 = vpop.permute.xlu0 %1336
    %1338 = vrot.lane.b32.xlu0 %v1313, 28
    %v1339 = vpop.permute.xlu0 %1338
    %1340 = vrot.lane.b32.xlu0 %v1315, 28
    %v1341 = vpop.permute.xlu0 %1340
    %1342 = vrot.lane.b32.xlu0 %v1317, 28
    %v1343 = vpop.permute.xlu0 %1342
    %1344 = vrot.lane.b32.xlu0 %v1319, 28
    %v1345 = vpop.permute.xlu0 %1344
    %1346 = vrot.lane.b32.xlu0 %v1321, 28
    %v1347 = vpop.permute.xlu0 %1346
    %1374 = vrot.lane.b32.xlu0 %v828, 32
    %v1375 = vpop.permute.xlu0 %1374
    %1376 = vrot.lane.b32.xlu0 %v829, 32
    %v1377 = vpop.permute.xlu0 %1376
    %1378 = vrot.lane.b32.xlu0 %v830, 32
    %v1379 = vpop.permute.xlu0 %1378
    %1380 = vrot.lane.b32.xlu0 %v831, 32
    %v1381 = vpop.permute.xlu0 %1380
    %1382 = vrot.lane.b32.xlu0 %v832, 32
    %v1383 = vpop.permute.xlu0 %1382
    %1384 = vrot.lane.b32.xlu0 %v833, 32
    %v1385 = vpop.permute.xlu0 %1384
    %1386 = vrot.lane.b32.xlu0 %v834, 32
    %v1387 = vpop.permute.xlu0 %1386
    %1388 = vrot.lane.b32.xlu0 %v835, 32
    %v1389 = vpop.permute.xlu0 %1388
    %1390 = vrot.lane.b32.xlu0 %v836, 32
    %v1391 = vpop.permute.xlu0 %1390
    %1392 = vrot.lane.b32.xlu0 %v837, 32
    %v1393 = vpop.permute.xlu0 %1392
    %1394 = vrot.lane.b32.xlu0 %v838, 32
    %v1395 = vpop.permute.xlu0 %1394
    %1396 = vrot.lane.b32.xlu0 %v839, 32
    %v1397 = vpop.permute.xlu0 %1396
    %1398 = vrot.lane.b32.xlu0 %v840, 32
    %v1399 = vpop.permute.xlu0 %1398
    %vm1413 = vcmask 31744
    %v1414 = vsel %vm1413, %v151, %v880
    %v1415 = vsel %vm1413, %v152, %v882
    %v1416 = vsel %vm1413, %v153, %v884
    %v1417 = vsel %vm1413, %v154, %v886
    %v1418 = vsel %vm1413, %v155, %v888
    %v1419 = vsel %vm1413, %v156, %v890
    %v1420 = vsel %vm1413, %v157, %v892
    %v1421 = vsel %vm1413, %v158, %v894
    %v1422 = vsel %vm1413, %v159, %v896
    %v1423 = vsel %vm1413, %v160, %v898
    %v1424 = vsel %vm1413, %v161, %v900
    %v1425 = vsel %vm1413, %v162, %v902
    %v1426 = vsel %vm1413, %v163, %v904
    %vm1427 = vcmask 64512
    %v1428 = vsel %vm1427, %v1414, %v957
    %v1429 = vsel %vm1427, %v1415, %v959
    %v1430 = vsel %vm1427, %v1416, %v961
    %v1431 = vsel %vm1427, %v1417, %v963
    %v1432 = vsel %vm1427, %v1418, %v965
    %v1433 = vsel %vm1427, %v1419, %v967
    %v1434 = vsel %vm1427, %v1420, %v969
    %v1435 = vsel %vm1427, %v1421, %v971
    %v1436 = vsel %vm1427, %v1422, %v973
    %v1437 = vsel %vm1427, %v1423, %v975
    %v1438 = vsel %vm1427, %v1424, %v977
    %v1439 = vsel %vm1427, %v1425, %v979
    %v1440 = vsel %vm1427, %v1426, %v981
    %vm1441 = vcmask 97280
    %v1442 = vsel %vm1441, %v1428, %v1037
    %v1443 = vsel %vm1441, %v1429, %v1039
    %v1444 = vsel %vm1441, %v1430, %v1041
    %v1445 = vsel %vm1441, %v1431, %v1043
    %v1446 = vsel %vm1441, %v1432, %v1045
    %v1447 = vsel %vm1441, %v1433, %v1047
    %v1448 = vsel %vm1441, %v1434, %v1049
    %v1449 = vsel %vm1441, %v1435, %v1051
    %v1450 = vsel %vm1441, %v1436, %v1053
    %v1451 = vsel %vm1441, %v1437, %v1055
    %v1452 = vsel %vm1441, %v1438, %v1057
    %v1453 = vsel %vm1441, %v1439, %v1059
    %v1454 = vsel %vm1441, %v1440, %v1061
    %vm1455 = vcmask 130048
    %v1456 = vsel %vm1455, %v1442, %v1089
    %v1457 = vsel %vm1455, %v1443, %v1091
    %v1458 = vsel %vm1455, %v1444, %v1093
    %v1459 = vsel %vm1455, %v1445, %v1095
    %v1460 = vsel %vm1455, %v1446, %v1097
    %v1461 = vsel %vm1455, %v1447, %v1099
    %v1462 = vsel %vm1455, %v1448, %v1101
    %v1463 = vsel %vm1455, %v1449, %v1103
    %v1464 = vsel %vm1455, %v1450, %v1105
    %v1465 = vsel %vm1455, %v1451, %v1107
    %v1466 = vsel %vm1455, %v1452, %v1109
    %v1467 = vsel %vm1455, %v1453, %v1111
    %v1468 = vsel %vm1455, %v1454, %v1113
    %vm1469 = vcmask 162816
    %v1470 = vsel %vm1469, %v1456, %v1166
    %v1471 = vsel %vm1469, %v1457, %v1168
    %v1472 = vsel %vm1469, %v1458, %v1170
    %v1473 = vsel %vm1469, %v1459, %v1172
    %v1474 = vsel %vm1469, %v1460, %v1174
    %v1475 = vsel %vm1469, %v1461, %v1176
    %v1476 = vsel %vm1469, %v1462, %v1178
    %v1477 = vsel %vm1469, %v1463, %v1180
    %v1478 = vsel %vm1469, %v1464, %v1182
    %v1479 = vsel %vm1469, %v1465, %v1184
    %v1480 = vsel %vm1469, %v1466, %v1186
    %v1481 = vsel %vm1469, %v1467, %v1188
    %v1482 = vsel %vm1469, %v1468, %v1190
    %vm1483 = vcmask 195584
    %v1484 = vsel %vm1483, %v1470, %v1243
    %v1485 = vsel %vm1483, %v1471, %v1245
    %v1486 = vsel %vm1483, %v1472, %v1247
    %v1487 = vsel %vm1483, %v1473, %v1249
    %v1488 = vsel %vm1483, %v1474, %v1251
    %v1489 = vsel %vm1483, %v1475, %v1253
    %v1490 = vsel %vm1483, %v1476, %v1255
    %v1491 = vsel %vm1483, %v1477, %v1257
    %v1492 = vsel %vm1483, %v1478, %v1259
    %v1493 = vsel %vm1483, %v1479, %v1261
    %v1494 = vsel %vm1483, %v1480, %v1263
    %v1495 = vsel %vm1483, %v1481, %v1265
    %v1496 = vsel %vm1483, %v1482, %v1267
    %vm1497 = vcmask 228352
    %v1498 = vsel %vm1497, %v1484, %v1323
    %v1499 = vsel %vm1497, %v1485, %v1325
    %v1500 = vsel %vm1497, %v1486, %v1327
    %v1501 = vsel %vm1497, %v1487, %v1329
    %v1502 = vsel %vm1497, %v1488, %v1331
    %v1503 = vsel %vm1497, %v1489, %v1333
    %v1504 = vsel %vm1497, %v1490, %v1335
    %v1505 = vsel %vm1497, %v1491, %v1337
    %v1506 = vsel %vm1497, %v1492, %v1339
    %v1507 = vsel %vm1497, %v1493, %v1341
    %v1508 = vsel %vm1497, %v1494, %v1343
    %v1509 = vsel %vm1497, %v1495, %v1345
    %v1510 = vsel %vm1497, %v1496, %v1347
    %vm1511 = vcmask 261120
    %v1512 = vsel %vm1511, %v1498, %v1375
    %v1513 = vsel %vm1511, %v1499, %v1377
    %v1514 = vsel %vm1511, %v1500, %v1379
    %v1515 = vsel %vm1511, %v1501, %v1381
    %v1516 = vsel %vm1511, %v1502, %v1383
    %v1517 = vsel %vm1511, %v1503, %v1385
    %v1518 = vsel %vm1511, %v1504, %v1387
    %v1519 = vsel %vm1511, %v1505, %v1389
    %v1520 = vsel %vm1511, %v1506, %v1391
    %v1521 = vsel %vm1511, %v1507, %v1393
    %v1522 = vsel %vm1511, %v1508, %v1395
    %v1523 = vsel %vm1511, %v1509, %v1397
    %v1524 = vsel %vm1511, %v1510, %v1399
    %v1525 = vld [vmem:[%s2] sm:$0xf]
    %v1526 = vld [vmem:[%s2 + $0x4] sm:$0xf]
    %v1527 = vld [vmem:[%s2 + $0x8] sm:$0xf]
    %v1528 = vld [vmem:[%s2 + $0xc] sm:$0xf]
    %v1529 = vld [vmem:[%s2 + $0x10] sm:$0x3]
    %v1530 = vpack.c.bf16 %v1513, %v1512
    %v1531 = vpack.c.bf16 %v1515, %v1514
    %v1532 = vpack.c.bf16 %v1517, %v1516
    %v1533 = vpack.c.bf16 %v1519, %v1518
    %v1534 = vpack.c.bf16 %v1521, %v1520
    %v1535 = vpack.c.bf16 %v1523, %v1522
    %v1536 = vpack.c.bf16 %v1524, %v1524
    %v1537 = vld [vmem:[%s3] sm:$0x1]
    %v1539 = vlaneseq
    %v1540 = vshrl.u32 %v1539, 7
    %v1541 = vsub.s32 0, %v1540
    %v1542 = vrot.slane %v1537, %v1541
    %v1549 = vunpack.c.l.b16 %v1525
    %v1550 = vunpack.c.l.b16 %v1526
    %v1551 = vunpack.c.l.b16 %v1527
    %v1552 = vunpack.c.l.b16 %v1528
    %v1553 = vunpack.c.l.b16 %v1529
    %v1554 = vpack.c.b16 %v1550, %v1549
    %v1555 = vpack.c.b16 %v1552, %v1551
    %v1556 = vpack.c.b16 %v1553, %v1553
    %vm1559 = vcmask 293888
    %v1561 = vsel %vm1559, %v1530, 0
    %v1564 = vsel %vm1559, %v1531, 0
    %v1567 = vsel %vm1559, %v1532, 0
    %v1570 = vsel %vm1559, %v1533, 0
    %v1573 = vsel %vm1559, %v1534, 0
    %v1576 = vsel %vm1559, %v1535, 0
    %v1579 = vsel %vm1559, %v1536, 0
    %v1582 = vsel %vm84, %v1556, 0
    %1584 = vmatprep.subr.bf16.mxu0 0
    %1585 = vmatpush1.bf16.msra.mxu0 %v1554
    %1586 = vmatprep.subr.bf16.mxu0 0
    %1587 = vmatpush1.bf16.msra.mxu0 %v1555
    %1588 = vmatprep.subr.bf16.mxu0 0
    %1589 = vmatpush1.bf16.msra.mxu0 %v1582
    %1590 = vmatprep.subr.bf16.mxu0 0
    %1591 = vmatpush1.bf16.msra.mxu0 0
    %1592 = vmatprep.subr.bf16.mxu0 0
    %1593 = vmatpush1.bf16.msra.mxu0 0
    %1594 = vmatprep.subr.bf16.mxu0 0
    %1595 = vmatpush1.bf16.msra.mxu0 0
    %1596 = vmatprep.subr.bf16.mxu0 0
    %1597 = vmatpush1.bf16.msra.mxu0 0
    %1598 = vmatprep.subr.bf16.mxu0 0
    %1599 = vmatpush1.bf16.msra.mxu0 0
    %1600 = vmatprep.subr.bf16.mxu0 0
    %1601 = vmatpush1.bf16.msra.mxu0 0
    %1602 = vmatprep.subr.bf16.mxu0 0
    %1603 = vmatpush1.bf16.msra.mxu0 0
    %1604 = vmatprep.subr.bf16.mxu0 0
    %1605 = vmatpush1.bf16.msra.mxu0 0
    %1606 = vmatprep.subr.bf16.mxu0 0
    %1607 = vmatpush1.bf16.msra.mxu0 0
    %1608 = vmatprep.subr.bf16.mxu0 0
    %1609 = vmatpush1.bf16.msra.mxu0 0
    %1610 = vmatprep.subr.bf16.mxu0 0
    %1611 = vmatpush1.bf16.msra.mxu0 0
    %1612 = vmatprep.subr.bf16.mxu0 0
    %1613 = vmatpush1.bf16.msra.mxu0 0
    %1614 = vmatprep.subr.bf16.mxu0 0
    %1615 = vmatpush1.bf16.msra.mxu0 0
    %1616 = vmatprep.mubr.bf16.mxu0 0
    %1617 = vmatmul.mubr.bf16.gmra.mrb[0].mxu0 %v1561
    %v1618 = vpop.f32.mrb[0].mxu0
    %v1619 = vadd.f32 %v1542, %v1618
    %v1620 = vpop.f32.mrb[0].mxu0
    %v1621 = vpop.f32.mrb[0].mxu0
    %v1622 = vadd.f32 %v1542, %v1621
    %v1623 = vpop.f32.mrb[0].mxu0
    %1624 = vmatprep.mubr.bf16.mxu0 0
    %1625 = vmatmul.mubr.bf16.gmra.mrb[0].mxu0 %v1564
    %v1626 = vpop.f32.mrb[0].mxu0
    %v1627 = vadd.f32 %v1542, %v1626
    %v1628 = vpop.f32.mrb[0].mxu0
    %v1629 = vpop.f32.mrb[0].mxu0
    %v1630 = vadd.f32 %v1542, %v1629
    %v1631 = vpop.f32.mrb[0].mxu0
    %1632 = vmatprep.mubr.bf16.mxu0 0
    %1633 = vmatmul.mubr.bf16.gmra.mrb[0].mxu0 %v1567
    %v1634 = vpop.f32.mrb[0].mxu0
    %v1635 = vadd.f32 %v1542, %v1634
    %v1636 = vpop.f32.mrb[0].mxu0
    %v1637 = vpop.f32.mrb[0].mxu0
    %v1638 = vadd.f32 %v1542, %v1637
    %v1639 = vpop.f32.mrb[0].mxu0
    %1640 = vmatprep.mubr.bf16.mxu0 0
    %1641 = vmatmul.mubr.bf16.gmra.mrb[0].mxu0 %v1570
    %v1642 = vpop.f32.mrb[0].mxu0
    %v1643 = vadd.f32 %v1542, %v1642
    %v1644 = vpop.f32.mrb[0].mxu0
    %v1645 = vpop.f32.mrb[0].mxu0
    %v1646 = vadd.f32 %v1542, %v1645
    %v1647 = vpop.f32.mrb[0].mxu0
    %1648 = vmatprep.mubr.bf16.mxu0 0
    %1649 = vmatmul.mubr.bf16.gmra.mrb[0].mxu0 %v1573
    %v1650 = vpop.f32.mrb[0].mxu0
    %v1651 = vadd.f32 %v1542, %v1650
    %v1652 = vpop.f32.mrb[0].mxu0
    %v1653 = vpop.f32.mrb[0].mxu0
    %v1654 = vadd.f32 %v1542, %v1653
    %v1655 = vpop.f32.mrb[0].mxu0
    %1656 = vmatprep.mubr.bf16.mxu0 0
    %1657 = vmatmul.mubr.bf16.gmra.mrb[0].mxu0 %v1576
    %v1658 = vpop.f32.mrb[0].mxu0
    %v1659 = vadd.f32 %v1542, %v1658
    %v1660 = vpop.f32.mrb[0].mxu0
    %v1661 = vpop.f32.mrb[0].mxu0
    %v1662 = vadd.f32 %v1542, %v1661
    %v1663 = vpop.f32.mrb[0].mxu0
    %1664 = vmatprep.mubr.bf16.mxu0 0
    %1665 = vmatmul.mubr.bf16.gmra.mrb[0].mxu0 %v1579
    %v1666 = vpop.f32.mrb[0].mxu0
    %v1667 = vadd.f32 %v1542, %v1666
    %v1668 = vpop.f32.mrb[0].mxu0
    %v1669 = vpop.f32.mrb[0].mxu0
    %v1670 = vpop.f32.mrb[0].mxu0
    %1671 = vdwg.mxu0
    %vm1672 = vcmp.gt.f32.partialorder %v1619, 0.0
    %vm1673 = vcmp.gt.f32.partialorder %v1622, 0.0
    %vm1674 = vcmp.gt.f32.partialorder %v1627, 0.0
    %vm1675 = vcmp.gt.f32.partialorder %v1630, 0.0
    %vm1676 = vcmp.gt.f32.partialorder %v1635, 0.0
    %vm1677 = vcmp.gt.f32.partialorder %v1638, 0.0
    %vm1678 = vcmp.gt.f32.partialorder %v1643, 0.0
    %vm1679 = vcmp.gt.f32.partialorder %v1646, 0.0
    %vm1680 = vcmp.gt.f32.partialorder %v1651, 0.0
    %vm1681 = vcmp.gt.f32.partialorder %v1654, 0.0
    %vm1682 = vcmp.gt.f32.partialorder %v1659, 0.0
    %vm1683 = vcmp.gt.f32.partialorder %v1662, 0.0
    %vm1684 = vcmp.gt.f32.partialorder %v1667, 0.0
    %v1685 = vmul.f32 %v1619, 1.442695
    %v1686 = vpow.pop %v1685
    %v1687 = vmul.f32 %v1622, 1.442695
    %v1688 = vpow.pop %v1687
    %v1689 = vmul.f32 %v1627, 1.442695
    %v1690 = vpow.pop %v1689
    %v1691 = vmul.f32 %v1630, 1.442695
    %v1692 = vpow.pop %v1691
    %v1693 = vmul.f32 %v1635, 1.442695
    %v1694 = vpow.pop %v1693
    %v1695 = vmul.f32 %v1638, 1.442695
    %v1696 = vpow.pop %v1695
    %v1697 = vmul.f32 %v1643, 1.442695
    %v1698 = vpow.pop %v1697
    %v1699 = vmul.f32 %v1646, 1.442695
    %v1700 = vpow.pop %v1699
    %v1701 = vmul.f32 %v1651, 1.442695
    %v1702 = vpow.pop %v1701
    %v1703 = vmul.f32 %v1654, 1.442695
    %v1704 = vpow.pop %v1703
    %v1705 = vmul.f32 %v1659, 1.442695
    %v1706 = vpow.pop %v1705
    %v1707 = vmul.f32 %v1662, 1.442695
    %v1708 = vpow.pop %v1707
    %v1709 = vmul.f32 %v1667, 1.442695
    %v1710 = vpow.pop %v1709
    %v1711 = vsub.f32 %v1686, 1.0
    %v1712 = vsub.f32 %v1688, 1.0
    %v1713 = vsub.f32 %v1690, 1.0
    %v1714 = vsub.f32 %v1692, 1.0
    %v1715 = vsub.f32 %v1694, 1.0
    %v1716 = vsub.f32 %v1696, 1.0
    %v1717 = vsub.f32 %v1698, 1.0
    %v1718 = vsub.f32 %v1700, 1.0
    %v1719 = vsub.f32 %v1702, 1.0
    %v1720 = vsub.f32 %v1704, 1.0
    %v1721 = vsub.f32 %v1706, 1.0
    %v1722 = vsub.f32 %v1708, 1.0
    %v1723 = vsub.f32 %v1710, 1.0
    %v1724 = vsel %vm1672, %v1619, %v1711
    %v1725 = vsel %vm1673, %v1622, %v1712
    %v1726 = vsel %vm1674, %v1627, %v1713
    %v1727 = vsel %vm1675, %v1630, %v1714
    %v1728 = vsel %vm1676, %v1635, %v1715
    %v1729 = vsel %vm1677, %v1638, %v1716
    %v1730 = vsel %vm1678, %v1643, %v1717
    %v1731 = vsel %vm1679, %v1646, %v1718
    %v1732 = vsel %vm1680, %v1651, %v1719
    %v1733 = vsel %vm1681, %v1654, %v1720
    %v1734 = vsel %vm1682, %v1659, %v1721
    %v1735 = vsel %vm1683, %v1662, %v1722
    %v1736 = vsel %vm1684, %v1667, %v1723
    %v1737 = vsel %vm84, %v1736, 0.0
    %v1738 = vmul.f32 %v1724, %v94
    %v1739 = vmul.f32 %v1725, %v99
    %v1740 = vmul.f32 %v1726, %v104
    %v1741 = vmul.f32 %v1727, %v109
    %v1742 = vmul.f32 %v1728, %v114
    %v1743 = vmul.f32 %v1729, %v119
    %v1744 = vmul.f32 %v1730, %v124
    %v1745 = vmul.f32 %v1731, %v129
    %v1746 = vmul.f32 %v1732, %v134
    %v1747 = vmul.f32 %v1733, %v139
    %v1748 = vmul.f32 %v1734, %v144
    %v1749 = vmul.f32 %v1735, %v149
    %v1750 = vmul.f32 %v1724, %v206
    %v1751 = vmul.f32 %v1725, %v208
    %v1752 = vmul.f32 %v1726, %v210
    %v1753 = vmul.f32 %v1727, %v212
    %v1754 = vmul.f32 %v1728, %v214
    %v1755 = vmul.f32 %v1729, %v216
    %v1756 = vmul.f32 %v1730, %v218
    %v1757 = vmul.f32 %v1731, %v220
    %v1758 = vmul.f32 %v1732, %v222
    %v1759 = vmul.f32 %v1733, %v224
    %v1760 = vmul.f32 %v1734, %v226
    %v1761 = vmul.f32 %v1735, %v228
    %v1762 = vmul.f32 %v1724, %v296
    %v1763 = vmul.f32 %v1725, %v298
    %v1764 = vmul.f32 %v1726, %v300
    %v1765 = vmul.f32 %v1727, %v302
    %v1766 = vmul.f32 %v1728, %v304
    %v1767 = vmul.f32 %v1729, %v306
    %v1768 = vmul.f32 %v1730, %v308
    %v1769 = vmul.f32 %v1731, %v310
    %v1770 = vmul.f32 %v1732, %v312
    %v1771 = vmul.f32 %v1733, %v314
    %v1772 = vmul.f32 %v1734, %v316
    %v1773 = vmul.f32 %v1735, %v318
    %v1774 = vmul.f32 %v1724, %v387
    %v1775 = vmul.f32 %v1725, %v389
    %v1776 = vmul.f32 %v1726, %v391
    %v1777 = vmul.f32 %v1727, %v393
    %v1778 = vmul.f32 %v1728, %v395
    %v1779 = vmul.f32 %v1729, %v397
    %v1780 = vmul.f32 %v1730, %v399
    %v1781 = vmul.f32 %v1731, %v401
    %v1782 = vmul.f32 %v1732, %v403
    %v1783 = vmul.f32 %v1733, %v405
    %v1784 = vmul.f32 %v1734, %v407
    %v1785 = vmul.f32 %v1735, %v409
    %v1786 = vmul.f32 %v1737, %v408
    %v1787 = vmul.f32 %v1724, %v440
    %v1788 = vmul.f32 %v1725, %v444
    %v1789 = vmul.f32 %v1726, %v448
    %v1790 = vmul.f32 %v1727, %v452
    %v1791 = vmul.f32 %v1728, %v456
    %v1792 = vmul.f32 %v1729, %v460
    %v1793 = vmul.f32 %v1730, %v464
    %v1794 = vmul.f32 %v1731, %v468
    %v1795 = vmul.f32 %v1732, %v472
    %v1796 = vmul.f32 %v1733, %v476
    %v1797 = vmul.f32 %v1734, %v480
    %v1798 = vmul.f32 %v1735, %v484
    %v1799 = vmul.f32 %v1737, %v488
    %v1800 = vmul.f32 %v1724, %v542
    %v1801 = vmul.f32 %v1725, %v544
    %v1802 = vmul.f32 %v1726, %v546
    %v1803 = vmul.f32 %v1727, %v548
    %v1804 = vmul.f32 %v1728, %v550
    %v1805 = vmul.f32 %v1729, %v552
    %v1806 = vmul.f32 %v1730, %v554
    %v1807 = vmul.f32 %v1731, %v556
    %v1808 = vmul.f32 %v1732, %v558
    %v1809 = vmul.f32 %v1733, %v560
    %v1810 = vmul.f32 %v1734, %v562
    %v1811 = vmul.f32 %v1735, %v564
    %v1812 = vmul.f32 %v1737, %v566
    %v1813 = vmul.f32 %v1724, %v633
    %v1814 = vmul.f32 %v1725, %v635
    %v1815 = vmul.f32 %v1726, %v637
    %v1816 = vmul.f32 %v1727, %v639
    %v1817 = vmul.f32 %v1728, %v641
    %v1818 = vmul.f32 %v1729, %v643
    %v1819 = vmul.f32 %v1730, %v645
    %v1820 = vmul.f32 %v1731, %v647
    %v1821 = vmul.f32 %v1732, %v649
    %v1822 = vmul.f32 %v1733, %v651
    %v1823 = vmul.f32 %v1734, %v653
    %v1824 = vmul.f32 %v1735, %v655
    %v1825 = vmul.f32 %v1737, %v657
    %v1826 = vmul.f32 %v1724, %v723
    %v1827 = vmul.f32 %v1725, %v725
    %v1828 = vmul.f32 %v1726, %v727
    %v1829 = vmul.f32 %v1727, %v729
    %v1830 = vmul.f32 %v1728, %v731
    %v1831 = vmul.f32 %v1729, %v733
    %v1832 = vmul.f32 %v1730, %v735
    %v1833 = vmul.f32 %v1731, %v737
    %v1834 = vmul.f32 %v1732, %v739
    %v1835 = vmul.f32 %v1733, %v741
    %v1836 = vmul.f32 %v1734, %v743
    %v1837 = vmul.f32 %v1735, %v745
    %v1838 = vmul.f32 %v1737, %v747
    %v1839 = vmul.f32 %v1725, %v778
    %v1840 = vmul.f32 %v1726, %v782
    %v1841 = vmul.f32 %v1727, %v786
    %v1842 = vmul.f32 %v1728, %v790
    %v1843 = vmul.f32 %v1729, %v794
    %v1844 = vmul.f32 %v1730, %v798
    %v1845 = vmul.f32 %v1731, %v802
    %v1846 = vmul.f32 %v1732, %v806
    %v1847 = vmul.f32 %v1733, %v810
    %v1848 = vmul.f32 %v1734, %v814
    %v1849 = vmul.f32 %v1735, %v818
    %v1850 = vmul.f32 %v1737, %v822
    %v1863 = vrot.slane %v1750, 1
    %v1864 = vsel %vm384, %v854, %v1863
    %v1865 = vrot.slane %v1751, 1
    %v1866 = vsel %vm384, %v1863, %v1865
    %v1867 = vrot.slane %v1752, 1
    %v1868 = vsel %vm384, %v1865, %v1867
    %v1869 = vrot.slane %v1753, 1
    %v1870 = vsel %vm384, %v1867, %v1869
    %v1871 = vrot.slane %v1754, 1
    %v1872 = vsel %vm384, %v1869, %v1871
    %v1873 = vrot.slane %v1755, 1
    %v1874 = vsel %vm384, %v1871, %v1873
    %v1875 = vrot.slane %v1756, 1
    %v1876 = vsel %vm384, %v1873, %v1875
    %v1877 = vrot.slane %v1757, 1
    %v1878 = vsel %vm384, %v1875, %v1877
    %v1879 = vrot.slane %v1758, 1
    %v1880 = vsel %vm384, %v1877, %v1879
    %v1881 = vrot.slane %v1759, 1
    %v1882 = vsel %vm384, %v1879, %v1881
    %v1883 = vrot.slane %v1760, 1
    %v1884 = vsel %vm384, %v1881, %v1883
    %v1885 = vrot.slane %v1761, 1
    %v1886 = vsel %vm384, %v1883, %v1885
    %1887 = vrot.lane.b32.xlu0 %v1864, 32
    %v1888 = vpop.permute.xlu0 %1887
    %1889 = vrot.lane.b32.xlu0 %v1866, 32
    %v1890 = vpop.permute.xlu0 %1889
    %1891 = vrot.lane.b32.xlu0 %v1868, 32
    %v1892 = vpop.permute.xlu0 %1891
    %1893 = vrot.lane.b32.xlu0 %v1870, 32
    %v1894 = vpop.permute.xlu0 %1893
    %1895 = vrot.lane.b32.xlu0 %v1872, 32
    %v1896 = vpop.permute.xlu0 %1895
    %1897 = vrot.lane.b32.xlu0 %v1874, 32
    %v1898 = vpop.permute.xlu0 %1897
    %1899 = vrot.lane.b32.xlu0 %v1876, 32
    %v1900 = vpop.permute.xlu0 %1899
    %1901 = vrot.lane.b32.xlu0 %v1878, 32
    %v1902 = vpop.permute.xlu0 %1901
    %1903 = vrot.lane.b32.xlu0 %v1880, 32
    %v1904 = vpop.permute.xlu0 %1903
    %1905 = vrot.lane.b32.xlu0 %v1882, 32
    %v1906 = vpop.permute.xlu0 %1905
    %1907 = vrot.lane.b32.xlu0 %v1884, 32
    %v1908 = vpop.permute.xlu0 %1907
    %1909 = vrot.lane.b32.xlu0 %v1886, 32
    %v1910 = vpop.permute.xlu0 %1909
    %1911 = vrot.lane.b32.xlu0 %v1885, 32
    %v1912 = vpop.permute.xlu0 %1911
    %v1938 = vrot.slane %v1762, 2
    %v1939 = vsel %vm632, %v931, %v1938
    %v1940 = vrot.slane %v1763, 2
    %v1941 = vsel %vm632, %v1938, %v1940
    %v1942 = vrot.slane %v1764, 2
    %v1943 = vsel %vm632, %v1940, %v1942
    %v1944 = vrot.slane %v1765, 2
    %v1945 = vsel %vm632, %v1942, %v1944
    %v1946 = vrot.slane %v1766, 2
    %v1947 = vsel %vm632, %v1944, %v1946
    %v1948 = vrot.slane %v1767, 2
    %v1949 = vsel %vm632, %v1946, %v1948
    %v1950 = vrot.slane %v1768, 2
    %v1951 = vsel %vm632, %v1948, %v1950
    %v1952 = vrot.slane %v1769, 2
    %v1953 = vsel %vm632, %v1950, %v1952
    %v1954 = vrot.slane %v1770, 2
    %v1955 = vsel %vm632, %v1952, %v1954
    %v1956 = vrot.slane %v1771, 2
    %v1957 = vsel %vm632, %v1954, %v1956
    %v1958 = vrot.slane %v1772, 2
    %v1959 = vsel %vm632, %v1956, %v1958
    %v1960 = vrot.slane %v1773, 2
    %v1961 = vsel %vm632, %v1958, %v1960
    %1962 = vrot.lane.b32.xlu0 %v1939, 64
    %v1963 = vpop.permute.xlu0 %1962
    %1964 = vrot.lane.b32.xlu0 %v1941, 64
    %v1965 = vpop.permute.xlu0 %1964
    %1966 = vrot.lane.b32.xlu0 %v1943, 64
    %v1967 = vpop.permute.xlu0 %1966
    %1968 = vrot.lane.b32.xlu0 %v1945, 64
    %v1969 = vpop.permute.xlu0 %1968
    %1970 = vrot.lane.b32.xlu0 %v1947, 64
    %v1971 = vpop.permute.xlu0 %1970
    %1972 = vrot.lane.b32.xlu0 %v1949, 64
    %v1973 = vpop.permute.xlu0 %1972
    %1974 = vrot.lane.b32.xlu0 %v1951, 64
    %v1975 = vpop.permute.xlu0 %1974
    %1976 = vrot.lane.b32.xlu0 %v1953, 64
    %v1977 = vpop.permute.xlu0 %1976
    %1978 = vrot.lane.b32.xlu0 %v1955, 64
    %v1979 = vpop.permute.xlu0 %1978
    %1980 = vrot.lane.b32.xlu0 %v1957, 64
    %v1981 = vpop.permute.xlu0 %1980
    %1982 = vrot.lane.b32.xlu0 %v1959, 64
    %v1983 = vpop.permute.xlu0 %1982
    %1984 = vrot.lane.b32.xlu0 %v1961, 64
    %v1985 = vpop.permute.xlu0 %1984
    %1986 = vrot.lane.b32.xlu0 %v1960, 64
    %v1987 = vpop.permute.xlu0 %1986
    %v2014 = vrot.slane %v1774, 7
    %v2015 = vsel %vm203, %v1009, %v2014
    %v2016 = vrot.slane %v1775, 7
    %v2017 = vsel %vm203, %v2014, %v2016
    %v2018 = vrot.slane %v1776, 7
    %v2019 = vsel %vm203, %v2016, %v2018
    %v2020 = vrot.slane %v1777, 7
    %v2021 = vsel %vm203, %v2018, %v2020
    %v2022 = vrot.slane %v1778, 7
    %v2023 = vsel %vm203, %v2020, %v2022
    %v2024 = vrot.slane %v1779, 7
    %v2025 = vsel %vm203, %v2022, %v2024
    %v2026 = vrot.slane %v1780, 7
    %v2027 = vsel %vm203, %v2024, %v2026
    %v2028 = vrot.slane %v1781, 7
    %v2029 = vsel %vm203, %v2026, %v2028
    %v2030 = vrot.slane %v1782, 7
    %v2031 = vsel %vm203, %v2028, %v2030
    %v2032 = vrot.slane %v1783, 7
    %v2033 = vsel %vm203, %v2030, %v2032
    %v2034 = vrot.slane %v1784, 7
    %v2035 = vsel %vm203, %v2032, %v2034
    %v2036 = vrot.slane %v1785, 7
    %v2037 = vsel %vm203, %v2034, %v2036
    %v2038 = vrot.slane %v1786, 7
    %v2039 = vsel %vm203, %v2036, %v2038
    %2040 = vrot.lane.b32.xlu0 %v2015, 96
    %v2041 = vpop.permute.xlu0 %2040
    %2042 = vrot.lane.b32.xlu0 %v2017, 96
    %v2043 = vpop.permute.xlu0 %2042
    %2044 = vrot.lane.b32.xlu0 %v2019, 96
    %v2045 = vpop.permute.xlu0 %2044
    %2046 = vrot.lane.b32.xlu0 %v2021, 96
    %v2047 = vpop.permute.xlu0 %2046
    %2048 = vrot.lane.b32.xlu0 %v2023, 96
    %v2049 = vpop.permute.xlu0 %2048
    %2050 = vrot.lane.b32.xlu0 %v2025, 96
    %v2051 = vpop.permute.xlu0 %2050
    %2052 = vrot.lane.b32.xlu0 %v2027, 96
    %v2053 = vpop.permute.xlu0 %2052
    %2054 = vrot.lane.b32.xlu0 %v2029, 96
    %v2055 = vpop.permute.xlu0 %2054
    %2056 = vrot.lane.b32.xlu0 %v2031, 96
    %v2057 = vpop.permute.xlu0 %2056
    %2058 = vrot.lane.b32.xlu0 %v2033, 96
    %v2059 = vpop.permute.xlu0 %2058
    %2060 = vrot.lane.b32.xlu0 %v2035, 96
    %v2061 = vpop.permute.xlu0 %2060
    %2062 = vrot.lane.b32.xlu0 %v2037, 96
    %v2063 = vpop.permute.xlu0 %2062
    %2064 = vrot.lane.b32.xlu0 %v2039, 96
    %v2065 = vpop.permute.xlu0 %2064
    %v2092 = vrot.slane %v1800, 1
    %v2093 = vrot.slane %v1801, 1
    %v2094 = vsel %vm384, %v2092, %v2093
    %v2095 = vrot.slane %v1802, 1
    %v2096 = vsel %vm384, %v2093, %v2095
    %v2097 = vrot.slane %v1803, 1
    %v2098 = vsel %vm384, %v2095, %v2097
    %v2099 = vrot.slane %v1804, 1
    %v2100 = vsel %vm384, %v2097, %v2099
    %v2101 = vrot.slane %v1805, 1
    %v2102 = vsel %vm384, %v2099, %v2101
    %v2103 = vrot.slane %v1806, 1
    %v2104 = vsel %vm384, %v2101, %v2103
    %v2105 = vrot.slane %v1807, 1
    %v2106 = vsel %vm384, %v2103, %v2105
    %v2107 = vrot.slane %v1808, 1
    %v2108 = vsel %vm384, %v2105, %v2107
    %v2109 = vrot.slane %v1809, 1
    %v2110 = vsel %vm384, %v2107, %v2109
    %v2111 = vrot.slane %v1810, 1
    %v2112 = vsel %vm384, %v2109, %v2111
    %v2113 = vrot.slane %v1811, 1
    %v2114 = vsel %vm384, %v2111, %v2113
    %v2115 = vrot.slane %v1812, 1
    %v2116 = vsel %vm384, %v2113, %v2115
    %2117 = vrot.lane.b32.xlu0 %v2094, 32
    %v2118 = vpop.permute.xlu0 %2117
    %2119 = vrot.lane.b32.xlu0 %v2096, 32
    %v2120 = vpop.permute.xlu0 %2119
    %2121 = vrot.lane.b32.xlu0 %v2098, 32
    %v2122 = vpop.permute.xlu0 %2121
    %2123 = vrot.lane.b32.xlu0 %v2100, 32
    %v2124 = vpop.permute.xlu0 %2123
    %2125 = vrot.lane.b32.xlu0 %v2102, 32
    %v2126 = vpop.permute.xlu0 %2125
    %2127 = vrot.lane.b32.xlu0 %v2104, 32
    %v2128 = vpop.permute.xlu0 %2127
    %2129 = vrot.lane.b32.xlu0 %v2106, 32
    %v2130 = vpop.permute.xlu0 %2129
    %2131 = vrot.lane.b32.xlu0 %v2108, 32
    %v2132 = vpop.permute.xlu0 %2131
    %2133 = vrot.lane.b32.xlu0 %v2110, 32
    %v2134 = vpop.permute.xlu0 %2133
    %2135 = vrot.lane.b32.xlu0 %v2112, 32
    %v2136 = vpop.permute.xlu0 %2135
    %2137 = vrot.lane.b32.xlu0 %v2114, 32
    %v2138 = vpop.permute.xlu0 %2137
    %2139 = vrot.lane.b32.xlu0 %v2116, 32
    %v2140 = vpop.permute.xlu0 %2139
    %2141 = vrot.lane.b32.xlu0 %v2115, 32
    %v2142 = vpop.permute.xlu0 %2141
    %v2169 = vrot.slane %v1813, 6
    %v2170 = vrot.slane %v1814, 6
    %v2171 = vsel %vm84, %v2169, %v2170
    %v2172 = vrot.slane %v1815, 6
    %v2173 = vsel %vm84, %v2170, %v2172
    %v2174 = vrot.slane %v1816, 6
    %v2175 = vsel %vm84, %v2172, %v2174
    %v2176 = vrot.slane %v1817, 6
    %v2177 = vsel %vm84, %v2174, %v2176
    %v2178 = vrot.slane %v1818, 6
    %v2179 = vsel %vm84, %v2176, %v2178
    %v2180 = vrot.slane %v1819, 6
    %v2181 = vsel %vm84, %v2178, %v2180
    %v2182 = vrot.slane %v1820, 6
    %v2183 = vsel %vm84, %v2180, %v2182
    %v2184 = vrot.slane %v1821, 6
    %v2185 = vsel %vm84, %v2182, %v2184
    %v2186 = vrot.slane %v1822, 6
    %v2187 = vsel %vm84, %v2184, %v2186
    %v2188 = vrot.slane %v1823, 6
    %v2189 = vsel %vm84, %v2186, %v2188
    %v2190 = vrot.slane %v1824, 6
    %v2191 = vsel %vm84, %v2188, %v2190
    %v2192 = vrot.slane %v1825, 6
    %v2193 = vsel %vm84, %v2190, %v2192
    %2194 = vrot.lane.b32.xlu0 %v2171, 64
    %v2195 = vpop.permute.xlu0 %2194
    %2196 = vrot.lane.b32.xlu0 %v2173, 64
    %v2197 = vpop.permute.xlu0 %2196
    %2198 = vrot.lane.b32.xlu0 %v2175, 64
    %v2199 = vpop.permute.xlu0 %2198
    %2200 = vrot.lane.b32.xlu0 %v2177, 64
    %v2201 = vpop.permute.xlu0 %2200
    %2202 = vrot.lane.b32.xlu0 %v2179, 64
    %v2203 = vpop.permute.xlu0 %2202
    %2204 = vrot.lane.b32.xlu0 %v2181, 64
    %v2205 = vpop.permute.xlu0 %2204
    %2206 = vrot.lane.b32.xlu0 %v2183, 64
    %v2207 = vpop.permute.xlu0 %2206
    %2208 = vrot.lane.b32.xlu0 %v2185, 64
    %v2209 = vpop.permute.xlu0 %2208
    %2210 = vrot.lane.b32.xlu0 %v2187, 64
    %v2211 = vpop.permute.xlu0 %2210
    %2212 = vrot.lane.b32.xlu0 %v2189, 64
    %v2213 = vpop.permute.xlu0 %2212
    %2214 = vrot.lane.b32.xlu0 %v2191, 64
    %v2215 = vpop.permute.xlu0 %2214
    %2216 = vrot.lane.b32.xlu0 %v2193, 64
    %v2217 = vpop.permute.xlu0 %2216
    %2218 = vrot.lane.b32.xlu0 %v2192, 64
    %v2219 = vpop.permute.xlu0 %2218
    %v2246 = vrot.slane %v1826, 7
    %v2247 = vrot.slane %v1827, 7
    %v2248 = vsel %vm203, %v2246, %v2247
    %v2249 = vrot.slane %v1828, 7
    %v2250 = vsel %vm203, %v2247, %v2249
    %v2251 = vrot.slane %v1829, 7
    %v2252 = vsel %vm203, %v2249, %v2251
    %v2253 = vrot.slane %v1830, 7
    %v2254 = vsel %vm203, %v2251, %v2253
    %v2255 = vrot.slane %v1831, 7
    %v2256 = vsel %vm203, %v2253, %v2255
    %v2257 = vrot.slane %v1832, 7
    %v2258 = vsel %vm203, %v2255, %v2257
    %v2259 = vrot.slane %v1833, 7
    %v2260 = vsel %vm203, %v2257, %v2259
    %v2261 = vrot.slane %v1834, 7
    %v2262 = vsel %vm203, %v2259, %v2261
    %v2263 = vrot.slane %v1835, 7
    %v2264 = vsel %vm203, %v2261, %v2263
    %v2265 = vrot.slane %v1836, 7
    %v2266 = vsel %vm203, %v2263, %v2265
    %v2267 = vrot.slane %v1837, 7
    %v2268 = vsel %vm203, %v2265, %v2267
    %v2269 = vrot.slane %v1838, 7
    %v2270 = vsel %vm203, %v2267, %v2269
    %v2271 = vsel %vm203, %v2269, %v1320
    %2272 = vrot.lane.b32.xlu0 %v2248, 96
    %v2273 = vpop.permute.xlu0 %2272
    %2274 = vrot.lane.b32.xlu0 %v2250, 96
    %v2275 = vpop.permute.xlu0 %2274
    %2276 = vrot.lane.b32.xlu0 %v2252, 96
    %v2277 = vpop.permute.xlu0 %2276
    %2278 = vrot.lane.b32.xlu0 %v2254, 96
    %v2279 = vpop.permute.xlu0 %2278
    %2280 = vrot.lane.b32.xlu0 %v2256, 96
    %v2281 = vpop.permute.xlu0 %2280
    %2282 = vrot.lane.b32.xlu0 %v2258, 96
    %v2283 = vpop.permute.xlu0 %2282
    %2284 = vrot.lane.b32.xlu0 %v2260, 96
    %v2285 = vpop.permute.xlu0 %2284
    %2286 = vrot.lane.b32.xlu0 %v2262, 96
    %v2287 = vpop.permute.xlu0 %2286
    %2288 = vrot.lane.b32.xlu0 %v2264, 96
    %v2289 = vpop.permute.xlu0 %2288
    %2290 = vrot.lane.b32.xlu0 %v2266, 96
    %v2291 = vpop.permute.xlu0 %2290
    %2292 = vrot.lane.b32.xlu0 %v2268, 96
    %v2293 = vpop.permute.xlu0 %2292
    %2294 = vrot.lane.b32.xlu0 %v2270, 96
    %v2295 = vpop.permute.xlu0 %2294
    %2296 = vrot.lane.b32.xlu0 %v2271, 96
    %v2297 = vpop.permute.xlu0 %2296
    %v2311 = vsel %vm1511, %v151, %v1888
    %v2312 = vsel %vm1511, %v1738, %v1890
    %v2313 = vsel %vm1511, %v1739, %v1892
    %v2314 = vsel %vm1511, %v1740, %v1894
    %v2315 = vsel %vm1511, %v1741, %v1896
    %v2316 = vsel %vm1511, %v1742, %v1898
    %v2317 = vsel %vm1511, %v1743, %v1900
    %v2318 = vsel %vm1511, %v1744, %v1902
    %v2319 = vsel %vm1511, %v1745, %v1904
    %v2320 = vsel %vm1511, %v1746, %v1906
    %v2321 = vsel %vm1511, %v1747, %v1908
    %v2322 = vsel %vm1511, %v1748, %v1910
    %v2323 = vsel %vm1511, %v1749, %v1912
    %vm2324 = vcmask 523264
    %v2325 = vsel %vm2324, %v2311, %v1963
    %v2326 = vsel %vm2324, %v2312, %v1965
    %v2327 = vsel %vm2324, %v2313, %v1967
    %v2328 = vsel %vm2324, %v2314, %v1969
    %v2329 = vsel %vm2324, %v2315, %v1971
    %v2330 = vsel %vm2324, %v2316, %v1973
    %v2331 = vsel %vm2324, %v2317, %v1975
    %v2332 = vsel %vm2324, %v2318, %v1977
    %v2333 = vsel %vm2324, %v2319, %v1979
    %v2334 = vsel %vm2324, %v2320, %v1981
    %v2335 = vsel %vm2324, %v2321, %v1983
    %v2336 = vsel %vm2324, %v2322, %v1985
    %v2337 = vsel %vm2324, %v2323, %v1987
    %vm2338 = vcmask 785408
    %v2339 = vsel %vm2338, %v2325, %v2041
    %v2340 = vsel %vm2338, %v2326, %v2043
    %v2341 = vsel %vm2338, %v2327, %v2045
    %v2342 = vsel %vm2338, %v2328, %v2047
    %v2343 = vsel %vm2338, %v2329, %v2049
    %v2344 = vsel %vm2338, %v2330, %v2051
    %v2345 = vsel %vm2338, %v2331, %v2053
    %v2346 = vsel %vm2338, %v2332, %v2055
    %v2347 = vsel %vm2338, %v2333, %v2057
    %v2348 = vsel %vm2338, %v2334, %v2059
    %v2349 = vsel %vm2338, %v2335, %v2061
    %v2350 = vsel %vm2338, %v2336, %v2063
    %v2351 = vsel %vm2338, %v2337, %v2065
    %v2352 = vsel %vm1511, %v1787, %v2118
    %v2353 = vsel %vm1511, %v1788, %v2120
    %v2354 = vsel %vm1511, %v1789, %v2122
    %v2355 = vsel %vm1511, %v1790, %v2124
    %v2356 = vsel %vm1511, %v1791, %v2126
    %v2357 = vsel %vm1511, %v1792, %v2128
    %v2358 = vsel %vm1511, %v1793, %v2130
    %v2359 = vsel %vm1511, %v1794, %v2132
    %v2360 = vsel %vm1511, %v1795, %v2134
    %v2361 = vsel %vm1511, %v1796, %v2136
    %v2362 = vsel %vm1511, %v1797, %v2138
    %v2363 = vsel %vm1511, %v1798, %v2140
    %v2364 = vsel %vm1511, %v1799, %v2142
    %v2365 = vsel %vm2324, %v2352, %v2195
    %v2366 = vsel %vm2324, %v2353, %v2197
    %v2367 = vsel %vm2324, %v2354, %v2199
    %v2368 = vsel %vm2324, %v2355, %v2201
    %v2369 = vsel %vm2324, %v2356, %v2203
    %v2370 = vsel %vm2324, %v2357, %v2205
    %v2371 = vsel %vm2324, %v2358, %v2207
    %v2372 = vsel %vm2324, %v2359, %v2209
    %v2373 = vsel %vm2324, %v2360, %v2211
    %v2374 = vsel %vm2324, %v2361, %v2213
    %v2375 = vsel %vm2324, %v2362, %v2215
    %v2376 = vsel %vm2324, %v2363, %v2217
    %v2377 = vsel %vm2324, %v2364, %v2219
    %v2378 = vsel %vm2338, %v2365, %v2273
    %v2379 = vsel %vm2338, %v2366, %v2275
    %v2380 = vsel %vm2338, %v2367, %v2277
    %v2381 = vsel %vm2338, %v2368, %v2279
    %v2382 = vsel %vm2338, %v2369, %v2281
    %v2383 = vsel %vm2338, %v2370, %v2283
    %v2384 = vsel %vm2338, %v2371, %v2285
    %v2385 = vsel %vm2338, %v2372, %v2287
    %v2386 = vsel %vm2338, %v2373, %v2289
    %v2387 = vsel %vm2338, %v2374, %v2291
    %v2388 = vsel %vm2338, %v2375, %v2293
    %v2389 = vsel %vm2338, %v2376, %v2295
    %v2390 = vsel %vm2338, %v2377, %v2297
    %v2391 = vld [vmem:[%s4] sm:$0xf]
    %v2392 = vld [vmem:[%s4 + $0x4] sm:$0xf]
    %v2393 = vld [vmem:[%s4 + $0x8] sm:$0xf]
    %v2394 = vld [vmem:[%s4 + $0xc] sm:$0xf]
    %v2395 = vld [vmem:[%s4 + $0x10] sm:$0xf]
    %v2396 = vld [vmem:[%s4 + $0x14] sm:$0xf]
    %v2397 = vld [vmem:[%s4 + $0x18] sm:$0xf]
    %v2398 = vld [vmem:[%s4 + $0x1c] sm:$0xf]
    %v2399 = vld [vmem:[%s4 + $0x20] sm:$0xf]
    %v2400 = vld [vmem:[%s4 + $0x24] sm:$0xf]
    %v2401 = vld [vmem:[%s4 + $0x28] sm:$0xf]
    %v2402 = vld [vmem:[%s4 + $0x2c] sm:$0xf]
    %v2403 = vld [vmem:[%s4 + $0x30] sm:$0xf]
    %v2404 = vld [vmem:[%s4 + $0x34] sm:$0xf]
    %v2405 = vld [vmem:[%s4 + $0x38] sm:$0xf]
    %v2406 = vld [vmem:[%s4 + $0x3c] sm:$0xf]
    %v2407 = vld [vmem:[%s4 + $0x40] sm:$0xf]
    %v2408 = vld [vmem:[%s4 + $0x44] sm:$0xf]
    %v2409 = vld [vmem:[%s4 + $0x48] sm:$0xf]
    %v2410 = vld [vmem:[%s4 + $0x4c] sm:$0xf]
    %v2411 = vld [vmem:[%s4 + $0x50] sm:$0xf]
    %v2412 = vld [vmem:[%s4 + $0x54] sm:$0xf]
    %v2413 = vld [vmem:[%s4 + $0x58] sm:$0xf]
    %v2414 = vld [vmem:[%s4 + $0x5c] sm:$0xf]
    %v2415 = vld [vmem:[%s4 + $0x60] sm:$0xf]
    %v2416 = vld [vmem:[%s4 + $0x64] sm:$0xf]
    %v2417 = vld [vmem:[%s4 + $0x68] sm:$0xf]
    %v2418 = vld [vmem:[%s4 + $0x6c] sm:$0xf]
    %v2419 = vld [vmem:[%s4 + $0x70] sm:$0xf]
    %v2420 = vld [vmem:[%s4 + $0x74] sm:$0xf]
    %v2421 = vld [vmem:[%s4 + $0x78] sm:$0xf]
    %v2422 = vld [vmem:[%s4 + $0x7c] sm:$0xf]
    %v2423 = vld [vmem:[%s4 + $0x80] sm:$0xf]
    %v2424 = vld [vmem:[%s4 + $0x84] sm:$0xf]
    %v2425 = vld [vmem:[%s4 + $0x88] sm:$0xf]
    %v2426 = vld [vmem:[%s4 + $0x8c] sm:$0xf]
    %v2427 = vpack.c.bf16 %v2340, %v2339
    %v2428 = vpack.c.bf16 %v2379, %v2378
    %v2429 = vpack.c.bf16 %v1840, %v1839
    %v2430 = vpack.c.bf16 %v2342, %v2341
    %v2431 = vpack.c.bf16 %v2381, %v2380
    %v2432 = vpack.c.bf16 %v1842, %v1841
    %v2433 = vpack.c.bf16 %v2344, %v2343
    %v2434 = vpack.c.bf16 %v2383, %v2382
    %v2435 = vpack.c.bf16 %v1844, %v1843
    %v2436 = vpack.c.bf16 %v2346, %v2345
    %v2437 = vpack.c.bf16 %v2385, %v2384
    %v2438 = vpack.c.bf16 %v1846, %v1845
    %v2439 = vpack.c.bf16 %v2348, %v2347
    %v2440 = vpack.c.bf16 %v2387, %v2386
    %v2441 = vpack.c.bf16 %v1848, %v1847
    %v2442 = vpack.c.bf16 %v2350, %v2349
    %v2443 = vpack.c.bf16 %v2389, %v2388
    %v2444 = vpack.c.bf16 %v1850, %v1849
    %v2445 = vpack.c.bf16 %v2351, %v2351
    %v2446 = vpack.c.bf16 %v2390, %v2390
    %v2447 = vpack.c.bf16 %v840, %v840
    %v2448 = vld [vmem:[%s5] sm:$0x1]
    %v2450 = vlaneseq
    %v2451 = vshrl.u32 %v2450, 7
    %v2452 = vsub.s32 0, %v2451
    %v2453 = vrot.slane %v2448, %v2452
    %v2491 = vunpack.c.l.b16 %v2391
    %v2492 = vunpack.c.l.b16 %v2392
    %v2493 = vunpack.c.l.b16 %v2393
    %v2494 = vunpack.c.l.b16 %v2394
    %v2495 = vunpack.c.l.b16 %v2395
    %v2496 = vunpack.c.l.b16 %v2396
    %v2497 = vunpack.c.l.b16 %v2397
    %v2498 = vunpack.c.l.b16 %v2398
    %v2499 = vunpack.c.l.b16 %v2399
    %v2500 = vunpack.c.l.b16 %v2400
    %v2501 = vunpack.c.l.b16 %v2401
    %v2502 = vunpack.c.l.b16 %v2402
    %v2503 = vunpack.c.l.b16 %v2403
    %v2504 = vunpack.c.l.b16 %v2404
    %v2505 = vunpack.c.l.b16 %v2405
    %v2506 = vunpack.c.l.b16 %v2406
    %v2507 = vunpack.c.l.b16 %v2407
    %v2508 = vunpack.c.l.b16 %v2408
    %v2509 = vunpack.c.l.b16 %v2409
    %v2510 = vunpack.c.l.b16 %v2410
    %v2511 = vunpack.c.l.b16 %v2411
    %v2512 = vunpack.c.l.b16 %v2412
    %v2513 = vunpack.c.l.b16 %v2413
    %v2514 = vunpack.c.l.b16 %v2414
    %v2515 = vunpack.c.l.b16 %v2415
    %v2516 = vunpack.c.l.b16 %v2416
    %v2517 = vunpack.c.l.b16 %v2417
    %v2518 = vunpack.c.l.b16 %v2418
    %v2519 = vunpack.c.l.b16 %v2419
    %v2520 = vunpack.c.l.b16 %v2420
    %v2521 = vunpack.c.l.b16 %v2421
    %v2522 = vunpack.c.l.b16 %v2422
    %v2523 = vunpack.c.l.b16 %v2423
    %v2524 = vunpack.c.l.b16 %v2424
    %v2525 = vunpack.c.l.b16 %v2425
    %v2526 = vunpack.c.l.b16 %v2426
    %v2527 = vpack.c.b16 %v2492, %v2491
    %v2528 = vpack.c.b16 %v2494, %v2493
    %v2529 = vpack.c.b16 %v2496, %v2495
    %v2530 = vpack.c.b16 %v2498, %v2497
    %v2531 = vpack.c.b16 %v2500, %v2499
    %v2532 = vpack.c.b16 %v2502, %v2501
    %v2533 = vpack.c.b16 %v2504, %v2503
    %v2534 = vpack.c.b16 %v2506, %v2505
    %v2535 = vpack.c.b16 %v2508, %v2507
    %v2536 = vpack.c.b16 %v2510, %v2509
    %v2537 = vpack.c.b16 %v2512, %v2511
    %v2538 = vpack.c.b16 %v2514, %v2513
    %v2539 = vpack.c.b16 %v2516, %v2515
    %v2540 = vpack.c.b16 %v2518, %v2517
    %v2541 = vpack.c.b16 %v2520, %v2519
    %v2542 = vpack.c.b16 %v2522, %v2521
    %v2543 = vpack.c.b16 %v2524, %v2523
    %v2544 = vpack.c.b16 %v2526, %v2525
    %v2564 = vsel %vm1511, %v2429, 0
    %v2567 = vsel %vm1511, %v2432, 0
    %v2570 = vsel %vm1511, %v2435, 0
    %v2573 = vsel %vm1511, %v2438, 0
    %v2576 = vsel %vm1511, %v2441, 0
    %v2579 = vsel %vm1511, %v2444, 0
    %v2582 = vsel %vm1511, %v2447, 0
    %2584 = vmatprep.subr.bf16.mxu0 0
    %2585 = vmatpush1.bf16.msra.mxu0 %v2527
    %2586 = vmatprep.subr.bf16.mxu0 0
    %2587 = vmatpush1.bf16.msra.mxu0 %v2528
    %2588 = vmatprep.subr.bf16.mxu0 0
    %2589 = vmatpush1.bf16.msra.mxu0 %v2529
    %2590 = vmatprep.subr.bf16.mxu0 0
    %2591 = vmatpush1.bf16.msra.mxu0 %v2530
    %2592 = vmatprep.subr.bf16.mxu0 0
    %2593 = vmatpush1.bf16.msra.mxu0 %v2531
    %2594 = vmatprep.subr.bf16.mxu0 0
    %2595 = vmatpush1.bf16.msra.mxu0 %v2532
    %2596 = vmatprep.subr.bf16.mxu0 0
    %2597 = vmatpush1.bf16.msra.mxu0 %v2533
    %2598 = vmatprep.subr.bf16.mxu0 0
    %2599 = vmatpush1.bf16.msra.mxu0 %v2534
    %2600 = vmatprep.subr.bf16.mxu0 0
    %2601 = vmatpush1.bf16.msra.mxu0 %v2535
    %2602 = vmatprep.subr.bf16.mxu0 0
    %2603 = vmatpush1.bf16.msra.mxu0 %v2536
    %2604 = vmatprep.subr.bf16.mxu0 0
    %2605 = vmatpush1.bf16.msra.mxu0 %v2537
    %2606 = vmatprep.subr.bf16.mxu0 0
    %2607 = vmatpush1.bf16.msra.mxu0 %v2538
    %2608 = vmatprep.subr.bf16.mxu0 0
    %2609 = vmatpush1.bf16.msra.mxu0 %v2539
    %2610 = vmatprep.subr.bf16.mxu0 0
    %2611 = vmatpush1.bf16.msra.mxu0 %v2540
    %2612 = vmatprep.subr.bf16.mxu0 0
    %2613 = vmatpush1.bf16.msra.mxu0 %v2541
    %2614 = vmatprep.subr.bf16.mxu0 0
    %2615 = vmatpush1.bf16.msra.mxu0 %v2542
    %2616 = vmatprep.mubr.bf16.mxu0 %v2428
    %2617 = vmatmul.mubr.bf16.gmra.mrb[0].mxu0 %v2427
    %v2618 = vpop.f32.mrb[0].mxu0
    %v2619 = vadd.f32 %v2453, %v2618
    %v2620 = vpop.f32.mrb[0].mxu0
    %v2621 = vpop.f32.mrb[0].mxu0
    %v2622 = vadd.f32 %v2453, %v2621
    %v2623 = vpop.f32.mrb[0].mxu0
    %2624 = vmatprep.mubr.bf16.mxu0 %v2431
    %2625 = vmatmul.mubr.bf16.gmra.mrb[0].mxu0 %v2430
    %v2626 = vpop.f32.mrb[0].mxu0
    %v2627 = vadd.f32 %v2453, %v2626
    %v2628 = vpop.f32.mrb[0].mxu0
    %v2629 = vpop.f32.mrb[0].mxu0
    %v2630 = vadd.f32 %v2453, %v2629
    %v2631 = vpop.f32.mrb[0].mxu0
    %2632 = vmatprep.mubr.bf16.mxu0 %v2434
    %2633 = vmatmul.mubr.bf16.gmra.mrb[0].mxu0 %v2433
    %v2634 = vpop.f32.mrb[0].mxu0
    %v2635 = vadd.f32 %v2453, %v2634
    %v2636 = vpop.f32.mrb[0].mxu0
    %v2637 = vpop.f32.mrb[0].mxu0
    %v2638 = vadd.f32 %v2453, %v2637
    %v2639 = vpop.f32.mrb[0].mxu0
    %2640 = vmatprep.mubr.bf16.mxu0 %v2437
    %2641 = vmatmul.mubr.bf16.gmra.mrb[0].mxu0 %v2436
    %v2642 = vpop.f32.mrb[0].mxu0
    %v2643 = vadd.f32 %v2453, %v2642
    %v2644 = vpop.f32.mrb[0].mxu0
    %v2645 = vpop.f32.mrb[0].mxu0
    %v2646 = vadd.f32 %v2453, %v2645
    %v2647 = vpop.f32.mrb[0].mxu0
    %2648 = vmatprep.mubr.bf16.mxu0 %v2440
    %2649 = vmatmul.mubr.bf16.gmra.mrb[0].mxu0 %v2439
    %v2650 = vpop.f32.mrb[0].mxu0
    %v2651 = vadd.f32 %v2453, %v2650
    %v2652 = vpop.f32.mrb[0].mxu0
    %v2653 = vpop.f32.mrb[0].mxu0
    %v2654 = vadd.f32 %v2453, %v2653
    %v2655 = vpop.f32.mrb[0].mxu0
    %2656 = vmatprep.mubr.bf16.mxu0 %v2443
    %2657 = vmatmul.mubr.bf16.gmra.mrb[0].mxu0 %v2442
    %v2658 = vpop.f32.mrb[0].mxu0
    %v2659 = vadd.f32 %v2453, %v2658
    %v2660 = vpop.f32.mrb[0].mxu0
    %v2661 = vpop.f32.mrb[0].mxu0
    %v2662 = vadd.f32 %v2453, %v2661
    %v2663 = vpop.f32.mrb[0].mxu0
    %2664 = vmatprep.mubr.bf16.mxu0 %v2446
    %2665 = vmatmul.mubr.bf16.gmra.mrb[0].mxu0 %v2445
    %v2666 = vpop.f32.mrb[0].mxu0
    %v2667 = vadd.f32 %v2453, %v2666
    %v2668 = vpop.f32.mrb[0].mxu0
    %v2669 = vpop.f32.mrb[0].mxu0
    %v2670 = vpop.f32.mrb[0].mxu0
    %2671 = vdwg.mxu0
    %2672 = vmatprep.subr.bf16.mxu0 0
    %2673 = vmatpush1.bf16.msra.mxu0 %v2543
    %2674 = vmatprep.subr.bf16.mxu0 0
    %2675 = vmatpush1.bf16.msra.mxu0 %v2544
    %2676 = vmatprep.subr.bf16.mxu0 0
    %2677 = vmatpush1.bf16.msra.mxu0 0
    %2678 = vmatprep.subr.bf16.mxu0 0
    %2679 = vmatpush1.bf16.msra.mxu0 0
    %2680 = vmatprep.subr.bf16.mxu0 0
    %2681 = vmatpush1.bf16.msra.mxu0 0
    %2682 = vmatprep.subr.bf16.mxu0 0
    %2683 = vmatpush1.bf16.msra.mxu0 0
    %2684 = vmatprep.subr.bf16.mxu0 0
    %2685 = vmatpush1.bf16.msra.mxu0 0
    %2686 = vmatprep.subr.bf16.mxu0 0
    %2687 = vmatpush1.bf16.msra.mxu0 0
    %2688 = vmatprep.subr.bf16.mxu0 0
    %2689 = vmatpush1.bf16.msra.mxu0 0
    %2690 = vmatprep.subr.bf16.mxu0 0
    %2691 = vmatpush1.bf16.msra.mxu0 0
    %2692 = vmatprep.subr.bf16.mxu0 0
    %2693 = vmatpush1.bf16.msra.mxu0 0
    %2694 = vmatprep.subr.bf16.mxu0 0
    %2695 = vmatpush1.bf16.msra.mxu0 0
    %2696 = vmatprep.subr.bf16.mxu0 0
    %2697 = vmatpush1.bf16.msra.mxu0 0
    %2698 = vmatprep.subr.bf16.mxu0 0
    %2699 = vmatpush1.bf16.msra.mxu0 0
    %2700 = vmatprep.subr.bf16.mxu0 0
    %2701 = vmatpush1.bf16.msra.mxu0 0
    %2702 = vmatprep.subr.bf16.mxu0 0
    %2703 = vmatpush1.bf16.msra.mxu0 0
    %2704 = vmatprep.mubr.bf16.mxu0 0
    %2705 = vmatmul.mubr.bf16.gmra.mrb[0].mxu0 %v2564
    %v2706 = vpop.f32.mrb[0].mxu0
    %v2707 = vadd.f32 %v2619, %v2706
    %v2708 = vpop.f32.mrb[0].mxu0
    %v2709 = vpop.f32.mrb[0].mxu0
    %v2710 = vadd.f32 %v2622, %v2709
    %v2711 = vpop.f32.mrb[0].mxu0
    %2712 = vmatprep.mubr.bf16.mxu0 0
    %2713 = vmatmul.mubr.bf16.gmra.mrb[0].mxu0 %v2567
    %v2714 = vpop.f32.mrb[0].mxu0
    %v2715 = vadd.f32 %v2627, %v2714
    %v2716 = vpop.f32.mrb[0].mxu0
    %v2717 = vpop.f32.mrb[0].mxu0
    %v2718 = vadd.f32 %v2630, %v2717
    %v2719 = vpop.f32.mrb[0].mxu0
    %2720 = vmatprep.mubr.bf16.mxu0 0
    %2721 = vmatmul.mubr.bf16.gmra.mrb[0].mxu0 %v2570
    %v2722 = vpop.f32.mrb[0].mxu0
    %v2723 = vadd.f32 %v2635, %v2722
    %v2724 = vpop.f32.mrb[0].mxu0
    %v2725 = vpop.f32.mrb[0].mxu0
    %v2726 = vadd.f32 %v2638, %v2725
    %v2727 = vpop.f32.mrb[0].mxu0
    %2728 = vmatprep.mubr.bf16.mxu0 0
    %2729 = vmatmul.mubr.bf16.gmra.mrb[0].mxu0 %v2573
    %v2730 = vpop.f32.mrb[0].mxu0
    %v2731 = vadd.f32 %v2643, %v2730
    %v2732 = vpop.f32.mrb[0].mxu0
    %v2733 = vpop.f32.mrb[0].mxu0
    %v2734 = vadd.f32 %v2646, %v2733
    %v2735 = vpop.f32.mrb[0].mxu0
    %2736 = vmatprep.mubr.bf16.mxu0 0
    %2737 = vmatmul.mubr.bf16.gmra.mrb[0].mxu0 %v2576
    %v2738 = vpop.f32.mrb[0].mxu0
    %v2739 = vadd.f32 %v2651, %v2738
    %v2740 = vpop.f32.mrb[0].mxu0
    %v2741 = vpop.f32.mrb[0].mxu0
    %v2742 = vadd.f32 %v2654, %v2741
    %v2743 = vpop.f32.mrb[0].mxu0
    %2744 = vmatprep.mubr.bf16.mxu0 0
    %2745 = vmatmul.mubr.bf16.gmra.mrb[0].mxu0 %v2579
    %v2746 = vpop.f32.mrb[0].mxu0
    %v2747 = vadd.f32 %v2659, %v2746
    %v2748 = vpop.f32.mrb[0].mxu0
    %v2749 = vpop.f32.mrb[0].mxu0
    %v2750 = vadd.f32 %v2662, %v2749
    %v2751 = vpop.f32.mrb[0].mxu0
    %2752 = vmatprep.mubr.bf16.mxu0 0
    %2753 = vmatmul.mubr.bf16.gmra.mrb[0].mxu0 %v2582
    %v2754 = vpop.f32.mrb[0].mxu0
    %v2755 = vadd.f32 %v2667, %v2754
    %v2756 = vpop.f32.mrb[0].mxu0
    %v2757 = vpop.f32.mrb[0].mxu0
    %v2758 = vpop.f32.mrb[0].mxu0
    %2759 = vdwg.mxu0
    %vm2760 = vcmp.gt.f32.partialorder %v2707, 0.0
    %vm2761 = vcmp.gt.f32.partialorder %v2710, 0.0
    %vm2762 = vcmp.gt.f32.partialorder %v2715, 0.0
    %vm2763 = vcmp.gt.f32.partialorder %v2718, 0.0
    %vm2764 = vcmp.gt.f32.partialorder %v2723, 0.0
    %vm2765 = vcmp.gt.f32.partialorder %v2726, 0.0
    %vm2766 = vcmp.gt.f32.partialorder %v2731, 0.0
    %vm2767 = vcmp.gt.f32.partialorder %v2734, 0.0
    %vm2768 = vcmp.gt.f32.partialorder %v2739, 0.0
    %vm2769 = vcmp.gt.f32.partialorder %v2742, 0.0
    %vm2770 = vcmp.gt.f32.partialorder %v2747, 0.0
    %vm2771 = vcmp.gt.f32.partialorder %v2750, 0.0
    %vm2772 = vcmp.gt.f32.partialorder %v2755, 0.0
    %v2773 = vmul.f32 %v2707, 1.442695
    %v2774 = vpow.pop %v2773
    %v2775 = vmul.f32 %v2710, 1.442695
    %v2776 = vpow.pop %v2775
    %v2777 = vmul.f32 %v2715, 1.442695
    %v2778 = vpow.pop %v2777
    %v2779 = vmul.f32 %v2718, 1.442695
    %v2780 = vpow.pop %v2779
    %v2781 = vmul.f32 %v2723, 1.442695
    %v2782 = vpow.pop %v2781
    %v2783 = vmul.f32 %v2726, 1.442695
    %v2784 = vpow.pop %v2783
    %v2785 = vmul.f32 %v2731, 1.442695
    %v2786 = vpow.pop %v2785
    %v2787 = vmul.f32 %v2734, 1.442695
    %v2788 = vpow.pop %v2787
    %v2789 = vmul.f32 %v2739, 1.442695
    %v2790 = vpow.pop %v2789
    %v2791 = vmul.f32 %v2742, 1.442695
    %v2792 = vpow.pop %v2791
    %v2793 = vmul.f32 %v2747, 1.442695
    %v2794 = vpow.pop %v2793
    %v2795 = vmul.f32 %v2750, 1.442695
    %v2796 = vpow.pop %v2795
    %v2797 = vmul.f32 %v2755, 1.442695
    %v2798 = vpow.pop %v2797
    %v2799 = vsub.f32 %v2774, 1.0
    %v2800 = vsub.f32 %v2776, 1.0
    %v2801 = vsub.f32 %v2778, 1.0
    %v2802 = vsub.f32 %v2780, 1.0
    %v2803 = vsub.f32 %v2782, 1.0
    %v2804 = vsub.f32 %v2784, 1.0
    %v2805 = vsub.f32 %v2786, 1.0
    %v2806 = vsub.f32 %v2788, 1.0
    %v2807 = vsub.f32 %v2790, 1.0
    %v2808 = vsub.f32 %v2792, 1.0
    %v2809 = vsub.f32 %v2794, 1.0
    %v2810 = vsub.f32 %v2796, 1.0
    %v2811 = vsub.f32 %v2798, 1.0
    %v2812 = vsel %vm2760, %v2707, %v2799
    %v2813 = vsel %vm2761, %v2710, %v2800
    %v2814 = vsel %vm2762, %v2715, %v2801
    %v2815 = vsel %vm2763, %v2718, %v2802
    %v2816 = vsel %vm2764, %v2723, %v2803
    %v2817 = vsel %vm2765, %v2726, %v2804
    %v2818 = vsel %vm2766, %v2731, %v2805
    %v2819 = vsel %vm2767, %v2734, %v2806
    %v2820 = vsel %vm2768, %v2739, %v2807
    %v2821 = vsel %vm2769, %v2742, %v2808
    %v2822 = vsel %vm2770, %v2747, %v2809
    %v2823 = vsel %vm2771, %v2750, %v2810
    %v2824 = vsel %vm2772, %v2755, %v2811
    %v2825 = vsel %vm84, %v2824, 0.0
    %v2826 = vmul.f32 %v2812, %v94
    %v2827 = vmul.f32 %v2813, %v99
    %v2828 = vmul.f32 %v2814, %v104
    %v2829 = vmul.f32 %v2815, %v109
    %v2830 = vmul.f32 %v2816, %v114
    %v2831 = vmul.f32 %v2817, %v119
    %v2832 = vmul.f32 %v2818, %v124
    %v2833 = vmul.f32 %v2819, %v129
    %v2834 = vmul.f32 %v2820, %v134
    %v2835 = vmul.f32 %v2821, %v139
    %v2836 = vmul.f32 %v2822, %v144
    %v2837 = vmul.f32 %v2823, %v149
    %v2838 = vmul.f32 %v2812, %v206
    %v2839 = vmul.f32 %v2813, %v208
    %v2840 = vmul.f32 %v2814, %v210
    %v2841 = vmul.f32 %v2815, %v212
    %v2842 = vmul.f32 %v2816, %v214
    %v2843 = vmul.f32 %v2817, %v216
    %v2844 = vmul.f32 %v2818, %v218
    %v2845 = vmul.f32 %v2819, %v220
    %v2846 = vmul.f32 %v2820, %v222
    %v2847 = vmul.f32 %v2821, %v224
    %v2848 = vmul.f32 %v2822, %v226
    %v2849 = vmul.f32 %v2823, %v228
    %v2850 = vmul.f32 %v2812, %v296
    %v2851 = vmul.f32 %v2813, %v298
    %v2852 = vmul.f32 %v2814, %v300
    %v2853 = vmul.f32 %v2815, %v302
    %v2854 = vmul.f32 %v2816, %v304
    %v2855 = vmul.f32 %v2817, %v306
    %v2856 = vmul.f32 %v2818, %v308
    %v2857 = vmul.f32 %v2819, %v310
    %v2858 = vmul.f32 %v2820, %v312
    %v2859 = vmul.f32 %v2821, %v314
    %v2860 = vmul.f32 %v2822, %v316
    %v2861 = vmul.f32 %v2823, %v318
    %v2862 = vmul.f32 %v2812, %v387
    %v2863 = vmul.f32 %v2813, %v389
    %v2864 = vmul.f32 %v2814, %v391
    %v2865 = vmul.f32 %v2815, %v393
    %v2866 = vmul.f32 %v2816, %v395
    %v2867 = vmul.f32 %v2817, %v397
    %v2868 = vmul.f32 %v2818, %v399
    %v2869 = vmul.f32 %v2819, %v401
    %v2870 = vmul.f32 %v2820, %v403
    %v2871 = vmul.f32 %v2821, %v405
    %v2872 = vmul.f32 %v2822, %v407
    %v2873 = vmul.f32 %v2823, %v409
    %v2874 = vmul.f32 %v2825, %v408
    %v2875 = vmul.f32 %v2812, %v440
    %v2876 = vmul.f32 %v2813, %v444
    %v2877 = vmul.f32 %v2814, %v448
    %v2878 = vmul.f32 %v2815, %v452
    %v2879 = vmul.f32 %v2816, %v456
    %v2880 = vmul.f32 %v2817, %v460
    %v2881 = vmul.f32 %v2818, %v464
    %v2882 = vmul.f32 %v2819, %v468
    %v2883 = vmul.f32 %v2820, %v472
    %v2884 = vmul.f32 %v2821, %v476
    %v2885 = vmul.f32 %v2822, %v480
    %v2886 = vmul.f32 %v2823, %v484
    %v2887 = vmul.f32 %v2825, %v488
    %v2888 = vmul.f32 %v2812, %v542
    %v2889 = vmul.f32 %v2813, %v544
    %v2890 = vmul.f32 %v2814, %v546
    %v2891 = vmul.f32 %v2815, %v548
    %v2892 = vmul.f32 %v2816, %v550
    %v2893 = vmul.f32 %v2817, %v552
    %v2894 = vmul.f32 %v2818, %v554
    %v2895 = vmul.f32 %v2819, %v556
    %v2896 = vmul.f32 %v2820, %v558
    %v2897 = vmul.f32 %v2821, %v560
    %v2898 = vmul.f32 %v2822, %v562
    %v2899 = vmul.f32 %v2823, %v564
    %v2900 = vmul.f32 %v2825, %v566
    %v2901 = vmul.f32 %v2812, %v633
    %v2902 = vmul.f32 %v2813, %v635
    %v2903 = vmul.f32 %v2814, %v637
    %v2904 = vmul.f32 %v2815, %v639
    %v2905 = vmul.f32 %v2816, %v641
    %v2906 = vmul.f32 %v2817, %v643
    %v2907 = vmul.f32 %v2818, %v645
    %v2908 = vmul.f32 %v2819, %v647
    %v2909 = vmul.f32 %v2820, %v649
    %v2910 = vmul.f32 %v2821, %v651
    %v2911 = vmul.f32 %v2822, %v653
    %v2912 = vmul.f32 %v2823, %v655
    %v2913 = vmul.f32 %v2825, %v657
    %v2914 = vmul.f32 %v2812, %v723
    %v2915 = vmul.f32 %v2813, %v725
    %v2916 = vmul.f32 %v2814, %v727
    %v2917 = vmul.f32 %v2815, %v729
    %v2918 = vmul.f32 %v2816, %v731
    %v2919 = vmul.f32 %v2817, %v733
    %v2920 = vmul.f32 %v2818, %v735
    %v2921 = vmul.f32 %v2819, %v737
    %v2922 = vmul.f32 %v2820, %v739
    %v2923 = vmul.f32 %v2821, %v741
    %v2924 = vmul.f32 %v2822, %v743
    %v2925 = vmul.f32 %v2823, %v745
    %v2926 = vmul.f32 %v2825, %v747
    %v2927 = vmul.f32 %v2813, %v778
    %v2928 = vmul.f32 %v2814, %v782
    %v2929 = vmul.f32 %v2815, %v786
    %v2930 = vmul.f32 %v2816, %v790
    %v2931 = vmul.f32 %v2817, %v794
    %v2932 = vmul.f32 %v2818, %v798
    %v2933 = vmul.f32 %v2819, %v802
    %v2934 = vmul.f32 %v2820, %v806
    %v2935 = vmul.f32 %v2821, %v810
    %v2936 = vmul.f32 %v2822, %v814
    %v2937 = vmul.f32 %v2823, %v818
    %v2938 = vmul.f32 %v2825, %v822
    %v2951 = vrot.slane %v2838, 1
    %v2952 = vsel %vm384, %v854, %v2951
    %v2953 = vrot.slane %v2839, 1
    %v2954 = vsel %vm384, %v2951, %v2953
    %v2955 = vrot.slane %v2840, 1
    %v2956 = vsel %vm384, %v2953, %v2955
    %v2957 = vrot.slane %v2841, 1
    %v2958 = vsel %vm384, %v2955, %v2957
    %v2959 = vrot.slane %v2842, 1
    %v2960 = vsel %vm384, %v2957, %v2959
    %v2961 = vrot.slane %v2843, 1
    %v2962 = vsel %vm384, %v2959, %v2961
    %v2963 = vrot.slane %v2844, 1
    %v2964 = vsel %vm384, %v2961, %v2963
    %v2965 = vrot.slane %v2845, 1
    %v2966 = vsel %vm384, %v2963, %v2965
    %v2967 = vrot.slane %v2846, 1
    %v2968 = vsel %vm384, %v2965, %v2967
    %v2969 = vrot.slane %v2847, 1
    %v2970 = vsel %vm384, %v2967, %v2969
    %v2971 = vrot.slane %v2848, 1
    %v2972 = vsel %vm384, %v2969, %v2971
    %v2973 = vrot.slane %v2849, 1
    %v2974 = vsel %vm384, %v2971, %v2973
    %2975 = vrot.lane.b32.xlu0 %v2952, 32
    %v2976 = vpop.permute.xlu0 %2975
    %2977 = vrot.lane.b32.xlu0 %v2954, 32
    %v2978 = vpop.permute.xlu0 %2977
    %2979 = vrot.lane.b32.xlu0 %v2956, 32
    %v2980 = vpop.permute.xlu0 %2979
    %2981 = vrot.lane.b32.xlu0 %v2958, 32
    %v2982 = vpop.permute.xlu0 %2981
    %2983 = vrot.lane.b32.xlu0 %v2960, 32
    %v2984 = vpop.permute.xlu0 %2983
    %2985 = vrot.lane.b32.xlu0 %v2962, 32
    %v2986 = vpop.permute.xlu0 %2985
    %2987 = vrot.lane.b32.xlu0 %v2964, 32
    %v2988 = vpop.permute.xlu0 %2987
    %2989 = vrot.lane.b32.xlu0 %v2966, 32
    %v2990 = vpop.permute.xlu0 %2989
    %2991 = vrot.lane.b32.xlu0 %v2968, 32
    %v2992 = vpop.permute.xlu0 %2991
    %2993 = vrot.lane.b32.xlu0 %v2970, 32
    %v2994 = vpop.permute.xlu0 %2993
    %2995 = vrot.lane.b32.xlu0 %v2972, 32
    %v2996 = vpop.permute.xlu0 %2995
    %2997 = vrot.lane.b32.xlu0 %v2974, 32
    %v2998 = vpop.permute.xlu0 %2997
    %2999 = vrot.lane.b32.xlu0 %v2973, 32
    %v3000 = vpop.permute.xlu0 %2999
    %v3026 = vrot.slane %v2850, 2
    %v3027 = vsel %vm632, %v931, %v3026
    %v3028 = vrot.slane %v2851, 2
    %v3029 = vsel %vm632, %v3026, %v3028
    %v3030 = vrot.slane %v2852, 2
    %v3031 = vsel %vm632, %v3028, %v3030
    %v3032 = vrot.slane %v2853, 2
    %v3033 = vsel %vm632, %v3030, %v3032
    %v3034 = vrot.slane %v2854, 2
    %v3035 = vsel %vm632, %v3032, %v3034
    %v3036 = vrot.slane %v2855, 2
    %v3037 = vsel %vm632, %v3034, %v3036
    %v3038 = vrot.slane %v2856, 2
    %v3039 = vsel %vm632, %v3036, %v3038
    %v3040 = vrot.slane %v2857, 2
    %v3041 = vsel %vm632, %v3038, %v3040
    %v3042 = vrot.slane %v2858, 2
    %v3043 = vsel %vm632, %v3040, %v3042
    %v3044 = vrot.slane %v2859, 2
    %v3045 = vsel %vm632, %v3042, %v3044
    %v3046 = vrot.slane %v2860, 2
    %v3047 = vsel %vm632, %v3044, %v3046
    %v3048 = vrot.slane %v2861, 2
    %v3049 = vsel %vm632, %v3046, %v3048
    %3050 = vrot.lane.b32.xlu0 %v3027, 64
    %v3051 = vpop.permute.xlu0 %3050
    %3052 = vrot.lane.b32.xlu0 %v3029, 64
    %v3053 = vpop.permute.xlu0 %3052
    %3054 = vrot.lane.b32.xlu0 %v3031, 64
    %v3055 = vpop.permute.xlu0 %3054
    %3056 = vrot.lane.b32.xlu0 %v3033, 64
    %v3057 = vpop.permute.xlu0 %3056
    %3058 = vrot.lane.b32.xlu0 %v3035, 64
    %v3059 = vpop.permute.xlu0 %3058
    %3060 = vrot.lane.b32.xlu0 %v3037, 64
    %v3061 = vpop.permute.xlu0 %3060
    %3062 = vrot.lane.b32.xlu0 %v3039, 64
    %v3063 = vpop.permute.xlu0 %3062
    %3064 = vrot.lane.b32.xlu0 %v3041, 64
    %v3065 = vpop.permute.xlu0 %3064
    %3066 = vrot.lane.b32.xlu0 %v3043, 64
    %v3067 = vpop.permute.xlu0 %3066
    %3068 = vrot.lane.b32.xlu0 %v3045, 64
    %v3069 = vpop.permute.xlu0 %3068
    %3070 = vrot.lane.b32.xlu0 %v3047, 64
    %v3071 = vpop.permute.xlu0 %3070
    %3072 = vrot.lane.b32.xlu0 %v3049, 64
    %v3073 = vpop.permute.xlu0 %3072
    %3074 = vrot.lane.b32.xlu0 %v3048, 64
    %v3075 = vpop.permute.xlu0 %3074
    %v3102 = vrot.slane %v2862, 7
    %v3103 = vsel %vm203, %v1009, %v3102
    %v3104 = vrot.slane %v2863, 7
    %v3105 = vsel %vm203, %v3102, %v3104
    %v3106 = vrot.slane %v2864, 7
    %v3107 = vsel %vm203, %v3104, %v3106
    %v3108 = vrot.slane %v2865, 7
    %v3109 = vsel %vm203, %v3106, %v3108
    %v3110 = vrot.slane %v2866, 7
    %v3111 = vsel %vm203, %v3108, %v3110
    %v3112 = vrot.slane %v2867, 7
    %v3113 = vsel %vm203, %v3110, %v3112
    %v3114 = vrot.slane %v2868, 7
    %v3115 = vsel %vm203, %v3112, %v3114
    %v3116 = vrot.slane %v2869, 7
    %v3117 = vsel %vm203, %v3114, %v3116
    %v3118 = vrot.slane %v2870, 7
    %v3119 = vsel %vm203, %v3116, %v3118
    %v3120 = vrot.slane %v2871, 7
    %v3121 = vsel %vm203, %v3118, %v3120
    %v3122 = vrot.slane %v2872, 7
    %v3123 = vsel %vm203, %v3120, %v3122
    %v3124 = vrot.slane %v2873, 7
    %v3125 = vsel %vm203, %v3122, %v3124
    %v3126 = vrot.slane %v2874, 7
    %v3127 = vsel %vm203, %v3124, %v3126
    %3128 = vrot.lane.b32.xlu0 %v3103, 96
    %v3129 = vpop.permute.xlu0 %3128
    %3130 = vrot.lane.b32.xlu0 %v3105, 96
    %v3131 = vpop.permute.xlu0 %3130
    %3132 = vrot.lane.b32.xlu0 %v3107, 96
    %v3133 = vpop.permute.xlu0 %3132
    %3134 = vrot.lane.b32.xlu0 %v3109, 96
    %v3135 = vpop.permute.xlu0 %3134
    %3136 = vrot.lane.b32.xlu0 %v3111, 96
    %v3137 = vpop.permute.xlu0 %3136
    %3138 = vrot.lane.b32.xlu0 %v3113, 96
    %v3139 = vpop.permute.xlu0 %3138
    %3140 = vrot.lane.b32.xlu0 %v3115, 96
    %v3141 = vpop.permute.xlu0 %3140
    %3142 = vrot.lane.b32.xlu0 %v3117, 96
    %v3143 = vpop.permute.xlu0 %3142
    %3144 = vrot.lane.b32.xlu0 %v3119, 96
    %v3145 = vpop.permute.xlu0 %3144
    %3146 = vrot.lane.b32.xlu0 %v3121, 96
    %v3147 = vpop.permute.xlu0 %3146
    %3148 = vrot.lane.b32.xlu0 %v3123, 96
    %v3149 = vpop.permute.xlu0 %3148
    %3150 = vrot.lane.b32.xlu0 %v3125, 96
    %v3151 = vpop.permute.xlu0 %3150
    %3152 = vrot.lane.b32.xlu0 %v3127, 96
    %v3153 = vpop.permute.xlu0 %3152
    %v3180 = vrot.slane %v2888, 1
    %v3181 = vrot.slane %v2889, 1
    %v3182 = vsel %vm384, %v3180, %v3181
    %v3183 = vrot.slane %v2890, 1
    %v3184 = vsel %vm384, %v3181, %v3183
    %v3185 = vrot.slane %v2891, 1
    %v3186 = vsel %vm384, %v3183, %v3185
    %v3187 = vrot.slane %v2892, 1
    %v3188 = vsel %vm384, %v3185, %v3187
    %v3189 = vrot.slane %v2893, 1
    %v3190 = vsel %vm384, %v3187, %v3189
    %v3191 = vrot.slane %v2894, 1
    %v3192 = vsel %vm384, %v3189, %v3191
    %v3193 = vrot.slane %v2895, 1
    %v3194 = vsel %vm384, %v3191, %v3193
    %v3195 = vrot.slane %v2896, 1
    %v3196 = vsel %vm384, %v3193, %v3195
    %v3197 = vrot.slane %v2897, 1
    %v3198 = vsel %vm384, %v3195, %v3197
    %v3199 = vrot.slane %v2898, 1
    %v3200 = vsel %vm384, %v3197, %v3199
    %v3201 = vrot.slane %v2899, 1
    %v3202 = vsel %vm384, %v3199, %v3201
    %v3203 = vrot.slane %v2900, 1
    %v3204 = vsel %vm384, %v3201, %v3203
    %3205 = vrot.lane.b32.xlu0 %v3182, 32
    %v3206 = vpop.permute.xlu0 %3205
    %3207 = vrot.lane.b32.xlu0 %v3184, 32
    %v3208 = vpop.permute.xlu0 %3207
    %3209 = vrot.lane.b32.xlu0 %v3186, 32
    %v3210 = vpop.permute.xlu0 %3209
    %3211 = vrot.lane.b32.xlu0 %v3188, 32
    %v3212 = vpop.permute.xlu0 %3211
    %3213 = vrot.lane.b32.xlu0 %v3190, 32
    %v3214 = vpop.permute.xlu0 %3213
    %3215 = vrot.lane.b32.xlu0 %v3192, 32
    %v3216 = vpop.permute.xlu0 %3215
    %3217 = vrot.lane.b32.xlu0 %v3194, 32
    %v3218 = vpop.permute.xlu0 %3217
    %3219 = vrot.lane.b32.xlu0 %v3196, 32
    %v3220 = vpop.permute.xlu0 %3219
    %3221 = vrot.lane.b32.xlu0 %v3198, 32
    %v3222 = vpop.permute.xlu0 %3221
    %3223 = vrot.lane.b32.xlu0 %v3200, 32
    %v3224 = vpop.permute.xlu0 %3223
    %3225 = vrot.lane.b32.xlu0 %v3202, 32
    %v3226 = vpop.permute.xlu0 %3225
    %3227 = vrot.lane.b32.xlu0 %v3204, 32
    %v3228 = vpop.permute.xlu0 %3227
    %3229 = vrot.lane.b32.xlu0 %v3203, 32
    %v3230 = vpop.permute.xlu0 %3229
    %v3257 = vrot.slane %v2901, 6
    %v3258 = vrot.slane %v2902, 6
    %v3259 = vsel %vm84, %v3257, %v3258
    %v3260 = vrot.slane %v2903, 6
    %v3261 = vsel %vm84, %v3258, %v3260
    %v3262 = vrot.slane %v2904, 6
    %v3263 = vsel %vm84, %v3260, %v3262
    %v3264 = vrot.slane %v2905, 6
    %v3265 = vsel %vm84, %v3262, %v3264
    %v3266 = vrot.slane %v2906, 6
    %v3267 = vsel %vm84, %v3264, %v3266
    %v3268 = vrot.slane %v2907, 6
    %v3269 = vsel %vm84, %v3266, %v3268
    %v3270 = vrot.slane %v2908, 6
    %v3271 = vsel %vm84, %v3268, %v3270
    %v3272 = vrot.slane %v2909, 6
    %v3273 = vsel %vm84, %v3270, %v3272
    %v3274 = vrot.slane %v2910, 6
    %v3275 = vsel %vm84, %v3272, %v3274
    %v3276 = vrot.slane %v2911, 6
    %v3277 = vsel %vm84, %v3274, %v3276
    %v3278 = vrot.slane %v2912, 6
    %v3279 = vsel %vm84, %v3276, %v3278
    %v3280 = vrot.slane %v2913, 6
    %v3281 = vsel %vm84, %v3278, %v3280
    %3282 = vrot.lane.b32.xlu0 %v3259, 64
    %v3283 = vpop.permute.xlu0 %3282
    %3284 = vrot.lane.b32.xlu0 %v3261, 64
    %v3285 = vpop.permute.xlu0 %3284
    %3286 = vrot.lane.b32.xlu0 %v3263, 64
    %v3287 = vpop.permute.xlu0 %3286
    %3288 = vrot.lane.b32.xlu0 %v3265, 64
    %v3289 = vpop.permute.xlu0 %3288
    %3290 = vrot.lane.b32.xlu0 %v3267, 64
    %v3291 = vpop.permute.xlu0 %3290
    %3292 = vrot.lane.b32.xlu0 %v3269, 64
    %v3293 = vpop.permute.xlu0 %3292
    %3294 = vrot.lane.b32.xlu0 %v3271, 64
    %v3295 = vpop.permute.xlu0 %3294
    %3296 = vrot.lane.b32.xlu0 %v3273, 64
    %v3297 = vpop.permute.xlu0 %3296
    %3298 = vrot.lane.b32.xlu0 %v3275, 64
    %v3299 = vpop.permute.xlu0 %3298
    %3300 = vrot.lane.b32.xlu0 %v3277, 64
    %v3301 = vpop.permute.xlu0 %3300
    %3302 = vrot.lane.b32.xlu0 %v3279, 64
    %v3303 = vpop.permute.xlu0 %3302
    %3304 = vrot.lane.b32.xlu0 %v3281, 64
    %v3305 = vpop.permute.xlu0 %3304
    %3306 = vrot.lane.b32.xlu0 %v3280, 64
    %v3307 = vpop.permute.xlu0 %3306
    %v3334 = vrot.slane %v2914, 7
    %v3335 = vrot.slane %v2915, 7
    %v3336 = vsel %vm203, %v3334, %v3335
    %v3337 = vrot.slane %v2916, 7
    %v3338 = vsel %vm203, %v3335, %v3337
    %v3339 = vrot.slane %v2917, 7
    %v3340 = vsel %vm203, %v3337, %v3339
    %v3341 = vrot.slane %v2918, 7
    %v3342 = vsel %vm203, %v3339, %v3341
    %v3343 = vrot.slane %v2919, 7
    %v3344 = vsel %vm203, %v3341, %v3343
    %v3345 = vrot.slane %v2920, 7
    %v3346 = vsel %vm203, %v3343, %v3345
    %v3347 = vrot.slane %v2921, 7
    %v3348 = vsel %vm203, %v3345, %v3347
    %v3349 = vrot.slane %v2922, 7
    %v3350 = vsel %vm203, %v3347, %v3349
    %v3351 = vrot.slane %v2923, 7
    %v3352 = vsel %vm203, %v3349, %v3351
    %v3353 = vrot.slane %v2924, 7
    %v3354 = vsel %vm203, %v3351, %v3353
    %v3355 = vrot.slane %v2925, 7
    %v3356 = vsel %vm203, %v3353, %v3355
    %v3357 = vrot.slane %v2926, 7
    %v3358 = vsel %vm203, %v3355, %v3357
    %v3359 = vsel %vm203, %v3357, %v1320
    %3360 = vrot.lane.b32.xlu0 %v3336, 96
    %v3361 = vpop.permute.xlu0 %3360
    %3362 = vrot.lane.b32.xlu0 %v3338, 96
    %v3363 = vpop.permute.xlu0 %3362
    %3364 = vrot.lane.b32.xlu0 %v3340, 96
    %v3365 = vpop.permute.xlu0 %3364
    %3366 = vrot.lane.b32.xlu0 %v3342, 96
    %v3367 = vpop.permute.xlu0 %3366
    %3368 = vrot.lane.b32.xlu0 %v3344, 96
    %v3369 = vpop.permute.xlu0 %3368
    %3370 = vrot.lane.b32.xlu0 %v3346, 96
    %v3371 = vpop.permute.xlu0 %3370
    %3372 = vrot.lane.b32.xlu0 %v3348, 96
    %v3373 = vpop.permute.xlu0 %3372
    %3374 = vrot.lane.b32.xlu0 %v3350, 96
    %v3375 = vpop.permute.xlu0 %3374
    %3376 = vrot.lane.b32.xlu0 %v3352, 96
    %v3377 = vpop.permute.xlu0 %3376
    %3378 = vrot.lane.b32.xlu0 %v3354, 96
    %v3379 = vpop.permute.xlu0 %3378
    %3380 = vrot.lane.b32.xlu0 %v3356, 96
    %v3381 = vpop.permute.xlu0 %3380
    %3382 = vrot.lane.b32.xlu0 %v3358, 96
    %v3383 = vpop.permute.xlu0 %3382
    %3384 = vrot.lane.b32.xlu0 %v3359, 96
    %v3385 = vpop.permute.xlu0 %3384
    %v3399 = vsel %vm1511, %v151, %v2976
    %v3400 = vsel %vm1511, %v2826, %v2978
    %v3401 = vsel %vm1511, %v2827, %v2980
    %v3402 = vsel %vm1511, %v2828, %v2982
    %v3403 = vsel %vm1511, %v2829, %v2984
    %v3404 = vsel %vm1511, %v2830, %v2986
    %v3405 = vsel %vm1511, %v2831, %v2988
    %v3406 = vsel %vm1511, %v2832, %v2990
    %v3407 = vsel %vm1511, %v2833, %v2992
    %v3408 = vsel %vm1511, %v2834, %v2994
    %v3409 = vsel %vm1511, %v2835, %v2996
    %v3410 = vsel %vm1511, %v2836, %v2998
    %v3411 = vsel %vm1511, %v2837, %v3000
    %v3412 = vsel %vm2324, %v3399, %v3051
    %v3413 = vsel %vm2324, %v3400, %v3053
    %v3414 = vsel %vm2324, %v3401, %v3055
    %v3415 = vsel %vm2324, %v3402, %v3057
    %v3416 = vsel %vm2324, %v3403, %v3059
    %v3417 = vsel %vm2324, %v3404, %v3061
    %v3418 = vsel %vm2324, %v3405, %v3063
    %v3419 = vsel %vm2324, %v3406, %v3065
    %v3420 = vsel %vm2324, %v3407, %v3067
    %v3421 = vsel %vm2324, %v3408, %v3069
    %v3422 = vsel %vm2324, %v3409, %v3071
    %v3423 = vsel %vm2324, %v3410, %v3073
    %v3424 = vsel %vm2324, %v3411, %v3075
    %v3425 = vsel %vm2338, %v3412, %v3129
    %v3426 = vsel %vm2338, %v3413, %v3131
    %v3427 = vsel %vm2338, %v3414, %v3133
    %v3428 = vsel %vm2338, %v3415, %v3135
    %v3429 = vsel %vm2338, %v3416, %v3137
    %v3430 = vsel %vm2338, %v3417, %v3139
    %v3431 = vsel %vm2338, %v3418, %v3141
    %v3432 = vsel %vm2338, %v3419, %v3143
    %v3433 = vsel %vm2338, %v3420, %v3145
    %v3434 = vsel %vm2338, %v3421, %v3147
    %v3435 = vsel %vm2338, %v3422, %v3149
    %v3436 = vsel %vm2338, %v3423, %v3151
    %v3437 = vsel %vm2338, %v3424, %v3153
    %v3438 = vsel %vm1511, %v2875, %v3206
    %v3439 = vsel %vm1511, %v2876, %v3208
    %v3440 = vsel %vm1511, %v2877, %v3210
    %v3441 = vsel %vm1511, %v2878, %v3212
    %v3442 = vsel %vm1511, %v2879, %v3214
    %v3443 = vsel %vm1511, %v2880, %v3216
    %v3444 = vsel %vm1511, %v2881, %v3218
    %v3445 = vsel %vm1511, %v2882, %v3220
    %v3446 = vsel %vm1511, %v2883, %v3222
    %v3447 = vsel %vm1511, %v2884, %v3224
    %v3448 = vsel %vm1511, %v2885, %v3226
    %v3449 = vsel %vm1511, %v2886, %v3228
    %v3450 = vsel %vm1511, %v2887, %v3230
    %v3451 = vsel %vm2324, %v3438, %v3283
    %v3452 = vsel %vm2324, %v3439, %v3285
    %v3453 = vsel %vm2324, %v3440, %v3287
    %v3454 = vsel %vm2324, %v3441, %v3289
    %v3455 = vsel %vm2324, %v3442, %v3291
    %v3456 = vsel %vm2324, %v3443, %v3293
    %v3457 = vsel %vm2324, %v3444, %v3295
    %v3458 = vsel %vm2324, %v3445, %v3297
    %v3459 = vsel %vm2324, %v3446, %v3299
    %v3460 = vsel %vm2324, %v3447, %v3301
    %v3461 = vsel %vm2324, %v3448, %v3303
    %v3462 = vsel %vm2324, %v3449, %v3305
    %v3463 = vsel %vm2324, %v3450, %v3307
    %v3464 = vsel %vm2338, %v3451, %v3361
    %v3465 = vsel %vm2338, %v3452, %v3363
    %v3466 = vsel %vm2338, %v3453, %v3365
    %v3467 = vsel %vm2338, %v3454, %v3367
    %v3468 = vsel %vm2338, %v3455, %v3369
    %v3469 = vsel %vm2338, %v3456, %v3371
    %v3470 = vsel %vm2338, %v3457, %v3373
    %v3471 = vsel %vm2338, %v3458, %v3375
    %v3472 = vsel %vm2338, %v3459, %v3377
    %v3473 = vsel %vm2338, %v3460, %v3379
    %v3474 = vsel %vm2338, %v3461, %v3381
    %v3475 = vsel %vm2338, %v3462, %v3383
    %v3476 = vsel %vm2338, %v3463, %v3385
    %v3477 = vld [vmem:[%s6] sm:$0xf]
    %v3478 = vld [vmem:[%s6 + $0x4] sm:$0xf]
    %v3479 = vld [vmem:[%s6 + $0x8] sm:$0xf]
    %v3480 = vld [vmem:[%s6 + $0xc] sm:$0xf]
    %v3481 = vld [vmem:[%s6 + $0x10] sm:$0xf]
    %v3482 = vld [vmem:[%s6 + $0x14] sm:$0xf]
    %v3483 = vld [vmem:[%s6 + $0x18] sm:$0xf]
    %v3484 = vld [vmem:[%s6 + $0x1c] sm:$0xf]
    %v3485 = vld [vmem:[%s6 + $0x20] sm:$0xf]
    %v3486 = vld [vmem:[%s6 + $0x24] sm:$0xf]
    %v3487 = vld [vmem:[%s6 + $0x28] sm:$0xf]
    %v3488 = vld [vmem:[%s6 + $0x2c] sm:$0xf]
    %v3489 = vld [vmem:[%s6 + $0x30] sm:$0xf]
    %v3490 = vld [vmem:[%s6 + $0x34] sm:$0xf]
    %v3491 = vld [vmem:[%s6 + $0x38] sm:$0xf]
    %v3492 = vld [vmem:[%s6 + $0x3c] sm:$0xf]
    %v3493 = vld [vmem:[%s6 + $0x40] sm:$0xf]
    %v3494 = vld [vmem:[%s6 + $0x44] sm:$0xf]
    %v3495 = vld [vmem:[%s6 + $0x48] sm:$0xf]
    %v3496 = vld [vmem:[%s6 + $0x4c] sm:$0xf]
    %v3497 = vld [vmem:[%s6 + $0x50] sm:$0xf]
    %v3498 = vld [vmem:[%s6 + $0x54] sm:$0xf]
    %v3499 = vld [vmem:[%s6 + $0x58] sm:$0xf]
    %v3500 = vld [vmem:[%s6 + $0x5c] sm:$0xf]
    %v3501 = vld [vmem:[%s6 + $0x60] sm:$0xf]
    %v3502 = vld [vmem:[%s6 + $0x64] sm:$0xf]
    %v3503 = vld [vmem:[%s6 + $0x68] sm:$0xf]
    %v3504 = vld [vmem:[%s6 + $0x6c] sm:$0xf]
    %v3505 = vld [vmem:[%s6 + $0x70] sm:$0xf]
    %v3506 = vld [vmem:[%s6 + $0x74] sm:$0xf]
    %v3507 = vld [vmem:[%s6 + $0x78] sm:$0xf]
    %v3508 = vld [vmem:[%s6 + $0x7c] sm:$0xf]
    %v3509 = vld [vmem:[%s6 + $0x80] sm:$0xf]
    %v3510 = vld [vmem:[%s6 + $0x84] sm:$0xf]
    %v3511 = vld [vmem:[%s6 + $0x88] sm:$0xf]
    %v3512 = vld [vmem:[%s6 + $0x8c] sm:$0xf]
    %v3513 = vpack.c.bf16 %v3426, %v3425
    %v3514 = vpack.c.bf16 %v3465, %v3464
    %v3515 = vpack.c.bf16 %v2928, %v2927
    %v3516 = vpack.c.bf16 %v3428, %v3427
    %v3517 = vpack.c.bf16 %v3467, %v3466
    %v3518 = vpack.c.bf16 %v2930, %v2929
    %v3519 = vpack.c.bf16 %v3430, %v3429
    %v3520 = vpack.c.bf16 %v3469, %v3468
    %v3521 = vpack.c.bf16 %v2932, %v2931
    %v3522 = vpack.c.bf16 %v3432, %v3431
    %v3523 = vpack.c.bf16 %v3471, %v3470
    %v3524 = vpack.c.bf16 %v2934, %v2933
    %v3525 = vpack.c.bf16 %v3434, %v3433
    %v3526 = vpack.c.bf16 %v3473, %v3472
    %v3527 = vpack.c.bf16 %v2936, %v2935
    %v3528 = vpack.c.bf16 %v3436, %v3435
    %v3529 = vpack.c.bf16 %v3475, %v3474
    %v3530 = vpack.c.bf16 %v2938, %v2937
    %v3531 = vpack.c.bf16 %v3437, %v3437
    %v3532 = vpack.c.bf16 %v3476, %v3476
    %v3533 = vld [vmem:[%s7] sm:$0x1]
    %v3535 = vlaneseq
    %v3536 = vshrl.u32 %v3535, 7
    %v3537 = vsub.s32 0, %v3536
    %v3538 = vrot.slane %v3533, %v3537
    %v3576 = vunpack.c.l.b16 %v3477
    %v3577 = vunpack.c.l.b16 %v3478
    %v3578 = vunpack.c.l.b16 %v3479
    %v3579 = vunpack.c.l.b16 %v3480
    %v3580 = vunpack.c.l.b16 %v3481
    %v3581 = vunpack.c.l.b16 %v3482
    %v3582 = vunpack.c.l.b16 %v3483
    %v3583 = vunpack.c.l.b16 %v3484
    %v3584 = vunpack.c.l.b16 %v3485
    %v3585 = vunpack.c.l.b16 %v3486
    %v3586 = vunpack.c.l.b16 %v3487
    %v3587 = vunpack.c.l.b16 %v3488
    %v3588 = vunpack.c.l.b16 %v3489
    %v3589 = vunpack.c.l.b16 %v3490
    %v3590 = vunpack.c.l.b16 %v3491
    %v3591 = vunpack.c.l.b16 %v3492
    %v3592 = vunpack.c.l.b16 %v3493
    %v3593 = vunpack.c.l.b16 %v3494
    %v3594 = vunpack.c.l.b16 %v3495
    %v3595 = vunpack.c.l.b16 %v3496
    %v3596 = vunpack.c.l.b16 %v3497
    %v3597 = vunpack.c.l.b16 %v3498
    %v3598 = vunpack.c.l.b16 %v3499
    %v3599 = vunpack.c.l.b16 %v3500
    %v3600 = vunpack.c.l.b16 %v3501
    %v3601 = vunpack.c.l.b16 %v3502
    %v3602 = vunpack.c.l.b16 %v3503
    %v3603 = vunpack.c.l.b16 %v3504
    %v3604 = vunpack.c.l.b16 %v3505
    %v3605 = vunpack.c.l.b16 %v3506
    %v3606 = vunpack.c.l.b16 %v3507
    %v3607 = vunpack.c.l.b16 %v3508
    %v3608 = vunpack.c.l.b16 %v3509
    %v3609 = vunpack.c.l.b16 %v3510
    %v3610 = vunpack.c.l.b16 %v3511
    %v3611 = vunpack.c.l.b16 %v3512
    %v3612 = vpack.c.b16 %v3577, %v3576
    %v3613 = vpack.c.b16 %v3579, %v3578
    %v3614 = vpack.c.b16 %v3581, %v3580
    %v3615 = vpack.c.b16 %v3583, %v3582
    %v3616 = vpack.c.b16 %v3585, %v3584
    %v3617 = vpack.c.b16 %v3587, %v3586
    %v3618 = vpack.c.b16 %v3589, %v3588
    %v3619 = vpack.c.b16 %v3591, %v3590
    %v3620 = vpack.c.b16 %v3593, %v3592
    %v3621 = vpack.c.b16 %v3595, %v3594
    %v3622 = vpack.c.b16 %v3597, %v3596
    %v3623 = vpack.c.b16 %v3599, %v3598
    %v3624 = vpack.c.b16 %v3601, %v3600
    %v3625 = vpack.c.b16 %v3603, %v3602
    %v3626 = vpack.c.b16 %v3605, %v3604
    %v3627 = vpack.c.b16 %v3607, %v3606
    %v3628 = vpack.c.b16 %v3609, %v3608
    %v3629 = vpack.c.b16 %v3611, %v3610
    %v3649 = vsel %vm1511, %v3515, 0
    %v3652 = vsel %vm1511, %v3518, 0
    %v3655 = vsel %vm1511, %v3521, 0
    %v3658 = vsel %vm1511, %v3524, 0
    %v3661 = vsel %vm1511, %v3527, 0
    %v3664 = vsel %vm1511, %v3530, 0
    %3666 = vmatprep.subr.bf16.mxu0 0
    %3667 = vmatpush1.bf16.msra.mxu0 %v3612
    %3668 = vmatprep.subr.bf16.mxu0 0
    %3669 = vmatpush1.bf16.msra.mxu0 %v3613
    %3670 = vmatprep.subr.bf16.mxu0 0
    %3671 = vmatpush1.bf16.msra.mxu0 %v3614
    %3672 = vmatprep.subr.bf16.mxu0 0
    %3673 = vmatpush1.bf16.msra.mxu0 %v3615
    %3674 = vmatprep.subr.bf16.mxu0 0
    %3675 = vmatpush1.bf16.msra.mxu0 %v3616
    %3676 = vmatprep.subr.bf16.mxu0 0
    %3677 = vmatpush1.bf16.msra.mxu0 %v3617
    %3678 = vmatprep.subr.bf16.mxu0 0
    %3679 = vmatpush1.bf16.msra.mxu0 %v3618
    %3680 = vmatprep.subr.bf16.mxu0 0
    %3681 = vmatpush1.bf16.msra.mxu0 %v3619
    %3682 = vmatprep.subr.bf16.mxu0 0
    %3683 = vmatpush1.bf16.msra.mxu0 %v3620
    %3684 = vmatprep.subr.bf16.mxu0 0
    %3685 = vmatpush1.bf16.msra.mxu0 %v3621
    %3686 = vmatprep.subr.bf16.mxu0 0
    %3687 = vmatpush1.bf16.msra.mxu0 %v3622
    %3688 = vmatprep.subr.bf16.mxu0 0
    %3689 = vmatpush1.bf16.msra.mxu0 %v3623
    %3690 = vmatprep.subr.bf16.mxu0 0
    %3691 = vmatpush1.bf16.msra.mxu0 %v3624
    %3692 = vmatprep.subr.bf16.mxu0 0
    %3693 = vmatpush1.bf16.msra.mxu0 %v3625
    %3694 = vmatprep.subr.bf16.mxu0 0
    %3695 = vmatpush1.bf16.msra.mxu0 %v3626
    %3696 = vmatprep.subr.bf16.mxu0 0
    %3697 = vmatpush1.bf16.msra.mxu0 %v3627
    %3698 = vmatprep.mubr.bf16.mxu0 %v3514
    %3699 = vmatmul.mubr.bf16.gmra.mrb[0].mxu0 %v3513
    %v3700 = vpop.f32.mrb[0].mxu0
    %v3701 = vadd.f32 %v3538, %v3700
    %v3702 = vpop.f32.mrb[0].mxu0
    %v3703 = vpop.f32.mrb[0].mxu0
    %v3704 = vadd.f32 %v3538, %v3703
    %v3705 = vpop.f32.mrb[0].mxu0
    %3706 = vmatprep.mubr.bf16.mxu0 %v3517
    %3707 = vmatmul.mubr.bf16.gmra.mrb[0].mxu0 %v3516
    %v3708 = vpop.f32.mrb[0].mxu0
    %v3709 = vadd.f32 %v3538, %v3708
    %v3710 = vpop.f32.mrb[0].mxu0
    %v3711 = vpop.f32.mrb[0].mxu0
    %v3712 = vadd.f32 %v3538, %v3711
    %v3713 = vpop.f32.mrb[0].mxu0
    %3714 = vmatprep.mubr.bf16.mxu0 %v3520
    %3715 = vmatmul.mubr.bf16.gmra.mrb[0].mxu0 %v3519
    %v3716 = vpop.f32.mrb[0].mxu0
    %v3717 = vadd.f32 %v3538, %v3716
    %v3718 = vpop.f32.mrb[0].mxu0
    %v3719 = vpop.f32.mrb[0].mxu0
    %v3720 = vadd.f32 %v3538, %v3719
    %v3721 = vpop.f32.mrb[0].mxu0
    %3722 = vmatprep.mubr.bf16.mxu0 %v3523
    %3723 = vmatmul.mubr.bf16.gmra.mrb[0].mxu0 %v3522
    %v3724 = vpop.f32.mrb[0].mxu0
    %v3725 = vadd.f32 %v3538, %v3724
    %v3726 = vpop.f32.mrb[0].mxu0
    %v3727 = vpop.f32.mrb[0].mxu0
    %v3728 = vadd.f32 %v3538, %v3727
    %v3729 = vpop.f32.mrb[0].mxu0
    %3730 = vmatprep.mubr.bf16.mxu0 %v3526
    %3731 = vmatmul.mubr.bf16.gmra.mrb[0].mxu0 %v3525
    %v3732 = vpop.f32.mrb[0].mxu0
    %v3733 = vadd.f32 %v3538, %v3732
    %v3734 = vpop.f32.mrb[0].mxu0
    %v3735 = vpop.f32.mrb[0].mxu0
    %v3736 = vadd.f32 %v3538, %v3735
    %v3737 = vpop.f32.mrb[0].mxu0
    %3738 = vmatprep.mubr.bf16.mxu0 %v3529
    %3739 = vmatmul.mubr.bf16.gmra.mrb[0].mxu0 %v3528
    %v3740 = vpop.f32.mrb[0].mxu0
    %v3741 = vadd.f32 %v3538, %v3740
    %v3742 = vpop.f32.mrb[0].mxu0
    %v3743 = vpop.f32.mrb[0].mxu0
    %v3744 = vadd.f32 %v3538, %v3743
    %v3745 = vpop.f32.mrb[0].mxu0
    %3746 = vmatprep.mubr.bf16.mxu0 %v3532
    %3747 = vmatmul.mubr.bf16.gmra.mrb[0].mxu0 %v3531
    %v3748 = vpop.f32.mrb[0].mxu0
    %v3749 = vadd.f32 %v3538, %v3748
    %v3750 = vpop.f32.mrb[0].mxu0
    %v3751 = vpop.f32.mrb[0].mxu0
    %v3752 = vpop.f32.mrb[0].mxu0
    %3753 = vdwg.mxu0
    %3754 = vmatprep.subr.bf16.mxu0 0
    %3755 = vmatpush1.bf16.msra.mxu0 %v3628
    %3756 = vmatprep.subr.bf16.mxu0 0
    %3757 = vmatpush1.bf16.msra.mxu0 %v3629
    %3758 = vmatprep.subr.bf16.mxu0 0
    %3759 = vmatpush1.bf16.msra.mxu0 0
    %3760 = vmatprep.subr.bf16.mxu0 0
    %3761 = vmatpush1.bf16.msra.mxu0 0
    %3762 = vmatprep.subr.bf16.mxu0 0
    %3763 = vmatpush1.bf16.msra.mxu0 0
    %3764 = vmatprep.subr.bf16.mxu0 0
    %3765 = vmatpush1.bf16.msra.mxu0 0
    %3766 = vmatprep.subr.bf16.mxu0 0
    %3767 = vmatpush1.bf16.msra.mxu0 0
    %3768 = vmatprep.subr.bf16.mxu0 0
    %3769 = vmatpush1.bf16.msra.mxu0 0
    %3770 = vmatprep.subr.bf16.mxu0 0
    %3771 = vmatpush1.bf16.msra.mxu0 0
    %3772 = vmatprep.subr.bf16.mxu0 0
    %3773 = vmatpush1.bf16.msra.mxu0 0
    %3774 = vmatprep.subr.bf16.mxu0 0
    %3775 = vmatpush1.bf16.msra.mxu0 0
    %3776 = vmatprep.subr.bf16.mxu0 0
    %3777 = vmatpush1.bf16.msra.mxu0 0
    %3778 = vmatprep.subr.bf16.mxu0 0
    %3779 = vmatpush1.bf16.msra.mxu0 0
    %3780 = vmatprep.subr.bf16.mxu0 0
    %3781 = vmatpush1.bf16.msra.mxu0 0
    %3782 = vmatprep.subr.bf16.mxu0 0
    %3783 = vmatpush1.bf16.msra.mxu0 0
    %3784 = vmatprep.subr.bf16.mxu0 0
    %3785 = vmatpush1.bf16.msra.mxu0 0
    %3786 = vmatprep.mubr.bf16.mxu0 0
    %3787 = vmatmul.mubr.bf16.gmra.mrb[0].mxu0 %v3649
    %v3788 = vpop.f32.mrb[0].mxu0
    %v3789 = vadd.f32 %v3701, %v3788
    %v3790 = vpop.f32.mrb[0].mxu0
    %v3791 = vpop.f32.mrb[0].mxu0
    %v3792 = vadd.f32 %v3704, %v3791
    %v3793 = vpop.f32.mrb[0].mxu0
    %3794 = vmatprep.mubr.bf16.mxu0 0
    %3795 = vmatmul.mubr.bf16.gmra.mrb[0].mxu0 %v3652
    %v3796 = vpop.f32.mrb[0].mxu0
    %v3797 = vadd.f32 %v3709, %v3796
    %v3798 = vpop.f32.mrb[0].mxu0
    %v3799 = vpop.f32.mrb[0].mxu0
    %v3800 = vadd.f32 %v3712, %v3799
    %v3801 = vpop.f32.mrb[0].mxu0
    %3802 = vmatprep.mubr.bf16.mxu0 0
    %3803 = vmatmul.mubr.bf16.gmra.mrb[0].mxu0 %v3655
    %v3804 = vpop.f32.mrb[0].mxu0
    %v3805 = vadd.f32 %v3717, %v3804
    %v3806 = vpop.f32.mrb[0].mxu0
    %v3807 = vpop.f32.mrb[0].mxu0
    %v3808 = vadd.f32 %v3720, %v3807
    %v3809 = vpop.f32.mrb[0].mxu0
    %3810 = vmatprep.mubr.bf16.mxu0 0
    %3811 = vmatmul.mubr.bf16.gmra.mrb[0].mxu0 %v3658
    %v3812 = vpop.f32.mrb[0].mxu0
    %v3813 = vadd.f32 %v3725, %v3812
    %v3814 = vpop.f32.mrb[0].mxu0
    %v3815 = vpop.f32.mrb[0].mxu0
    %v3816 = vadd.f32 %v3728, %v3815
    %v3817 = vpop.f32.mrb[0].mxu0
    %3818 = vmatprep.mubr.bf16.mxu0 0
    %3819 = vmatmul.mubr.bf16.gmra.mrb[0].mxu0 %v3661
    %v3820 = vpop.f32.mrb[0].mxu0
    %v3821 = vadd.f32 %v3733, %v3820
    %v3822 = vpop.f32.mrb[0].mxu0
    %v3823 = vpop.f32.mrb[0].mxu0
    %v3824 = vadd.f32 %v3736, %v3823
    %v3825 = vpop.f32.mrb[0].mxu0
    %3826 = vmatprep.mubr.bf16.mxu0 0
    %3827 = vmatmul.mubr.bf16.gmra.mrb[0].mxu0 %v3664
    %v3828 = vpop.f32.mrb[0].mxu0
    %v3829 = vadd.f32 %v3741, %v3828
    %v3830 = vpop.f32.mrb[0].mxu0
    %v3831 = vpop.f32.mrb[0].mxu0
    %v3832 = vadd.f32 %v3744, %v3831
    %v3833 = vpop.f32.mrb[0].mxu0
    %3834 = vmatprep.mubr.bf16.mxu0 0
    %3835 = vmatmul.mubr.bf16.gmra.mrb[0].mxu0 %v2582
    %v3836 = vpop.f32.mrb[0].mxu0
    %v3837 = vadd.f32 %v3749, %v3836
    %v3838 = vpop.f32.mrb[0].mxu0
    %v3839 = vpop.f32.mrb[0].mxu0
    %v3840 = vpop.f32.mrb[0].mxu0
    %3841 = vdwg.mxu0
    %vm3842 = vcmp.gt.f32.partialorder %v3789, 0.0
    %vm3843 = vcmp.gt.f32.partialorder %v3792, 0.0
    %vm3844 = vcmp.gt.f32.partialorder %v3797, 0.0
    %vm3845 = vcmp.gt.f32.partialorder %v3800, 0.0
    %vm3846 = vcmp.gt.f32.partialorder %v3805, 0.0
    %vm3847 = vcmp.gt.f32.partialorder %v3808, 0.0
    %vm3848 = vcmp.gt.f32.partialorder %v3813, 0.0
    %vm3849 = vcmp.gt.f32.partialorder %v3816, 0.0
    %vm3850 = vcmp.gt.f32.partialorder %v3821, 0.0
    %vm3851 = vcmp.gt.f32.partialorder %v3824, 0.0
    %vm3852 = vcmp.gt.f32.partialorder %v3829, 0.0
    %vm3853 = vcmp.gt.f32.partialorder %v3832, 0.0
    %vm3854 = vcmp.gt.f32.partialorder %v3837, 0.0
    %v3855 = vmul.f32 %v3789, 1.442695
    %v3856 = vpow.pop %v3855
    %v3857 = vmul.f32 %v3792, 1.442695
    %v3858 = vpow.pop %v3857
    %v3859 = vmul.f32 %v3797, 1.442695
    %v3860 = vpow.pop %v3859
    %v3861 = vmul.f32 %v3800, 1.442695
    %v3862 = vpow.pop %v3861
    %v3863 = vmul.f32 %v3805, 1.442695
    %v3864 = vpow.pop %v3863
    %v3865 = vmul.f32 %v3808, 1.442695
    %v3866 = vpow.pop %v3865
    %v3867 = vmul.f32 %v3813, 1.442695
    %v3868 = vpow.pop %v3867
    %v3869 = vmul.f32 %v3816, 1.442695
    %v3870 = vpow.pop %v3869
    %v3871 = vmul.f32 %v3821, 1.442695
    %v3872 = vpow.pop %v3871
    %v3873 = vmul.f32 %v3824, 1.442695
    %v3874 = vpow.pop %v3873
    %v3875 = vmul.f32 %v3829, 1.442695
    %v3876 = vpow.pop %v3875
    %v3877 = vmul.f32 %v3832, 1.442695
    %v3878 = vpow.pop %v3877
    %v3879 = vmul.f32 %v3837, 1.442695
    %v3880 = vpow.pop %v3879
    %v3881 = vsub.f32 %v3856, 1.0
    %v3882 = vsub.f32 %v3858, 1.0
    %v3883 = vsub.f32 %v3860, 1.0
    %v3884 = vsub.f32 %v3862, 1.0
    %v3885 = vsub.f32 %v3864, 1.0
    %v3886 = vsub.f32 %v3866, 1.0
    %v3887 = vsub.f32 %v3868, 1.0
    %v3888 = vsub.f32 %v3870, 1.0
    %v3889 = vsub.f32 %v3872, 1.0
    %v3890 = vsub.f32 %v3874, 1.0
    %v3891 = vsub.f32 %v3876, 1.0
    %v3892 = vsub.f32 %v3878, 1.0
    %v3893 = vsub.f32 %v3880, 1.0
    %v3894 = vsel %vm3842, %v3789, %v3881
    %v3895 = vsel %vm3843, %v3792, %v3882
    %v3896 = vsel %vm3844, %v3797, %v3883
    %v3897 = vsel %vm3845, %v3800, %v3884
    %v3898 = vsel %vm3846, %v3805, %v3885
    %v3899 = vsel %vm3847, %v3808, %v3886
    %v3900 = vsel %vm3848, %v3813, %v3887
    %v3901 = vsel %vm3849, %v3816, %v3888
    %v3902 = vsel %vm3850, %v3821, %v3889
    %v3903 = vsel %vm3851, %v3824, %v3890
    %v3904 = vsel %vm3852, %v3829, %v3891
    %v3905 = vsel %vm3853, %v3832, %v3892
    %v3906 = vsel %vm3854, %v3837, %v3893
    %v3907 = vld [vmem:[%s8] sm:$0xff]
    %v3908 = vld [vmem:[%s8 + $0x8] sm:$0xff]
    %v3909 = vld [vmem:[%s8 + $0x10] sm:$0xff]
    %v3910 = vld [vmem:[%s8 + $0x18] sm:$0xff]
    %v3911 = vld [vmem:[%s8 + $0x20] sm:$0xff]
    %v3912 = vld [vmem:[%s8 + $0x28] sm:$0xff]
    %v3913 = vld [vmem:[%s8 + $0x30] sm:$0xff]
    %v3914 = vld [vmem:[%s8 + $0x38] sm:$0xff]
    %v3915 = vld [vmem:[%s8 + $0x40] sm:$0xff]
    %v3916 = vld [vmem:[%s8 + $0x48] sm:$0xff]
    %v3917 = vld [vmem:[%s8 + $0x50] sm:$0xff]
    %v3918 = vld [vmem:[%s8 + $0x58] sm:$0xff]
    %v3919 = vld [vmem:[%s8 + $0x60] sm:$0x3]
    %3921 = vset.pattern.permute.xlu0 0
    %3922 = vperm.xlu0 %3921, %v3907
    %v3923 = vpop.permute.xlu0 %3922
    %3926 = vset.pattern.permute.xlu0 0
    %3927 = vperm.xlu0 %3926, %v3908
    %v3928 = vpop.permute.xlu0 %3927
    %3931 = vset.pattern.permute.xlu0 0
    %3932 = vperm.xlu0 %3931, %v3909
    %v3933 = vpop.permute.xlu0 %3932
    %3936 = vset.pattern.permute.xlu0 0
    %3937 = vperm.xlu0 %3936, %v3910
    %v3938 = vpop.permute.xlu0 %3937
    %3941 = vset.pattern.permute.xlu0 0
    %3942 = vperm.xlu0 %3941, %v3911
    %v3943 = vpop.permute.xlu0 %3942
    %3946 = vset.pattern.permute.xlu0 0
    %3947 = vperm.xlu0 %3946, %v3912
    %v3948 = vpop.permute.xlu0 %3947
    %3951 = vset.pattern.permute.xlu0 0
    %3952 = vperm.xlu0 %3951, %v3913
    %v3953 = vpop.permute.xlu0 %3952
    %3956 = vset.pattern.permute.xlu0 0
    %3957 = vperm.xlu0 %3956, %v3914
    %v3958 = vpop.permute.xlu0 %3957
    %3961 = vset.pattern.permute.xlu0 0
    %3962 = vperm.xlu0 %3961, %v3915
    %v3963 = vpop.permute.xlu0 %3962
    %3966 = vset.pattern.permute.xlu0 0
    %3967 = vperm.xlu0 %3966, %v3916
    %v3968 = vpop.permute.xlu0 %3967
    %3971 = vset.pattern.permute.xlu0 0
    %3972 = vperm.xlu0 %3971, %v3917
    %v3973 = vpop.permute.xlu0 %3972
    %3976 = vset.pattern.permute.xlu0 0
    %3977 = vperm.xlu0 %3976, %v3918
    %v3978 = vpop.permute.xlu0 %3977
    %3981 = vset.pattern.permute.xlu0 0
    %3982 = vperm.xlu0 %3981, %v3919
    %v3983 = vpop.permute.xlu0 %3982
    %v3985 = vmul.f32 %v3894, %v3923
    %v3986 = vmul.f32 %v3895, %v3928
    %v3987 = vmul.f32 %v3896, %v3933
    %v3988 = vmul.f32 %v3897, %v3938
    %v3989 = vmul.f32 %v3898, %v3943
    %v3990 = vmul.f32 %v3899, %v3948
    %v3991 = vmul.f32 %v3900, %v3953
    %v3992 = vmul.f32 %v3901, %v3958
    %v3993 = vmul.f32 %v3902, %v3963
    %v3994 = vmul.f32 %v3903, %v3968
    %v3995 = vmul.f32 %v3904, %v3973
    %v3996 = vmul.f32 %v3905, %v3978
    %v3997 = vmul.f32 %v3906, %v3983
    %3998 = vset.pattern.permute.xlu0 1
    %3999 = vperm.xlu0 %3998, %v3907
    %v4000 = vpop.permute.xlu0 %3999
    %4002 = vset.pattern.permute.xlu0 1
    %4003 = vperm.xlu0 %4002, %v3908
    %v4004 = vpop.permute.xlu0 %4003
    %4006 = vset.pattern.permute.xlu0 1
    %4007 = vperm.xlu0 %4006, %v3909
    %v4008 = vpop.permute.xlu0 %4007
    %4010 = vset.pattern.permute.xlu0 1
    %4011 = vperm.xlu0 %4010, %v3910
    %v4012 = vpop.permute.xlu0 %4011
    %4014 = vset.pattern.permute.xlu0 1
    %4015 = vperm.xlu0 %4014, %v3911
    %v4016 = vpop.permute.xlu0 %4015
    %4018 = vset.pattern.permute.xlu0 1
    %4019 = vperm.xlu0 %4018, %v3912
    %v4020 = vpop.permute.xlu0 %4019
    %4022 = vset.pattern.permute.xlu0 1
    %4023 = vperm.xlu0 %4022, %v3913
    %v4024 = vpop.permute.xlu0 %4023
    %4026 = vset.pattern.permute.xlu0 1
    %4027 = vperm.xlu0 %4026, %v3914
    %v4028 = vpop.permute.xlu0 %4027
    %4030 = vset.pattern.permute.xlu0 1
    %4031 = vperm.xlu0 %4030, %v3915
    %v4032 = vpop.permute.xlu0 %4031
    %4034 = vset.pattern.permute.xlu0 1
    %4035 = vperm.xlu0 %4034, %v3916
    %v4036 = vpop.permute.xlu0 %4035
    %4038 = vset.pattern.permute.xlu0 1
    %4039 = vperm.xlu0 %4038, %v3917
    %v4040 = vpop.permute.xlu0 %4039
    %4042 = vset.pattern.permute.xlu0 1
    %4043 = vperm.xlu0 %4042, %v3918
    %v4044 = vpop.permute.xlu0 %4043
    %4046 = vset.pattern.permute.xlu0 1
    %4047 = vperm.xlu0 %4046, %v3919
    %v4048 = vpop.permute.xlu0 %4047
    %v4050 = vmul.f32 %v3894, %v4000
    %v4051 = vmul.f32 %v3895, %v4004
    %v4052 = vmul.f32 %v3896, %v4008
    %v4053 = vmul.f32 %v3897, %v4012
    %v4054 = vmul.f32 %v3898, %v4016
    %v4055 = vmul.f32 %v3899, %v4020
    %v4056 = vmul.f32 %v3900, %v4024
    %v4057 = vmul.f32 %v3901, %v4028
    %v4058 = vmul.f32 %v3902, %v4032
    %v4059 = vmul.f32 %v3903, %v4036
    %v4060 = vmul.f32 %v3904, %v4040
    %v4061 = vmul.f32 %v3905, %v4044
    %v4062 = vmul.f32 %v3906, %v4048
    %4063 = vset.pattern.permute.xlu0 2
    %4064 = vperm.xlu0 %4063, %v3907
    %v4065 = vpop.permute.xlu0 %4064
    %4067 = vset.pattern.permute.xlu0 2
    %4068 = vperm.xlu0 %4067, %v3908
    %v4069 = vpop.permute.xlu0 %4068
    %4071 = vset.pattern.permute.xlu0 2
    %4072 = vperm.xlu0 %4071, %v3909
    %v4073 = vpop.permute.xlu0 %4072
    %4075 = vset.pattern.permute.xlu0 2
    %4076 = vperm.xlu0 %4075, %v3910
    %v4077 = vpop.permute.xlu0 %4076
    %4079 = vset.pattern.permute.xlu0 2
    %4080 = vperm.xlu0 %4079, %v3911
    %v4081 = vpop.permute.xlu0 %4080
    %4083 = vset.pattern.permute.xlu0 2
    %4084 = vperm.xlu0 %4083, %v3912
    %v4085 = vpop.permute.xlu0 %4084
    %4087 = vset.pattern.permute.xlu0 2
    %4088 = vperm.xlu0 %4087, %v3913
    %v4089 = vpop.permute.xlu0 %4088
    %4091 = vset.pattern.permute.xlu0 2
    %4092 = vperm.xlu0 %4091, %v3914
    %v4093 = vpop.permute.xlu0 %4092
    %4095 = vset.pattern.permute.xlu0 2
    %4096 = vperm.xlu0 %4095, %v3915
    %v4097 = vpop.permute.xlu0 %4096
    %4099 = vset.pattern.permute.xlu0 2
    %4100 = vperm.xlu0 %4099, %v3916
    %v4101 = vpop.permute.xlu0 %4100
    %4103 = vset.pattern.permute.xlu0 2
    %4104 = vperm.xlu0 %4103, %v3917
    %v4105 = vpop.permute.xlu0 %4104
    %4107 = vset.pattern.permute.xlu0 2
    %4108 = vperm.xlu0 %4107, %v3918
    %v4109 = vpop.permute.xlu0 %4108
    %4111 = vset.pattern.permute.xlu0 2
    %4112 = vperm.xlu0 %4111, %v3919
    %v4113 = vpop.permute.xlu0 %4112
    %v4115 = vmul.f32 %v3894, %v4065
    %v4116 = vmul.f32 %v3895, %v4069
    %v4117 = vmul.f32 %v3896, %v4073
    %v4118 = vmul.f32 %v3897, %v4077
    %v4119 = vmul.f32 %v3898, %v4081
    %v4120 = vmul.f32 %v3899, %v4085
    %v4121 = vmul.f32 %v3900, %v4089
    %v4122 = vmul.f32 %v3901, %v4093
    %v4123 = vmul.f32 %v3902, %v4097
    %v4124 = vmul.f32 %v3903, %v4101
    %v4125 = vmul.f32 %v3904, %v4105
    %v4126 = vmul.f32 %v3905, %v4109
    %v4127 = vmul.f32 %v3906, %v4113
    %4128 = vset.pattern.permute.xlu0 3
    %4129 = vperm.xlu0 %4128, %v3907
    %v4130 = vpop.permute.xlu0 %4129
    %4132 = vset.pattern.permute.xlu0 3
    %4133 = vperm.xlu0 %4132, %v3908
    %v4134 = vpop.permute.xlu0 %4133
    %4136 = vset.pattern.permute.xlu0 3
    %4137 = vperm.xlu0 %4136, %v3909
    %v4138 = vpop.permute.xlu0 %4137
    %4140 = vset.pattern.permute.xlu0 3
    %4141 = vperm.xlu0 %4140, %v3910
    %v4142 = vpop.permute.xlu0 %4141
    %4144 = vset.pattern.permute.xlu0 3
    %4145 = vperm.xlu0 %4144, %v3911
    %v4146 = vpop.permute.xlu0 %4145
    %4148 = vset.pattern.permute.xlu0 3
    %4149 = vperm.xlu0 %4148, %v3912
    %v4150 = vpop.permute.xlu0 %4149
    %4152 = vset.pattern.permute.xlu0 3
    %4153 = vperm.xlu0 %4152, %v3913
    %v4154 = vpop.permute.xlu0 %4153
    %4156 = vset.pattern.permute.xlu0 3
    %4157 = vperm.xlu0 %4156, %v3914
    %v4158 = vpop.permute.xlu0 %4157
    %4160 = vset.pattern.permute.xlu0 3
    %4161 = vperm.xlu0 %4160, %v3915
    %v4162 = vpop.permute.xlu0 %4161
    %4164 = vset.pattern.permute.xlu0 3
    %4165 = vperm.xlu0 %4164, %v3916
    %v4166 = vpop.permute.xlu0 %4165
    %4168 = vset.pattern.permute.xlu0 3
    %4169 = vperm.xlu0 %4168, %v3917
    %v4170 = vpop.permute.xlu0 %4169
    %4172 = vset.pattern.permute.xlu0 3
    %4173 = vperm.xlu0 %4172, %v3918
    %v4174 = vpop.permute.xlu0 %4173
    %4176 = vset.pattern.permute.xlu0 3
    %4177 = vperm.xlu0 %4176, %v3919
    %v4178 = vpop.permute.xlu0 %4177
    %v4180 = vmul.f32 %v3894, %v4130
    %v4181 = vmul.f32 %v3895, %v4134
    %v4182 = vmul.f32 %v3896, %v4138
    %v4183 = vmul.f32 %v3897, %v4142
    %v4184 = vmul.f32 %v3898, %v4146
    %v4185 = vmul.f32 %v3899, %v4150
    %v4186 = vmul.f32 %v3900, %v4154
    %v4187 = vmul.f32 %v3901, %v4158
    %v4188 = vmul.f32 %v3902, %v4162
    %v4189 = vmul.f32 %v3903, %v4166
    %v4190 = vmul.f32 %v3904, %v4170
    %v4191 = vmul.f32 %v3905, %v4174
    %v4192 = vmul.f32 %v3906, %v4178
    %4193 = vset.pattern.permute.xlu0 4
    %4194 = vperm.xlu0 %4193, %v3907
    %v4195 = vpop.permute.xlu0 %4194
    %4197 = vset.pattern.permute.xlu0 4
    %4198 = vperm.xlu0 %4197, %v3908
    %v4199 = vpop.permute.xlu0 %4198
    %4201 = vset.pattern.permute.xlu0 4
    %4202 = vperm.xlu0 %4201, %v3909
    %v4203 = vpop.permute.xlu0 %4202
    %4205 = vset.pattern.permute.xlu0 4
    %4206 = vperm.xlu0 %4205, %v3910
    %v4207 = vpop.permute.xlu0 %4206
    %4209 = vset.pattern.permute.xlu0 4
    %4210 = vperm.xlu0 %4209, %v3911
    %v4211 = vpop.permute.xlu0 %4210
    %4213 = vset.pattern.permute.xlu0 4
    %4214 = vperm.xlu0 %4213, %v3912
    %v4215 = vpop.permute.xlu0 %4214
    %4217 = vset.pattern.permute.xlu0 4
    %4218 = vperm.xlu0 %4217, %v3913
    %v4219 = vpop.permute.xlu0 %4218
    %4221 = vset.pattern.permute.xlu0 4
    %4222 = vperm.xlu0 %4221, %v3914
    %v4223 = vpop.permute.xlu0 %4222
    %4225 = vset.pattern.permute.xlu0 4
    %4226 = vperm.xlu0 %4225, %v3915
    %v4227 = vpop.permute.xlu0 %4226
    %4229 = vset.pattern.permute.xlu0 4
    %4230 = vperm.xlu0 %4229, %v3916
    %v4231 = vpop.permute.xlu0 %4230
    %4233 = vset.pattern.permute.xlu0 4
    %4234 = vperm.xlu0 %4233, %v3917
    %v4235 = vpop.permute.xlu0 %4234
    %4237 = vset.pattern.permute.xlu0 4
    %4238 = vperm.xlu0 %4237, %v3918
    %v4239 = vpop.permute.xlu0 %4238
    %4241 = vset.pattern.permute.xlu0 4
    %4242 = vperm.xlu0 %4241, %v3919
    %v4243 = vpop.permute.xlu0 %4242
    %v4245 = vmul.f32 %v3894, %v4195
    %v4246 = vmul.f32 %v3895, %v4199
    %v4247 = vmul.f32 %v3896, %v4203
    %v4248 = vmul.f32 %v3897, %v4207
    %v4249 = vmul.f32 %v3898, %v4211
    %v4250 = vmul.f32 %v3899, %v4215
    %v4251 = vmul.f32 %v3900, %v4219
    %v4252 = vmul.f32 %v3901, %v4223
    %v4253 = vmul.f32 %v3902, %v4227
    %v4254 = vmul.f32 %v3903, %v4231
    %v4255 = vmul.f32 %v3904, %v4235
    %v4256 = vmul.f32 %v3905, %v4239
    %v4257 = vmul.f32 %v3906, %v4243
    %4258 = vset.pattern.permute.xlu0 5
    %4259 = vperm.xlu0 %4258, %v3907
    %v4260 = vpop.permute.xlu0 %4259
    %4262 = vset.pattern.permute.xlu0 5
    %4263 = vperm.xlu0 %4262, %v3908
    %v4264 = vpop.permute.xlu0 %4263
    %4266 = vset.pattern.permute.xlu0 5
    %4267 = vperm.xlu0 %4266, %v3909
    %v4268 = vpop.permute.xlu0 %4267
    %4270 = vset.pattern.permute.xlu0 5
    %4271 = vperm.xlu0 %4270, %v3910
    %v4272 = vpop.permute.xlu0 %4271
    %4274 = vset.pattern.permute.xlu0 5
    %4275 = vperm.xlu0 %4274, %v3911
    %v4276 = vpop.permute.xlu0 %4275
    %4278 = vset.pattern.permute.xlu0 5
    %4279 = vperm.xlu0 %4278, %v3912
    %v4280 = vpop.permute.xlu0 %4279
    %4282 = vset.pattern.permute.xlu0 5
    %4283 = vperm.xlu0 %4282, %v3913
    %v4284 = vpop.permute.xlu0 %4283
    %4286 = vset.pattern.permute.xlu0 5
    %4287 = vperm.xlu0 %4286, %v3914
    %v4288 = vpop.permute.xlu0 %4287
    %4290 = vset.pattern.permute.xlu0 5
    %4291 = vperm.xlu0 %4290, %v3915
    %v4292 = vpop.permute.xlu0 %4291
    %4294 = vset.pattern.permute.xlu0 5
    %4295 = vperm.xlu0 %4294, %v3916
    %v4296 = vpop.permute.xlu0 %4295
    %4298 = vset.pattern.permute.xlu0 5
    %4299 = vperm.xlu0 %4298, %v3917
    %v4300 = vpop.permute.xlu0 %4299
    %4302 = vset.pattern.permute.xlu0 5
    %4303 = vperm.xlu0 %4302, %v3918
    %v4304 = vpop.permute.xlu0 %4303
    %4306 = vset.pattern.permute.xlu0 5
    %4307 = vperm.xlu0 %4306, %v3919
    %v4308 = vpop.permute.xlu0 %4307
    %v4310 = vmul.f32 %v3894, %v4260
    %v4311 = vmul.f32 %v3895, %v4264
    %v4312 = vmul.f32 %v3896, %v4268
    %v4313 = vmul.f32 %v3897, %v4272
    %v4314 = vmul.f32 %v3898, %v4276
    %v4315 = vmul.f32 %v3899, %v4280
    %v4316 = vmul.f32 %v3900, %v4284
    %v4317 = vmul.f32 %v3901, %v4288
    %v4318 = vmul.f32 %v3902, %v4292
    %v4319 = vmul.f32 %v3903, %v4296
    %v4320 = vmul.f32 %v3904, %v4300
    %v4321 = vmul.f32 %v3905, %v4304
    %v4322 = vmul.f32 %v3906, %v4308
    %4323 = vset.pattern.permute.xlu0 6
    %4324 = vperm.xlu0 %4323, %v3907
    %v4325 = vpop.permute.xlu0 %4324
    %4327 = vset.pattern.permute.xlu0 6
    %4328 = vperm.xlu0 %4327, %v3908
    %v4329 = vpop.permute.xlu0 %4328
    %4331 = vset.pattern.permute.xlu0 6
    %4332 = vperm.xlu0 %4331, %v3909
    %v4333 = vpop.permute.xlu0 %4332
    %4335 = vset.pattern.permute.xlu0 6
    %4336 = vperm.xlu0 %4335, %v3910
    %v4337 = vpop.permute.xlu0 %4336
    %4339 = vset.pattern.permute.xlu0 6
    %4340 = vperm.xlu0 %4339, %v3911
    %v4341 = vpop.permute.xlu0 %4340
    %4343 = vset.pattern.permute.xlu0 6
    %4344 = vperm.xlu0 %4343, %v3912
    %v4345 = vpop.permute.xlu0 %4344
    %4347 = vset.pattern.permute.xlu0 6
    %4348 = vperm.xlu0 %4347, %v3913
    %v4349 = vpop.permute.xlu0 %4348
    %4351 = vset.pattern.permute.xlu0 6
    %4352 = vperm.xlu0 %4351, %v3914
    %v4353 = vpop.permute.xlu0 %4352
    %4355 = vset.pattern.permute.xlu0 6
    %4356 = vperm.xlu0 %4355, %v3915
    %v4357 = vpop.permute.xlu0 %4356
    %4359 = vset.pattern.permute.xlu0 6
    %4360 = vperm.xlu0 %4359, %v3916
    %v4361 = vpop.permute.xlu0 %4360
    %4363 = vset.pattern.permute.xlu0 6
    %4364 = vperm.xlu0 %4363, %v3917
    %v4365 = vpop.permute.xlu0 %4364
    %4367 = vset.pattern.permute.xlu0 6
    %4368 = vperm.xlu0 %4367, %v3918
    %v4369 = vpop.permute.xlu0 %4368
    %4371 = vset.pattern.permute.xlu0 6
    %4372 = vperm.xlu0 %4371, %v3919
    %v4373 = vpop.permute.xlu0 %4372
    %v4375 = vmul.f32 %v3894, %v4325
    %v4376 = vmul.f32 %v3895, %v4329
    %v4377 = vmul.f32 %v3896, %v4333
    %v4378 = vmul.f32 %v3897, %v4337
    %v4379 = vmul.f32 %v3898, %v4341
    %v4380 = vmul.f32 %v3899, %v4345
    %v4381 = vmul.f32 %v3900, %v4349
    %v4382 = vmul.f32 %v3901, %v4353
    %v4383 = vmul.f32 %v3902, %v4357
    %v4384 = vmul.f32 %v3903, %v4361
    %v4385 = vmul.f32 %v3904, %v4365
    %v4386 = vmul.f32 %v3905, %v4369
    %v4387 = vmul.f32 %v3906, %v4373
    %4388 = vset.pattern.permute.xlu0 7
    %4389 = vperm.xlu0 %4388, %v3907
    %v4390 = vpop.permute.xlu0 %4389
    %4392 = vset.pattern.permute.xlu0 7
    %4393 = vperm.xlu0 %4392, %v3908
    %v4394 = vpop.permute.xlu0 %4393
    %4396 = vset.pattern.permute.xlu0 7
    %4397 = vperm.xlu0 %4396, %v3909
    %v4398 = vpop.permute.xlu0 %4397
    %4400 = vset.pattern.permute.xlu0 7
    %4401 = vperm.xlu0 %4400, %v3910
    %v4402 = vpop.permute.xlu0 %4401
    %4404 = vset.pattern.permute.xlu0 7
    %4405 = vperm.xlu0 %4404, %v3911
    %v4406 = vpop.permute.xlu0 %4405
    %4408 = vset.pattern.permute.xlu0 7
    %4409 = vperm.xlu0 %4408, %v3912
    %v4410 = vpop.permute.xlu0 %4409
    %4412 = vset.pattern.permute.xlu0 7
    %4413 = vperm.xlu0 %4412, %v3913
    %v4414 = vpop.permute.xlu0 %4413
    %4416 = vset.pattern.permute.xlu0 7
    %4417 = vperm.xlu0 %4416, %v3914
    %v4418 = vpop.permute.xlu0 %4417
    %4420 = vset.pattern.permute.xlu0 7
    %4421 = vperm.xlu0 %4420, %v3915
    %v4422 = vpop.permute.xlu0 %4421
    %4424 = vset.pattern.permute.xlu0 7
    %4425 = vperm.xlu0 %4424, %v3916
    %v4426 = vpop.permute.xlu0 %4425
    %4428 = vset.pattern.permute.xlu0 7
    %4429 = vperm.xlu0 %4428, %v3917
    %v4430 = vpop.permute.xlu0 %4429
    %4432 = vset.pattern.permute.xlu0 7
    %4433 = vperm.xlu0 %4432, %v3918
    %v4434 = vpop.permute.xlu0 %4433
    %4436 = vset.pattern.permute.xlu0 7
    %4437 = vperm.xlu0 %4436, %v3919
    %v4438 = vpop.permute.xlu0 %4437
    %v4440 = vmul.f32 %v3894, %v4390
    %v4441 = vmul.f32 %v3895, %v4394
    %v4442 = vmul.f32 %v3896, %v4398
    %v4443 = vmul.f32 %v3897, %v4402
    %v4444 = vmul.f32 %v3898, %v4406
    %v4445 = vmul.f32 %v3899, %v4410
    %v4446 = vmul.f32 %v3900, %v4414
    %v4447 = vmul.f32 %v3901, %v4418
    %v4448 = vmul.f32 %v3902, %v4422
    %v4449 = vmul.f32 %v3903, %v4426
    %v4450 = vmul.f32 %v3904, %v4430
    %v4451 = vmul.f32 %v3905, %v4434
    %v4452 = vmul.f32 %v3906, %v4438
    %4453 = vset.pattern.permute.xlu0 8
    %4454 = vperm.xlu0 %4453, %v3907
    %v4455 = vpop.permute.xlu0 %4454
    %4457 = vset.pattern.permute.xlu0 8
    %4458 = vperm.xlu0 %4457, %v3908
    %v4459 = vpop.permute.xlu0 %4458
    %4461 = vset.pattern.permute.xlu0 8
    %4462 = vperm.xlu0 %4461, %v3909
    %v4463 = vpop.permute.xlu0 %4462
    %4465 = vset.pattern.permute.xlu0 8
    %4466 = vperm.xlu0 %4465, %v3910
    %v4467 = vpop.permute.xlu0 %4466
    %4469 = vset.pattern.permute.xlu0 8
    %4470 = vperm.xlu0 %4469, %v3911
    %v4471 = vpop.permute.xlu0 %4470
    %4473 = vset.pattern.permute.xlu0 8
    %4474 = vperm.xlu0 %4473, %v3912
    %v4475 = vpop.permute.xlu0 %4474
    %4477 = vset.pattern.permute.xlu0 8
    %4478 = vperm.xlu0 %4477, %v3913
    %v4479 = vpop.permute.xlu0 %4478
    %4481 = vset.pattern.permute.xlu0 8
    %4482 = vperm.xlu0 %4481, %v3914
    %v4483 = vpop.permute.xlu0 %4482
    %4485 = vset.pattern.permute.xlu0 8
    %4486 = vperm.xlu0 %4485, %v3915
    %v4487 = vpop.permute.xlu0 %4486
    %4489 = vset.pattern.permute.xlu0 8
    %4490 = vperm.xlu0 %4489, %v3916
    %v4491 = vpop.permute.xlu0 %4490
    %4493 = vset.pattern.permute.xlu0 8
    %4494 = vperm.xlu0 %4493, %v3917
    %v4495 = vpop.permute.xlu0 %4494
    %4497 = vset.pattern.permute.xlu0 8
    %4498 = vperm.xlu0 %4497, %v3918
    %v4499 = vpop.permute.xlu0 %4498
    %4501 = vset.pattern.permute.xlu0 8
    %4502 = vperm.xlu0 %4501, %v3919
    %v4503 = vpop.permute.xlu0 %4502
    %v4505 = vmul.f32 %v3894, %v4455
    %v4506 = vmul.f32 %v3895, %v4459
    %v4507 = vmul.f32 %v3896, %v4463
    %v4508 = vmul.f32 %v3897, %v4467
    %v4509 = vmul.f32 %v3898, %v4471
    %v4510 = vmul.f32 %v3899, %v4475
    %v4511 = vmul.f32 %v3900, %v4479
    %v4512 = vmul.f32 %v3901, %v4483
    %v4513 = vmul.f32 %v3902, %v4487
    %v4514 = vmul.f32 %v3903, %v4491
    %v4515 = vmul.f32 %v3904, %v4495
    %v4516 = vmul.f32 %v3905, %v4499
    %v4517 = vmul.f32 %v3906, %v4503
    %4518 = vset.pattern.permute.xlu0 9
    %4519 = vperm.xlu0 %4518, %v3907
    %v4520 = vpop.permute.xlu0 %4519
    %4522 = vset.pattern.permute.xlu0 9
    %4523 = vperm.xlu0 %4522, %v3908
    %v4524 = vpop.permute.xlu0 %4523
    %4526 = vset.pattern.permute.xlu0 9
    %4527 = vperm.xlu0 %4526, %v3909
    %v4528 = vpop.permute.xlu0 %4527
    %4530 = vset.pattern.permute.xlu0 9
    %4531 = vperm.xlu0 %4530, %v3910
    %v4532 = vpop.permute.xlu0 %4531
    %4534 = vset.pattern.permute.xlu0 9
    %4535 = vperm.xlu0 %4534, %v3911
    %v4536 = vpop.permute.xlu0 %4535
    %4538 = vset.pattern.permute.xlu0 9
    %4539 = vperm.xlu0 %4538, %v3912
    %v4540 = vpop.permute.xlu0 %4539
    %4542 = vset.pattern.permute.xlu0 9
    %4543 = vperm.xlu0 %4542, %v3913
    %v4544 = vpop.permute.xlu0 %4543
    %4546 = vset.pattern.permute.xlu0 9
    %4547 = vperm.xlu0 %4546, %v3914
    %v4548 = vpop.permute.xlu0 %4547
    %4550 = vset.pattern.permute.xlu0 9
    %4551 = vperm.xlu0 %4550, %v3915
    %v4552 = vpop.permute.xlu0 %4551
    %4554 = vset.pattern.permute.xlu0 9
    %4555 = vperm.xlu0 %4554, %v3916
    %v4556 = vpop.permute.xlu0 %4555
    %4558 = vset.pattern.permute.xlu0 9
    %4559 = vperm.xlu0 %4558, %v3917
    %v4560 = vpop.permute.xlu0 %4559
    %4562 = vset.pattern.permute.xlu0 9
    %4563 = vperm.xlu0 %4562, %v3918
    %v4564 = vpop.permute.xlu0 %4563
    %4566 = vset.pattern.permute.xlu0 9
    %4567 = vperm.xlu0 %4566, %v3919
    %v4568 = vpop.permute.xlu0 %4567
    %v4570 = vmul.f32 %v3894, %v4520
    %v4571 = vmul.f32 %v3895, %v4524
    %v4572 = vmul.f32 %v3896, %v4528
    %v4573 = vmul.f32 %v3897, %v4532
    %v4574 = vmul.f32 %v3898, %v4536
    %v4575 = vmul.f32 %v3899, %v4540
    %v4576 = vmul.f32 %v3900, %v4544
    %v4577 = vmul.f32 %v3901, %v4548
    %v4578 = vmul.f32 %v3902, %v4552
    %v4579 = vmul.f32 %v3903, %v4556
    %v4580 = vmul.f32 %v3904, %v4560
    %v4581 = vmul.f32 %v3905, %v4564
    %v4582 = vmul.f32 %v3906, %v4568
    %4583 = vset.pattern.permute.xlu0 10
    %4584 = vperm.xlu0 %4583, %v3907
    %v4585 = vpop.permute.xlu0 %4584
    %4587 = vset.pattern.permute.xlu0 10
    %4588 = vperm.xlu0 %4587, %v3908
    %v4589 = vpop.permute.xlu0 %4588
    %4591 = vset.pattern.permute.xlu0 10
    %4592 = vperm.xlu0 %4591, %v3909
    %v4593 = vpop.permute.xlu0 %4592
    %4595 = vset.pattern.permute.xlu0 10
    %4596 = vperm.xlu0 %4595, %v3910
    %v4597 = vpop.permute.xlu0 %4596
    %4599 = vset.pattern.permute.xlu0 10
    %4600 = vperm.xlu0 %4599, %v3911
    %v4601 = vpop.permute.xlu0 %4600
    %4603 = vset.pattern.permute.xlu0 10
    %4604 = vperm.xlu0 %4603, %v3912
    %v4605 = vpop.permute.xlu0 %4604
    %4607 = vset.pattern.permute.xlu0 10
    %4608 = vperm.xlu0 %4607, %v3913
    %v4609 = vpop.permute.xlu0 %4608
    %4611 = vset.pattern.permute.xlu0 10
    %4612 = vperm.xlu0 %4611, %v3914
    %v4613 = vpop.permute.xlu0 %4612
    %4615 = vset.pattern.permute.xlu0 10
    %4616 = vperm.xlu0 %4615, %v3915
    %v4617 = vpop.permute.xlu0 %4616
    %4619 = vset.pattern.permute.xlu0 10
    %4620 = vperm.xlu0 %4619, %v3916
    %v4621 = vpop.permute.xlu0 %4620
    %4623 = vset.pattern.permute.xlu0 10
    %4624 = vperm.xlu0 %4623, %v3917
    %v4625 = vpop.permute.xlu0 %4624
    %4627 = vset.pattern.permute.xlu0 10
    %4628 = vperm.xlu0 %4627, %v3918
    %v4629 = vpop.permute.xlu0 %4628
    %4631 = vset.pattern.permute.xlu0 10
    %4632 = vperm.xlu0 %4631, %v3919
    %v4633 = vpop.permute.xlu0 %4632
    %v4635 = vmul.f32 %v3894, %v4585
    %v4636 = vmul.f32 %v3895, %v4589
    %v4637 = vmul.f32 %v3896, %v4593
    %v4638 = vmul.f32 %v3897, %v4597
    %v4639 = vmul.f32 %v3898, %v4601
    %v4640 = vmul.f32 %v3899, %v4605
    %v4641 = vmul.f32 %v3900, %v4609
    %v4642 = vmul.f32 %v3901, %v4613
    %v4643 = vmul.f32 %v3902, %v4617
    %v4644 = vmul.f32 %v3903, %v4621
    %v4645 = vmul.f32 %v3904, %v4625
    %v4646 = vmul.f32 %v3905, %v4629
    %v4647 = vmul.f32 %v3906, %v4633
    %4648 = vset.pattern.permute.xlu0 11
    %4649 = vperm.xlu0 %4648, %v3907
    %v4650 = vpop.permute.xlu0 %4649
    %4652 = vset.pattern.permute.xlu0 11
    %4653 = vperm.xlu0 %4652, %v3908
    %v4654 = vpop.permute.xlu0 %4653
    %4656 = vset.pattern.permute.xlu0 11
    %4657 = vperm.xlu0 %4656, %v3909
    %v4658 = vpop.permute.xlu0 %4657
    %4660 = vset.pattern.permute.xlu0 11
    %4661 = vperm.xlu0 %4660, %v3910
    %v4662 = vpop.permute.xlu0 %4661
    %4664 = vset.pattern.permute.xlu0 11
    %4665 = vperm.xlu0 %4664, %v3911
    %v4666 = vpop.permute.xlu0 %4665
    %4668 = vset.pattern.permute.xlu0 11
    %4669 = vperm.xlu0 %4668, %v3912
    %v4670 = vpop.permute.xlu0 %4669
    %4672 = vset.pattern.permute.xlu0 11
    %4673 = vperm.xlu0 %4672, %v3913
    %v4674 = vpop.permute.xlu0 %4673
    %4676 = vset.pattern.permute.xlu0 11
    %4677 = vperm.xlu0 %4676, %v3914
    %v4678 = vpop.permute.xlu0 %4677
    %4680 = vset.pattern.permute.xlu0 11
    %4681 = vperm.xlu0 %4680, %v3915
    %v4682 = vpop.permute.xlu0 %4681
    %4684 = vset.pattern.permute.xlu0 11
    %4685 = vperm.xlu0 %4684, %v3916
    %v4686 = vpop.permute.xlu0 %4685
    %4688 = vset.pattern.permute.xlu0 11
    %4689 = vperm.xlu0 %4688, %v3917
    %v4690 = vpop.permute.xlu0 %4689
    %4692 = vset.pattern.permute.xlu0 11
    %4693 = vperm.xlu0 %4692, %v3918
    %v4694 = vpop.permute.xlu0 %4693
    %4696 = vset.pattern.permute.xlu0 11
    %4697 = vperm.xlu0 %4696, %v3919
    %v4698 = vpop.permute.xlu0 %4697
    %v4700 = vmul.f32 %v3894, %v4650
    %v4701 = vmul.f32 %v3895, %v4654
    %v4702 = vmul.f32 %v3896, %v4658
    %v4703 = vmul.f32 %v3897, %v4662
    %v4704 = vmul.f32 %v3898, %v4666
    %v4705 = vmul.f32 %v3899, %v4670
    %v4706 = vmul.f32 %v3900, %v4674
    %v4707 = vmul.f32 %v3901, %v4678
    %v4708 = vmul.f32 %v3902, %v4682
    %v4709 = vmul.f32 %v3903, %v4686
    %v4710 = vmul.f32 %v3904, %v4690
    %v4711 = vmul.f32 %v3905, %v4694
    %v4712 = vmul.f32 %v3906, %v4698
    %4713 = vset.pattern.permute.xlu0 12
    %4714 = vperm.xlu0 %4713, %v3907
    %v4715 = vpop.permute.xlu0 %4714
    %4717 = vset.pattern.permute.xlu0 12
    %4718 = vperm.xlu0 %4717, %v3908
    %v4719 = vpop.permute.xlu0 %4718
    %4721 = vset.pattern.permute.xlu0 12
    %4722 = vperm.xlu0 %4721, %v3909
    %v4723 = vpop.permute.xlu0 %4722
    %4725 = vset.pattern.permute.xlu0 12
    %4726 = vperm.xlu0 %4725, %v3910
    %v4727 = vpop.permute.xlu0 %4726
    %4729 = vset.pattern.permute.xlu0 12
    %4730 = vperm.xlu0 %4729, %v3911
    %v4731 = vpop.permute.xlu0 %4730
    %4733 = vset.pattern.permute.xlu0 12
    %4734 = vperm.xlu0 %4733, %v3912
    %v4735 = vpop.permute.xlu0 %4734
    %4737 = vset.pattern.permute.xlu0 12
    %4738 = vperm.xlu0 %4737, %v3913
    %v4739 = vpop.permute.xlu0 %4738
    %4741 = vset.pattern.permute.xlu0 12
    %4742 = vperm.xlu0 %4741, %v3914
    %v4743 = vpop.permute.xlu0 %4742
    %4745 = vset.pattern.permute.xlu0 12
    %4746 = vperm.xlu0 %4745, %v3915
    %v4747 = vpop.permute.xlu0 %4746
    %4749 = vset.pattern.permute.xlu0 12
    %4750 = vperm.xlu0 %4749, %v3916
    %v4751 = vpop.permute.xlu0 %4750
    %4753 = vset.pattern.permute.xlu0 12
    %4754 = vperm.xlu0 %4753, %v3917
    %v4755 = vpop.permute.xlu0 %4754
    %4757 = vset.pattern.permute.xlu0 12
    %4758 = vperm.xlu0 %4757, %v3918
    %v4759 = vpop.permute.xlu0 %4758
    %4761 = vset.pattern.permute.xlu0 12
    %4762 = vperm.xlu0 %4761, %v3919
    %v4763 = vpop.permute.xlu0 %4762
    %v4765 = vmul.f32 %v3894, %v4715
    %v4766 = vmul.f32 %v3895, %v4719
    %v4767 = vmul.f32 %v3896, %v4723
    %v4768 = vmul.f32 %v3897, %v4727
    %v4769 = vmul.f32 %v3898, %v4731
    %v4770 = vmul.f32 %v3899, %v4735
    %v4771 = vmul.f32 %v3900, %v4739
    %v4772 = vmul.f32 %v3901, %v4743
    %v4773 = vmul.f32 %v3902, %v4747
    %v4774 = vmul.f32 %v3903, %v4751
    %v4775 = vmul.f32 %v3904, %v4755
    %v4776 = vmul.f32 %v3905, %v4759
    %v4777 = vmul.f32 %v3906, %v4763
    %4778 = vset.pattern.permute.xlu0 13
    %4779 = vperm.xlu0 %4778, %v3907
    %v4780 = vpop.permute.xlu0 %4779
    %4782 = vset.pattern.permute.xlu0 13
    %4783 = vperm.xlu0 %4782, %v3908
    %v4784 = vpop.permute.xlu0 %4783
    %4786 = vset.pattern.permute.xlu0 13
    %4787 = vperm.xlu0 %4786, %v3909
    %v4788 = vpop.permute.xlu0 %4787
    %4790 = vset.pattern.permute.xlu0 13
    %4791 = vperm.xlu0 %4790, %v3910
    %v4792 = vpop.permute.xlu0 %4791
    %4794 = vset.pattern.permute.xlu0 13
    %4795 = vperm.xlu0 %4794, %v3911
    %v4796 = vpop.permute.xlu0 %4795
    %4798 = vset.pattern.permute.xlu0 13
    %4799 = vperm.xlu0 %4798, %v3912
    %v4800 = vpop.permute.xlu0 %4799
    %4802 = vset.pattern.permute.xlu0 13
    %4803 = vperm.xlu0 %4802, %v3913
    %v4804 = vpop.permute.xlu0 %4803
    %4806 = vset.pattern.permute.xlu0 13
    %4807 = vperm.xlu0 %4806, %v3914
    %v4808 = vpop.permute.xlu0 %4807
    %4810 = vset.pattern.permute.xlu0 13
    %4811 = vperm.xlu0 %4810, %v3915
    %v4812 = vpop.permute.xlu0 %4811
    %4814 = vset.pattern.permute.xlu0 13
    %4815 = vperm.xlu0 %4814, %v3916
    %v4816 = vpop.permute.xlu0 %4815
    %4818 = vset.pattern.permute.xlu0 13
    %4819 = vperm.xlu0 %4818, %v3917
    %v4820 = vpop.permute.xlu0 %4819
    %4822 = vset.pattern.permute.xlu0 13
    %4823 = vperm.xlu0 %4822, %v3918
    %v4824 = vpop.permute.xlu0 %4823
    %4826 = vset.pattern.permute.xlu0 13
    %4827 = vperm.xlu0 %4826, %v3919
    %v4828 = vpop.permute.xlu0 %4827
    %v4830 = vmul.f32 %v3894, %v4780
    %v4831 = vmul.f32 %v3895, %v4784
    %v4832 = vmul.f32 %v3896, %v4788
    %v4833 = vmul.f32 %v3897, %v4792
    %v4834 = vmul.f32 %v3898, %v4796
    %v4835 = vmul.f32 %v3899, %v4800
    %v4836 = vmul.f32 %v3900, %v4804
    %v4837 = vmul.f32 %v3901, %v4808
    %v4838 = vmul.f32 %v3902, %v4812
    %v4839 = vmul.f32 %v3903, %v4816
    %v4840 = vmul.f32 %v3904, %v4820
    %v4841 = vmul.f32 %v3905, %v4824
    %v4842 = vmul.f32 %v3906, %v4828
    %4843 = vset.pattern.permute.xlu0 14
    %4844 = vperm.xlu0 %4843, %v3907
    %v4845 = vpop.permute.xlu0 %4844
    %4847 = vset.pattern.permute.xlu0 14
    %4848 = vperm.xlu0 %4847, %v3908
    %v4849 = vpop.permute.xlu0 %4848
    %4851 = vset.pattern.permute.xlu0 14
    %4852 = vperm.xlu0 %4851, %v3909
    %v4853 = vpop.permute.xlu0 %4852
    %4855 = vset.pattern.permute.xlu0 14
    %4856 = vperm.xlu0 %4855, %v3910
    %v4857 = vpop.permute.xlu0 %4856
    %4859 = vset.pattern.permute.xlu0 14
    %4860 = vperm.xlu0 %4859, %v3911
    %v4861 = vpop.permute.xlu0 %4860
    %4863 = vset.pattern.permute.xlu0 14
    %4864 = vperm.xlu0 %4863, %v3912
    %v4865 = vpop.permute.xlu0 %4864
    %4867 = vset.pattern.permute.xlu0 14
    %4868 = vperm.xlu0 %4867, %v3913
    %v4869 = vpop.permute.xlu0 %4868
    %4871 = vset.pattern.permute.xlu0 14
    %4872 = vperm.xlu0 %4871, %v3914
    %v4873 = vpop.permute.xlu0 %4872
    %4875 = vset.pattern.permute.xlu0 14
    %4876 = vperm.xlu0 %4875, %v3915
    %v4877 = vpop.permute.xlu0 %4876
    %4879 = vset.pattern.permute.xlu0 14
    %4880 = vperm.xlu0 %4879, %v3916
    %v4881 = vpop.permute.xlu0 %4880
    %4883 = vset.pattern.permute.xlu0 14
    %4884 = vperm.xlu0 %4883, %v3917
    %v4885 = vpop.permute.xlu0 %4884
    %4887 = vset.pattern.permute.xlu0 14
    %4888 = vperm.xlu0 %4887, %v3918
    %v4889 = vpop.permute.xlu0 %4888
    %4891 = vset.pattern.permute.xlu0 14
    %4892 = vperm.xlu0 %4891, %v3919
    %v4893 = vpop.permute.xlu0 %4892
    %v4895 = vmul.f32 %v3894, %v4845
    %v4896 = vmul.f32 %v3895, %v4849
    %v4897 = vmul.f32 %v3896, %v4853
    %v4898 = vmul.f32 %v3897, %v4857
    %v4899 = vmul.f32 %v3898, %v4861
    %v4900 = vmul.f32 %v3899, %v4865
    %v4901 = vmul.f32 %v3900, %v4869
    %v4902 = vmul.f32 %v3901, %v4873
    %v4903 = vmul.f32 %v3902, %v4877
    %v4904 = vmul.f32 %v3903, %v4881
    %v4905 = vmul.f32 %v3904, %v4885
    %v4906 = vmul.f32 %v3905, %v4889
    %v4907 = vmul.f32 %v3906, %v4893
    %4908 = vset.pattern.permute.xlu0 15
    %4909 = vperm.xlu0 %4908, %v3907
    %v4910 = vpop.permute.xlu0 %4909
    %4912 = vset.pattern.permute.xlu0 15
    %4913 = vperm.xlu0 %4912, %v3908
    %v4914 = vpop.permute.xlu0 %4913
    %4916 = vset.pattern.permute.xlu0 15
    %4917 = vperm.xlu0 %4916, %v3909
    %v4918 = vpop.permute.xlu0 %4917
    %4920 = vset.pattern.permute.xlu0 15
    %4921 = vperm.xlu0 %4920, %v3910
    %v4922 = vpop.permute.xlu0 %4921
    %4924 = vset.pattern.permute.xlu0 15
    %4925 = vperm.xlu0 %4924, %v3911
    %v4926 = vpop.permute.xlu0 %4925
    %4928 = vset.pattern.permute.xlu0 15
    %4929 = vperm.xlu0 %4928, %v3912
    %v4930 = vpop.permute.xlu0 %4929
    %4932 = vset.pattern.permute.xlu0 15
    %4933 = vperm.xlu0 %4932, %v3913
    %v4934 = vpop.permute.xlu0 %4933
    %4936 = vset.pattern.permute.xlu0 15
    %4937 = vperm.xlu0 %4936, %v3914
    %v4938 = vpop.permute.xlu0 %4937
    %4940 = vset.pattern.permute.xlu0 15
    %4941 = vperm.xlu0 %4940, %v3915
    %v4942 = vpop.permute.xlu0 %4941
    %4944 = vset.pattern.permute.xlu0 15
    %4945 = vperm.xlu0 %4944, %v3916
    %v4946 = vpop.permute.xlu0 %4945
    %4948 = vset.pattern.permute.xlu0 15
    %4949 = vperm.xlu0 %4948, %v3917
    %v4950 = vpop.permute.xlu0 %4949
    %4952 = vset.pattern.permute.xlu0 15
    %4953 = vperm.xlu0 %4952, %v3918
    %v4954 = vpop.permute.xlu0 %4953
    %4956 = vset.pattern.permute.xlu0 15
    %4957 = vperm.xlu0 %4956, %v3919
    %v4958 = vpop.permute.xlu0 %4957
    %v4960 = vmul.f32 %v3894, %v4910
    %v4961 = vmul.f32 %v3895, %v4914
    %v4962 = vmul.f32 %v3896, %v4918
    %v4963 = vmul.f32 %v3897, %v4922
    %v4964 = vmul.f32 %v3898, %v4926
    %v4965 = vmul.f32 %v3899, %v4930
    %v4966 = vmul.f32 %v3900, %v4934
    %v4967 = vmul.f32 %v3901, %v4938
    %v4968 = vmul.f32 %v3902, %v4942
    %v4969 = vmul.f32 %v3903, %v4946
    %v4970 = vmul.f32 %v3904, %v4950
    %v4971 = vmul.f32 %v3905, %v4954
    %v4972 = vmul.f32 %v3906, %v4958
    %4973 = vset.pattern.permute.xlu0 16
    %4974 = vperm.xlu0 %4973, %v3907
    %v4975 = vpop.permute.xlu0 %4974
    %4977 = vset.pattern.permute.xlu0 16
    %4978 = vperm.xlu0 %4977, %v3908
    %v4979 = vpop.permute.xlu0 %4978
    %4981 = vset.pattern.permute.xlu0 16
    %4982 = vperm.xlu0 %4981, %v3909
    %v4983 = vpop.permute.xlu0 %4982
    %4985 = vset.pattern.permute.xlu0 16
    %4986 = vperm.xlu0 %4985, %v3910
    %v4987 = vpop.permute.xlu0 %4986
    %4989 = vset.pattern.permute.xlu0 16
    %4990 = vperm.xlu0 %4989, %v3911
    %v4991 = vpop.permute.xlu0 %4990
    %4993 = vset.pattern.permute.xlu0 16
    %4994 = vperm.xlu0 %4993, %v3912
    %v4995 = vpop.permute.xlu0 %4994
    %4997 = vset.pattern.permute.xlu0 16
    %4998 = vperm.xlu0 %4997, %v3913
    %v4999 = vpop.permute.xlu0 %4998
    %5001 = vset.pattern.permute.xlu0 16
    %5002 = vperm.xlu0 %5001, %v3914
    %v5003 = vpop.permute.xlu0 %5002
    %5005 = vset.pattern.permute.xlu0 16
    %5006 = vperm.xlu0 %5005, %v3915
    %v5007 = vpop.permute.xlu0 %5006
    %5009 = vset.pattern.permute.xlu0 16
    %5010 = vperm.xlu0 %5009, %v3916
    %v5011 = vpop.permute.xlu0 %5010
    %5013 = vset.pattern.permute.xlu0 16
    %5014 = vperm.xlu0 %5013, %v3917
    %v5015 = vpop.permute.xlu0 %5014
    %5017 = vset.pattern.permute.xlu0 16
    %5018 = vperm.xlu0 %5017, %v3918
    %v5019 = vpop.permute.xlu0 %5018
    %5021 = vset.pattern.permute.xlu0 16
    %5022 = vperm.xlu0 %5021, %v3919
    %v5023 = vpop.permute.xlu0 %5022
    %v5025 = vmul.f32 %v3894, %v4975
    %v5026 = vmul.f32 %v3895, %v4979
    %v5027 = vmul.f32 %v3896, %v4983
    %v5028 = vmul.f32 %v3897, %v4987
    %v5029 = vmul.f32 %v3898, %v4991
    %v5030 = vmul.f32 %v3899, %v4995
    %v5031 = vmul.f32 %v3900, %v4999
    %v5032 = vmul.f32 %v3901, %v5003
    %v5033 = vmul.f32 %v3902, %v5007
    %v5034 = vmul.f32 %v3903, %v5011
    %v5035 = vmul.f32 %v3904, %v5015
    %v5036 = vmul.f32 %v3905, %v5019
    %v5037 = vmul.f32 %v3906, %v5023
    %5038 = vset.pattern.permute.xlu0 17
    %5039 = vperm.xlu0 %5038, %v3907
    %v5040 = vpop.permute.xlu0 %5039
    %5042 = vset.pattern.permute.xlu0 17
    %5043 = vperm.xlu0 %5042, %v3908
    %v5044 = vpop.permute.xlu0 %5043
    %5046 = vset.pattern.permute.xlu0 17
    %5047 = vperm.xlu0 %5046, %v3909
    %v5048 = vpop.permute.xlu0 %5047
    %5050 = vset.pattern.permute.xlu0 17
    %5051 = vperm.xlu0 %5050, %v3910
    %v5052 = vpop.permute.xlu0 %5051
    %5054 = vset.pattern.permute.xlu0 17
    %5055 = vperm.xlu0 %5054, %v3911
    %v5056 = vpop.permute.xlu0 %5055
    %5058 = vset.pattern.permute.xlu0 17
    %5059 = vperm.xlu0 %5058, %v3912
    %v5060 = vpop.permute.xlu0 %5059
    %5062 = vset.pattern.permute.xlu0 17
    %5063 = vperm.xlu0 %5062, %v3913
    %v5064 = vpop.permute.xlu0 %5063
    %5066 = vset.pattern.permute.xlu0 17
    %5067 = vperm.xlu0 %5066, %v3914
    %v5068 = vpop.permute.xlu0 %5067
    %5070 = vset.pattern.permute.xlu0 17
    %5071 = vperm.xlu0 %5070, %v3915
    %v5072 = vpop.permute.xlu0 %5071
    %5074 = vset.pattern.permute.xlu0 17
    %5075 = vperm.xlu0 %5074, %v3916
    %v5076 = vpop.permute.xlu0 %5075
    %5078 = vset.pattern.permute.xlu0 17
    %5079 = vperm.xlu0 %5078, %v3917
    %v5080 = vpop.permute.xlu0 %5079
    %5082 = vset.pattern.permute.xlu0 17
    %5083 = vperm.xlu0 %5082, %v3918
    %v5084 = vpop.permute.xlu0 %5083
    %5086 = vset.pattern.permute.xlu0 17
    %5087 = vperm.xlu0 %5086, %v3919
    %v5088 = vpop.permute.xlu0 %5087
    %v5090 = vmul.f32 %v3894, %v5040
    %v5091 = vmul.f32 %v3895, %v5044
    %v5092 = vmul.f32 %v3896, %v5048
    %v5093 = vmul.f32 %v3897, %v5052
    %v5094 = vmul.f32 %v3898, %v5056
    %v5095 = vmul.f32 %v3899, %v5060
    %v5096 = vmul.f32 %v3900, %v5064
    %v5097 = vmul.f32 %v3901, %v5068
    %v5098 = vmul.f32 %v3902, %v5072
    %v5099 = vmul.f32 %v3903, %v5076
    %v5100 = vmul.f32 %v3904, %v5080
    %v5101 = vmul.f32 %v3905, %v5084
    %v5102 = vmul.f32 %v3906, %v5088
    %5103 = vset.pattern.permute.xlu0 18
    %5104 = vperm.xlu0 %5103, %v3907
    %v5105 = vpop.permute.xlu0 %5104
    %5107 = vset.pattern.permute.xlu0 18
    %5108 = vperm.xlu0 %5107, %v3908
    %v5109 = vpop.permute.xlu0 %5108
    %5111 = vset.pattern.permute.xlu0 18
    %5112 = vperm.xlu0 %5111, %v3909
    %v5113 = vpop.permute.xlu0 %5112
    %5115 = vset.pattern.permute.xlu0 18
    %5116 = vperm.xlu0 %5115, %v3910
    %v5117 = vpop.permute.xlu0 %5116
    %5119 = vset.pattern.permute.xlu0 18
    %5120 = vperm.xlu0 %5119, %v3911
    %v5121 = vpop.permute.xlu0 %5120
    %5123 = vset.pattern.permute.xlu0 18
    %5124 = vperm.xlu0 %5123, %v3912
    %v5125 = vpop.permute.xlu0 %5124
    %5127 = vset.pattern.permute.xlu0 18
    %5128 = vperm.xlu0 %5127, %v3913
    %v5129 = vpop.permute.xlu0 %5128
    %5131 = vset.pattern.permute.xlu0 18
    %5132 = vperm.xlu0 %5131, %v3914
    %v5133 = vpop.permute.xlu0 %5132
    %5135 = vset.pattern.permute.xlu0 18
    %5136 = vperm.xlu0 %5135, %v3915
    %v5137 = vpop.permute.xlu0 %5136
    %5139 = vset.pattern.permute.xlu0 18
    %5140 = vperm.xlu0 %5139, %v3916
    %v5141 = vpop.permute.xlu0 %5140
    %5143 = vset.pattern.permute.xlu0 18
    %5144 = vperm.xlu0 %5143, %v3917
    %v5145 = vpop.permute.xlu0 %5144
    %5147 = vset.pattern.permute.xlu0 18
    %5148 = vperm.xlu0 %5147, %v3918
    %v5149 = vpop.permute.xlu0 %5148
    %5151 = vset.pattern.permute.xlu0 18
    %5152 = vperm.xlu0 %5151, %v3919
    %v5153 = vpop.permute.xlu0 %5152
    %v5155 = vmul.f32 %v3894, %v5105
    %v5156 = vmul.f32 %v3895, %v5109
    %v5157 = vmul.f32 %v3896, %v5113
    %v5158 = vmul.f32 %v3897, %v5117
    %v5159 = vmul.f32 %v3898, %v5121
    %v5160 = vmul.f32 %v3899, %v5125
    %v5161 = vmul.f32 %v3900, %v5129
    %v5162 = vmul.f32 %v3901, %v5133
    %v5163 = vmul.f32 %v3902, %v5137
    %v5164 = vmul.f32 %v3903, %v5141
    %v5165 = vmul.f32 %v3904, %v5145
    %v5166 = vmul.f32 %v3905, %v5149
    %v5167 = vmul.f32 %v3906, %v5153
    %5168 = vset.pattern.permute.xlu0 19
    %5169 = vperm.xlu0 %5168, %v3907
    %v5170 = vpop.permute.xlu0 %5169
    %5172 = vset.pattern.permute.xlu0 19
    %5173 = vperm.xlu0 %5172, %v3908
    %v5174 = vpop.permute.xlu0 %5173
    %5176 = vset.pattern.permute.xlu0 19
    %5177 = vperm.xlu0 %5176, %v3909
    %v5178 = vpop.permute.xlu0 %5177
    %5180 = vset.pattern.permute.xlu0 19
    %5181 = vperm.xlu0 %5180, %v3910
    %v5182 = vpop.permute.xlu0 %5181
    %5184 = vset.pattern.permute.xlu0 19
    %5185 = vperm.xlu0 %5184, %v3911
    %v5186 = vpop.permute.xlu0 %5185
    %5188 = vset.pattern.permute.xlu0 19
    %5189 = vperm.xlu0 %5188, %v3912
    %v5190 = vpop.permute.xlu0 %5189
    %5192 = vset.pattern.permute.xlu0 19
    %5193 = vperm.xlu0 %5192, %v3913
    %v5194 = vpop.permute.xlu0 %5193
    %5196 = vset.pattern.permute.xlu0 19
    %5197 = vperm.xlu0 %5196, %v3914
    %v5198 = vpop.permute.xlu0 %5197
    %5200 = vset.pattern.permute.xlu0 19
    %5201 = vperm.xlu0 %5200, %v3915
    %v5202 = vpop.permute.xlu0 %5201
    %5204 = vset.pattern.permute.xlu0 19
    %5205 = vperm.xlu0 %5204, %v3916
    %v5206 = vpop.permute.xlu0 %5205
    %5208 = vset.pattern.permute.xlu0 19
    %5209 = vperm.xlu0 %5208, %v3917
    %v5210 = vpop.permute.xlu0 %5209
    %5212 = vset.pattern.permute.xlu0 19
    %5213 = vperm.xlu0 %5212, %v3918
    %v5214 = vpop.permute.xlu0 %5213
    %5216 = vset.pattern.permute.xlu0 19
    %5217 = vperm.xlu0 %5216, %v3919
    %v5218 = vpop.permute.xlu0 %5217
    %v5220 = vmul.f32 %v3894, %v5170
    %v5221 = vmul.f32 %v3895, %v5174
    %v5222 = vmul.f32 %v3896, %v5178
    %v5223 = vmul.f32 %v3897, %v5182
    %v5224 = vmul.f32 %v3898, %v5186
    %v5225 = vmul.f32 %v3899, %v5190
    %v5226 = vmul.f32 %v3900, %v5194
    %v5227 = vmul.f32 %v3901, %v5198
    %v5228 = vmul.f32 %v3902, %v5202
    %v5229 = vmul.f32 %v3903, %v5206
    %v5230 = vmul.f32 %v3904, %v5210
    %v5231 = vmul.f32 %v3905, %v5214
    %v5232 = vmul.f32 %v3906, %v5218
    %5233 = vset.pattern.permute.xlu0 20
    %5234 = vperm.xlu0 %5233, %v3907
    %v5235 = vpop.permute.xlu0 %5234
    %5237 = vset.pattern.permute.xlu0 20
    %5238 = vperm.xlu0 %5237, %v3908
    %v5239 = vpop.permute.xlu0 %5238
    %5241 = vset.pattern.permute.xlu0 20
    %5242 = vperm.xlu0 %5241, %v3909
    %v5243 = vpop.permute.xlu0 %5242
    %5245 = vset.pattern.permute.xlu0 20
    %5246 = vperm.xlu0 %5245, %v3910
    %v5247 = vpop.permute.xlu0 %5246
    %5249 = vset.pattern.permute.xlu0 20
    %5250 = vperm.xlu0 %5249, %v3911
    %v5251 = vpop.permute.xlu0 %5250
    %5253 = vset.pattern.permute.xlu0 20
    %5254 = vperm.xlu0 %5253, %v3912
    %v5255 = vpop.permute.xlu0 %5254
    %5257 = vset.pattern.permute.xlu0 20
    %5258 = vperm.xlu0 %5257, %v3913
    %v5259 = vpop.permute.xlu0 %5258
    %5261 = vset.pattern.permute.xlu0 20
    %5262 = vperm.xlu0 %5261, %v3914
    %v5263 = vpop.permute.xlu0 %5262
    %5265 = vset.pattern.permute.xlu0 20
    %5266 = vperm.xlu0 %5265, %v3915
    %v5267 = vpop.permute.xlu0 %5266
    %5269 = vset.pattern.permute.xlu0 20
    %5270 = vperm.xlu0 %5269, %v3916
    %v5271 = vpop.permute.xlu0 %5270
    %5273 = vset.pattern.permute.xlu0 20
    %5274 = vperm.xlu0 %5273, %v3917
    %v5275 = vpop.permute.xlu0 %5274
    %5277 = vset.pattern.permute.xlu0 20
    %5278 = vperm.xlu0 %5277, %v3918
    %v5279 = vpop.permute.xlu0 %5278
    %5281 = vset.pattern.permute.xlu0 20
    %5282 = vperm.xlu0 %5281, %v3919
    %v5283 = vpop.permute.xlu0 %5282
    %v5285 = vmul.f32 %v3894, %v5235
    %v5286 = vmul.f32 %v3895, %v5239
    %v5287 = vmul.f32 %v3896, %v5243
    %v5288 = vmul.f32 %v3897, %v5247
    %v5289 = vmul.f32 %v3898, %v5251
    %v5290 = vmul.f32 %v3899, %v5255
    %v5291 = vmul.f32 %v3900, %v5259
    %v5292 = vmul.f32 %v3901, %v5263
    %v5293 = vmul.f32 %v3902, %v5267
    %v5294 = vmul.f32 %v3903, %v5271
    %v5295 = vmul.f32 %v3904, %v5275
    %v5296 = vmul.f32 %v3905, %v5279
    %v5297 = vmul.f32 %v3906, %v5283
    %5298 = vset.pattern.permute.xlu0 21
    %5299 = vperm.xlu0 %5298, %v3907
    %v5300 = vpop.permute.xlu0 %5299
    %5302 = vset.pattern.permute.xlu0 21
    %5303 = vperm.xlu0 %5302, %v3908
    %v5304 = vpop.permute.xlu0 %5303
    %5306 = vset.pattern.permute.xlu0 21
    %5307 = vperm.xlu0 %5306, %v3909
    %v5308 = vpop.permute.xlu0 %5307
    %5310 = vset.pattern.permute.xlu0 21
    %5311 = vperm.xlu0 %5310, %v3910
    %v5312 = vpop.permute.xlu0 %5311
    %5314 = vset.pattern.permute.xlu0 21
    %5315 = vperm.xlu0 %5314, %v3911
    %v5316 = vpop.permute.xlu0 %5315
    %5318 = vset.pattern.permute.xlu0 21
    %5319 = vperm.xlu0 %5318, %v3912
    %v5320 = vpop.permute.xlu0 %5319
    %5322 = vset.pattern.permute.xlu0 21
    %5323 = vperm.xlu0 %5322, %v3913
    %v5324 = vpop.permute.xlu0 %5323
    %5326 = vset.pattern.permute.xlu0 21
    %5327 = vperm.xlu0 %5326, %v3914
    %v5328 = vpop.permute.xlu0 %5327
    %5330 = vset.pattern.permute.xlu0 21
    %5331 = vperm.xlu0 %5330, %v3915
    %v5332 = vpop.permute.xlu0 %5331
    %5334 = vset.pattern.permute.xlu0 21
    %5335 = vperm.xlu0 %5334, %v3916
    %v5336 = vpop.permute.xlu0 %5335
    %5338 = vset.pattern.permute.xlu0 21
    %5339 = vperm.xlu0 %5338, %v3917
    %v5340 = vpop.permute.xlu0 %5339
    %5342 = vset.pattern.permute.xlu0 21
    %5343 = vperm.xlu0 %5342, %v3918
    %v5344 = vpop.permute.xlu0 %5343
    %5346 = vset.pattern.permute.xlu0 21
    %5347 = vperm.xlu0 %5346, %v3919
    %v5348 = vpop.permute.xlu0 %5347
    %v5350 = vmul.f32 %v3894, %v5300
    %v5351 = vmul.f32 %v3895, %v5304
    %v5352 = vmul.f32 %v3896, %v5308
    %v5353 = vmul.f32 %v3897, %v5312
    %v5354 = vmul.f32 %v3898, %v5316
    %v5355 = vmul.f32 %v3899, %v5320
    %v5356 = vmul.f32 %v3900, %v5324
    %v5357 = vmul.f32 %v3901, %v5328
    %v5358 = vmul.f32 %v3902, %v5332
    %v5359 = vmul.f32 %v3903, %v5336
    %v5360 = vmul.f32 %v3904, %v5340
    %v5361 = vmul.f32 %v3905, %v5344
    %v5362 = vmul.f32 %v3906, %v5348
    %5363 = vset.pattern.permute.xlu0 22
    %5364 = vperm.xlu0 %5363, %v3907
    %v5365 = vpop.permute.xlu0 %5364
    %5367 = vset.pattern.permute.xlu0 22
    %5368 = vperm.xlu0 %5367, %v3908
    %v5369 = vpop.permute.xlu0 %5368
    %5371 = vset.pattern.permute.xlu0 22
    %5372 = vperm.xlu0 %5371, %v3909
    %v5373 = vpop.permute.xlu0 %5372
    %5375 = vset.pattern.permute.xlu0 22
    %5376 = vperm.xlu0 %5375, %v3910
    %v5377 = vpop.permute.xlu0 %5376
    %5379 = vset.pattern.permute.xlu0 22
    %5380 = vperm.xlu0 %5379, %v3911
    %v5381 = vpop.permute.xlu0 %5380
    %5383 = vset.pattern.permute.xlu0 22
    %5384 = vperm.xlu0 %5383, %v3912
    %v5385 = vpop.permute.xlu0 %5384
    %5387 = vset.pattern.permute.xlu0 22
    %5388 = vperm.xlu0 %5387, %v3913
    %v5389 = vpop.permute.xlu0 %5388
    %5391 = vset.pattern.permute.xlu0 22
    %5392 = vperm.xlu0 %5391, %v3914
    %v5393 = vpop.permute.xlu0 %5392
    %5395 = vset.pattern.permute.xlu0 22
    %5396 = vperm.xlu0 %5395, %v3915
    %v5397 = vpop.permute.xlu0 %5396
    %5399 = vset.pattern.permute.xlu0 22
    %5400 = vperm.xlu0 %5399, %v3916
    %v5401 = vpop.permute.xlu0 %5400
    %5403 = vset.pattern.permute.xlu0 22
    %5404 = vperm.xlu0 %5403, %v3917
    %v5405 = vpop.permute.xlu0 %5404
    %5407 = vset.pattern.permute.xlu0 22
    %5408 = vperm.xlu0 %5407, %v3918
    %v5409 = vpop.permute.xlu0 %5408
    %5411 = vset.pattern.permute.xlu0 22
    %5412 = vperm.xlu0 %5411, %v3919
    %v5413 = vpop.permute.xlu0 %5412
    %v5415 = vmul.f32 %v3894, %v5365
    %v5416 = vmul.f32 %v3895, %v5369
    %v5417 = vmul.f32 %v3896, %v5373
    %v5418 = vmul.f32 %v3897, %v5377
    %v5419 = vmul.f32 %v3898, %v5381
    %v5420 = vmul.f32 %v3899, %v5385
    %v5421 = vmul.f32 %v3900, %v5389
    %v5422 = vmul.f32 %v3901, %v5393
    %v5423 = vmul.f32 %v3902, %v5397
    %v5424 = vmul.f32 %v3903, %v5401
    %v5425 = vmul.f32 %v3904, %v5405
    %v5426 = vmul.f32 %v3905, %v5409
    %v5427 = vmul.f32 %v3906, %v5413
    %5428 = vset.pattern.permute.xlu0 23
    %5429 = vperm.xlu0 %5428, %v3907
    %v5430 = vpop.permute.xlu0 %5429
    %5432 = vset.pattern.permute.xlu0 23
    %5433 = vperm.xlu0 %5432, %v3908
    %v5434 = vpop.permute.xlu0 %5433
    %5436 = vset.pattern.permute.xlu0 23
    %5437 = vperm.xlu0 %5436, %v3909
    %v5438 = vpop.permute.xlu0 %5437
    %5440 = vset.pattern.permute.xlu0 23
    %5441 = vperm.xlu0 %5440, %v3910
    %v5442 = vpop.permute.xlu0 %5441
    %5444 = vset.pattern.permute.xlu0 23
    %5445 = vperm.xlu0 %5444, %v3911
    %v5446 = vpop.permute.xlu0 %5445
    %5448 = vset.pattern.permute.xlu0 23
    %5449 = vperm.xlu0 %5448, %v3912
    %v5450 = vpop.permute.xlu0 %5449
    %5452 = vset.pattern.permute.xlu0 23
    %5453 = vperm.xlu0 %5452, %v3913
    %v5454 = vpop.permute.xlu0 %5453
    %5456 = vset.pattern.permute.xlu0 23
    %5457 = vperm.xlu0 %5456, %v3914
    %v5458 = vpop.permute.xlu0 %5457
    %5460 = vset.pattern.permute.xlu0 23
    %5461 = vperm.xlu0 %5460, %v3915
    %v5462 = vpop.permute.xlu0 %5461
    %5464 = vset.pattern.permute.xlu0 23
    %5465 = vperm.xlu0 %5464, %v3916
    %v5466 = vpop.permute.xlu0 %5465
    %5468 = vset.pattern.permute.xlu0 23
    %5469 = vperm.xlu0 %5468, %v3917
    %v5470 = vpop.permute.xlu0 %5469
    %5472 = vset.pattern.permute.xlu0 23
    %5473 = vperm.xlu0 %5472, %v3918
    %v5474 = vpop.permute.xlu0 %5473
    %5476 = vset.pattern.permute.xlu0 23
    %5477 = vperm.xlu0 %5476, %v3919
    %v5478 = vpop.permute.xlu0 %5477
    %v5480 = vmul.f32 %v3894, %v5430
    %v5481 = vmul.f32 %v3895, %v5434
    %v5482 = vmul.f32 %v3896, %v5438
    %v5483 = vmul.f32 %v3897, %v5442
    %v5484 = vmul.f32 %v3898, %v5446
    %v5485 = vmul.f32 %v3899, %v5450
    %v5486 = vmul.f32 %v3900, %v5454
    %v5487 = vmul.f32 %v3901, %v5458
    %v5488 = vmul.f32 %v3902, %v5462
    %v5489 = vmul.f32 %v3903, %v5466
    %v5490 = vmul.f32 %v3904, %v5470
    %v5491 = vmul.f32 %v3905, %v5474
    %v5492 = vmul.f32 %v3906, %v5478
    %5493 = vset.pattern.permute.xlu0 24
    %5494 = vperm.xlu0 %5493, %v3907
    %v5495 = vpop.permute.xlu0 %5494
    %5497 = vset.pattern.permute.xlu0 24
    %5498 = vperm.xlu0 %5497, %v3908
    %v5499 = vpop.permute.xlu0 %5498
    %5501 = vset.pattern.permute.xlu0 24
    %5502 = vperm.xlu0 %5501, %v3909
    %v5503 = vpop.permute.xlu0 %5502
    %5505 = vset.pattern.permute.xlu0 24
    %5506 = vperm.xlu0 %5505, %v3910
    %v5507 = vpop.permute.xlu0 %5506
    %5509 = vset.pattern.permute.xlu0 24
    %5510 = vperm.xlu0 %5509, %v3911
    %v5511 = vpop.permute.xlu0 %5510
    %5513 = vset.pattern.permute.xlu0 24
    %5514 = vperm.xlu0 %5513, %v3912
    %v5515 = vpop.permute.xlu0 %5514
    %5517 = vset.pattern.permute.xlu0 24
    %5518 = vperm.xlu0 %5517, %v3913
    %v5519 = vpop.permute.xlu0 %5518
    %5521 = vset.pattern.permute.xlu0 24
    %5522 = vperm.xlu0 %5521, %v3914
    %v5523 = vpop.permute.xlu0 %5522
    %5525 = vset.pattern.permute.xlu0 24
    %5526 = vperm.xlu0 %5525, %v3915
    %v5527 = vpop.permute.xlu0 %5526
    %5529 = vset.pattern.permute.xlu0 24
    %5530 = vperm.xlu0 %5529, %v3916
    %v5531 = vpop.permute.xlu0 %5530
    %5533 = vset.pattern.permute.xlu0 24
    %5534 = vperm.xlu0 %5533, %v3917
    %v5535 = vpop.permute.xlu0 %5534
    %5537 = vset.pattern.permute.xlu0 24
    %5538 = vperm.xlu0 %5537, %v3918
    %v5539 = vpop.permute.xlu0 %5538
    %5541 = vset.pattern.permute.xlu0 24
    %5542 = vperm.xlu0 %5541, %v3919
    %v5543 = vpop.permute.xlu0 %5542
    %v5545 = vmul.f32 %v3894, %v5495
    %v5546 = vmul.f32 %v3895, %v5499
    %v5547 = vmul.f32 %v3896, %v5503
    %v5548 = vmul.f32 %v3897, %v5507
    %v5549 = vmul.f32 %v3898, %v5511
    %v5550 = vmul.f32 %v3899, %v5515
    %v5551 = vmul.f32 %v3900, %v5519
    %v5552 = vmul.f32 %v3901, %v5523
    %v5553 = vmul.f32 %v3902, %v5527
    %v5554 = vmul.f32 %v3903, %v5531
    %v5555 = vmul.f32 %v3904, %v5535
    %v5556 = vmul.f32 %v3905, %v5539
    %v5557 = vmul.f32 %v3906, %v5543
    %5558 = vset.pattern.permute.xlu0 25
    %5559 = vperm.xlu0 %5558, %v3907
    %v5560 = vpop.permute.xlu0 %5559
    %5562 = vset.pattern.permute.xlu0 25
    %5563 = vperm.xlu0 %5562, %v3908
    %v5564 = vpop.permute.xlu0 %5563
    %5566 = vset.pattern.permute.xlu0 25
    %5567 = vperm.xlu0 %5566, %v3909
    %v5568 = vpop.permute.xlu0 %5567
    %5570 = vset.pattern.permute.xlu0 25
    %5571 = vperm.xlu0 %5570, %v3910
    %v5572 = vpop.permute.xlu0 %5571
    %5574 = vset.pattern.permute.xlu0 25
    %5575 = vperm.xlu0 %5574, %v3911
    %v5576 = vpop.permute.xlu0 %5575
    %5578 = vset.pattern.permute.xlu0 25
    %5579 = vperm.xlu0 %5578, %v3912
    %v5580 = vpop.permute.xlu0 %5579
    %5582 = vset.pattern.permute.xlu0 25
    %5583 = vperm.xlu0 %5582, %v3913
    %v5584 = vpop.permute.xlu0 %5583
    %5586 = vset.pattern.permute.xlu0 25
    %5587 = vperm.xlu0 %5586, %v3914
    %v5588 = vpop.permute.xlu0 %5587
    %5590 = vset.pattern.permute.xlu0 25
    %5591 = vperm.xlu0 %5590, %v3915
    %v5592 = vpop.permute.xlu0 %5591
    %5594 = vset.pattern.permute.xlu0 25
    %5595 = vperm.xlu0 %5594, %v3916
    %v5596 = vpop.permute.xlu0 %5595
    %5598 = vset.pattern.permute.xlu0 25
    %5599 = vperm.xlu0 %5598, %v3917
    %v5600 = vpop.permute.xlu0 %5599
    %5602 = vset.pattern.permute.xlu0 25
    %5603 = vperm.xlu0 %5602, %v3918
    %v5604 = vpop.permute.xlu0 %5603
    %5606 = vset.pattern.permute.xlu0 25
    %5607 = vperm.xlu0 %5606, %v3919
    %v5608 = vpop.permute.xlu0 %5607
    %v5610 = vmul.f32 %v3894, %v5560
    %v5611 = vmul.f32 %v3895, %v5564
    %v5612 = vmul.f32 %v3896, %v5568
    %v5613 = vmul.f32 %v3897, %v5572
    %v5614 = vmul.f32 %v3898, %v5576
    %v5615 = vmul.f32 %v3899, %v5580
    %v5616 = vmul.f32 %v3900, %v5584
    %v5617 = vmul.f32 %v3901, %v5588
    %v5618 = vmul.f32 %v3902, %v5592
    %v5619 = vmul.f32 %v3903, %v5596
    %v5620 = vmul.f32 %v3904, %v5600
    %v5621 = vmul.f32 %v3905, %v5604
    %v5622 = vmul.f32 %v3906, %v5608
    %5623 = vset.pattern.permute.xlu0 26
    %5624 = vperm.xlu0 %5623, %v3907
    %v5625 = vpop.permute.xlu0 %5624
    %5627 = vset.pattern.permute.xlu0 26
    %5628 = vperm.xlu0 %5627, %v3908
    %v5629 = vpop.permute.xlu0 %5628
    %5631 = vset.pattern.permute.xlu0 26
    %5632 = vperm.xlu0 %5631, %v3909
    %v5633 = vpop.permute.xlu0 %5632
    %5635 = vset.pattern.permute.xlu0 26
    %5636 = vperm.xlu0 %5635, %v3910
    %v5637 = vpop.permute.xlu0 %5636
    %5639 = vset.pattern.permute.xlu0 26
    %5640 = vperm.xlu0 %5639, %v3911
    %v5641 = vpop.permute.xlu0 %5640
    %5643 = vset.pattern.permute.xlu0 26
    %5644 = vperm.xlu0 %5643, %v3912
    %v5645 = vpop.permute.xlu0 %5644
    %5647 = vset.pattern.permute.xlu0 26
    %5648 = vperm.xlu0 %5647, %v3913
    %v5649 = vpop.permute.xlu0 %5648
    %5651 = vset.pattern.permute.xlu0 26
    %5652 = vperm.xlu0 %5651, %v3914
    %v5653 = vpop.permute.xlu0 %5652
    %5655 = vset.pattern.permute.xlu0 26
    %5656 = vperm.xlu0 %5655, %v3915
    %v5657 = vpop.permute.xlu0 %5656
    %5659 = vset.pattern.permute.xlu0 26
    %5660 = vperm.xlu0 %5659, %v3916
    %v5661 = vpop.permute.xlu0 %5660
    %5663 = vset.pattern.permute.xlu0 26
    %5664 = vperm.xlu0 %5663, %v3917
    %v5665 = vpop.permute.xlu0 %5664
    %5667 = vset.pattern.permute.xlu0 26
    %5668 = vperm.xlu0 %5667, %v3918
    %v5669 = vpop.permute.xlu0 %5668
    %5671 = vset.pattern.permute.xlu0 26
    %5672 = vperm.xlu0 %5671, %v3919
    %v5673 = vpop.permute.xlu0 %5672
    %v5675 = vmul.f32 %v3894, %v5625
    %v5676 = vmul.f32 %v3895, %v5629
    %v5677 = vmul.f32 %v3896, %v5633
    %v5678 = vmul.f32 %v3897, %v5637
    %v5679 = vmul.f32 %v3898, %v5641
    %v5680 = vmul.f32 %v3899, %v5645
    %v5681 = vmul.f32 %v3900, %v5649
    %v5682 = vmul.f32 %v3901, %v5653
    %v5683 = vmul.f32 %v3902, %v5657
    %v5684 = vmul.f32 %v3903, %v5661
    %v5685 = vmul.f32 %v3904, %v5665
    %v5686 = vmul.f32 %v3905, %v5669
    %v5687 = vmul.f32 %v3906, %v5673
    %5688 = vset.pattern.permute.xlu0 27
    %5689 = vperm.xlu0 %5688, %v3907
    %v5690 = vpop.permute.xlu0 %5689
    %5692 = vset.pattern.permute.xlu0 27
    %5693 = vperm.xlu0 %5692, %v3908
    %v5694 = vpop.permute.xlu0 %5693
    %5696 = vset.pattern.permute.xlu0 27
    %5697 = vperm.xlu0 %5696, %v3909
    %v5698 = vpop.permute.xlu0 %5697
    %5700 = vset.pattern.permute.xlu0 27
    %5701 = vperm.xlu0 %5700, %v3910
    %v5702 = vpop.permute.xlu0 %5701
    %5704 = vset.pattern.permute.xlu0 27
    %5705 = vperm.xlu0 %5704, %v3911
    %v5706 = vpop.permute.xlu0 %5705
    %5708 = vset.pattern.permute.xlu0 27
    %5709 = vperm.xlu0 %5708, %v3912
    %v5710 = vpop.permute.xlu0 %5709
    %5712 = vset.pattern.permute.xlu0 27
    %5713 = vperm.xlu0 %5712, %v3913
    %v5714 = vpop.permute.xlu0 %5713
    %5716 = vset.pattern.permute.xlu0 27
    %5717 = vperm.xlu0 %5716, %v3914
    %v5718 = vpop.permute.xlu0 %5717
    %5720 = vset.pattern.permute.xlu0 27
    %5721 = vperm.xlu0 %5720, %v3915
    %v5722 = vpop.permute.xlu0 %5721
    %5724 = vset.pattern.permute.xlu0 27
    %5725 = vperm.xlu0 %5724, %v3916
    %v5726 = vpop.permute.xlu0 %5725
    %5728 = vset.pattern.permute.xlu0 27
    %5729 = vperm.xlu0 %5728, %v3917
    %v5730 = vpop.permute.xlu0 %5729
    %5732 = vset.pattern.permute.xlu0 27
    %5733 = vperm.xlu0 %5732, %v3918
    %v5734 = vpop.permute.xlu0 %5733
    %5736 = vset.pattern.permute.xlu0 27
    %5737 = vperm.xlu0 %5736, %v3919
    %v5738 = vpop.permute.xlu0 %5737
    %v5740 = vmul.f32 %v3894, %v5690
    %v5741 = vmul.f32 %v3895, %v5694
    %v5742 = vmul.f32 %v3896, %v5698
    %v5743 = vmul.f32 %v3897, %v5702
    %v5744 = vmul.f32 %v3898, %v5706
    %v5745 = vmul.f32 %v3899, %v5710
    %v5746 = vmul.f32 %v3900, %v5714
    %v5747 = vmul.f32 %v3901, %v5718
    %v5748 = vmul.f32 %v3902, %v5722
    %v5749 = vmul.f32 %v3903, %v5726
    %v5750 = vmul.f32 %v3904, %v5730
    %v5751 = vmul.f32 %v3905, %v5734
    %v5752 = vmul.f32 %v3906, %v5738
    %5753 = vset.pattern.permute.xlu0 28
    %5754 = vperm.xlu0 %5753, %v3907
    %v5755 = vpop.permute.xlu0 %5754
    %5757 = vset.pattern.permute.xlu0 28
    %5758 = vperm.xlu0 %5757, %v3908
    %v5759 = vpop.permute.xlu0 %5758
    %5761 = vset.pattern.permute.xlu0 28
    %5762 = vperm.xlu0 %5761, %v3909
    %v5763 = vpop.permute.xlu0 %5762
    %5765 = vset.pattern.permute.xlu0 28
    %5766 = vperm.xlu0 %5765, %v3910
    %v5767 = vpop.permute.xlu0 %5766
    %5769 = vset.pattern.permute.xlu0 28
    %5770 = vperm.xlu0 %5769, %v3911
    %v5771 = vpop.permute.xlu0 %5770
    %5773 = vset.pattern.permute.xlu0 28
    %5774 = vperm.xlu0 %5773, %v3912
    %v5775 = vpop.permute.xlu0 %5774
    %5777 = vset.pattern.permute.xlu0 28
    %5778 = vperm.xlu0 %5777, %v3913
    %v5779 = vpop.permute.xlu0 %5778
    %5781 = vset.pattern.permute.xlu0 28
    %5782 = vperm.xlu0 %5781, %v3914
    %v5783 = vpop.permute.xlu0 %5782
    %5785 = vset.pattern.permute.xlu0 28
    %5786 = vperm.xlu0 %5785, %v3915
    %v5787 = vpop.permute.xlu0 %5786
    %5789 = vset.pattern.permute.xlu0 28
    %5790 = vperm.xlu0 %5789, %v3916
    %v5791 = vpop.permute.xlu0 %5790
    %5793 = vset.pattern.permute.xlu0 28
    %5794 = vperm.xlu0 %5793, %v3917
    %v5795 = vpop.permute.xlu0 %5794
    %5797 = vset.pattern.permute.xlu0 28
    %5798 = vperm.xlu0 %5797, %v3918
    %v5799 = vpop.permute.xlu0 %5798
    %5801 = vset.pattern.permute.xlu0 28
    %5802 = vperm.xlu0 %5801, %v3919
    %v5803 = vpop.permute.xlu0 %5802
    %v5805 = vmul.f32 %v3894, %v5755
    %v5806 = vmul.f32 %v3895, %v5759
    %v5807 = vmul.f32 %v3896, %v5763
    %v5808 = vmul.f32 %v3897, %v5767
    %v5809 = vmul.f32 %v3898, %v5771
    %v5810 = vmul.f32 %v3899, %v5775
    %v5811 = vmul.f32 %v3900, %v5779
    %v5812 = vmul.f32 %v3901, %v5783
    %v5813 = vmul.f32 %v3902, %v5787
    %v5814 = vmul.f32 %v3903, %v5791
    %v5815 = vmul.f32 %v3904, %v5795
    %v5816 = vmul.f32 %v3905, %v5799
    %v5817 = vmul.f32 %v3906, %v5803
    %5818 = vset.pattern.permute.xlu0 29
    %5819 = vperm.xlu0 %5818, %v3907
    %v5820 = vpop.permute.xlu0 %5819
    %5822 = vset.pattern.permute.xlu0 29
    %5823 = vperm.xlu0 %5822, %v3908
    %v5824 = vpop.permute.xlu0 %5823
    %5826 = vset.pattern.permute.xlu0 29
    %5827 = vperm.xlu0 %5826, %v3909
    %v5828 = vpop.permute.xlu0 %5827
    %5830 = vset.pattern.permute.xlu0 29
    %5831 = vperm.xlu0 %5830, %v3910
    %v5832 = vpop.permute.xlu0 %5831
    %5834 = vset.pattern.permute.xlu0 29
    %5835 = vperm.xlu0 %5834, %v3911
    %v5836 = vpop.permute.xlu0 %5835
    %5838 = vset.pattern.permute.xlu0 29
    %5839 = vperm.xlu0 %5838, %v3912
    %v5840 = vpop.permute.xlu0 %5839
    %5842 = vset.pattern.permute.xlu0 29
    %5843 = vperm.xlu0 %5842, %v3913
    %v5844 = vpop.permute.xlu0 %5843
    %5846 = vset.pattern.permute.xlu0 29
    %5847 = vperm.xlu0 %5846, %v3914
    %v5848 = vpop.permute.xlu0 %5847
    %5850 = vset.pattern.permute.xlu0 29
    %5851 = vperm.xlu0 %5850, %v3915
    %v5852 = vpop.permute.xlu0 %5851
    %5854 = vset.pattern.permute.xlu0 29
    %5855 = vperm.xlu0 %5854, %v3916
    %v5856 = vpop.permute.xlu0 %5855
    %5858 = vset.pattern.permute.xlu0 29
    %5859 = vperm.xlu0 %5858, %v3917
    %v5860 = vpop.permute.xlu0 %5859
    %5862 = vset.pattern.permute.xlu0 29
    %5863 = vperm.xlu0 %5862, %v3918
    %v5864 = vpop.permute.xlu0 %5863
    %5866 = vset.pattern.permute.xlu0 29
    %5867 = vperm.xlu0 %5866, %v3919
    %v5868 = vpop.permute.xlu0 %5867
    %v5870 = vmul.f32 %v3894, %v5820
    %v5871 = vmul.f32 %v3895, %v5824
    %v5872 = vmul.f32 %v3896, %v5828
    %v5873 = vmul.f32 %v3897, %v5832
    %v5874 = vmul.f32 %v3898, %v5836
    %v5875 = vmul.f32 %v3899, %v5840
    %v5876 = vmul.f32 %v3900, %v5844
    %v5877 = vmul.f32 %v3901, %v5848
    %v5878 = vmul.f32 %v3902, %v5852
    %v5879 = vmul.f32 %v3903, %v5856
    %v5880 = vmul.f32 %v3904, %v5860
    %v5881 = vmul.f32 %v3905, %v5864
    %v5882 = vmul.f32 %v3906, %v5868
    %5883 = vset.pattern.permute.xlu0 30
    %5884 = vperm.xlu0 %5883, %v3907
    %v5885 = vpop.permute.xlu0 %5884
    %5887 = vset.pattern.permute.xlu0 30
    %5888 = vperm.xlu0 %5887, %v3908
    %v5889 = vpop.permute.xlu0 %5888
    %5891 = vset.pattern.permute.xlu0 30
    %5892 = vperm.xlu0 %5891, %v3909
    %v5893 = vpop.permute.xlu0 %5892
    %5895 = vset.pattern.permute.xlu0 30
    %5896 = vperm.xlu0 %5895, %v3910
    %v5897 = vpop.permute.xlu0 %5896
    %5899 = vset.pattern.permute.xlu0 30
    %5900 = vperm.xlu0 %5899, %v3911
    %v5901 = vpop.permute.xlu0 %5900
    %5903 = vset.pattern.permute.xlu0 30
    %5904 = vperm.xlu0 %5903, %v3912
    %v5905 = vpop.permute.xlu0 %5904
    %5907 = vset.pattern.permute.xlu0 30
    %5908 = vperm.xlu0 %5907, %v3913
    %v5909 = vpop.permute.xlu0 %5908
    %5911 = vset.pattern.permute.xlu0 30
    %5912 = vperm.xlu0 %5911, %v3914
    %v5913 = vpop.permute.xlu0 %5912
    %5915 = vset.pattern.permute.xlu0 30
    %5916 = vperm.xlu0 %5915, %v3915
    %v5917 = vpop.permute.xlu0 %5916
    %5919 = vset.pattern.permute.xlu0 30
    %5920 = vperm.xlu0 %5919, %v3916
    %v5921 = vpop.permute.xlu0 %5920
    %5923 = vset.pattern.permute.xlu0 30
    %5924 = vperm.xlu0 %5923, %v3917
    %v5925 = vpop.permute.xlu0 %5924
    %5927 = vset.pattern.permute.xlu0 30
    %5928 = vperm.xlu0 %5927, %v3918
    %v5929 = vpop.permute.xlu0 %5928
    %5931 = vset.pattern.permute.xlu0 30
    %5932 = vperm.xlu0 %5931, %v3919
    %v5933 = vpop.permute.xlu0 %5932
    %v5935 = vmul.f32 %v3894, %v5885
    %v5936 = vmul.f32 %v3895, %v5889
    %v5937 = vmul.f32 %v3896, %v5893
    %v5938 = vmul.f32 %v3897, %v5897
    %v5939 = vmul.f32 %v3898, %v5901
    %v5940 = vmul.f32 %v3899, %v5905
    %v5941 = vmul.f32 %v3900, %v5909
    %v5942 = vmul.f32 %v3901, %v5913
    %v5943 = vmul.f32 %v3902, %v5917
    %v5944 = vmul.f32 %v3903, %v5921
    %v5945 = vmul.f32 %v3904, %v5925
    %v5946 = vmul.f32 %v3905, %v5929
    %v5947 = vmul.f32 %v3906, %v5933
    %5948 = vset.pattern.permute.xlu0 31
    %5949 = vperm.xlu0 %5948, %v3907
    %v5950 = vpop.permute.xlu0 %5949
    %5952 = vset.pattern.permute.xlu0 31
    %5953 = vperm.xlu0 %5952, %v3908
    %v5954 = vpop.permute.xlu0 %5953
    %5956 = vset.pattern.permute.xlu0 31
    %5957 = vperm.xlu0 %5956, %v3909
    %v5958 = vpop.permute.xlu0 %5957
    %5960 = vset.pattern.permute.xlu0 31
    %5961 = vperm.xlu0 %5960, %v3910
    %v5962 = vpop.permute.xlu0 %5961
    %5964 = vset.pattern.permute.xlu0 31
    %5965 = vperm.xlu0 %5964, %v3911
    %v5966 = vpop.permute.xlu0 %5965
    %5968 = vset.pattern.permute.xlu0 31
    %5969 = vperm.xlu0 %5968, %v3912
    %v5970 = vpop.permute.xlu0 %5969
    %5972 = vset.pattern.permute.xlu0 31
    %5973 = vperm.xlu0 %5972, %v3913
    %v5974 = vpop.permute.xlu0 %5973
    %5976 = vset.pattern.permute.xlu0 31
    %5977 = vperm.xlu0 %5976, %v3914
    %v5978 = vpop.permute.xlu0 %5977
    %5980 = vset.pattern.permute.xlu0 31
    %5981 = vperm.xlu0 %5980, %v3915
    %v5982 = vpop.permute.xlu0 %5981
    %5984 = vset.pattern.permute.xlu0 31
    %5985 = vperm.xlu0 %5984, %v3916
    %v5986 = vpop.permute.xlu0 %5985
    %5988 = vset.pattern.permute.xlu0 31
    %5989 = vperm.xlu0 %5988, %v3917
    %v5990 = vpop.permute.xlu0 %5989
    %5992 = vset.pattern.permute.xlu0 31
    %5993 = vperm.xlu0 %5992, %v3918
    %v5994 = vpop.permute.xlu0 %5993
    %5996 = vset.pattern.permute.xlu0 31
    %5997 = vperm.xlu0 %5996, %v3919
    %v5998 = vpop.permute.xlu0 %5997
    %v6000 = vmul.f32 %v3894, %v5950
    %v6001 = vmul.f32 %v3895, %v5954
    %v6002 = vmul.f32 %v3896, %v5958
    %v6003 = vmul.f32 %v3897, %v5962
    %v6004 = vmul.f32 %v3898, %v5966
    %v6005 = vmul.f32 %v3899, %v5970
    %v6006 = vmul.f32 %v3900, %v5974
    %v6007 = vmul.f32 %v3901, %v5978
    %v6008 = vmul.f32 %v3902, %v5982
    %v6009 = vmul.f32 %v3903, %v5986
    %v6010 = vmul.f32 %v3904, %v5990
    %v6011 = vmul.f32 %v3905, %v5994
    %v6012 = vmul.f32 %v3906, %v5998
    %6013 = vset.pattern.permute.xlu0 32
    %6014 = vperm.xlu0 %6013, %v3907
    %v6015 = vpop.permute.xlu0 %6014
    %6017 = vset.pattern.permute.xlu0 32
    %6018 = vperm.xlu0 %6017, %v3908
    %v6019 = vpop.permute.xlu0 %6018
    %6021 = vset.pattern.permute.xlu0 32
    %6022 = vperm.xlu0 %6021, %v3909
    %v6023 = vpop.permute.xlu0 %6022
    %6025 = vset.pattern.permute.xlu0 32
    %6026 = vperm.xlu0 %6025, %v3910
    %v6027 = vpop.permute.xlu0 %6026
    %6029 = vset.pattern.permute.xlu0 32
    %6030 = vperm.xlu0 %6029, %v3911
    %v6031 = vpop.permute.xlu0 %6030
    %6033 = vset.pattern.permute.xlu0 32
    %6034 = vperm.xlu0 %6033, %v3912
    %v6035 = vpop.permute.xlu0 %6034
    %6037 = vset.pattern.permute.xlu0 32
    %6038 = vperm.xlu0 %6037, %v3913
    %v6039 = vpop.permute.xlu0 %6038
    %6041 = vset.pattern.permute.xlu0 32
    %6042 = vperm.xlu0 %6041, %v3914
    %v6043 = vpop.permute.xlu0 %6042
    %6045 = vset.pattern.permute.xlu0 32
    %6046 = vperm.xlu0 %6045, %v3915
    %v6047 = vpop.permute.xlu0 %6046
    %6049 = vset.pattern.permute.xlu0 32
    %6050 = vperm.xlu0 %6049, %v3916
    %v6051 = vpop.permute.xlu0 %6050
    %6053 = vset.pattern.permute.xlu0 32
    %6054 = vperm.xlu0 %6053, %v3917
    %v6055 = vpop.permute.xlu0 %6054
    %6057 = vset.pattern.permute.xlu0 32
    %6058 = vperm.xlu0 %6057, %v3918
    %v6059 = vpop.permute.xlu0 %6058
    %6061 = vset.pattern.permute.xlu0 32
    %6062 = vperm.xlu0 %6061, %v3919
    %v6063 = vpop.permute.xlu0 %6062
    %v6065 = vmul.f32 %v3894, %v6015
    %v6066 = vmul.f32 %v3895, %v6019
    %v6067 = vmul.f32 %v3896, %v6023
    %v6068 = vmul.f32 %v3897, %v6027
    %v6069 = vmul.f32 %v3898, %v6031
    %v6070 = vmul.f32 %v3899, %v6035
    %v6071 = vmul.f32 %v3900, %v6039
    %v6072 = vmul.f32 %v3901, %v6043
    %v6073 = vmul.f32 %v3902, %v6047
    %v6074 = vmul.f32 %v3903, %v6051
    %v6075 = vmul.f32 %v3904, %v6055
    %v6076 = vmul.f32 %v3905, %v6059
    %v6077 = vmul.f32 %v3906, %v6063
    %6078 = vset.pattern.permute.xlu0 33
    %6079 = vperm.xlu0 %6078, %v3907
    %v6080 = vpop.permute.xlu0 %6079
    %6082 = vset.pattern.permute.xlu0 33
    %6083 = vperm.xlu0 %6082, %v3908
    %v6084 = vpop.permute.xlu0 %6083
    %6086 = vset.pattern.permute.xlu0 33
    %6087 = vperm.xlu0 %6086, %v3909
    %v6088 = vpop.permute.xlu0 %6087
    %6090 = vset.pattern.permute.xlu0 33
    %6091 = vperm.xlu0 %6090, %v3910
    %v6092 = vpop.permute.xlu0 %6091
    %6094 = vset.pattern.permute.xlu0 33
    %6095 = vperm.xlu0 %6094, %v3911
    %v6096 = vpop.permute.xlu0 %6095
    %6098 = vset.pattern.permute.xlu0 33
    %6099 = vperm.xlu0 %6098, %v3912
    %v6100 = vpop.permute.xlu0 %6099
    %6102 = vset.pattern.permute.xlu0 33
    %6103 = vperm.xlu0 %6102, %v3913
    %v6104 = vpop.permute.xlu0 %6103
    %6106 = vset.pattern.permute.xlu0 33
    %6107 = vperm.xlu0 %6106, %v3914
    %v6108 = vpop.permute.xlu0 %6107
    %6110 = vset.pattern.permute.xlu0 33
    %6111 = vperm.xlu0 %6110, %v3915
    %v6112 = vpop.permute.xlu0 %6111
    %6114 = vset.pattern.permute.xlu0 33
    %6115 = vperm.xlu0 %6114, %v3916
    %v6116 = vpop.permute.xlu0 %6115
    %6118 = vset.pattern.permute.xlu0 33
    %6119 = vperm.xlu0 %6118, %v3917
    %v6120 = vpop.permute.xlu0 %6119
    %6122 = vset.pattern.permute.xlu0 33
    %6123 = vperm.xlu0 %6122, %v3918
    %v6124 = vpop.permute.xlu0 %6123
    %6126 = vset.pattern.permute.xlu0 33
    %6127 = vperm.xlu0 %6126, %v3919
    %v6128 = vpop.permute.xlu0 %6127
    %v6130 = vmul.f32 %v3894, %v6080
    %v6131 = vmul.f32 %v3895, %v6084
    %v6132 = vmul.f32 %v3896, %v6088
    %v6133 = vmul.f32 %v3897, %v6092
    %v6134 = vmul.f32 %v3898, %v6096
    %v6135 = vmul.f32 %v3899, %v6100
    %v6136 = vmul.f32 %v3900, %v6104
    %v6137 = vmul.f32 %v3901, %v6108
    %v6138 = vmul.f32 %v3902, %v6112
    %v6139 = vmul.f32 %v3903, %v6116
    %v6140 = vmul.f32 %v3904, %v6120
    %v6141 = vmul.f32 %v3905, %v6124
    %v6142 = vmul.f32 %v3906, %v6128
    %6143 = vset.pattern.permute.xlu0 34
    %6144 = vperm.xlu0 %6143, %v3907
    %v6145 = vpop.permute.xlu0 %6144
    %6147 = vset.pattern.permute.xlu0 34
    %6148 = vperm.xlu0 %6147, %v3908
    %v6149 = vpop.permute.xlu0 %6148
    %6151 = vset.pattern.permute.xlu0 34
    %6152 = vperm.xlu0 %6151, %v3909
    %v6153 = vpop.permute.xlu0 %6152
    %6155 = vset.pattern.permute.xlu0 34
    %6156 = vperm.xlu0 %6155, %v3910
    %v6157 = vpop.permute.xlu0 %6156
    %6159 = vset.pattern.permute.xlu0 34
    %6160 = vperm.xlu0 %6159, %v3911
    %v6161 = vpop.permute.xlu0 %6160
    %6163 = vset.pattern.permute.xlu0 34
    %6164 = vperm.xlu0 %6163, %v3912
    %v6165 = vpop.permute.xlu0 %6164
    %6167 = vset.pattern.permute.xlu0 34
    %6168 = vperm.xlu0 %6167, %v3913
    %v6169 = vpop.permute.xlu0 %6168
    %6171 = vset.pattern.permute.xlu0 34
    %6172 = vperm.xlu0 %6171, %v3914
    %v6173 = vpop.permute.xlu0 %6172
    %6175 = vset.pattern.permute.xlu0 34
    %6176 = vperm.xlu0 %6175, %v3915
    %v6177 = vpop.permute.xlu0 %6176
    %6179 = vset.pattern.permute.xlu0 34
    %6180 = vperm.xlu0 %6179, %v3916
    %v6181 = vpop.permute.xlu0 %6180
    %6183 = vset.pattern.permute.xlu0 34
    %6184 = vperm.xlu0 %6183, %v3917
    %v6185 = vpop.permute.xlu0 %6184
    %6187 = vset.pattern.permute.xlu0 34
    %6188 = vperm.xlu0 %6187, %v3918
    %v6189 = vpop.permute.xlu0 %6188
    %6191 = vset.pattern.permute.xlu0 34
    %6192 = vperm.xlu0 %6191, %v3919
    %v6193 = vpop.permute.xlu0 %6192
    %v6195 = vmul.f32 %v3894, %v6145
    %v6196 = vmul.f32 %v3895, %v6149
    %v6197 = vmul.f32 %v3896, %v6153
    %v6198 = vmul.f32 %v3897, %v6157
    %v6199 = vmul.f32 %v3898, %v6161
    %v6200 = vmul.f32 %v3899, %v6165
    %v6201 = vmul.f32 %v3900, %v6169
    %v6202 = vmul.f32 %v3901, %v6173
    %v6203 = vmul.f32 %v3902, %v6177
    %v6204 = vmul.f32 %v3903, %v6181
    %v6205 = vmul.f32 %v3904, %v6185
    %v6206 = vmul.f32 %v3905, %v6189
    %v6207 = vmul.f32 %v3906, %v6193
    %6208 = vset.pattern.permute.xlu0 35
    %6209 = vperm.xlu0 %6208, %v3907
    %v6210 = vpop.permute.xlu0 %6209
    %6212 = vset.pattern.permute.xlu0 35
    %6213 = vperm.xlu0 %6212, %v3908
    %v6214 = vpop.permute.xlu0 %6213
    %6216 = vset.pattern.permute.xlu0 35
    %6217 = vperm.xlu0 %6216, %v3909
    %v6218 = vpop.permute.xlu0 %6217
    %6220 = vset.pattern.permute.xlu0 35
    %6221 = vperm.xlu0 %6220, %v3910
    %v6222 = vpop.permute.xlu0 %6221
    %6224 = vset.pattern.permute.xlu0 35
    %6225 = vperm.xlu0 %6224, %v3911
    %v6226 = vpop.permute.xlu0 %6225
    %6228 = vset.pattern.permute.xlu0 35
    %6229 = vperm.xlu0 %6228, %v3912
    %v6230 = vpop.permute.xlu0 %6229
    %6232 = vset.pattern.permute.xlu0 35
    %6233 = vperm.xlu0 %6232, %v3913
    %v6234 = vpop.permute.xlu0 %6233
    %6236 = vset.pattern.permute.xlu0 35
    %6237 = vperm.xlu0 %6236, %v3914
    %v6238 = vpop.permute.xlu0 %6237
    %6240 = vset.pattern.permute.xlu0 35
    %6241 = vperm.xlu0 %6240, %v3915
    %v6242 = vpop.permute.xlu0 %6241
    %6244 = vset.pattern.permute.xlu0 35
    %6245 = vperm.xlu0 %6244, %v3916
    %v6246 = vpop.permute.xlu0 %6245
    %6248 = vset.pattern.permute.xlu0 35
    %6249 = vperm.xlu0 %6248, %v3917
    %v6250 = vpop.permute.xlu0 %6249
    %6252 = vset.pattern.permute.xlu0 35
    %6253 = vperm.xlu0 %6252, %v3918
    %v6254 = vpop.permute.xlu0 %6253
    %6256 = vset.pattern.permute.xlu0 35
    %6257 = vperm.xlu0 %6256, %v3919
    %v6258 = vpop.permute.xlu0 %6257
    %v6260 = vmul.f32 %v3894, %v6210
    %v6261 = vmul.f32 %v3895, %v6214
    %v6262 = vmul.f32 %v3896, %v6218
    %v6263 = vmul.f32 %v3897, %v6222
    %v6264 = vmul.f32 %v3898, %v6226
    %v6265 = vmul.f32 %v3899, %v6230
    %v6266 = vmul.f32 %v3900, %v6234
    %v6267 = vmul.f32 %v3901, %v6238
    %v6268 = vmul.f32 %v3902, %v6242
    %v6269 = vmul.f32 %v3903, %v6246
    %v6270 = vmul.f32 %v3904, %v6250
    %v6271 = vmul.f32 %v3905, %v6254
    %v6272 = vmul.f32 %v3906, %v6258
    %6273 = vset.pattern.permute.xlu0 36
    %6274 = vperm.xlu0 %6273, %v3907
    %v6275 = vpop.permute.xlu0 %6274
    %6277 = vset.pattern.permute.xlu0 36
    %6278 = vperm.xlu0 %6277, %v3908
    %v6279 = vpop.permute.xlu0 %6278
    %6281 = vset.pattern.permute.xlu0 36
    %6282 = vperm.xlu0 %6281, %v3909
    %v6283 = vpop.permute.xlu0 %6282
    %6285 = vset.pattern.permute.xlu0 36
    %6286 = vperm.xlu0 %6285, %v3910
    %v6287 = vpop.permute.xlu0 %6286
    %6289 = vset.pattern.permute.xlu0 36
    %6290 = vperm.xlu0 %6289, %v3911
    %v6291 = vpop.permute.xlu0 %6290
    %6293 = vset.pattern.permute.xlu0 36
    %6294 = vperm.xlu0 %6293, %v3912
    %v6295 = vpop.permute.xlu0 %6294
    %6297 = vset.pattern.permute.xlu0 36
    %6298 = vperm.xlu0 %6297, %v3913
    %v6299 = vpop.permute.xlu0 %6298
    %6301 = vset.pattern.permute.xlu0 36
    %6302 = vperm.xlu0 %6301, %v3914
    %v6303 = vpop.permute.xlu0 %6302
    %6305 = vset.pattern.permute.xlu0 36
    %6306 = vperm.xlu0 %6305, %v3915
    %v6307 = vpop.permute.xlu0 %6306
    %6309 = vset.pattern.permute.xlu0 36
    %6310 = vperm.xlu0 %6309, %v3916
    %v6311 = vpop.permute.xlu0 %6310
    %6313 = vset.pattern.permute.xlu0 36
    %6314 = vperm.xlu0 %6313, %v3917
    %v6315 = vpop.permute.xlu0 %6314
    %6317 = vset.pattern.permute.xlu0 36
    %6318 = vperm.xlu0 %6317, %v3918
    %v6319 = vpop.permute.xlu0 %6318
    %6321 = vset.pattern.permute.xlu0 36
    %6322 = vperm.xlu0 %6321, %v3919
    %v6323 = vpop.permute.xlu0 %6322
    %v6325 = vmul.f32 %v3894, %v6275
    %v6326 = vmul.f32 %v3895, %v6279
    %v6327 = vmul.f32 %v3896, %v6283
    %v6328 = vmul.f32 %v3897, %v6287
    %v6329 = vmul.f32 %v3898, %v6291
    %v6330 = vmul.f32 %v3899, %v6295
    %v6331 = vmul.f32 %v3900, %v6299
    %v6332 = vmul.f32 %v3901, %v6303
    %v6333 = vmul.f32 %v3902, %v6307
    %v6334 = vmul.f32 %v3903, %v6311
    %v6335 = vmul.f32 %v3904, %v6315
    %v6336 = vmul.f32 %v3905, %v6319
    %v6337 = vmul.f32 %v3906, %v6323
    %6338 = vset.pattern.permute.xlu0 37
    %6339 = vperm.xlu0 %6338, %v3907
    %v6340 = vpop.permute.xlu0 %6339
    %6342 = vset.pattern.permute.xlu0 37
    %6343 = vperm.xlu0 %6342, %v3908
    %v6344 = vpop.permute.xlu0 %6343
    %6346 = vset.pattern.permute.xlu0 37
    %6347 = vperm.xlu0 %6346, %v3909
    %v6348 = vpop.permute.xlu0 %6347
    %6350 = vset.pattern.permute.xlu0 37
    %6351 = vperm.xlu0 %6350, %v3910
    %v6352 = vpop.permute.xlu0 %6351
    %6354 = vset.pattern.permute.xlu0 37
    %6355 = vperm.xlu0 %6354, %v3911
    %v6356 = vpop.permute.xlu0 %6355
    %6358 = vset.pattern.permute.xlu0 37
    %6359 = vperm.xlu0 %6358, %v3912
    %v6360 = vpop.permute.xlu0 %6359
    %6362 = vset.pattern.permute.xlu0 37
    %6363 = vperm.xlu0 %6362, %v3913
    %v6364 = vpop.permute.xlu0 %6363
    %6366 = vset.pattern.permute.xlu0 37
    %6367 = vperm.xlu0 %6366, %v3914
    %v6368 = vpop.permute.xlu0 %6367
    %6370 = vset.pattern.permute.xlu0 37
    %6371 = vperm.xlu0 %6370, %v3915
    %v6372 = vpop.permute.xlu0 %6371
    %6374 = vset.pattern.permute.xlu0 37
    %6375 = vperm.xlu0 %6374, %v3916
    %v6376 = vpop.permute.xlu0 %6375
    %6378 = vset.pattern.permute.xlu0 37
    %6379 = vperm.xlu0 %6378, %v3917
    %v6380 = vpop.permute.xlu0 %6379
    %6382 = vset.pattern.permute.xlu0 37
    %6383 = vperm.xlu0 %6382, %v3918
    %v6384 = vpop.permute.xlu0 %6383
    %6386 = vset.pattern.permute.xlu0 37
    %6387 = vperm.xlu0 %6386, %v3919
    %v6388 = vpop.permute.xlu0 %6387
    %v6390 = vmul.f32 %v3894, %v6340
    %v6391 = vmul.f32 %v3895, %v6344
    %v6392 = vmul.f32 %v3896, %v6348
    %v6393 = vmul.f32 %v3897, %v6352
    %v6394 = vmul.f32 %v3898, %v6356
    %v6395 = vmul.f32 %v3899, %v6360
    %v6396 = vmul.f32 %v3900, %v6364
    %v6397 = vmul.f32 %v3901, %v6368
    %v6398 = vmul.f32 %v3902, %v6372
    %v6399 = vmul.f32 %v3903, %v6376
    %v6400 = vmul.f32 %v3904, %v6380
    %v6401 = vmul.f32 %v3905, %v6384
    %v6402 = vmul.f32 %v3906, %v6388
    %6403 = vset.pattern.permute.xlu0 38
    %6404 = vperm.xlu0 %6403, %v3907
    %v6405 = vpop.permute.xlu0 %6404
    %6407 = vset.pattern.permute.xlu0 38
    %6408 = vperm.xlu0 %6407, %v3908
    %v6409 = vpop.permute.xlu0 %6408
    %6411 = vset.pattern.permute.xlu0 38
    %6412 = vperm.xlu0 %6411, %v3909
    %v6413 = vpop.permute.xlu0 %6412
    %6415 = vset.pattern.permute.xlu0 38
    %6416 = vperm.xlu0 %6415, %v3910
    %v6417 = vpop.permute.xlu0 %6416
    %6419 = vset.pattern.permute.xlu0 38
    %6420 = vperm.xlu0 %6419, %v3911
    %v6421 = vpop.permute.xlu0 %6420
    %6423 = vset.pattern.permute.xlu0 38
    %6424 = vperm.xlu0 %6423, %v3912
    %v6425 = vpop.permute.xlu0 %6424
    %6427 = vset.pattern.permute.xlu0 38
    %6428 = vperm.xlu0 %6427, %v3913
    %v6429 = vpop.permute.xlu0 %6428
    %6431 = vset.pattern.permute.xlu0 38
    %6432 = vperm.xlu0 %6431, %v3914
    %v6433 = vpop.permute.xlu0 %6432
    %6435 = vset.pattern.permute.xlu0 38
    %6436 = vperm.xlu0 %6435, %v3915
    %v6437 = vpop.permute.xlu0 %6436
    %6439 = vset.pattern.permute.xlu0 38
    %6440 = vperm.xlu0 %6439, %v3916
    %v6441 = vpop.permute.xlu0 %6440
    %6443 = vset.pattern.permute.xlu0 38
    %6444 = vperm.xlu0 %6443, %v3917
    %v6445 = vpop.permute.xlu0 %6444
    %6447 = vset.pattern.permute.xlu0 38
    %6448 = vperm.xlu0 %6447, %v3918
    %v6449 = vpop.permute.xlu0 %6448
    %6451 = vset.pattern.permute.xlu0 38
    %6452 = vperm.xlu0 %6451, %v3919
    %v6453 = vpop.permute.xlu0 %6452
    %v6455 = vmul.f32 %v3894, %v6405
    %v6456 = vmul.f32 %v3895, %v6409
    %v6457 = vmul.f32 %v3896, %v6413
    %v6458 = vmul.f32 %v3897, %v6417
    %v6459 = vmul.f32 %v3898, %v6421
    %v6460 = vmul.f32 %v3899, %v6425
    %v6461 = vmul.f32 %v3900, %v6429
    %v6462 = vmul.f32 %v3901, %v6433
    %v6463 = vmul.f32 %v3902, %v6437
    %v6464 = vmul.f32 %v3903, %v6441
    %v6465 = vmul.f32 %v3904, %v6445
    %v6466 = vmul.f32 %v3905, %v6449
    %v6467 = vmul.f32 %v3906, %v6453
    %6468 = vset.pattern.permute.xlu0 39
    %6469 = vperm.xlu0 %6468, %v3907
    %v6470 = vpop.permute.xlu0 %6469
    %6472 = vset.pattern.permute.xlu0 39
    %6473 = vperm.xlu0 %6472, %v3908
    %v6474 = vpop.permute.xlu0 %6473
    %6476 = vset.pattern.permute.xlu0 39
    %6477 = vperm.xlu0 %6476, %v3909
    %v6478 = vpop.permute.xlu0 %6477
    %6480 = vset.pattern.permute.xlu0 39
    %6481 = vperm.xlu0 %6480, %v3910
    %v6482 = vpop.permute.xlu0 %6481
    %6484 = vset.pattern.permute.xlu0 39
    %6485 = vperm.xlu0 %6484, %v3911
    %v6486 = vpop.permute.xlu0 %6485
    %6488 = vset.pattern.permute.xlu0 39
    %6489 = vperm.xlu0 %6488, %v3912
    %v6490 = vpop.permute.xlu0 %6489
    %6492 = vset.pattern.permute.xlu0 39
    %6493 = vperm.xlu0 %6492, %v3913
    %v6494 = vpop.permute.xlu0 %6493
    %6496 = vset.pattern.permute.xlu0 39
    %6497 = vperm.xlu0 %6496, %v3914
    %v6498 = vpop.permute.xlu0 %6497
    %6500 = vset.pattern.permute.xlu0 39
    %6501 = vperm.xlu0 %6500, %v3915
    %v6502 = vpop.permute.xlu0 %6501
    %6504 = vset.pattern.permute.xlu0 39
    %6505 = vperm.xlu0 %6504, %v3916
    %v6506 = vpop.permute.xlu0 %6505
    %6508 = vset.pattern.permute.xlu0 39
    %6509 = vperm.xlu0 %6508, %v3917
    %v6510 = vpop.permute.xlu0 %6509
    %6512 = vset.pattern.permute.xlu0 39
    %6513 = vperm.xlu0 %6512, %v3918
    %v6514 = vpop.permute.xlu0 %6513
    %6516 = vset.pattern.permute.xlu0 39
    %6517 = vperm.xlu0 %6516, %v3919
    %v6518 = vpop.permute.xlu0 %6517
    %v6520 = vmul.f32 %v3894, %v6470
    %v6521 = vmul.f32 %v3895, %v6474
    %v6522 = vmul.f32 %v3896, %v6478
    %v6523 = vmul.f32 %v3897, %v6482
    %v6524 = vmul.f32 %v3898, %v6486
    %v6525 = vmul.f32 %v3899, %v6490
    %v6526 = vmul.f32 %v3900, %v6494
    %v6527 = vmul.f32 %v3901, %v6498
    %v6528 = vmul.f32 %v3902, %v6502
    %v6529 = vmul.f32 %v3903, %v6506
    %v6530 = vmul.f32 %v3904, %v6510
    %v6531 = vmul.f32 %v3905, %v6514
    %v6532 = vmul.f32 %v3906, %v6518
    %6533 = vset.pattern.permute.xlu0 40
    %6534 = vperm.xlu0 %6533, %v3907
    %v6535 = vpop.permute.xlu0 %6534
    %6537 = vset.pattern.permute.xlu0 40
    %6538 = vperm.xlu0 %6537, %v3908
    %v6539 = vpop.permute.xlu0 %6538
    %6541 = vset.pattern.permute.xlu0 40
    %6542 = vperm.xlu0 %6541, %v3909
    %v6543 = vpop.permute.xlu0 %6542
    %6545 = vset.pattern.permute.xlu0 40
    %6546 = vperm.xlu0 %6545, %v3910
    %v6547 = vpop.permute.xlu0 %6546
    %6549 = vset.pattern.permute.xlu0 40
    %6550 = vperm.xlu0 %6549, %v3911
    %v6551 = vpop.permute.xlu0 %6550
    %6553 = vset.pattern.permute.xlu0 40
    %6554 = vperm.xlu0 %6553, %v3912
    %v6555 = vpop.permute.xlu0 %6554
    %6557 = vset.pattern.permute.xlu0 40
    %6558 = vperm.xlu0 %6557, %v3913
    %v6559 = vpop.permute.xlu0 %6558
    %6561 = vset.pattern.permute.xlu0 40
    %6562 = vperm.xlu0 %6561, %v3914
    %v6563 = vpop.permute.xlu0 %6562
    %6565 = vset.pattern.permute.xlu0 40
    %6566 = vperm.xlu0 %6565, %v3915
    %v6567 = vpop.permute.xlu0 %6566
    %6569 = vset.pattern.permute.xlu0 40
    %6570 = vperm.xlu0 %6569, %v3916
    %v6571 = vpop.permute.xlu0 %6570
    %6573 = vset.pattern.permute.xlu0 40
    %6574 = vperm.xlu0 %6573, %v3917
    %v6575 = vpop.permute.xlu0 %6574
    %6577 = vset.pattern.permute.xlu0 40
    %6578 = vperm.xlu0 %6577, %v3918
    %v6579 = vpop.permute.xlu0 %6578
    %6581 = vset.pattern.permute.xlu0 40
    %6582 = vperm.xlu0 %6581, %v3919
    %v6583 = vpop.permute.xlu0 %6582
    %v6585 = vmul.f32 %v3894, %v6535
    %v6586 = vmul.f32 %v3895, %v6539
    %v6587 = vmul.f32 %v3896, %v6543
    %v6588 = vmul.f32 %v3897, %v6547
    %v6589 = vmul.f32 %v3898, %v6551
    %v6590 = vmul.f32 %v3899, %v6555
    %v6591 = vmul.f32 %v3900, %v6559
    %v6592 = vmul.f32 %v3901, %v6563
    %v6593 = vmul.f32 %v3902, %v6567
    %v6594 = vmul.f32 %v3903, %v6571
    %v6595 = vmul.f32 %v3904, %v6575
    %v6596 = vmul.f32 %v3905, %v6579
    %v6597 = vmul.f32 %v3906, %v6583
    %6598 = vset.pattern.permute.xlu0 41
    %6599 = vperm.xlu0 %6598, %v3907
    %v6600 = vpop.permute.xlu0 %6599
    %6602 = vset.pattern.permute.xlu0 41
    %6603 = vperm.xlu0 %6602, %v3908
    %v6604 = vpop.permute.xlu0 %6603
    %6606 = vset.pattern.permute.xlu0 41
    %6607 = vperm.xlu0 %6606, %v3909
    %v6608 = vpop.permute.xlu0 %6607
    %6610 = vset.pattern.permute.xlu0 41
    %6611 = vperm.xlu0 %6610, %v3910
    %v6612 = vpop.permute.xlu0 %6611
    %6614 = vset.pattern.permute.xlu0 41
    %6615 = vperm.xlu0 %6614, %v3911
    %v6616 = vpop.permute.xlu0 %6615
    %6618 = vset.pattern.permute.xlu0 41
    %6619 = vperm.xlu0 %6618, %v3912
    %v6620 = vpop.permute.xlu0 %6619
    %6622 = vset.pattern.permute.xlu0 41
    %6623 = vperm.xlu0 %6622, %v3913
    %v6624 = vpop.permute.xlu0 %6623
    %6626 = vset.pattern.permute.xlu0 41
    %6627 = vperm.xlu0 %6626, %v3914
    %v6628 = vpop.permute.xlu0 %6627
    %6630 = vset.pattern.permute.xlu0 41
    %6631 = vperm.xlu0 %6630, %v3915
    %v6632 = vpop.permute.xlu0 %6631
    %6634 = vset.pattern.permute.xlu0 41
    %6635 = vperm.xlu0 %6634, %v3916
    %v6636 = vpop.permute.xlu0 %6635
    %6638 = vset.pattern.permute.xlu0 41
    %6639 = vperm.xlu0 %6638, %v3917
    %v6640 = vpop.permute.xlu0 %6639
    %6642 = vset.pattern.permute.xlu0 41
    %6643 = vperm.xlu0 %6642, %v3918
    %v6644 = vpop.permute.xlu0 %6643
    %6646 = vset.pattern.permute.xlu0 41
    %6647 = vperm.xlu0 %6646, %v3919
    %v6648 = vpop.permute.xlu0 %6647
    %v6650 = vmul.f32 %v3894, %v6600
    %v6651 = vmul.f32 %v3895, %v6604
    %v6652 = vmul.f32 %v3896, %v6608
    %v6653 = vmul.f32 %v3897, %v6612
    %v6654 = vmul.f32 %v3898, %v6616
    %v6655 = vmul.f32 %v3899, %v6620
    %v6656 = vmul.f32 %v3900, %v6624
    %v6657 = vmul.f32 %v3901, %v6628
    %v6658 = vmul.f32 %v3902, %v6632
    %v6659 = vmul.f32 %v3903, %v6636
    %v6660 = vmul.f32 %v3904, %v6640
    %v6661 = vmul.f32 %v3905, %v6644
    %v6662 = vmul.f32 %v3906, %v6648
    %6663 = vset.pattern.permute.xlu0 42
    %6664 = vperm.xlu0 %6663, %v3907
    %v6665 = vpop.permute.xlu0 %6664
    %6667 = vset.pattern.permute.xlu0 42
    %6668 = vperm.xlu0 %6667, %v3908
    %v6669 = vpop.permute.xlu0 %6668
    %6671 = vset.pattern.permute.xlu0 42
    %6672 = vperm.xlu0 %6671, %v3909
    %v6673 = vpop.permute.xlu0 %6672
    %6675 = vset.pattern.permute.xlu0 42
    %6676 = vperm.xlu0 %6675, %v3910
    %v6677 = vpop.permute.xlu0 %6676
    %6679 = vset.pattern.permute.xlu0 42
    %6680 = vperm.xlu0 %6679, %v3911
    %v6681 = vpop.permute.xlu0 %6680
    %6683 = vset.pattern.permute.xlu0 42
    %6684 = vperm.xlu0 %6683, %v3912
    %v6685 = vpop.permute.xlu0 %6684
    %6687 = vset.pattern.permute.xlu0 42
    %6688 = vperm.xlu0 %6687, %v3913
    %v6689 = vpop.permute.xlu0 %6688
    %6691 = vset.pattern.permute.xlu0 42
    %6692 = vperm.xlu0 %6691, %v3914
    %v6693 = vpop.permute.xlu0 %6692
    %6695 = vset.pattern.permute.xlu0 42
    %6696 = vperm.xlu0 %6695, %v3915
    %v6697 = vpop.permute.xlu0 %6696
    %6699 = vset.pattern.permute.xlu0 42
    %6700 = vperm.xlu0 %6699, %v3916
    %v6701 = vpop.permute.xlu0 %6700
    %6703 = vset.pattern.permute.xlu0 42
    %6704 = vperm.xlu0 %6703, %v3917
    %v6705 = vpop.permute.xlu0 %6704
    %6707 = vset.pattern.permute.xlu0 42
    %6708 = vperm.xlu0 %6707, %v3918
    %v6709 = vpop.permute.xlu0 %6708
    %6711 = vset.pattern.permute.xlu0 42
    %6712 = vperm.xlu0 %6711, %v3919
    %v6713 = vpop.permute.xlu0 %6712
    %v6715 = vmul.f32 %v3894, %v6665
    %v6716 = vmul.f32 %v3895, %v6669
    %v6717 = vmul.f32 %v3896, %v6673
    %v6718 = vmul.f32 %v3897, %v6677
    %v6719 = vmul.f32 %v3898, %v6681
    %v6720 = vmul.f32 %v3899, %v6685
    %v6721 = vmul.f32 %v3900, %v6689
    %v6722 = vmul.f32 %v3901, %v6693
    %v6723 = vmul.f32 %v3902, %v6697
    %v6724 = vmul.f32 %v3903, %v6701
    %v6725 = vmul.f32 %v3904, %v6705
    %v6726 = vmul.f32 %v3905, %v6709
    %v6727 = vmul.f32 %v3906, %v6713
    %6728 = vset.pattern.permute.xlu0 43
    %6729 = vperm.xlu0 %6728, %v3907
    %v6730 = vpop.permute.xlu0 %6729
    %6732 = vset.pattern.permute.xlu0 43
    %6733 = vperm.xlu0 %6732, %v3908
    %v6734 = vpop.permute.xlu0 %6733
    %6736 = vset.pattern.permute.xlu0 43
    %6737 = vperm.xlu0 %6736, %v3909
    %v6738 = vpop.permute.xlu0 %6737
    %6740 = vset.pattern.permute.xlu0 43
    %6741 = vperm.xlu0 %6740, %v3910
    %v6742 = vpop.permute.xlu0 %6741
    %6744 = vset.pattern.permute.xlu0 43
    %6745 = vperm.xlu0 %6744, %v3911
    %v6746 = vpop.permute.xlu0 %6745
    %6748 = vset.pattern.permute.xlu0 43
    %6749 = vperm.xlu0 %6748, %v3912
    %v6750 = vpop.permute.xlu0 %6749
    %6752 = vset.pattern.permute.xlu0 43
    %6753 = vperm.xlu0 %6752, %v3913
    %v6754 = vpop.permute.xlu0 %6753
    %6756 = vset.pattern.permute.xlu0 43
    %6757 = vperm.xlu0 %6756, %v3914
    %v6758 = vpop.permute.xlu0 %6757
    %6760 = vset.pattern.permute.xlu0 43
    %6761 = vperm.xlu0 %6760, %v3915
    %v6762 = vpop.permute.xlu0 %6761
    %6764 = vset.pattern.permute.xlu0 43
    %6765 = vperm.xlu0 %6764, %v3916
    %v6766 = vpop.permute.xlu0 %6765
    %6768 = vset.pattern.permute.xlu0 43
    %6769 = vperm.xlu0 %6768, %v3917
    %v6770 = vpop.permute.xlu0 %6769
    %6772 = vset.pattern.permute.xlu0 43
    %6773 = vperm.xlu0 %6772, %v3918
    %v6774 = vpop.permute.xlu0 %6773
    %6776 = vset.pattern.permute.xlu0 43
    %6777 = vperm.xlu0 %6776, %v3919
    %v6778 = vpop.permute.xlu0 %6777
    %v6780 = vmul.f32 %v3894, %v6730
    %v6781 = vmul.f32 %v3895, %v6734
    %v6782 = vmul.f32 %v3896, %v6738
    %v6783 = vmul.f32 %v3897, %v6742
    %v6784 = vmul.f32 %v3898, %v6746
    %v6785 = vmul.f32 %v3899, %v6750
    %v6786 = vmul.f32 %v3900, %v6754
    %v6787 = vmul.f32 %v3901, %v6758
    %v6788 = vmul.f32 %v3902, %v6762
    %v6789 = vmul.f32 %v3903, %v6766
    %v6790 = vmul.f32 %v3904, %v6770
    %v6791 = vmul.f32 %v3905, %v6774
    %v6792 = vmul.f32 %v3906, %v6778
    %6793 = vset.pattern.permute.xlu0 44
    %6794 = vperm.xlu0 %6793, %v3907
    %v6795 = vpop.permute.xlu0 %6794
    %6797 = vset.pattern.permute.xlu0 44
    %6798 = vperm.xlu0 %6797, %v3908
    %v6799 = vpop.permute.xlu0 %6798
    %6801 = vset.pattern.permute.xlu0 44
    %6802 = vperm.xlu0 %6801, %v3909
    %v6803 = vpop.permute.xlu0 %6802
    %6805 = vset.pattern.permute.xlu0 44
    %6806 = vperm.xlu0 %6805, %v3910
    %v6807 = vpop.permute.xlu0 %6806
    %6809 = vset.pattern.permute.xlu0 44
    %6810 = vperm.xlu0 %6809, %v3911
    %v6811 = vpop.permute.xlu0 %6810
    %6813 = vset.pattern.permute.xlu0 44
    %6814 = vperm.xlu0 %6813, %v3912
    %v6815 = vpop.permute.xlu0 %6814
    %6817 = vset.pattern.permute.xlu0 44
    %6818 = vperm.xlu0 %6817, %v3913
    %v6819 = vpop.permute.xlu0 %6818
    %6821 = vset.pattern.permute.xlu0 44
    %6822 = vperm.xlu0 %6821, %v3914
    %v6823 = vpop.permute.xlu0 %6822
    %6825 = vset.pattern.permute.xlu0 44
    %6826 = vperm.xlu0 %6825, %v3915
    %v6827 = vpop.permute.xlu0 %6826
    %6829 = vset.pattern.permute.xlu0 44
    %6830 = vperm.xlu0 %6829, %v3916
    %v6831 = vpop.permute.xlu0 %6830
    %6833 = vset.pattern.permute.xlu0 44
    %6834 = vperm.xlu0 %6833, %v3917
    %v6835 = vpop.permute.xlu0 %6834
    %6837 = vset.pattern.permute.xlu0 44
    %6838 = vperm.xlu0 %6837, %v3918
    %v6839 = vpop.permute.xlu0 %6838
    %6841 = vset.pattern.permute.xlu0 44
    %6842 = vperm.xlu0 %6841, %v3919
    %v6843 = vpop.permute.xlu0 %6842
    %v6845 = vmul.f32 %v3894, %v6795
    %v6846 = vmul.f32 %v3895, %v6799
    %v6847 = vmul.f32 %v3896, %v6803
    %v6848 = vmul.f32 %v3897, %v6807
    %v6849 = vmul.f32 %v3898, %v6811
    %v6850 = vmul.f32 %v3899, %v6815
    %v6851 = vmul.f32 %v3900, %v6819
    %v6852 = vmul.f32 %v3901, %v6823
    %v6853 = vmul.f32 %v3902, %v6827
    %v6854 = vmul.f32 %v3903, %v6831
    %v6855 = vmul.f32 %v3904, %v6835
    %v6856 = vmul.f32 %v3905, %v6839
    %v6857 = vmul.f32 %v3906, %v6843
    %6858 = vset.pattern.permute.xlu0 45
    %6859 = vperm.xlu0 %6858, %v3907
    %v6860 = vpop.permute.xlu0 %6859
    %6862 = vset.pattern.permute.xlu0 45
    %6863 = vperm.xlu0 %6862, %v3908
    %v6864 = vpop.permute.xlu0 %6863
    %6866 = vset.pattern.permute.xlu0 45
    %6867 = vperm.xlu0 %6866, %v3909
    %v6868 = vpop.permute.xlu0 %6867
    %6870 = vset.pattern.permute.xlu0 45
    %6871 = vperm.xlu0 %6870, %v3910
    %v6872 = vpop.permute.xlu0 %6871
    %6874 = vset.pattern.permute.xlu0 45
    %6875 = vperm.xlu0 %6874, %v3911
    %v6876 = vpop.permute.xlu0 %6875
    %6878 = vset.pattern.permute.xlu0 45
    %6879 = vperm.xlu0 %6878, %v3912
    %v6880 = vpop.permute.xlu0 %6879
    %6882 = vset.pattern.permute.xlu0 45
    %6883 = vperm.xlu0 %6882, %v3913
    %v6884 = vpop.permute.xlu0 %6883
    %6886 = vset.pattern.permute.xlu0 45
    %6887 = vperm.xlu0 %6886, %v3914
    %v6888 = vpop.permute.xlu0 %6887
    %6890 = vset.pattern.permute.xlu0 45
    %6891 = vperm.xlu0 %6890, %v3915
    %v6892 = vpop.permute.xlu0 %6891
    %6894 = vset.pattern.permute.xlu0 45
    %6895 = vperm.xlu0 %6894, %v3916
    %v6896 = vpop.permute.xlu0 %6895
    %6898 = vset.pattern.permute.xlu0 45
    %6899 = vperm.xlu0 %6898, %v3917
    %v6900 = vpop.permute.xlu0 %6899
    %6902 = vset.pattern.permute.xlu0 45
    %6903 = vperm.xlu0 %6902, %v3918
    %v6904 = vpop.permute.xlu0 %6903
    %6906 = vset.pattern.permute.xlu0 45
    %6907 = vperm.xlu0 %6906, %v3919
    %v6908 = vpop.permute.xlu0 %6907
    %v6910 = vmul.f32 %v3894, %v6860
    %v6911 = vmul.f32 %v3895, %v6864
    %v6912 = vmul.f32 %v3896, %v6868
    %v6913 = vmul.f32 %v3897, %v6872
    %v6914 = vmul.f32 %v3898, %v6876
    %v6915 = vmul.f32 %v3899, %v6880
    %v6916 = vmul.f32 %v3900, %v6884
    %v6917 = vmul.f32 %v3901, %v6888
    %v6918 = vmul.f32 %v3902, %v6892
    %v6919 = vmul.f32 %v3903, %v6896
    %v6920 = vmul.f32 %v3904, %v6900
    %v6921 = vmul.f32 %v3905, %v6904
    %v6922 = vmul.f32 %v3906, %v6908
    %6923 = vset.pattern.permute.xlu0 46
    %6924 = vperm.xlu0 %6923, %v3907
    %v6925 = vpop.permute.xlu0 %6924
    %6927 = vset.pattern.permute.xlu0 46
    %6928 = vperm.xlu0 %6927, %v3908
    %v6929 = vpop.permute.xlu0 %6928
    %6931 = vset.pattern.permute.xlu0 46
    %6932 = vperm.xlu0 %6931, %v3909
    %v6933 = vpop.permute.xlu0 %6932
    %6935 = vset.pattern.permute.xlu0 46
    %6936 = vperm.xlu0 %6935, %v3910
    %v6937 = vpop.permute.xlu0 %6936
    %6939 = vset.pattern.permute.xlu0 46
    %6940 = vperm.xlu0 %6939, %v3911
    %v6941 = vpop.permute.xlu0 %6940
    %6943 = vset.pattern.permute.xlu0 46
    %6944 = vperm.xlu0 %6943, %v3912
    %v6945 = vpop.permute.xlu0 %6944
    %6947 = vset.pattern.permute.xlu0 46
    %6948 = vperm.xlu0 %6947, %v3913
    %v6949 = vpop.permute.xlu0 %6948
    %6951 = vset.pattern.permute.xlu0 46
    %6952 = vperm.xlu0 %6951, %v3914
    %v6953 = vpop.permute.xlu0 %6952
    %6955 = vset.pattern.permute.xlu0 46
    %6956 = vperm.xlu0 %6955, %v3915
    %v6957 = vpop.permute.xlu0 %6956
    %6959 = vset.pattern.permute.xlu0 46
    %6960 = vperm.xlu0 %6959, %v3916
    %v6961 = vpop.permute.xlu0 %6960
    %6963 = vset.pattern.permute.xlu0 46
    %6964 = vperm.xlu0 %6963, %v3917
    %v6965 = vpop.permute.xlu0 %6964
    %6967 = vset.pattern.permute.xlu0 46
    %6968 = vperm.xlu0 %6967, %v3918
    %v6969 = vpop.permute.xlu0 %6968
    %6971 = vset.pattern.permute.xlu0 46
    %6972 = vperm.xlu0 %6971, %v3919
    %v6973 = vpop.permute.xlu0 %6972
    %v6975 = vmul.f32 %v3894, %v6925
    %v6976 = vmul.f32 %v3895, %v6929
    %v6977 = vmul.f32 %v3896, %v6933
    %v6978 = vmul.f32 %v3897, %v6937
    %v6979 = vmul.f32 %v3898, %v6941
    %v6980 = vmul.f32 %v3899, %v6945
    %v6981 = vmul.f32 %v3900, %v6949
    %v6982 = vmul.f32 %v3901, %v6953
    %v6983 = vmul.f32 %v3902, %v6957
    %v6984 = vmul.f32 %v3903, %v6961
    %v6985 = vmul.f32 %v3904, %v6965
    %v6986 = vmul.f32 %v3905, %v6969
    %v6987 = vmul.f32 %v3906, %v6973
    %6988 = vset.pattern.permute.xlu0 47
    %6989 = vperm.xlu0 %6988, %v3907
    %v6990 = vpop.permute.xlu0 %6989
    %6992 = vset.pattern.permute.xlu0 47
    %6993 = vperm.xlu0 %6992, %v3908
    %v6994 = vpop.permute.xlu0 %6993
    %6996 = vset.pattern.permute.xlu0 47
    %6997 = vperm.xlu0 %6996, %v3909
    %v6998 = vpop.permute.xlu0 %6997
    %7000 = vset.pattern.permute.xlu0 47
    %7001 = vperm.xlu0 %7000, %v3910
    %v7002 = vpop.permute.xlu0 %7001
    %7004 = vset.pattern.permute.xlu0 47
    %7005 = vperm.xlu0 %7004, %v3911
    %v7006 = vpop.permute.xlu0 %7005
    %7008 = vset.pattern.permute.xlu0 47
    %7009 = vperm.xlu0 %7008, %v3912
    %v7010 = vpop.permute.xlu0 %7009
    %7012 = vset.pattern.permute.xlu0 47
    %7013 = vperm.xlu0 %7012, %v3913
    %v7014 = vpop.permute.xlu0 %7013
    %7016 = vset.pattern.permute.xlu0 47
    %7017 = vperm.xlu0 %7016, %v3914
    %v7018 = vpop.permute.xlu0 %7017
    %7020 = vset.pattern.permute.xlu0 47
    %7021 = vperm.xlu0 %7020, %v3915
    %v7022 = vpop.permute.xlu0 %7021
    %7024 = vset.pattern.permute.xlu0 47
    %7025 = vperm.xlu0 %7024, %v3916
    %v7026 = vpop.permute.xlu0 %7025
    %7028 = vset.pattern.permute.xlu0 47
    %7029 = vperm.xlu0 %7028, %v3917
    %v7030 = vpop.permute.xlu0 %7029
    %7032 = vset.pattern.permute.xlu0 47
    %7033 = vperm.xlu0 %7032, %v3918
    %v7034 = vpop.permute.xlu0 %7033
    %7036 = vset.pattern.permute.xlu0 47
    %7037 = vperm.xlu0 %7036, %v3919
    %v7038 = vpop.permute.xlu0 %7037
    %v7040 = vmul.f32 %v3894, %v6990
    %v7041 = vmul.f32 %v3895, %v6994
    %v7042 = vmul.f32 %v3896, %v6998
    %v7043 = vmul.f32 %v3897, %v7002
    %v7044 = vmul.f32 %v3898, %v7006
    %v7045 = vmul.f32 %v3899, %v7010
    %v7046 = vmul.f32 %v3900, %v7014
    %v7047 = vmul.f32 %v3901, %v7018
    %v7048 = vmul.f32 %v3902, %v7022
    %v7049 = vmul.f32 %v3903, %v7026
    %v7050 = vmul.f32 %v3904, %v7030
    %v7051 = vmul.f32 %v3905, %v7034
    %v7052 = vmul.f32 %v3906, %v7038
    %7053 = vset.pattern.permute.xlu0 48
    %7054 = vperm.xlu0 %7053, %v3907
    %v7055 = vpop.permute.xlu0 %7054
    %7057 = vset.pattern.permute.xlu0 48
    %7058 = vperm.xlu0 %7057, %v3908
    %v7059 = vpop.permute.xlu0 %7058
    %7061 = vset.pattern.permute.xlu0 48
    %7062 = vperm.xlu0 %7061, %v3909
    %v7063 = vpop.permute.xlu0 %7062
    %7065 = vset.pattern.permute.xlu0 48
    %7066 = vperm.xlu0 %7065, %v3910
    %v7067 = vpop.permute.xlu0 %7066
    %7069 = vset.pattern.permute.xlu0 48
    %7070 = vperm.xlu0 %7069, %v3911
    %v7071 = vpop.permute.xlu0 %7070
    %7073 = vset.pattern.permute.xlu0 48
    %7074 = vperm.xlu0 %7073, %v3912
    %v7075 = vpop.permute.xlu0 %7074
    %7077 = vset.pattern.permute.xlu0 48
    %7078 = vperm.xlu0 %7077, %v3913
    %v7079 = vpop.permute.xlu0 %7078
    %7081 = vset.pattern.permute.xlu0 48
    %7082 = vperm.xlu0 %7081, %v3914
    %v7083 = vpop.permute.xlu0 %7082
    %7085 = vset.pattern.permute.xlu0 48
    %7086 = vperm.xlu0 %7085, %v3915
    %v7087 = vpop.permute.xlu0 %7086
    %7089 = vset.pattern.permute.xlu0 48
    %7090 = vperm.xlu0 %7089, %v3916
    %v7091 = vpop.permute.xlu0 %7090
    %7093 = vset.pattern.permute.xlu0 48
    %7094 = vperm.xlu0 %7093, %v3917
    %v7095 = vpop.permute.xlu0 %7094
    %7097 = vset.pattern.permute.xlu0 48
    %7098 = vperm.xlu0 %7097, %v3918
    %v7099 = vpop.permute.xlu0 %7098
    %7101 = vset.pattern.permute.xlu0 48
    %7102 = vperm.xlu0 %7101, %v3919
    %v7103 = vpop.permute.xlu0 %7102
    %v7105 = vmul.f32 %v3894, %v7055
    %v7106 = vmul.f32 %v3895, %v7059
    %v7107 = vmul.f32 %v3896, %v7063
    %v7108 = vmul.f32 %v3897, %v7067
    %v7109 = vmul.f32 %v3898, %v7071
    %v7110 = vmul.f32 %v3899, %v7075
    %v7111 = vmul.f32 %v3900, %v7079
    %v7112 = vmul.f32 %v3901, %v7083
    %v7113 = vmul.f32 %v3902, %v7087
    %v7114 = vmul.f32 %v3903, %v7091
    %v7115 = vmul.f32 %v3904, %v7095
    %v7116 = vmul.f32 %v3905, %v7099
    %v7117 = vmul.f32 %v3906, %v7103
    %7131 = vrot.lane.b32.xlu0 %v4050, 32
    %v7132 = vpop.permute.xlu0 %7131
    %7133 = vrot.lane.b32.xlu0 %v4051, 32
    %v7134 = vpop.permute.xlu0 %7133
    %7135 = vrot.lane.b32.xlu0 %v4052, 32
    %v7136 = vpop.permute.xlu0 %7135
    %7137 = vrot.lane.b32.xlu0 %v4053, 32
    %v7138 = vpop.permute.xlu0 %7137
    %7139 = vrot.lane.b32.xlu0 %v4054, 32
    %v7140 = vpop.permute.xlu0 %7139
    %7141 = vrot.lane.b32.xlu0 %v4055, 32
    %v7142 = vpop.permute.xlu0 %7141
    %7143 = vrot.lane.b32.xlu0 %v4056, 32
    %v7144 = vpop.permute.xlu0 %7143
    %7145 = vrot.lane.b32.xlu0 %v4057, 32
    %v7146 = vpop.permute.xlu0 %7145
    %7147 = vrot.lane.b32.xlu0 %v4058, 32
    %v7148 = vpop.permute.xlu0 %7147
    %7149 = vrot.lane.b32.xlu0 %v4059, 32
    %v7150 = vpop.permute.xlu0 %7149
    %7151 = vrot.lane.b32.xlu0 %v4060, 32
    %v7152 = vpop.permute.xlu0 %7151
    %7153 = vrot.lane.b32.xlu0 %v4061, 32
    %v7154 = vpop.permute.xlu0 %7153
    %7155 = vrot.lane.b32.xlu0 %v4062, 32
    %v7156 = vpop.permute.xlu0 %7155
    %7183 = vrot.lane.b32.xlu0 %v4115, 64
    %v7184 = vpop.permute.xlu0 %7183
    %7185 = vrot.lane.b32.xlu0 %v4116, 64
    %v7186 = vpop.permute.xlu0 %7185
    %7187 = vrot.lane.b32.xlu0 %v4117, 64
    %v7188 = vpop.permute.xlu0 %7187
    %7189 = vrot.lane.b32.xlu0 %v4118, 64
    %v7190 = vpop.permute.xlu0 %7189
    %7191 = vrot.lane.b32.xlu0 %v4119, 64
    %v7192 = vpop.permute.xlu0 %7191
    %7193 = vrot.lane.b32.xlu0 %v4120, 64
    %v7194 = vpop.permute.xlu0 %7193
    %7195 = vrot.lane.b32.xlu0 %v4121, 64
    %v7196 = vpop.permute.xlu0 %7195
    %7197 = vrot.lane.b32.xlu0 %v4122, 64
    %v7198 = vpop.permute.xlu0 %7197
    %7199 = vrot.lane.b32.xlu0 %v4123, 64
    %v7200 = vpop.permute.xlu0 %7199
    %7201 = vrot.lane.b32.xlu0 %v4124, 64
    %v7202 = vpop.permute.xlu0 %7201
    %7203 = vrot.lane.b32.xlu0 %v4125, 64
    %v7204 = vpop.permute.xlu0 %7203
    %7205 = vrot.lane.b32.xlu0 %v4126, 64
    %v7206 = vpop.permute.xlu0 %7205
    %7207 = vrot.lane.b32.xlu0 %v4127, 64
    %v7208 = vpop.permute.xlu0 %7207
    %7235 = vrot.lane.b32.xlu0 %v4180, 96
    %v7236 = vpop.permute.xlu0 %7235
    %7237 = vrot.lane.b32.xlu0 %v4181, 96
    %v7238 = vpop.permute.xlu0 %7237
    %7239 = vrot.lane.b32.xlu0 %v4182, 96
    %v7240 = vpop.permute.xlu0 %7239
    %7241 = vrot.lane.b32.xlu0 %v4183, 96
    %v7242 = vpop.permute.xlu0 %7241
    %7243 = vrot.lane.b32.xlu0 %v4184, 96
    %v7244 = vpop.permute.xlu0 %7243
    %7245 = vrot.lane.b32.xlu0 %v4185, 96
    %v7246 = vpop.permute.xlu0 %7245
    %7247 = vrot.lane.b32.xlu0 %v4186, 96
    %v7248 = vpop.permute.xlu0 %7247
    %7249 = vrot.lane.b32.xlu0 %v4187, 96
    %v7250 = vpop.permute.xlu0 %7249
    %7251 = vrot.lane.b32.xlu0 %v4188, 96
    %v7252 = vpop.permute.xlu0 %7251
    %7253 = vrot.lane.b32.xlu0 %v4189, 96
    %v7254 = vpop.permute.xlu0 %7253
    %7255 = vrot.lane.b32.xlu0 %v4190, 96
    %v7256 = vpop.permute.xlu0 %7255
    %7257 = vrot.lane.b32.xlu0 %v4191, 96
    %v7258 = vpop.permute.xlu0 %7257
    %7259 = vrot.lane.b32.xlu0 %v4192, 96
    %v7260 = vpop.permute.xlu0 %7259
    %7287 = vrot.lane.b32.xlu0 %v4310, 32
    %v7288 = vpop.permute.xlu0 %7287
    %7289 = vrot.lane.b32.xlu0 %v4311, 32
    %v7290 = vpop.permute.xlu0 %7289
    %7291 = vrot.lane.b32.xlu0 %v4312, 32
    %v7292 = vpop.permute.xlu0 %7291
    %7293 = vrot.lane.b32.xlu0 %v4313, 32
    %v7294 = vpop.permute.xlu0 %7293
    %7295 = vrot.lane.b32.xlu0 %v4314, 32
    %v7296 = vpop.permute.xlu0 %7295
    %7297 = vrot.lane.b32.xlu0 %v4315, 32
    %v7298 = vpop.permute.xlu0 %7297
    %7299 = vrot.lane.b32.xlu0 %v4316, 32
    %v7300 = vpop.permute.xlu0 %7299
    %7301 = vrot.lane.b32.xlu0 %v4317, 32
    %v7302 = vpop.permute.xlu0 %7301
    %7303 = vrot.lane.b32.xlu0 %v4318, 32
    %v7304 = vpop.permute.xlu0 %7303
    %7305 = vrot.lane.b32.xlu0 %v4319, 32
    %v7306 = vpop.permute.xlu0 %7305
    %7307 = vrot.lane.b32.xlu0 %v4320, 32
    %v7308 = vpop.permute.xlu0 %7307
    %7309 = vrot.lane.b32.xlu0 %v4321, 32
    %v7310 = vpop.permute.xlu0 %7309
    %7311 = vrot.lane.b32.xlu0 %v4322, 32
    %v7312 = vpop.permute.xlu0 %7311
    %7339 = vrot.lane.b32.xlu0 %v4375, 64
    %v7340 = vpop.permute.xlu0 %7339
    %7341 = vrot.lane.b32.xlu0 %v4376, 64
    %v7342 = vpop.permute.xlu0 %7341
    %7343 = vrot.lane.b32.xlu0 %v4377, 64
    %v7344 = vpop.permute.xlu0 %7343
    %7345 = vrot.lane.b32.xlu0 %v4378, 64
    %v7346 = vpop.permute.xlu0 %7345
    %7347 = vrot.lane.b32.xlu0 %v4379, 64
    %v7348 = vpop.permute.xlu0 %7347
    %7349 = vrot.lane.b32.xlu0 %v4380, 64
    %v7350 = vpop.permute.xlu0 %7349
    %7351 = vrot.lane.b32.xlu0 %v4381, 64
    %v7352 = vpop.permute.xlu0 %7351
    %7353 = vrot.lane.b32.xlu0 %v4382, 64
    %v7354 = vpop.permute.xlu0 %7353
    %7355 = vrot.lane.b32.xlu0 %v4383, 64
    %v7356 = vpop.permute.xlu0 %7355
    %7357 = vrot.lane.b32.xlu0 %v4384, 64
    %v7358 = vpop.permute.xlu0 %7357
    %7359 = vrot.lane.b32.xlu0 %v4385, 64
    %v7360 = vpop.permute.xlu0 %7359
    %7361 = vrot.lane.b32.xlu0 %v4386, 64
    %v7362 = vpop.permute.xlu0 %7361
    %7363 = vrot.lane.b32.xlu0 %v4387, 64
    %v7364 = vpop.permute.xlu0 %7363
    %7391 = vrot.lane.b32.xlu0 %v4440, 96
    %v7392 = vpop.permute.xlu0 %7391
    %7393 = vrot.lane.b32.xlu0 %v4441, 96
    %v7394 = vpop.permute.xlu0 %7393
    %7395 = vrot.lane.b32.xlu0 %v4442, 96
    %v7396 = vpop.permute.xlu0 %7395
    %7397 = vrot.lane.b32.xlu0 %v4443, 96
    %v7398 = vpop.permute.xlu0 %7397
    %7399 = vrot.lane.b32.xlu0 %v4444, 96
    %v7400 = vpop.permute.xlu0 %7399
    %7401 = vrot.lane.b32.xlu0 %v4445, 96
    %v7402 = vpop.permute.xlu0 %7401
    %7403 = vrot.lane.b32.xlu0 %v4446, 96
    %v7404 = vpop.permute.xlu0 %7403
    %7405 = vrot.lane.b32.xlu0 %v4447, 96
    %v7406 = vpop.permute.xlu0 %7405
    %7407 = vrot.lane.b32.xlu0 %v4448, 96
    %v7408 = vpop.permute.xlu0 %7407
    %7409 = vrot.lane.b32.xlu0 %v4449, 96
    %v7410 = vpop.permute.xlu0 %7409
    %7411 = vrot.lane.b32.xlu0 %v4450, 96
    %v7412 = vpop.permute.xlu0 %7411
    %7413 = vrot.lane.b32.xlu0 %v4451, 96
    %v7414 = vpop.permute.xlu0 %7413
    %7415 = vrot.lane.b32.xlu0 %v4452, 96
    %v7416 = vpop.permute.xlu0 %7415
    %7443 = vrot.lane.b32.xlu0 %v4570, 32
    %v7444 = vpop.permute.xlu0 %7443
    %7445 = vrot.lane.b32.xlu0 %v4571, 32
    %v7446 = vpop.permute.xlu0 %7445
    %7447 = vrot.lane.b32.xlu0 %v4572, 32
    %v7448 = vpop.permute.xlu0 %7447
    %7449 = vrot.lane.b32.xlu0 %v4573, 32
    %v7450 = vpop.permute.xlu0 %7449
    %7451 = vrot.lane.b32.xlu0 %v4574, 32
    %v7452 = vpop.permute.xlu0 %7451
    %7453 = vrot.lane.b32.xlu0 %v4575, 32
    %v7454 = vpop.permute.xlu0 %7453
    %7455 = vrot.lane.b32.xlu0 %v4576, 32
    %v7456 = vpop.permute.xlu0 %7455
    %7457 = vrot.lane.b32.xlu0 %v4577, 32
    %v7458 = vpop.permute.xlu0 %7457
    %7459 = vrot.lane.b32.xlu0 %v4578, 32
    %v7460 = vpop.permute.xlu0 %7459
    %7461 = vrot.lane.b32.xlu0 %v4579, 32
    %v7462 = vpop.permute.xlu0 %7461
    %7463 = vrot.lane.b32.xlu0 %v4580, 32
    %v7464 = vpop.permute.xlu0 %7463
    %7465 = vrot.lane.b32.xlu0 %v4581, 32
    %v7466 = vpop.permute.xlu0 %7465
    %7467 = vrot.lane.b32.xlu0 %v4582, 32
    %v7468 = vpop.permute.xlu0 %7467
    %7495 = vrot.lane.b32.xlu0 %v4635, 64
    %v7496 = vpop.permute.xlu0 %7495
    %7497 = vrot.lane.b32.xlu0 %v4636, 64
    %v7498 = vpop.permute.xlu0 %7497
    %7499 = vrot.lane.b32.xlu0 %v4637, 64
    %v7500 = vpop.permute.xlu0 %7499
    %7501 = vrot.lane.b32.xlu0 %v4638, 64
    %v7502 = vpop.permute.xlu0 %7501
    %7503 = vrot.lane.b32.xlu0 %v4639, 64
    %v7504 = vpop.permute.xlu0 %7503
    %7505 = vrot.lane.b32.xlu0 %v4640, 64
    %v7506 = vpop.permute.xlu0 %7505
    %7507 = vrot.lane.b32.xlu0 %v4641, 64
    %v7508 = vpop.permute.xlu0 %7507
    %7509 = vrot.lane.b32.xlu0 %v4642, 64
    %v7510 = vpop.permute.xlu0 %7509
    %7511 = vrot.lane.b32.xlu0 %v4643, 64
    %v7512 = vpop.permute.xlu0 %7511
    %7513 = vrot.lane.b32.xlu0 %v4644, 64
    %v7514 = vpop.permute.xlu0 %7513
    %7515 = vrot.lane.b32.xlu0 %v4645, 64
    %v7516 = vpop.permute.xlu0 %7515
    %7517 = vrot.lane.b32.xlu0 %v4646, 64
    %v7518 = vpop.permute.xlu0 %7517
    %7519 = vrot.lane.b32.xlu0 %v4647, 64
    %v7520 = vpop.permute.xlu0 %7519
    %7547 = vrot.lane.b32.xlu0 %v4700, 96
    %v7548 = vpop.permute.xlu0 %7547
    %7549 = vrot.lane.b32.xlu0 %v4701, 96
    %v7550 = vpop.permute.xlu0 %7549
    %7551 = vrot.lane.b32.xlu0 %v4702, 96
    %v7552 = vpop.permute.xlu0 %7551
    %7553 = vrot.lane.b32.xlu0 %v4703, 96
    %v7554 = vpop.permute.xlu0 %7553
    %7555 = vrot.lane.b32.xlu0 %v4704, 96
    %v7556 = vpop.permute.xlu0 %7555
    %7557 = vrot.lane.b32.xlu0 %v4705, 96
    %v7558 = vpop.permute.xlu0 %7557
    %7559 = vrot.lane.b32.xlu0 %v4706, 96
    %v7560 = vpop.permute.xlu0 %7559
    %7561 = vrot.lane.b32.xlu0 %v4707, 96
    %v7562 = vpop.permute.xlu0 %7561
    %7563 = vrot.lane.b32.xlu0 %v4708, 96
    %v7564 = vpop.permute.xlu0 %7563
    %7565 = vrot.lane.b32.xlu0 %v4709, 96
    %v7566 = vpop.permute.xlu0 %7565
    %7567 = vrot.lane.b32.xlu0 %v4710, 96
    %v7568 = vpop.permute.xlu0 %7567
    %7569 = vrot.lane.b32.xlu0 %v4711, 96
    %v7570 = vpop.permute.xlu0 %7569
    %7571 = vrot.lane.b32.xlu0 %v4712, 96
    %v7572 = vpop.permute.xlu0 %7571
    %7599 = vrot.lane.b32.xlu0 %v4830, 32
    %v7600 = vpop.permute.xlu0 %7599
    %7601 = vrot.lane.b32.xlu0 %v4831, 32
    %v7602 = vpop.permute.xlu0 %7601
    %7603 = vrot.lane.b32.xlu0 %v4832, 32
    %v7604 = vpop.permute.xlu0 %7603
    %7605 = vrot.lane.b32.xlu0 %v4833, 32
    %v7606 = vpop.permute.xlu0 %7605
    %7607 = vrot.lane.b32.xlu0 %v4834, 32
    %v7608 = vpop.permute.xlu0 %7607
    %7609 = vrot.lane.b32.xlu0 %v4835, 32
    %v7610 = vpop.permute.xlu0 %7609
    %7611 = vrot.lane.b32.xlu0 %v4836, 32
    %v7612 = vpop.permute.xlu0 %7611
    %7613 = vrot.lane.b32.xlu0 %v4837, 32
    %v7614 = vpop.permute.xlu0 %7613
    %7615 = vrot.lane.b32.xlu0 %v4838, 32
    %v7616 = vpop.permute.xlu0 %7615
    %7617 = vrot.lane.b32.xlu0 %v4839, 32
    %v7618 = vpop.permute.xlu0 %7617
    %7619 = vrot.lane.b32.xlu0 %v4840, 32
    %v7620 = vpop.permute.xlu0 %7619
    %7621 = vrot.lane.b32.xlu0 %v4841, 32
    %v7622 = vpop.permute.xlu0 %7621
    %7623 = vrot.lane.b32.xlu0 %v4842, 32
    %v7624 = vpop.permute.xlu0 %7623
    %7651 = vrot.lane.b32.xlu0 %v4895, 64
    %v7652 = vpop.permute.xlu0 %7651
    %7653 = vrot.lane.b32.xlu0 %v4896, 64
    %v7654 = vpop.permute.xlu0 %7653
    %7655 = vrot.lane.b32.xlu0 %v4897, 64
    %v7656 = vpop.permute.xlu0 %7655
    %7657 = vrot.lane.b32.xlu0 %v4898, 64
    %v7658 = vpop.permute.xlu0 %7657
    %7659 = vrot.lane.b32.xlu0 %v4899, 64
    %v7660 = vpop.permute.xlu0 %7659
    %7661 = vrot.lane.b32.xlu0 %v4900, 64
    %v7662 = vpop.permute.xlu0 %7661
    %7663 = vrot.lane.b32.xlu0 %v4901, 64
    %v7664 = vpop.permute.xlu0 %7663
    %7665 = vrot.lane.b32.xlu0 %v4902, 64
    %v7666 = vpop.permute.xlu0 %7665
    %7667 = vrot.lane.b32.xlu0 %v4903, 64
    %v7668 = vpop.permute.xlu0 %7667
    %7669 = vrot.lane.b32.xlu0 %v4904, 64
    %v7670 = vpop.permute.xlu0 %7669
    %7671 = vrot.lane.b32.xlu0 %v4905, 64
    %v7672 = vpop.permute.xlu0 %7671
    %7673 = vrot.lane.b32.xlu0 %v4906, 64
    %v7674 = vpop.permute.xlu0 %7673
    %7675 = vrot.lane.b32.xlu0 %v4907, 64
    %v7676 = vpop.permute.xlu0 %7675
    %7703 = vrot.lane.b32.xlu0 %v4960, 96
    %v7704 = vpop.permute.xlu0 %7703
    %7705 = vrot.lane.b32.xlu0 %v4961, 96
    %v7706 = vpop.permute.xlu0 %7705
    %7707 = vrot.lane.b32.xlu0 %v4962, 96
    %v7708 = vpop.permute.xlu0 %7707
    %7709 = vrot.lane.b32.xlu0 %v4963, 96
    %v7710 = vpop.permute.xlu0 %7709
    %7711 = vrot.lane.b32.xlu0 %v4964, 96
    %v7712 = vpop.permute.xlu0 %7711
    %7713 = vrot.lane.b32.xlu0 %v4965, 96
    %v7714 = vpop.permute.xlu0 %7713
    %7715 = vrot.lane.b32.xlu0 %v4966, 96
    %v7716 = vpop.permute.xlu0 %7715
    %7717 = vrot.lane.b32.xlu0 %v4967, 96
    %v7718 = vpop.permute.xlu0 %7717
    %7719 = vrot.lane.b32.xlu0 %v4968, 96
    %v7720 = vpop.permute.xlu0 %7719
    %7721 = vrot.lane.b32.xlu0 %v4969, 96
    %v7722 = vpop.permute.xlu0 %7721
    %7723 = vrot.lane.b32.xlu0 %v4970, 96
    %v7724 = vpop.permute.xlu0 %7723
    %7725 = vrot.lane.b32.xlu0 %v4971, 96
    %v7726 = vpop.permute.xlu0 %7725
    %7727 = vrot.lane.b32.xlu0 %v4972, 96
    %v7728 = vpop.permute.xlu0 %7727
    %v7742 = vsel %vm1511, %v3985, %v7132
    %v7743 = vsel %vm1511, %v3986, %v7134
    %v7744 = vsel %vm1511, %v3987, %v7136
    %v7745 = vsel %vm1511, %v3988, %v7138
    %v7746 = vsel %vm1511, %v3989, %v7140
    %v7747 = vsel %vm1511, %v3990, %v7142
    %v7748 = vsel %vm1511, %v3991, %v7144
    %v7749 = vsel %vm1511, %v3992, %v7146
    %v7750 = vsel %vm1511, %v3993, %v7148
    %v7751 = vsel %vm1511, %v3994, %v7150
    %v7752 = vsel %vm1511, %v3995, %v7152
    %v7753 = vsel %vm1511, %v3996, %v7154
    %v7754 = vsel %vm1511, %v3997, %v7156
    %v7755 = vsel %vm2324, %v7742, %v7184
    %v7756 = vsel %vm2324, %v7743, %v7186
    %v7757 = vsel %vm2324, %v7744, %v7188
    %v7758 = vsel %vm2324, %v7745, %v7190
    %v7759 = vsel %vm2324, %v7746, %v7192
    %v7760 = vsel %vm2324, %v7747, %v7194
    %v7761 = vsel %vm2324, %v7748, %v7196
    %v7762 = vsel %vm2324, %v7749, %v7198
    %v7763 = vsel %vm2324, %v7750, %v7200
    %v7764 = vsel %vm2324, %v7751, %v7202
    %v7765 = vsel %vm2324, %v7752, %v7204
    %v7766 = vsel %vm2324, %v7753, %v7206
    %v7767 = vsel %vm2324, %v7754, %v7208
    %v7768 = vsel %vm2338, %v7755, %v7236
    %v7769 = vsel %vm2338, %v7756, %v7238
    %v7770 = vsel %vm2338, %v7757, %v7240
    %v7771 = vsel %vm2338, %v7758, %v7242
    %v7772 = vsel %vm2338, %v7759, %v7244
    %v7773 = vsel %vm2338, %v7760, %v7246
    %v7774 = vsel %vm2338, %v7761, %v7248
    %v7775 = vsel %vm2338, %v7762, %v7250
    %v7776 = vsel %vm2338, %v7763, %v7252
    %v7777 = vsel %vm2338, %v7764, %v7254
    %v7778 = vsel %vm2338, %v7765, %v7256
    %v7779 = vsel %vm2338, %v7766, %v7258
    %v7780 = vsel %vm2338, %v7767, %v7260
    %v7781 = vsel %vm1511, %v4245, %v7288
    %v7782 = vsel %vm1511, %v4246, %v7290
    %v7783 = vsel %vm1511, %v4247, %v7292
    %v7784 = vsel %vm1511, %v4248, %v7294
    %v7785 = vsel %vm1511, %v4249, %v7296
    %v7786 = vsel %vm1511, %v4250, %v7298
    %v7787 = vsel %vm1511, %v4251, %v7300
    %v7788 = vsel %vm1511, %v4252, %v7302
    %v7789 = vsel %vm1511, %v4253, %v7304
    %v7790 = vsel %vm1511, %v4254, %v7306
    %v7791 = vsel %vm1511, %v4255, %v7308
    %v7792 = vsel %vm1511, %v4256, %v7310
    %v7793 = vsel %vm1511, %v4257, %v7312
    %v7794 = vsel %vm2324, %v7781, %v7340
    %v7795 = vsel %vm2324, %v7782, %v7342
    %v7796 = vsel %vm2324, %v7783, %v7344
    %v7797 = vsel %vm2324, %v7784, %v7346
    %v7798 = vsel %vm2324, %v7785, %v7348
    %v7799 = vsel %vm2324, %v7786, %v7350
    %v7800 = vsel %vm2324, %v7787, %v7352
    %v7801 = vsel %vm2324, %v7788, %v7354
    %v7802 = vsel %vm2324, %v7789, %v7356
    %v7803 = vsel %vm2324, %v7790, %v7358
    %v7804 = vsel %vm2324, %v7791, %v7360
    %v7805 = vsel %vm2324, %v7792, %v7362
    %v7806 = vsel %vm2324, %v7793, %v7364
    %v7807 = vsel %vm2338, %v7794, %v7392
    %v7808 = vsel %vm2338, %v7795, %v7394
    %v7809 = vsel %vm2338, %v7796, %v7396
    %v7810 = vsel %vm2338, %v7797, %v7398
    %v7811 = vsel %vm2338, %v7798, %v7400
    %v7812 = vsel %vm2338, %v7799, %v7402
    %v7813 = vsel %vm2338, %v7800, %v7404
    %v7814 = vsel %vm2338, %v7801, %v7406
    %v7815 = vsel %vm2338, %v7802, %v7408
    %v7816 = vsel %vm2338, %v7803, %v7410
    %v7817 = vsel %vm2338, %v7804, %v7412
    %v7818 = vsel %vm2338, %v7805, %v7414
    %v7819 = vsel %vm2338, %v7806, %v7416
    %v7820 = vsel %vm1511, %v4505, %v7444
    %v7821 = vsel %vm1511, %v4506, %v7446
    %v7822 = vsel %vm1511, %v4507, %v7448
    %v7823 = vsel %vm1511, %v4508, %v7450
    %v7824 = vsel %vm1511, %v4509, %v7452
    %v7825 = vsel %vm1511, %v4510, %v7454
    %v7826 = vsel %vm1511, %v4511, %v7456
    %v7827 = vsel %vm1511, %v4512, %v7458
    %v7828 = vsel %vm1511, %v4513, %v7460
    %v7829 = vsel %vm1511, %v4514, %v7462
    %v7830 = vsel %vm1511, %v4515, %v7464
    %v7831 = vsel %vm1511, %v4516, %v7466
    %v7832 = vsel %vm1511, %v4517, %v7468
    %v7833 = vsel %vm2324, %v7820, %v7496
    %v7834 = vsel %vm2324, %v7821, %v7498
    %v7835 = vsel %vm2324, %v7822, %v7500
    %v7836 = vsel %vm2324, %v7823, %v7502
    %v7837 = vsel %vm2324, %v7824, %v7504
    %v7838 = vsel %vm2324, %v7825, %v7506
    %v7839 = vsel %vm2324, %v7826, %v7508
    %v7840 = vsel %vm2324, %v7827, %v7510
    %v7841 = vsel %vm2324, %v7828, %v7512
    %v7842 = vsel %vm2324, %v7829, %v7514
    %v7843 = vsel %vm2324, %v7830, %v7516
    %v7844 = vsel %vm2324, %v7831, %v7518
    %v7845 = vsel %vm2324, %v7832, %v7520
    %v7846 = vsel %vm2338, %v7833, %v7548
    %v7847 = vsel %vm2338, %v7834, %v7550
    %v7848 = vsel %vm2338, %v7835, %v7552
    %v7849 = vsel %vm2338, %v7836, %v7554
    %v7850 = vsel %vm2338, %v7837, %v7556
    %v7851 = vsel %vm2338, %v7838, %v7558
    %v7852 = vsel %vm2338, %v7839, %v7560
    %v7853 = vsel %vm2338, %v7840, %v7562
    %v7854 = vsel %vm2338, %v7841, %v7564
    %v7855 = vsel %vm2338, %v7842, %v7566
    %v7856 = vsel %vm2338, %v7843, %v7568
    %v7857 = vsel %vm2338, %v7844, %v7570
    %v7858 = vsel %vm2338, %v7845, %v7572
    %v7859 = vsel %vm1511, %v4765, %v7600
    %v7860 = vsel %vm1511, %v4766, %v7602
    %v7861 = vsel %vm1511, %v4767, %v7604
    %v7862 = vsel %vm1511, %v4768, %v7606
    %v7863 = vsel %vm1511, %v4769, %v7608
    %v7864 = vsel %vm1511, %v4770, %v7610
    %v7865 = vsel %vm1511, %v4771, %v7612
    %v7866 = vsel %vm1511, %v4772, %v7614
    %v7867 = vsel %vm1511, %v4773, %v7616
    %v7868 = vsel %vm1511, %v4774, %v7618
    %v7869 = vsel %vm1511, %v4775, %v7620
    %v7870 = vsel %vm1511, %v4776, %v7622
    %v7871 = vsel %vm1511, %v4777, %v7624
    %v7872 = vsel %vm2324, %v7859, %v7652
    %v7873 = vsel %vm2324, %v7860, %v7654
    %v7874 = vsel %vm2324, %v7861, %v7656
    %v7875 = vsel %vm2324, %v7862, %v7658
    %v7876 = vsel %vm2324, %v7863, %v7660
    %v7877 = vsel %vm2324, %v7864, %v7662
    %v7878 = vsel %vm2324, %v7865, %v7664
    %v7879 = vsel %vm2324, %v7866, %v7666
    %v7880 = vsel %vm2324, %v7867, %v7668
    %v7881 = vsel %vm2324, %v7868, %v7670
    %v7882 = vsel %vm2324, %v7869, %v7672
    %v7883 = vsel %vm2324, %v7870, %v7674
    %v7884 = vsel %vm2324, %v7871, %v7676
    %v7885 = vsel %vm2338, %v7872, %v7704
    %v7886 = vsel %vm2338, %v7873, %v7706
    %v7887 = vsel %vm2338, %v7874, %v7708
    %v7888 = vsel %vm2338, %v7875, %v7710
    %v7889 = vsel %vm2338, %v7876, %v7712
    %v7890 = vsel %vm2338, %v7877, %v7714
    %v7891 = vsel %vm2338, %v7878, %v7716
    %v7892 = vsel %vm2338, %v7879, %v7718
    %v7893 = vsel %vm2338, %v7880, %v7720
    %v7894 = vsel %vm2338, %v7881, %v7722
    %v7895 = vsel %vm2338, %v7882, %v7724
    %v7896 = vsel %vm2338, %v7883, %v7726
    %v7897 = vsel %vm2338, %v7884, %v7728
    %7911 = vrot.lane.b32.xlu0 %v5090, 32
    %v7912 = vpop.permute.xlu0 %7911
    %7913 = vrot.lane.b32.xlu0 %v5091, 32
    %v7914 = vpop.permute.xlu0 %7913
    %7915 = vrot.lane.b32.xlu0 %v5092, 32
    %v7916 = vpop.permute.xlu0 %7915
    %7917 = vrot.lane.b32.xlu0 %v5093, 32
    %v7918 = vpop.permute.xlu0 %7917
    %7919 = vrot.lane.b32.xlu0 %v5094, 32
    %v7920 = vpop.permute.xlu0 %7919
    %7921 = vrot.lane.b32.xlu0 %v5095, 32
    %v7922 = vpop.permute.xlu0 %7921
    %7923 = vrot.lane.b32.xlu0 %v5096, 32
    %v7924 = vpop.permute.xlu0 %7923
    %7925 = vrot.lane.b32.xlu0 %v5097, 32
    %v7926 = vpop.permute.xlu0 %7925
    %7927 = vrot.lane.b32.xlu0 %v5098, 32
    %v7928 = vpop.permute.xlu0 %7927
    %7929 = vrot.lane.b32.xlu0 %v5099, 32
    %v7930 = vpop.permute.xlu0 %7929
    %7931 = vrot.lane.b32.xlu0 %v5100, 32
    %v7932 = vpop.permute.xlu0 %7931
    %7933 = vrot.lane.b32.xlu0 %v5101, 32
    %v7934 = vpop.permute.xlu0 %7933
    %7935 = vrot.lane.b32.xlu0 %v5102, 32
    %v7936 = vpop.permute.xlu0 %7935
    %7963 = vrot.lane.b32.xlu0 %v5155, 64
    %v7964 = vpop.permute.xlu0 %7963
    %7965 = vrot.lane.b32.xlu0 %v5156, 64
    %v7966 = vpop.permute.xlu0 %7965
    %7967 = vrot.lane.b32.xlu0 %v5157, 64
    %v7968 = vpop.permute.xlu0 %7967
    %7969 = vrot.lane.b32.xlu0 %v5158, 64
    %v7970 = vpop.permute.xlu0 %7969
    %7971 = vrot.lane.b32.xlu0 %v5159, 64
    %v7972 = vpop.permute.xlu0 %7971
    %7973 = vrot.lane.b32.xlu0 %v5160, 64
    %v7974 = vpop.permute.xlu0 %7973
    %7975 = vrot.lane.b32.xlu0 %v5161, 64
    %v7976 = vpop.permute.xlu0 %7975
    %7977 = vrot.lane.b32.xlu0 %v5162, 64
    %v7978 = vpop.permute.xlu0 %7977
    %7979 = vrot.lane.b32.xlu0 %v5163, 64
    %v7980 = vpop.permute.xlu0 %7979
    %7981 = vrot.lane.b32.xlu0 %v5164, 64
    %v7982 = vpop.permute.xlu0 %7981
    %7983 = vrot.lane.b32.xlu0 %v5165, 64
    %v7984 = vpop.permute.xlu0 %7983
    %7985 = vrot.lane.b32.xlu0 %v5166, 64
    %v7986 = vpop.permute.xlu0 %7985
    %7987 = vrot.lane.b32.xlu0 %v5167, 64
    %v7988 = vpop.permute.xlu0 %7987
    %8015 = vrot.lane.b32.xlu0 %v5220, 96
    %v8016 = vpop.permute.xlu0 %8015
    %8017 = vrot.lane.b32.xlu0 %v5221, 96
    %v8018 = vpop.permute.xlu0 %8017
    %8019 = vrot.lane.b32.xlu0 %v5222, 96
    %v8020 = vpop.permute.xlu0 %8019
    %8021 = vrot.lane.b32.xlu0 %v5223, 96
    %v8022 = vpop.permute.xlu0 %8021
    %8023 = vrot.lane.b32.xlu0 %v5224, 96
    %v8024 = vpop.permute.xlu0 %8023
    %8025 = vrot.lane.b32.xlu0 %v5225, 96
    %v8026 = vpop.permute.xlu0 %8025
    %8027 = vrot.lane.b32.xlu0 %v5226, 96
    %v8028 = vpop.permute.xlu0 %8027
    %8029 = vrot.lane.b32.xlu0 %v5227, 96
    %v8030 = vpop.permute.xlu0 %8029
    %8031 = vrot.lane.b32.xlu0 %v5228, 96
    %v8032 = vpop.permute.xlu0 %8031
    %8033 = vrot.lane.b32.xlu0 %v5229, 96
    %v8034 = vpop.permute.xlu0 %8033
    %8035 = vrot.lane.b32.xlu0 %v5230, 96
    %v8036 = vpop.permute.xlu0 %8035
    %8037 = vrot.lane.b32.xlu0 %v5231, 96
    %v8038 = vpop.permute.xlu0 %8037
    %8039 = vrot.lane.b32.xlu0 %v5232, 96
    %v8040 = vpop.permute.xlu0 %8039
    %8067 = vrot.lane.b32.xlu0 %v5350, 32
    %v8068 = vpop.permute.xlu0 %8067
    %8069 = vrot.lane.b32.xlu0 %v5351, 32
    %v8070 = vpop.permute.xlu0 %8069
    %8071 = vrot.lane.b32.xlu0 %v5352, 32
    %v8072 = vpop.permute.xlu0 %8071
    %8073 = vrot.lane.b32.xlu0 %v5353, 32
    %v8074 = vpop.permute.xlu0 %8073
    %8075 = vrot.lane.b32.xlu0 %v5354, 32
    %v8076 = vpop.permute.xlu0 %8075
    %8077 = vrot.lane.b32.xlu0 %v5355, 32
    %v8078 = vpop.permute.xlu0 %8077
    %8079 = vrot.lane.b32.xlu0 %v5356, 32
    %v8080 = vpop.permute.xlu0 %8079
    %8081 = vrot.lane.b32.xlu0 %v5357, 32
    %v8082 = vpop.permute.xlu0 %8081
    %8083 = vrot.lane.b32.xlu0 %v5358, 32
    %v8084 = vpop.permute.xlu0 %8083
    %8085 = vrot.lane.b32.xlu0 %v5359, 32
    %v8086 = vpop.permute.xlu0 %8085
    %8087 = vrot.lane.b32.xlu0 %v5360, 32
    %v8088 = vpop.permute.xlu0 %8087
    %8089 = vrot.lane.b32.xlu0 %v5361, 32
    %v8090 = vpop.permute.xlu0 %8089
    %8091 = vrot.lane.b32.xlu0 %v5362, 32
    %v8092 = vpop.permute.xlu0 %8091
    %8119 = vrot.lane.b32.xlu0 %v5415, 64
    %v8120 = vpop.permute.xlu0 %8119
    %8121 = vrot.lane.b32.xlu0 %v5416, 64
    %v8122 = vpop.permute.xlu0 %8121
    %8123 = vrot.lane.b32.xlu0 %v5417, 64
    %v8124 = vpop.permute.xlu0 %8123
    %8125 = vrot.lane.b32.xlu0 %v5418, 64
    %v8126 = vpop.permute.xlu0 %8125
    %8127 = vrot.lane.b32.xlu0 %v5419, 64
    %v8128 = vpop.permute.xlu0 %8127
    %8129 = vrot.lane.b32.xlu0 %v5420, 64
    %v8130 = vpop.permute.xlu0 %8129
    %8131 = vrot.lane.b32.xlu0 %v5421, 64
    %v8132 = vpop.permute.xlu0 %8131
    %8133 = vrot.lane.b32.xlu0 %v5422, 64
    %v8134 = vpop.permute.xlu0 %8133
    %8135 = vrot.lane.b32.xlu0 %v5423, 64
    %v8136 = vpop.permute.xlu0 %8135
    %8137 = vrot.lane.b32.xlu0 %v5424, 64
    %v8138 = vpop.permute.xlu0 %8137
    %8139 = vrot.lane.b32.xlu0 %v5425, 64
    %v8140 = vpop.permute.xlu0 %8139
    %8141 = vrot.lane.b32.xlu0 %v5426, 64
    %v8142 = vpop.permute.xlu0 %8141
    %8143 = vrot.lane.b32.xlu0 %v5427, 64
    %v8144 = vpop.permute.xlu0 %8143
    %8171 = vrot.lane.b32.xlu0 %v5480, 96
    %v8172 = vpop.permute.xlu0 %8171
    %8173 = vrot.lane.b32.xlu0 %v5481, 96
    %v8174 = vpop.permute.xlu0 %8173
    %8175 = vrot.lane.b32.xlu0 %v5482, 96
    %v8176 = vpop.permute.xlu0 %8175
    %8177 = vrot.lane.b32.xlu0 %v5483, 96
    %v8178 = vpop.permute.xlu0 %8177
    %8179 = vrot.lane.b32.xlu0 %v5484, 96
    %v8180 = vpop.permute.xlu0 %8179
    %8181 = vrot.lane.b32.xlu0 %v5485, 96
    %v8182 = vpop.permute.xlu0 %8181
    %8183 = vrot.lane.b32.xlu0 %v5486, 96
    %v8184 = vpop.permute.xlu0 %8183
    %8185 = vrot.lane.b32.xlu0 %v5487, 96
    %v8186 = vpop.permute.xlu0 %8185
    %8187 = vrot.lane.b32.xlu0 %v5488, 96
    %v8188 = vpop.permute.xlu0 %8187
    %8189 = vrot.lane.b32.xlu0 %v5489, 96
    %v8190 = vpop.permute.xlu0 %8189
    %8191 = vrot.lane.b32.xlu0 %v5490, 96
    %v8192 = vpop.permute.xlu0 %8191
    %8193 = vrot.lane.b32.xlu0 %v5491, 96
    %v8194 = vpop.permute.xlu0 %8193
    %8195 = vrot.lane.b32.xlu0 %v5492, 96
    %v8196 = vpop.permute.xlu0 %8195
    %8223 = vrot.lane.b32.xlu0 %v5610, 32
    %v8224 = vpop.permute.xlu0 %8223
    %8225 = vrot.lane.b32.xlu0 %v5611, 32
    %v8226 = vpop.permute.xlu0 %8225
    %8227 = vrot.lane.b32.xlu0 %v5612, 32
    %v8228 = vpop.permute.xlu0 %8227
    %8229 = vrot.lane.b32.xlu0 %v5613, 32
    %v8230 = vpop.permute.xlu0 %8229
    %8231 = vrot.lane.b32.xlu0 %v5614, 32
    %v8232 = vpop.permute.xlu0 %8231
    %8233 = vrot.lane.b32.xlu0 %v5615, 32
    %v8234 = vpop.permute.xlu0 %8233
    %8235 = vrot.lane.b32.xlu0 %v5616, 32
    %v8236 = vpop.permute.xlu0 %8235
    %8237 = vrot.lane.b32.xlu0 %v5617, 32
    %v8238 = vpop.permute.xlu0 %8237
    %8239 = vrot.lane.b32.xlu0 %v5618, 32
    %v8240 = vpop.permute.xlu0 %8239
    %8241 = vrot.lane.b32.xlu0 %v5619, 32
    %v8242 = vpop.permute.xlu0 %8241
    %8243 = vrot.lane.b32.xlu0 %v5620, 32
    %v8244 = vpop.permute.xlu0 %8243
    %8245 = vrot.lane.b32.xlu0 %v5621, 32
    %v8246 = vpop.permute.xlu0 %8245
    %8247 = vrot.lane.b32.xlu0 %v5622, 32
    %v8248 = vpop.permute.xlu0 %8247
    %8275 = vrot.lane.b32.xlu0 %v5675, 64
    %v8276 = vpop.permute.xlu0 %8275
    %8277 = vrot.lane.b32.xlu0 %v5676, 64
    %v8278 = vpop.permute.xlu0 %8277
    %8279 = vrot.lane.b32.xlu0 %v5677, 64
    %v8280 = vpop.permute.xlu0 %8279
    %8281 = vrot.lane.b32.xlu0 %v5678, 64
    %v8282 = vpop.permute.xlu0 %8281
    %8283 = vrot.lane.b32.xlu0 %v5679, 64
    %v8284 = vpop.permute.xlu0 %8283
    %8285 = vrot.lane.b32.xlu0 %v5680, 64
    %v8286 = vpop.permute.xlu0 %8285
    %8287 = vrot.lane.b32.xlu0 %v5681, 64
    %v8288 = vpop.permute.xlu0 %8287
    %8289 = vrot.lane.b32.xlu0 %v5682, 64
    %v8290 = vpop.permute.xlu0 %8289
    %8291 = vrot.lane.b32.xlu0 %v5683, 64
    %v8292 = vpop.permute.xlu0 %8291
    %8293 = vrot.lane.b32.xlu0 %v5684, 64
    %v8294 = vpop.permute.xlu0 %8293
    %8295 = vrot.lane.b32.xlu0 %v5685, 64
    %v8296 = vpop.permute.xlu0 %8295
    %8297 = vrot.lane.b32.xlu0 %v5686, 64
    %v8298 = vpop.permute.xlu0 %8297
    %8299 = vrot.lane.b32.xlu0 %v5687, 64
    %v8300 = vpop.permute.xlu0 %8299
    %8327 = vrot.lane.b32.xlu0 %v5740, 96
    %v8328 = vpop.permute.xlu0 %8327
    %8329 = vrot.lane.b32.xlu0 %v5741, 96
    %v8330 = vpop.permute.xlu0 %8329
    %8331 = vrot.lane.b32.xlu0 %v5742, 96
    %v8332 = vpop.permute.xlu0 %8331
    %8333 = vrot.lane.b32.xlu0 %v5743, 96
    %v8334 = vpop.permute.xlu0 %8333
    %8335 = vrot.lane.b32.xlu0 %v5744, 96
    %v8336 = vpop.permute.xlu0 %8335
    %8337 = vrot.lane.b32.xlu0 %v5745, 96
    %v8338 = vpop.permute.xlu0 %8337
    %8339 = vrot.lane.b32.xlu0 %v5746, 96
    %v8340 = vpop.permute.xlu0 %8339
    %8341 = vrot.lane.b32.xlu0 %v5747, 96
    %v8342 = vpop.permute.xlu0 %8341
    %8343 = vrot.lane.b32.xlu0 %v5748, 96
    %v8344 = vpop.permute.xlu0 %8343
    %8345 = vrot.lane.b32.xlu0 %v5749, 96
    %v8346 = vpop.permute.xlu0 %8345
    %8347 = vrot.lane.b32.xlu0 %v5750, 96
    %v8348 = vpop.permute.xlu0 %8347
    %8349 = vrot.lane.b32.xlu0 %v5751, 96
    %v8350 = vpop.permute.xlu0 %8349
    %8351 = vrot.lane.b32.xlu0 %v5752, 96
    %v8352 = vpop.permute.xlu0 %8351
    %8379 = vrot.lane.b32.xlu0 %v5870, 32
    %v8380 = vpop.permute.xlu0 %8379
    %8381 = vrot.lane.b32.xlu0 %v5871, 32
    %v8382 = vpop.permute.xlu0 %8381
    %8383 = vrot.lane.b32.xlu0 %v5872, 32
    %v8384 = vpop.permute.xlu0 %8383
    %8385 = vrot.lane.b32.xlu0 %v5873, 32
    %v8386 = vpop.permute.xlu0 %8385
    %8387 = vrot.lane.b32.xlu0 %v5874, 32
    %v8388 = vpop.permute.xlu0 %8387
    %8389 = vrot.lane.b32.xlu0 %v5875, 32
    %v8390 = vpop.permute.xlu0 %8389
    %8391 = vrot.lane.b32.xlu0 %v5876, 32
    %v8392 = vpop.permute.xlu0 %8391
    %8393 = vrot.lane.b32.xlu0 %v5877, 32
    %v8394 = vpop.permute.xlu0 %8393
    %8395 = vrot.lane.b32.xlu0 %v5878, 32
    %v8396 = vpop.permute.xlu0 %8395
    %8397 = vrot.lane.b32.xlu0 %v5879, 32
    %v8398 = vpop.permute.xlu0 %8397
    %8399 = vrot.lane.b32.xlu0 %v5880, 32
    %v8400 = vpop.permute.xlu0 %8399
    %8401 = vrot.lane.b32.xlu0 %v5881, 32
    %v8402 = vpop.permute.xlu0 %8401
    %8403 = vrot.lane.b32.xlu0 %v5882, 32
    %v8404 = vpop.permute.xlu0 %8403
    %8431 = vrot.lane.b32.xlu0 %v5935, 64
    %v8432 = vpop.permute.xlu0 %8431
    %8433 = vrot.lane.b32.xlu0 %v5936, 64
    %v8434 = vpop.permute.xlu0 %8433
    %8435 = vrot.lane.b32.xlu0 %v5937, 64
    %v8436 = vpop.permute.xlu0 %8435
    %8437 = vrot.lane.b32.xlu0 %v5938, 64
    %v8438 = vpop.permute.xlu0 %8437
    %8439 = vrot.lane.b32.xlu0 %v5939, 64
    %v8440 = vpop.permute.xlu0 %8439
    %8441 = vrot.lane.b32.xlu0 %v5940, 64
    %v8442 = vpop.permute.xlu0 %8441
    %8443 = vrot.lane.b32.xlu0 %v5941, 64
    %v8444 = vpop.permute.xlu0 %8443
    %8445 = vrot.lane.b32.xlu0 %v5942, 64
    %v8446 = vpop.permute.xlu0 %8445
    %8447 = vrot.lane.b32.xlu0 %v5943, 64
    %v8448 = vpop.permute.xlu0 %8447
    %8449 = vrot.lane.b32.xlu0 %v5944, 64
    %v8450 = vpop.permute.xlu0 %8449
    %8451 = vrot.lane.b32.xlu0 %v5945, 64
    %v8452 = vpop.permute.xlu0 %8451
    %8453 = vrot.lane.b32.xlu0 %v5946, 64
    %v8454 = vpop.permute.xlu0 %8453
    %8455 = vrot.lane.b32.xlu0 %v5947, 64
    %v8456 = vpop.permute.xlu0 %8455
    %8483 = vrot.lane.b32.xlu0 %v6000, 96
    %v8484 = vpop.permute.xlu0 %8483
    %8485 = vrot.lane.b32.xlu0 %v6001, 96
    %v8486 = vpop.permute.xlu0 %8485
    %8487 = vrot.lane.b32.xlu0 %v6002, 96
    %v8488 = vpop.permute.xlu0 %8487
    %8489 = vrot.lane.b32.xlu0 %v6003, 96
    %v8490 = vpop.permute.xlu0 %8489
    %8491 = vrot.lane.b32.xlu0 %v6004, 96
    %v8492 = vpop.permute.xlu0 %8491
    %8493 = vrot.lane.b32.xlu0 %v6005, 96
    %v8494 = vpop.permute.xlu0 %8493
    %8495 = vrot.lane.b32.xlu0 %v6006, 96
    %v8496 = vpop.permute.xlu0 %8495
    %8497 = vrot.lane.b32.xlu0 %v6007, 96
    %v8498 = vpop.permute.xlu0 %8497
    %8499 = vrot.lane.b32.xlu0 %v6008, 96
    %v8500 = vpop.permute.xlu0 %8499
    %8501 = vrot.lane.b32.xlu0 %v6009, 96
    %v8502 = vpop.permute.xlu0 %8501
    %8503 = vrot.lane.b32.xlu0 %v6010, 96
    %v8504 = vpop.permute.xlu0 %8503
    %8505 = vrot.lane.b32.xlu0 %v6011, 96
    %v8506 = vpop.permute.xlu0 %8505
    %8507 = vrot.lane.b32.xlu0 %v6012, 96
    %v8508 = vpop.permute.xlu0 %8507
    %v8522 = vsel %vm1511, %v5025, %v7912
    %v8523 = vsel %vm1511, %v5026, %v7914
    %v8524 = vsel %vm1511, %v5027, %v7916
    %v8525 = vsel %vm1511, %v5028, %v7918
    %v8526 = vsel %vm1511, %v5029, %v7920
    %v8527 = vsel %vm1511, %v5030, %v7922
    %v8528 = vsel %vm1511, %v5031, %v7924
    %v8529 = vsel %vm1511, %v5032, %v7926
    %v8530 = vsel %vm1511, %v5033, %v7928
    %v8531 = vsel %vm1511, %v5034, %v7930
    %v8532 = vsel %vm1511, %v5035, %v7932
    %v8533 = vsel %vm1511, %v5036, %v7934
    %v8534 = vsel %vm1511, %v5037, %v7936
    %v8535 = vsel %vm2324, %v8522, %v7964
    %v8536 = vsel %vm2324, %v8523, %v7966
    %v8537 = vsel %vm2324, %v8524, %v7968
    %v8538 = vsel %vm2324, %v8525, %v7970
    %v8539 = vsel %vm2324, %v8526, %v7972
    %v8540 = vsel %vm2324, %v8527, %v7974
    %v8541 = vsel %vm2324, %v8528, %v7976
    %v8542 = vsel %vm2324, %v8529, %v7978
    %v8543 = vsel %vm2324, %v8530, %v7980
    %v8544 = vsel %vm2324, %v8531, %v7982
    %v8545 = vsel %vm2324, %v8532, %v7984
    %v8546 = vsel %vm2324, %v8533, %v7986
    %v8547 = vsel %vm2324, %v8534, %v7988
    %v8548 = vsel %vm2338, %v8535, %v8016
    %v8549 = vsel %vm2338, %v8536, %v8018
    %v8550 = vsel %vm2338, %v8537, %v8020
    %v8551 = vsel %vm2338, %v8538, %v8022
    %v8552 = vsel %vm2338, %v8539, %v8024
    %v8553 = vsel %vm2338, %v8540, %v8026
    %v8554 = vsel %vm2338, %v8541, %v8028
    %v8555 = vsel %vm2338, %v8542, %v8030
    %v8556 = vsel %vm2338, %v8543, %v8032
    %v8557 = vsel %vm2338, %v8544, %v8034
    %v8558 = vsel %vm2338, %v8545, %v8036
    %v8559 = vsel %vm2338, %v8546, %v8038
    %v8560 = vsel %vm2338, %v8547, %v8040
    %v8561 = vsel %vm1511, %v5285, %v8068
    %v8562 = vsel %vm1511, %v5286, %v8070
    %v8563 = vsel %vm1511, %v5287, %v8072
    %v8564 = vsel %vm1511, %v5288, %v8074
    %v8565 = vsel %vm1511, %v5289, %v8076
    %v8566 = vsel %vm1511, %v5290, %v8078
    %v8567 = vsel %vm1511, %v5291, %v8080
    %v8568 = vsel %vm1511, %v5292, %v8082
    %v8569 = vsel %vm1511, %v5293, %v8084
    %v8570 = vsel %vm1511, %v5294, %v8086
    %v8571 = vsel %vm1511, %v5295, %v8088
    %v8572 = vsel %vm1511, %v5296, %v8090
    %v8573 = vsel %vm1511, %v5297, %v8092
    %v8574 = vsel %vm2324, %v8561, %v8120
    %v8575 = vsel %vm2324, %v8562, %v8122
    %v8576 = vsel %vm2324, %v8563, %v8124
    %v8577 = vsel %vm2324, %v8564, %v8126
    %v8578 = vsel %vm2324, %v8565, %v8128
    %v8579 = vsel %vm2324, %v8566, %v8130
    %v8580 = vsel %vm2324, %v8567, %v8132
    %v8581 = vsel %vm2324, %v8568, %v8134
    %v8582 = vsel %vm2324, %v8569, %v8136
    %v8583 = vsel %vm2324, %v8570, %v8138
    %v8584 = vsel %vm2324, %v8571, %v8140
    %v8585 = vsel %vm2324, %v8572, %v8142
    %v8586 = vsel %vm2324, %v8573, %v8144
    %v8587 = vsel %vm2338, %v8574, %v8172
    %v8588 = vsel %vm2338, %v8575, %v8174
    %v8589 = vsel %vm2338, %v8576, %v8176
    %v8590 = vsel %vm2338, %v8577, %v8178
    %v8591 = vsel %vm2338, %v8578, %v8180
    %v8592 = vsel %vm2338, %v8579, %v8182
    %v8593 = vsel %vm2338, %v8580, %v8184
    %v8594 = vsel %vm2338, %v8581, %v8186
    %v8595 = vsel %vm2338, %v8582, %v8188
    %v8596 = vsel %vm2338, %v8583, %v8190
    %v8597 = vsel %vm2338, %v8584, %v8192
    %v8598 = vsel %vm2338, %v8585, %v8194
    %v8599 = vsel %vm2338, %v8586, %v8196
    %v8600 = vsel %vm1511, %v5545, %v8224
    %v8601 = vsel %vm1511, %v5546, %v8226
    %v8602 = vsel %vm1511, %v5547, %v8228
    %v8603 = vsel %vm1511, %v5548, %v8230
    %v8604 = vsel %vm1511, %v5549, %v8232
    %v8605 = vsel %vm1511, %v5550, %v8234
    %v8606 = vsel %vm1511, %v5551, %v8236
    %v8607 = vsel %vm1511, %v5552, %v8238
    %v8608 = vsel %vm1511, %v5553, %v8240
    %v8609 = vsel %vm1511, %v5554, %v8242
    %v8610 = vsel %vm1511, %v5555, %v8244
    %v8611 = vsel %vm1511, %v5556, %v8246
    %v8612 = vsel %vm1511, %v5557, %v8248
    %v8613 = vsel %vm2324, %v8600, %v8276
    %v8614 = vsel %vm2324, %v8601, %v8278
    %v8615 = vsel %vm2324, %v8602, %v8280
    %v8616 = vsel %vm2324, %v8603, %v8282
    %v8617 = vsel %vm2324, %v8604, %v8284
    %v8618 = vsel %vm2324, %v8605, %v8286
    %v8619 = vsel %vm2324, %v8606, %v8288
    %v8620 = vsel %vm2324, %v8607, %v8290
    %v8621 = vsel %vm2324, %v8608, %v8292
    %v8622 = vsel %vm2324, %v8609, %v8294
    %v8623 = vsel %vm2324, %v8610, %v8296
    %v8624 = vsel %vm2324, %v8611, %v8298
    %v8625 = vsel %vm2324, %v8612, %v8300
    %v8626 = vsel %vm2338, %v8613, %v8328
    %v8627 = vsel %vm2338, %v8614, %v8330
    %v8628 = vsel %vm2338, %v8615, %v8332
    %v8629 = vsel %vm2338, %v8616, %v8334
    %v8630 = vsel %vm2338, %v8617, %v8336
    %v8631 = vsel %vm2338, %v8618, %v8338
    %v8632 = vsel %vm2338, %v8619, %v8340
    %v8633 = vsel %vm2338, %v8620, %v8342
    %v8634 = vsel %vm2338, %v8621, %v8344
    %v8635 = vsel %vm2338, %v8622, %v8346
    %v8636 = vsel %vm2338, %v8623, %v8348
    %v8637 = vsel %vm2338, %v8624, %v8350
    %v8638 = vsel %vm2338, %v8625, %v8352
    %v8639 = vsel %vm1511, %v5805, %v8380
    %v8640 = vsel %vm1511, %v5806, %v8382
    %v8641 = vsel %vm1511, %v5807, %v8384
    %v8642 = vsel %vm1511, %v5808, %v8386
    %v8643 = vsel %vm1511, %v5809, %v8388
    %v8644 = vsel %vm1511, %v5810, %v8390
    %v8645 = vsel %vm1511, %v5811, %v8392
    %v8646 = vsel %vm1511, %v5812, %v8394
    %v8647 = vsel %vm1511, %v5813, %v8396
    %v8648 = vsel %vm1511, %v5814, %v8398
    %v8649 = vsel %vm1511, %v5815, %v8400
    %v8650 = vsel %vm1511, %v5816, %v8402
    %v8651 = vsel %vm1511, %v5817, %v8404
    %v8652 = vsel %vm2324, %v8639, %v8432
    %v8653 = vsel %vm2324, %v8640, %v8434
    %v8654 = vsel %vm2324, %v8641, %v8436
    %v8655 = vsel %vm2324, %v8642, %v8438
    %v8656 = vsel %vm2324, %v8643, %v8440
    %v8657 = vsel %vm2324, %v8644, %v8442
    %v8658 = vsel %vm2324, %v8645, %v8444
    %v8659 = vsel %vm2324, %v8646, %v8446
    %v8660 = vsel %vm2324, %v8647, %v8448
    %v8661 = vsel %vm2324, %v8648, %v8450
    %v8662 = vsel %vm2324, %v8649, %v8452
    %v8663 = vsel %vm2324, %v8650, %v8454
    %v8664 = vsel %vm2324, %v8651, %v8456
    %v8665 = vsel %vm2338, %v8652, %v8484
    %v8666 = vsel %vm2338, %v8653, %v8486
    %v8667 = vsel %vm2338, %v8654, %v8488
    %v8668 = vsel %vm2338, %v8655, %v8490
    %v8669 = vsel %vm2338, %v8656, %v8492
    %v8670 = vsel %vm2338, %v8657, %v8494
    %v8671 = vsel %vm2338, %v8658, %v8496
    %v8672 = vsel %vm2338, %v8659, %v8498
    %v8673 = vsel %vm2338, %v8660, %v8500
    %v8674 = vsel %vm2338, %v8661, %v8502
    %v8675 = vsel %vm2338, %v8662, %v8504
    %v8676 = vsel %vm2338, %v8663, %v8506
    %v8677 = vsel %vm2338, %v8664, %v8508
    %8691 = vrot.lane.b32.xlu0 %v6130, 32
    %v8692 = vpop.permute.xlu0 %8691
    %8693 = vrot.lane.b32.xlu0 %v6131, 32
    %v8694 = vpop.permute.xlu0 %8693
    %8695 = vrot.lane.b32.xlu0 %v6132, 32
    %v8696 = vpop.permute.xlu0 %8695
    %8697 = vrot.lane.b32.xlu0 %v6133, 32
    %v8698 = vpop.permute.xlu0 %8697
    %8699 = vrot.lane.b32.xlu0 %v6134, 32
    %v8700 = vpop.permute.xlu0 %8699
    %8701 = vrot.lane.b32.xlu0 %v6135, 32
    %v8702 = vpop.permute.xlu0 %8701
    %8703 = vrot.lane.b32.xlu0 %v6136, 32
    %v8704 = vpop.permute.xlu0 %8703
    %8705 = vrot.lane.b32.xlu0 %v6137, 32
    %v8706 = vpop.permute.xlu0 %8705
    %8707 = vrot.lane.b32.xlu0 %v6138, 32
    %v8708 = vpop.permute.xlu0 %8707
    %8709 = vrot.lane.b32.xlu0 %v6139, 32
    %v8710 = vpop.permute.xlu0 %8709
    %8711 = vrot.lane.b32.xlu0 %v6140, 32
    %v8712 = vpop.permute.xlu0 %8711
    %8713 = vrot.lane.b32.xlu0 %v6141, 32
    %v8714 = vpop.permute.xlu0 %8713
    %8715 = vrot.lane.b32.xlu0 %v6142, 32
    %v8716 = vpop.permute.xlu0 %8715
    %8743 = vrot.lane.b32.xlu0 %v6195, 64
    %v8744 = vpop.permute.xlu0 %8743
    %8745 = vrot.lane.b32.xlu0 %v6196, 64
    %v8746 = vpop.permute.xlu0 %8745
    %8747 = vrot.lane.b32.xlu0 %v6197, 64
    %v8748 = vpop.permute.xlu0 %8747
    %8749 = vrot.lane.b32.xlu0 %v6198, 64
    %v8750 = vpop.permute.xlu0 %8749
    %8751 = vrot.lane.b32.xlu0 %v6199, 64
    %v8752 = vpop.permute.xlu0 %8751
    %8753 = vrot.lane.b32.xlu0 %v6200, 64
    %v8754 = vpop.permute.xlu0 %8753
    %8755 = vrot.lane.b32.xlu0 %v6201, 64
    %v8756 = vpop.permute.xlu0 %8755
    %8757 = vrot.lane.b32.xlu0 %v6202, 64
    %v8758 = vpop.permute.xlu0 %8757
    %8759 = vrot.lane.b32.xlu0 %v6203, 64
    %v8760 = vpop.permute.xlu0 %8759
    %8761 = vrot.lane.b32.xlu0 %v6204, 64
    %v8762 = vpop.permute.xlu0 %8761
    %8763 = vrot.lane.b32.xlu0 %v6205, 64
    %v8764 = vpop.permute.xlu0 %8763
    %8765 = vrot.lane.b32.xlu0 %v6206, 64
    %v8766 = vpop.permute.xlu0 %8765
    %8767 = vrot.lane.b32.xlu0 %v6207, 64
    %v8768 = vpop.permute.xlu0 %8767
    %8795 = vrot.lane.b32.xlu0 %v6260, 96
    %v8796 = vpop.permute.xlu0 %8795
    %8797 = vrot.lane.b32.xlu0 %v6261, 96
    %v8798 = vpop.permute.xlu0 %8797
    %8799 = vrot.lane.b32.xlu0 %v6262, 96
    %v8800 = vpop.permute.xlu0 %8799
    %8801 = vrot.lane.b32.xlu0 %v6263, 96
    %v8802 = vpop.permute.xlu0 %8801
    %8803 = vrot.lane.b32.xlu0 %v6264, 96
    %v8804 = vpop.permute.xlu0 %8803
    %8805 = vrot.lane.b32.xlu0 %v6265, 96
    %v8806 = vpop.permute.xlu0 %8805
    %8807 = vrot.lane.b32.xlu0 %v6266, 96
    %v8808 = vpop.permute.xlu0 %8807
    %8809 = vrot.lane.b32.xlu0 %v6267, 96
    %v8810 = vpop.permute.xlu0 %8809
    %8811 = vrot.lane.b32.xlu0 %v6268, 96
    %v8812 = vpop.permute.xlu0 %8811
    %8813 = vrot.lane.b32.xlu0 %v6269, 96
    %v8814 = vpop.permute.xlu0 %8813
    %8815 = vrot.lane.b32.xlu0 %v6270, 96
    %v8816 = vpop.permute.xlu0 %8815
    %8817 = vrot.lane.b32.xlu0 %v6271, 96
    %v8818 = vpop.permute.xlu0 %8817
    %8819 = vrot.lane.b32.xlu0 %v6272, 96
    %v8820 = vpop.permute.xlu0 %8819
    %8847 = vrot.lane.b32.xlu0 %v6390, 32
    %v8848 = vpop.permute.xlu0 %8847
    %8849 = vrot.lane.b32.xlu0 %v6391, 32
    %v8850 = vpop.permute.xlu0 %8849
    %8851 = vrot.lane.b32.xlu0 %v6392, 32
    %v8852 = vpop.permute.xlu0 %8851
    %8853 = vrot.lane.b32.xlu0 %v6393, 32
    %v8854 = vpop.permute.xlu0 %8853
    %8855 = vrot.lane.b32.xlu0 %v6394, 32
    %v8856 = vpop.permute.xlu0 %8855
    %8857 = vrot.lane.b32.xlu0 %v6395, 32
    %v8858 = vpop.permute.xlu0 %8857
    %8859 = vrot.lane.b32.xlu0 %v6396, 32
    %v8860 = vpop.permute.xlu0 %8859
    %8861 = vrot.lane.b32.xlu0 %v6397, 32
    %v8862 = vpop.permute.xlu0 %8861
    %8863 = vrot.lane.b32.xlu0 %v6398, 32
    %v8864 = vpop.permute.xlu0 %8863
    %8865 = vrot.lane.b32.xlu0 %v6399, 32
    %v8866 = vpop.permute.xlu0 %8865
    %8867 = vrot.lane.b32.xlu0 %v6400, 32
    %v8868 = vpop.permute.xlu0 %8867
    %8869 = vrot.lane.b32.xlu0 %v6401, 32
    %v8870 = vpop.permute.xlu0 %8869
    %8871 = vrot.lane.b32.xlu0 %v6402, 32
    %v8872 = vpop.permute.xlu0 %8871
    %8899 = vrot.lane.b32.xlu0 %v6455, 64
    %v8900 = vpop.permute.xlu0 %8899
    %8901 = vrot.lane.b32.xlu0 %v6456, 64
    %v8902 = vpop.permute.xlu0 %8901
    %8903 = vrot.lane.b32.xlu0 %v6457, 64
    %v8904 = vpop.permute.xlu0 %8903
    %8905 = vrot.lane.b32.xlu0 %v6458, 64
    %v8906 = vpop.permute.xlu0 %8905
    %8907 = vrot.lane.b32.xlu0 %v6459, 64
    %v8908 = vpop.permute.xlu0 %8907
    %8909 = vrot.lane.b32.xlu0 %v6460, 64
    %v8910 = vpop.permute.xlu0 %8909
    %8911 = vrot.lane.b32.xlu0 %v6461, 64
    %v8912 = vpop.permute.xlu0 %8911
    %8913 = vrot.lane.b32.xlu0 %v6462, 64
    %v8914 = vpop.permute.xlu0 %8913
    %8915 = vrot.lane.b32.xlu0 %v6463, 64
    %v8916 = vpop.permute.xlu0 %8915
    %8917 = vrot.lane.b32.xlu0 %v6464, 64
    %v8918 = vpop.permute.xlu0 %8917
    %8919 = vrot.lane.b32.xlu0 %v6465, 64
    %v8920 = vpop.permute.xlu0 %8919
    %8921 = vrot.lane.b32.xlu0 %v6466, 64
    %v8922 = vpop.permute.xlu0 %8921
    %8923 = vrot.lane.b32.xlu0 %v6467, 64
    %v8924 = vpop.permute.xlu0 %8923
    %8951 = vrot.lane.b32.xlu0 %v6520, 96
    %v8952 = vpop.permute.xlu0 %8951
    %8953 = vrot.lane.b32.xlu0 %v6521, 96
    %v8954 = vpop.permute.xlu0 %8953
    %8955 = vrot.lane.b32.xlu0 %v6522, 96
    %v8956 = vpop.permute.xlu0 %8955
    %8957 = vrot.lane.b32.xlu0 %v6523, 96
    %v8958 = vpop.permute.xlu0 %8957
    %8959 = vrot.lane.b32.xlu0 %v6524, 96
    %v8960 = vpop.permute.xlu0 %8959
    %8961 = vrot.lane.b32.xlu0 %v6525, 96
    %v8962 = vpop.permute.xlu0 %8961
    %8963 = vrot.lane.b32.xlu0 %v6526, 96
    %v8964 = vpop.permute.xlu0 %8963
    %8965 = vrot.lane.b32.xlu0 %v6527, 96
    %v8966 = vpop.permute.xlu0 %8965
    %8967 = vrot.lane.b32.xlu0 %v6528, 96
    %v8968 = vpop.permute.xlu0 %8967
    %8969 = vrot.lane.b32.xlu0 %v6529, 96
    %v8970 = vpop.permute.xlu0 %8969
    %8971 = vrot.lane.b32.xlu0 %v6530, 96
    %v8972 = vpop.permute.xlu0 %8971
    %8973 = vrot.lane.b32.xlu0 %v6531, 96
    %v8974 = vpop.permute.xlu0 %8973
    %8975 = vrot.lane.b32.xlu0 %v6532, 96
    %v8976 = vpop.permute.xlu0 %8975
    %9003 = vrot.lane.b32.xlu0 %v6650, 32
    %v9004 = vpop.permute.xlu0 %9003
    %9005 = vrot.lane.b32.xlu0 %v6651, 32
    %v9006 = vpop.permute.xlu0 %9005
    %9007 = vrot.lane.b32.xlu0 %v6652, 32
    %v9008 = vpop.permute.xlu0 %9007
    %9009 = vrot.lane.b32.xlu0 %v6653, 32
    %v9010 = vpop.permute.xlu0 %9009
    %9011 = vrot.lane.b32.xlu0 %v6654, 32
    %v9012 = vpop.permute.xlu0 %9011
    %9013 = vrot.lane.b32.xlu0 %v6655, 32
    %v9014 = vpop.permute.xlu0 %9013
    %9015 = vrot.lane.b32.xlu0 %v6656, 32
    %v9016 = vpop.permute.xlu0 %9015
    %9017 = vrot.lane.b32.xlu0 %v6657, 32
    %v9018 = vpop.permute.xlu0 %9017
    %9019 = vrot.lane.b32.xlu0 %v6658, 32
    %v9020 = vpop.permute.xlu0 %9019
    %9021 = vrot.lane.b32.xlu0 %v6659, 32
    %v9022 = vpop.permute.xlu0 %9021
    %9023 = vrot.lane.b32.xlu0 %v6660, 32
    %v9024 = vpop.permute.xlu0 %9023
    %9025 = vrot.lane.b32.xlu0 %v6661, 32
    %v9026 = vpop.permute.xlu0 %9025
    %9027 = vrot.lane.b32.xlu0 %v6662, 32
    %v9028 = vpop.permute.xlu0 %9027
    %9055 = vrot.lane.b32.xlu0 %v6715, 64
    %v9056 = vpop.permute.xlu0 %9055
    %9057 = vrot.lane.b32.xlu0 %v6716, 64
    %v9058 = vpop.permute.xlu0 %9057
    %9059 = vrot.lane.b32.xlu0 %v6717, 64
    %v9060 = vpop.permute.xlu0 %9059
    %9061 = vrot.lane.b32.xlu0 %v6718, 64
    %v9062 = vpop.permute.xlu0 %9061
    %9063 = vrot.lane.b32.xlu0 %v6719, 64
    %v9064 = vpop.permute.xlu0 %9063
    %9065 = vrot.lane.b32.xlu0 %v6720, 64
    %v9066 = vpop.permute.xlu0 %9065
    %9067 = vrot.lane.b32.xlu0 %v6721, 64
    %v9068 = vpop.permute.xlu0 %9067
    %9069 = vrot.lane.b32.xlu0 %v6722, 64
    %v9070 = vpop.permute.xlu0 %9069
    %9071 = vrot.lane.b32.xlu0 %v6723, 64
    %v9072 = vpop.permute.xlu0 %9071
    %9073 = vrot.lane.b32.xlu0 %v6724, 64
    %v9074 = vpop.permute.xlu0 %9073
    %9075 = vrot.lane.b32.xlu0 %v6725, 64
    %v9076 = vpop.permute.xlu0 %9075
    %9077 = vrot.lane.b32.xlu0 %v6726, 64
    %v9078 = vpop.permute.xlu0 %9077
    %9079 = vrot.lane.b32.xlu0 %v6727, 64
    %v9080 = vpop.permute.xlu0 %9079
    %9107 = vrot.lane.b32.xlu0 %v6780, 96
    %v9108 = vpop.permute.xlu0 %9107
    %9109 = vrot.lane.b32.xlu0 %v6781, 96
    %v9110 = vpop.permute.xlu0 %9109
    %9111 = vrot.lane.b32.xlu0 %v6782, 96
    %v9112 = vpop.permute.xlu0 %9111
    %9113 = vrot.lane.b32.xlu0 %v6783, 96
    %v9114 = vpop.permute.xlu0 %9113
    %9115 = vrot.lane.b32.xlu0 %v6784, 96
    %v9116 = vpop.permute.xlu0 %9115
    %9117 = vrot.lane.b32.xlu0 %v6785, 96
    %v9118 = vpop.permute.xlu0 %9117
    %9119 = vrot.lane.b32.xlu0 %v6786, 96
    %v9120 = vpop.permute.xlu0 %9119
    %9121 = vrot.lane.b32.xlu0 %v6787, 96
    %v9122 = vpop.permute.xlu0 %9121
    %9123 = vrot.lane.b32.xlu0 %v6788, 96
    %v9124 = vpop.permute.xlu0 %9123
    %9125 = vrot.lane.b32.xlu0 %v6789, 96
    %v9126 = vpop.permute.xlu0 %9125
    %9127 = vrot.lane.b32.xlu0 %v6790, 96
    %v9128 = vpop.permute.xlu0 %9127
    %9129 = vrot.lane.b32.xlu0 %v6791, 96
    %v9130 = vpop.permute.xlu0 %9129
    %9131 = vrot.lane.b32.xlu0 %v6792, 96
    %v9132 = vpop.permute.xlu0 %9131
    %9159 = vrot.lane.b32.xlu0 %v6910, 32
    %v9160 = vpop.permute.xlu0 %9159
    %9161 = vrot.lane.b32.xlu0 %v6911, 32
    %v9162 = vpop.permute.xlu0 %9161
    %9163 = vrot.lane.b32.xlu0 %v6912, 32
    %v9164 = vpop.permute.xlu0 %9163
    %9165 = vrot.lane.b32.xlu0 %v6913, 32
    %v9166 = vpop.permute.xlu0 %9165
    %9167 = vrot.lane.b32.xlu0 %v6914, 32
    %v9168 = vpop.permute.xlu0 %9167
    %9169 = vrot.lane.b32.xlu0 %v6915, 32
    %v9170 = vpop.permute.xlu0 %9169
    %9171 = vrot.lane.b32.xlu0 %v6916, 32
    %v9172 = vpop.permute.xlu0 %9171
    %9173 = vrot.lane.b32.xlu0 %v6917, 32
    %v9174 = vpop.permute.xlu0 %9173
    %9175 = vrot.lane.b32.xlu0 %v6918, 32
    %v9176 = vpop.permute.xlu0 %9175
    %9177 = vrot.lane.b32.xlu0 %v6919, 32
    %v9178 = vpop.permute.xlu0 %9177
    %9179 = vrot.lane.b32.xlu0 %v6920, 32
    %v9180 = vpop.permute.xlu0 %9179
    %9181 = vrot.lane.b32.xlu0 %v6921, 32
    %v9182 = vpop.permute.xlu0 %9181
    %9183 = vrot.lane.b32.xlu0 %v6922, 32
    %v9184 = vpop.permute.xlu0 %9183
    %9211 = vrot.lane.b32.xlu0 %v6975, 64
    %v9212 = vpop.permute.xlu0 %9211
    %9213 = vrot.lane.b32.xlu0 %v6976, 64
    %v9214 = vpop.permute.xlu0 %9213
    %9215 = vrot.lane.b32.xlu0 %v6977, 64
    %v9216 = vpop.permute.xlu0 %9215
    %9217 = vrot.lane.b32.xlu0 %v6978, 64
    %v9218 = vpop.permute.xlu0 %9217
    %9219 = vrot.lane.b32.xlu0 %v6979, 64
    %v9220 = vpop.permute.xlu0 %9219
    %9221 = vrot.lane.b32.xlu0 %v6980, 64
    %v9222 = vpop.permute.xlu0 %9221
    %9223 = vrot.lane.b32.xlu0 %v6981, 64
    %v9224 = vpop.permute.xlu0 %9223
    %9225 = vrot.lane.b32.xlu0 %v6982, 64
    %v9226 = vpop.permute.xlu0 %9225
    %9227 = vrot.lane.b32.xlu0 %v6983, 64
    %v9228 = vpop.permute.xlu0 %9227
    %9229 = vrot.lane.b32.xlu0 %v6984, 64
    %v9230 = vpop.permute.xlu0 %9229
    %9231 = vrot.lane.b32.xlu0 %v6985, 64
    %v9232 = vpop.permute.xlu0 %9231
    %9233 = vrot.lane.b32.xlu0 %v6986, 64
    %v9234 = vpop.permute.xlu0 %9233
    %9235 = vrot.lane.b32.xlu0 %v6987, 64
    %v9236 = vpop.permute.xlu0 %9235
    %9263 = vrot.lane.b32.xlu0 %v7040, 96
    %v9264 = vpop.permute.xlu0 %9263
    %9265 = vrot.lane.b32.xlu0 %v7041, 96
    %v9266 = vpop.permute.xlu0 %9265
    %9267 = vrot.lane.b32.xlu0 %v7042, 96
    %v9268 = vpop.permute.xlu0 %9267
    %9269 = vrot.lane.b32.xlu0 %v7043, 96
    %v9270 = vpop.permute.xlu0 %9269
    %9271 = vrot.lane.b32.xlu0 %v7044, 96
    %v9272 = vpop.permute.xlu0 %9271
    %9273 = vrot.lane.b32.xlu0 %v7045, 96
    %v9274 = vpop.permute.xlu0 %9273
    %9275 = vrot.lane.b32.xlu0 %v7046, 96
    %v9276 = vpop.permute.xlu0 %9275
    %9277 = vrot.lane.b32.xlu0 %v7047, 96
    %v9278 = vpop.permute.xlu0 %9277
    %9279 = vrot.lane.b32.xlu0 %v7048, 96
    %v9280 = vpop.permute.xlu0 %9279
    %9281 = vrot.lane.b32.xlu0 %v7049, 96
    %v9282 = vpop.permute.xlu0 %9281
    %9283 = vrot.lane.b32.xlu0 %v7050, 96
    %v9284 = vpop.permute.xlu0 %9283
    %9285 = vrot.lane.b32.xlu0 %v7051, 96
    %v9286 = vpop.permute.xlu0 %9285
    %9287 = vrot.lane.b32.xlu0 %v7052, 96
    %v9288 = vpop.permute.xlu0 %9287
    %v9302 = vsel %vm1511, %v6065, %v8692
    %v9303 = vsel %vm1511, %v6066, %v8694
    %v9304 = vsel %vm1511, %v6067, %v8696
    %v9305 = vsel %vm1511, %v6068, %v8698
    %v9306 = vsel %vm1511, %v6069, %v8700
    %v9307 = vsel %vm1511, %v6070, %v8702
    %v9308 = vsel %vm1511, %v6071, %v8704
    %v9309 = vsel %vm1511, %v6072, %v8706
    %v9310 = vsel %vm1511, %v6073, %v8708
    %v9311 = vsel %vm1511, %v6074, %v8710
    %v9312 = vsel %vm1511, %v6075, %v8712
    %v9313 = vsel %vm1511, %v6076, %v8714
    %v9314 = vsel %vm1511, %v6077, %v8716
    %v9315 = vsel %vm2324, %v9302, %v8744
    %v9316 = vsel %vm2324, %v9303, %v8746
    %v9317 = vsel %vm2324, %v9304, %v8748
    %v9318 = vsel %vm2324, %v9305, %v8750
    %v9319 = vsel %vm2324, %v9306, %v8752
    %v9320 = vsel %vm2324, %v9307, %v8754
    %v9321 = vsel %vm2324, %v9308, %v8756
    %v9322 = vsel %vm2324, %v9309, %v8758
    %v9323 = vsel %vm2324, %v9310, %v8760
    %v9324 = vsel %vm2324, %v9311, %v8762
    %v9325 = vsel %vm2324, %v9312, %v8764
    %v9326 = vsel %vm2324, %v9313, %v8766
    %v9327 = vsel %vm2324, %v9314, %v8768
    %v9328 = vsel %vm2338, %v9315, %v8796
    %v9329 = vsel %vm2338, %v9316, %v8798
    %v9330 = vsel %vm2338, %v9317, %v8800
    %v9331 = vsel %vm2338, %v9318, %v8802
    %v9332 = vsel %vm2338, %v9319, %v8804
    %v9333 = vsel %vm2338, %v9320, %v8806
    %v9334 = vsel %vm2338, %v9321, %v8808
    %v9335 = vsel %vm2338, %v9322, %v8810
    %v9336 = vsel %vm2338, %v9323, %v8812
    %v9337 = vsel %vm2338, %v9324, %v8814
    %v9338 = vsel %vm2338, %v9325, %v8816
    %v9339 = vsel %vm2338, %v9326, %v8818
    %v9340 = vsel %vm2338, %v9327, %v8820
    %v9341 = vsel %vm1511, %v6325, %v8848
    %v9342 = vsel %vm1511, %v6326, %v8850
    %v9343 = vsel %vm1511, %v6327, %v8852
    %v9344 = vsel %vm1511, %v6328, %v8854
    %v9345 = vsel %vm1511, %v6329, %v8856
    %v9346 = vsel %vm1511, %v6330, %v8858
    %v9347 = vsel %vm1511, %v6331, %v8860
    %v9348 = vsel %vm1511, %v6332, %v8862
    %v9349 = vsel %vm1511, %v6333, %v8864
    %v9350 = vsel %vm1511, %v6334, %v8866
    %v9351 = vsel %vm1511, %v6335, %v8868
    %v9352 = vsel %vm1511, %v6336, %v8870
    %v9353 = vsel %vm1511, %v6337, %v8872
    %v9354 = vsel %vm2324, %v9341, %v8900
    %v9355 = vsel %vm2324, %v9342, %v8902
    %v9356 = vsel %vm2324, %v9343, %v8904
    %v9357 = vsel %vm2324, %v9344, %v8906
    %v9358 = vsel %vm2324, %v9345, %v8908
    %v9359 = vsel %vm2324, %v9346, %v8910
    %v9360 = vsel %vm2324, %v9347, %v8912
    %v9361 = vsel %vm2324, %v9348, %v8914
    %v9362 = vsel %vm2324, %v9349, %v8916
    %v9363 = vsel %vm2324, %v9350, %v8918
    %v9364 = vsel %vm2324, %v9351, %v8920
    %v9365 = vsel %vm2324, %v9352, %v8922
    %v9366 = vsel %vm2324, %v9353, %v8924
    %v9367 = vsel %vm2338, %v9354, %v8952
    %v9368 = vsel %vm2338, %v9355, %v8954
    %v9369 = vsel %vm2338, %v9356, %v8956
    %v9370 = vsel %vm2338, %v9357, %v8958
    %v9371 = vsel %vm2338, %v9358, %v8960
    %v9372 = vsel %vm2338, %v9359, %v8962
    %v9373 = vsel %vm2338, %v9360, %v8964
    %v9374 = vsel %vm2338, %v9361, %v8966
    %v9375 = vsel %vm2338, %v9362, %v8968
    %v9376 = vsel %vm2338, %v9363, %v8970
    %v9377 = vsel %vm2338, %v9364, %v8972
    %v9378 = vsel %vm2338, %v9365, %v8974
    %v9379 = vsel %vm2338, %v9366, %v8976
    %v9380 = vsel %vm1511, %v6585, %v9004
    %v9381 = vsel %vm1511, %v6586, %v9006
    %v9382 = vsel %vm1511, %v6587, %v9008
    %v9383 = vsel %vm1511, %v6588, %v9010
    %v9384 = vsel %vm1511, %v6589, %v9012
    %v9385 = vsel %vm1511, %v6590, %v9014
    %v9386 = vsel %vm1511, %v6591, %v9016
    %v9387 = vsel %vm1511, %v6592, %v9018
    %v9388 = vsel %vm1511, %v6593, %v9020
    %v9389 = vsel %vm1511, %v6594, %v9022
    %v9390 = vsel %vm1511, %v6595, %v9024
    %v9391 = vsel %vm1511, %v6596, %v9026
    %v9392 = vsel %vm1511, %v6597, %v9028
    %v9393 = vsel %vm2324, %v9380, %v9056
    %v9394 = vsel %vm2324, %v9381, %v9058
    %v9395 = vsel %vm2324, %v9382, %v9060
    %v9396 = vsel %vm2324, %v9383, %v9062
    %v9397 = vsel %vm2324, %v9384, %v9064
    %v9398 = vsel %vm2324, %v9385, %v9066
    %v9399 = vsel %vm2324, %v9386, %v9068
    %v9400 = vsel %vm2324, %v9387, %v9070
    %v9401 = vsel %vm2324, %v9388, %v9072
    %v9402 = vsel %vm2324, %v9389, %v9074
    %v9403 = vsel %vm2324, %v9390, %v9076
    %v9404 = vsel %vm2324, %v9391, %v9078
    %v9405 = vsel %vm2324, %v9392, %v9080
    %v9406 = vsel %vm2338, %v9393, %v9108
    %v9407 = vsel %vm2338, %v9394, %v9110
    %v9408 = vsel %vm2338, %v9395, %v9112
    %v9409 = vsel %vm2338, %v9396, %v9114
    %v9410 = vsel %vm2338, %v9397, %v9116
    %v9411 = vsel %vm2338, %v9398, %v9118
    %v9412 = vsel %vm2338, %v9399, %v9120
    %v9413 = vsel %vm2338, %v9400, %v9122
    %v9414 = vsel %vm2338, %v9401, %v9124
    %v9415 = vsel %vm2338, %v9402, %v9126
    %v9416 = vsel %vm2338, %v9403, %v9128
    %v9417 = vsel %vm2338, %v9404, %v9130
    %v9418 = vsel %vm2338, %v9405, %v9132
    %v9419 = vsel %vm1511, %v6845, %v9160
    %v9420 = vsel %vm1511, %v6846, %v9162
    %v9421 = vsel %vm1511, %v6847, %v9164
    %v9422 = vsel %vm1511, %v6848, %v9166
    %v9423 = vsel %vm1511, %v6849, %v9168
    %v9424 = vsel %vm1511, %v6850, %v9170
    %v9425 = vsel %vm1511, %v6851, %v9172
    %v9426 = vsel %vm1511, %v6852, %v9174
    %v9427 = vsel %vm1511, %v6853, %v9176
    %v9428 = vsel %vm1511, %v6854, %v9178
    %v9429 = vsel %vm1511, %v6855, %v9180
    %v9430 = vsel %vm1511, %v6856, %v9182
    %v9431 = vsel %vm1511, %v6857, %v9184
    %v9432 = vsel %vm2324, %v9419, %v9212
    %v9433 = vsel %vm2324, %v9420, %v9214
    %v9434 = vsel %vm2324, %v9421, %v9216
    %v9435 = vsel %vm2324, %v9422, %v9218
    %v9436 = vsel %vm2324, %v9423, %v9220
    %v9437 = vsel %vm2324, %v9424, %v9222
    %v9438 = vsel %vm2324, %v9425, %v9224
    %v9439 = vsel %vm2324, %v9426, %v9226
    %v9440 = vsel %vm2324, %v9427, %v9228
    %v9441 = vsel %vm2324, %v9428, %v9230
    %v9442 = vsel %vm2324, %v9429, %v9232
    %v9443 = vsel %vm2324, %v9430, %v9234
    %v9444 = vsel %vm2324, %v9431, %v9236
    %v9445 = vsel %vm2338, %v9432, %v9264
    %v9446 = vsel %vm2338, %v9433, %v9266
    %v9447 = vsel %vm2338, %v9434, %v9268
    %v9448 = vsel %vm2338, %v9435, %v9270
    %v9449 = vsel %vm2338, %v9436, %v9272
    %v9450 = vsel %vm2338, %v9437, %v9274
    %v9451 = vsel %vm2338, %v9438, %v9276
    %v9452 = vsel %vm2338, %v9439, %v9278
    %v9453 = vsel %vm2338, %v9440, %v9280
    %v9454 = vsel %vm2338, %v9441, %v9282
    %v9455 = vsel %vm2338, %v9442, %v9284
    %v9456 = vsel %vm2338, %v9443, %v9286
    %v9457 = vsel %vm2338, %v9444, %v9288
    %v9458 = vld [vmem:[%s10] sm:$0xf]
    %v9459 = vld [vmem:[%s10 + $0x4] sm:$0xf]
    %v9460 = vld [vmem:[%s10 + $0x8] sm:$0xf]
    %v9461 = vld [vmem:[%s10 + $0xc] sm:$0xf]
    %v9462 = vld [vmem:[%s10 + $0x10] sm:$0xf]
    %v9463 = vld [vmem:[%s10 + $0x14] sm:$0xf]
    %v9464 = vld [vmem:[%s10 + $0x18] sm:$0xf]
    %v9465 = vld [vmem:[%s10 + $0x1c] sm:$0xf]
    %v9466 = vld [vmem:[%s10 + $0x20] sm:$0xf]
    %v9467 = vld [vmem:[%s10 + $0x24] sm:$0xf]
    %v9468 = vld [vmem:[%s10 + $0x28] sm:$0xf]
    %v9469 = vld [vmem:[%s10 + $0x2c] sm:$0xf]
    %v9470 = vld [vmem:[%s10 + $0x30] sm:$0xf]
    %v9471 = vld [vmem:[%s10 + $0x34] sm:$0xf]
    %v9472 = vld [vmem:[%s10 + $0x38] sm:$0xf]
    %v9473 = vld [vmem:[%s10 + $0x3c] sm:$0xf]
    %v9474 = vld [vmem:[%s10 + $0x40] sm:$0xf]
    %v9475 = vld [vmem:[%s10 + $0x44] sm:$0xf]
    %v9476 = vld [vmem:[%s10 + $0x48] sm:$0xf]
    %v9477 = vld [vmem:[%s10 + $0x4c] sm:$0xf]
    %v9478 = vld [vmem:[%s10 + $0x50] sm:$0xf]
    %v9479 = vld [vmem:[%s10 + $0x54] sm:$0xf]
    %v9480 = vld [vmem:[%s10 + $0x58] sm:$0xf]
    %v9481 = vld [vmem:[%s10 + $0x5c] sm:$0xf]
    %v9482 = vld [vmem:[%s10 + $0x60] sm:$0xf]
    %v9483 = vld [vmem:[%s10 + $0x64] sm:$0xf]
    %v9484 = vld [vmem:[%s10 + $0x68] sm:$0xf]
    %v9485 = vld [vmem:[%s10 + $0x6c] sm:$0xf]
    %v9486 = vld [vmem:[%s10 + $0x70] sm:$0xf]
    %v9487 = vld [vmem:[%s10 + $0x74] sm:$0xf]
    %v9488 = vld [vmem:[%s10 + $0x78] sm:$0xf]
    %v9489 = vld [vmem:[%s10 + $0x7c] sm:$0xf]
    %v9490 = vld [vmem:[%s10 + $0x80] sm:$0xf]
    %v9491 = vld [vmem:[%s10 + $0x84] sm:$0xf]
    %v9492 = vld [vmem:[%s10 + $0x88] sm:$0xf]
    %v9493 = vld [vmem:[%s10 + $0x8c] sm:$0xf]
    %v9494 = vld [vmem:[%s10 + $0x90] sm:$0xf]
    %v9495 = vld [vmem:[%s10 + $0x94] sm:$0xf]
    %v9496 = vld [vmem:[%s10 + $0x98] sm:$0xf]
    %v9497 = vld [vmem:[%s10 + $0x9c] sm:$0xf]
    %v9498 = vld [vmem:[%s10 + $0xa0] sm:$0xf]
    %v9499 = vld [vmem:[%s10 + $0xa4] sm:$0xf]
    %v9500 = vld [vmem:[%s10 + $0xa8] sm:$0xf]
    %v9501 = vld [vmem:[%s10 + $0xac] sm:$0xf]
    %v9502 = vld [vmem:[%s10 + $0xb0] sm:$0xf]
    %v9503 = vld [vmem:[%s10 + $0xb4] sm:$0xf]
    %v9504 = vld [vmem:[%s10 + $0xb8] sm:$0xf]
    %v9505 = vld [vmem:[%s10 + $0xbc] sm:$0xf]
    %v9506 = vld [vmem:[%s10 + $0xc0] sm:$0xf]
    %v9507 = vld [vmem:[%s10 + $0xc4] sm:$0xf]
    %v9508 = vld [vmem:[%s10 + $0xc8] sm:$0xf]
    %v9509 = vld [vmem:[%s10 + $0xcc] sm:$0xf]
    %v9510 = vld [vmem:[%s10 + $0xd0] sm:$0xf]
    %v9511 = vld [vmem:[%s10 + $0xd4] sm:$0xf]
    %v9512 = vld [vmem:[%s10 + $0xd8] sm:$0xf]
    %v9513 = vld [vmem:[%s10 + $0xdc] sm:$0xf]
    %v9514 = vld [vmem:[%s10 + $0xe0] sm:$0xf]
    %v9515 = vld [vmem:[%s10 + $0xe4] sm:$0xf]
    %v9516 = vld [vmem:[%s10 + $0xe8] sm:$0xf]
    %v9517 = vld [vmem:[%s10 + $0xec] sm:$0xf]
    %v9518 = vld [vmem:[%s10 + $0xf0] sm:$0xf]
    %v9519 = vld [vmem:[%s10 + $0xf4] sm:$0xf]
    %v9520 = vld [vmem:[%s10 + $0xf8] sm:$0xf]
    %v9521 = vld [vmem:[%s10 + $0xfc] sm:$0xf]
    %v9522 = vld [vmem:[%s10 + $0x100] sm:$0xf]
    %v9523 = vld [vmem:[%s10 + $0x104] sm:$0xf]
    %v9524 = vld [vmem:[%s10 + $0x108] sm:$0xf]
    %v9525 = vld [vmem:[%s10 + $0x10c] sm:$0xf]
    %v9526 = vld [vmem:[%s10 + $0x110] sm:$0xf]
    %v9527 = vld [vmem:[%s10 + $0x114] sm:$0xf]
    %v9528 = vld [vmem:[%s10 + $0x118] sm:$0xf]
    %v9529 = vld [vmem:[%s10 + $0x11c] sm:$0xf]
    %v9530 = vld [vmem:[%s10 + $0x120] sm:$0xf]
    %v9531 = vld [vmem:[%s10 + $0x124] sm:$0xf]
    %v9532 = vld [vmem:[%s10 + $0x128] sm:$0xf]
    %v9533 = vld [vmem:[%s10 + $0x12c] sm:$0xf]
    %v9534 = vld [vmem:[%s10 + $0x130] sm:$0xf]
    %v9535 = vld [vmem:[%s10 + $0x134] sm:$0xf]
    %v9536 = vld [vmem:[%s10 + $0x138] sm:$0xf]
    %v9537 = vld [vmem:[%s10 + $0x13c] sm:$0xf]
    %v9538 = vld [vmem:[%s10 + $0x140] sm:$0xf]
    %v9539 = vld [vmem:[%s10 + $0x144] sm:$0xf]
    %v9540 = vld [vmem:[%s10 + $0x148] sm:$0xf]
    %v9541 = vld [vmem:[%s10 + $0x14c] sm:$0xf]
    %v9542 = vld [vmem:[%s10 + $0x150] sm:$0xf]
    %v9543 = vld [vmem:[%s10 + $0x154] sm:$0xf]
    %v9544 = vld [vmem:[%s10 + $0x158] sm:$0xf]
    %v9545 = vld [vmem:[%s10 + $0x15c] sm:$0xf]
    %v9546 = vld [vmem:[%s10 + $0x160] sm:$0xf]
    %v9547 = vld [vmem:[%s10 + $0x164] sm:$0xf]
    %v9548 = vld [vmem:[%s10 + $0x168] sm:$0xf]
    %v9549 = vld [vmem:[%s10 + $0x16c] sm:$0xf]
    %v9550 = vld [vmem:[%s10 + $0x170] sm:$0xf]
    %v9551 = vld [vmem:[%s10 + $0x174] sm:$0xf]
    %v9552 = vld [vmem:[%s10 + $0x178] sm:$0xf]
    %v9553 = vld [vmem:[%s10 + $0x17c] sm:$0xf]
    %v9554 = vld [vmem:[%s10 + $0x180] sm:$0xf]
    %v9555 = vld [vmem:[%s10 + $0x184] sm:$0xf]
    %v9556 = vld [vmem:[%s10 + $0x188] sm:$0xf]
    %v9557 = vld [vmem:[%s10 + $0x18c] sm:$0xf]
    %v9558 = vld [vmem:[%s10 + $0x190] sm:$0xf]
    %v9559 = vld [vmem:[%s10 + $0x194] sm:$0xf]
    %v9560 = vld [vmem:[%s10 + $0x198] sm:$0xf]
    %v9561 = vld [vmem:[%s10 + $0x19c] sm:$0xf]
    %v9562 = vld [vmem:[%s10 + $0x1a0] sm:$0xf]
    %v9563 = vld [vmem:[%s10 + $0x1a4] sm:$0xf]
    %v9564 = vld [vmem:[%s10 + $0x1a8] sm:$0xf]
    %v9565 = vld [vmem:[%s10 + $0x1ac] sm:$0xf]
    %v9566 = vld [vmem:[%s10 + $0x1b0] sm:$0xf]
    %v9567 = vld [vmem:[%s10 + $0x1b4] sm:$0xf]
    %v9568 = vld [vmem:[%s10 + $0x1b8] sm:$0xf]
    %v9569 = vld [vmem:[%s10 + $0x1bc] sm:$0xf]
    %v9570 = vld [vmem:[%s10 + $0x1c0] sm:$0xf]
    %v9571 = vld [vmem:[%s10 + $0x1c4] sm:$0xf]
    %v9572 = vld [vmem:[%s10 + $0x1c8] sm:$0xf]
    %v9573 = vld [vmem:[%s10 + $0x1cc] sm:$0xf]
    %v9574 = vld [vmem:[%s10 + $0x1d0] sm:$0xf]
    %v9575 = vld [vmem:[%s10 + $0x1d4] sm:$0xf]
    %v9576 = vld [vmem:[%s10 + $0x1d8] sm:$0xf]
    %v9577 = vld [vmem:[%s10 + $0x1dc] sm:$0xf]
    %v9578 = vld [vmem:[%s10 + $0x1e0] sm:$0xf]
    %v9579 = vld [vmem:[%s10 + $0x1e4] sm:$0xf]
    %v9580 = vld [vmem:[%s10 + $0x1e8] sm:$0xf]
    %v9581 = vld [vmem:[%s10 + $0x1ec] sm:$0xf]
    %v9582 = vld [vmem:[%s10 + $0x1f0] sm:$0xf]
    %v9583 = vld [vmem:[%s10 + $0x1f4] sm:$0xf]
    %v9584 = vld [vmem:[%s10 + $0x1f8] sm:$0xf]
    %v9585 = vld [vmem:[%s10 + $0x1fc] sm:$0xf]
    %v9586 = vld [vmem:[%s10 + $0x200] sm:$0xf]
    %v9587 = vld [vmem:[%s10 + $0x204] sm:$0xf]
    %v9588 = vld [vmem:[%s10 + $0x208] sm:$0xf]
    %v9589 = vld [vmem:[%s10 + $0x20c] sm:$0xf]
    %v9590 = vld [vmem:[%s10 + $0x210] sm:$0xf]
    %v9591 = vld [vmem:[%s10 + $0x214] sm:$0xf]
    %v9592 = vld [vmem:[%s10 + $0x218] sm:$0xf]
    %v9593 = vld [vmem:[%s10 + $0x21c] sm:$0xf]
    %v9594 = vld [vmem:[%s10 + $0x220] sm:$0xf]
    %v9595 = vld [vmem:[%s10 + $0x224] sm:$0xf]
    %v9596 = vld [vmem:[%s10 + $0x228] sm:$0xf]
    %v9597 = vld [vmem:[%s10 + $0x22c] sm:$0xf]
    %v9598 = vld [vmem:[%s10 + $0x230] sm:$0xf]
    %v9599 = vld [vmem:[%s10 + $0x234] sm:$0xf]
    %v9600 = vld [vmem:[%s10 + $0x238] sm:$0xf]
    %v9601 = vld [vmem:[%s10 + $0x23c] sm:$0xf]
    %v9602 = vld [vmem:[%s10 + $0x240] sm:$0xf]
    %v9603 = vld [vmem:[%s10 + $0x244] sm:$0xf]
    %v9604 = vld [vmem:[%s10 + $0x248] sm:$0xf]
    %v9605 = vld [vmem:[%s10 + $0x24c] sm:$0xf]
    %v9606 = vld [vmem:[%s10 + $0x250] sm:$0xf]
    %v9607 = vld [vmem:[%s10 + $0x254] sm:$0xf]
    %v9608 = vld [vmem:[%s10 + $0x258] sm:$0xf]
    %v9609 = vld [vmem:[%s10 + $0x25c] sm:$0xf]
    %v9610 = vld [vmem:[%s10 + $0x260] sm:$0xf]
    %v9611 = vld [vmem:[%s10 + $0x264] sm:$0xf]
    %v9612 = vld [vmem:[%s10 + $0x268] sm:$0xf]
    %v9613 = vld [vmem:[%s10 + $0x26c] sm:$0xf]
    %v9614 = vld [vmem:[%s10 + $0x270] sm:$0xf]
    %v9615 = vld [vmem:[%s10 + $0x274] sm:$0xf]
    %v9616 = vld [vmem:[%s10 + $0x278] sm:$0xf]
    %v9617 = vld [vmem:[%s10 + $0x27c] sm:$0xf]
    %v9618 = vld [vmem:[%s10 + $0x280] sm:$0xf]
    %v9619 = vld [vmem:[%s10 + $0x284] sm:$0xf]
    %v9620 = vld [vmem:[%s10 + $0x288] sm:$0xf]
    %v9621 = vld [vmem:[%s10 + $0x28c] sm:$0xf]
    %v9622 = vld [vmem:[%s10 + $0x290] sm:$0xf]
    %v9623 = vld [vmem:[%s10 + $0x294] sm:$0xf]
    %v9624 = vld [vmem:[%s10 + $0x298] sm:$0xf]
    %v9625 = vld [vmem:[%s10 + $0x29c] sm:$0xf]
    %v9626 = vld [vmem:[%s10 + $0x2a0] sm:$0xf]
    %v9627 = vld [vmem:[%s10 + $0x2a4] sm:$0xf]
    %v9628 = vld [vmem:[%s10 + $0x2a8] sm:$0xf]
    %v9629 = vld [vmem:[%s10 + $0x2ac] sm:$0xf]
    %v9630 = vld [vmem:[%s10 + $0x2b0] sm:$0xf]
    %v9631 = vld [vmem:[%s10 + $0x2b4] sm:$0xf]
    %v9632 = vld [vmem:[%s10 + $0x2b8] sm:$0xf]
    %v9633 = vld [vmem:[%s10 + $0x2bc] sm:$0xf]
    %v9634 = vld [vmem:[%s10 + $0x2c0] sm:$0xf]
    %v9635 = vld [vmem:[%s10 + $0x2c4] sm:$0xf]
    %v9636 = vld [vmem:[%s10 + $0x2c8] sm:$0xf]
    %v9637 = vld [vmem:[%s10 + $0x2cc] sm:$0xf]
    %v9638 = vld [vmem:[%s10 + $0x2d0] sm:$0xf]
    %v9639 = vld [vmem:[%s10 + $0x2d4] sm:$0xf]
    %v9640 = vld [vmem:[%s10 + $0x2d8] sm:$0xf]
    %v9641 = vld [vmem:[%s10 + $0x2dc] sm:$0xf]
    %v9642 = vld [vmem:[%s10 + $0x2e0] sm:$0xf]
    %v9643 = vld [vmem:[%s10 + $0x2e4] sm:$0xf]
    %v9644 = vld [vmem:[%s10 + $0x2e8] sm:$0xf]
    %v9645 = vld [vmem:[%s10 + $0x2ec] sm:$0xf]
    %v9646 = vld [vmem:[%s10 + $0x2f0] sm:$0xf]
    %v9647 = vld [vmem:[%s10 + $0x2f4] sm:$0xf]
    %v9648 = vld [vmem:[%s10 + $0x2f8] sm:$0xf]
    %v9649 = vld [vmem:[%s10 + $0x2fc] sm:$0xf]
    %v9650 = vld [vmem:[%s10 + $0x300] sm:$0xf]
    %v9651 = vld [vmem:[%s10 + $0x304] sm:$0xf]
    %v9652 = vld [vmem:[%s10 + $0x308] sm:$0xf]
    %v9653 = vld [vmem:[%s10 + $0x30c] sm:$0xf]
    %v9654 = vpack.c.bf16 %v7769, %v7768
    %v9655 = vpack.c.bf16 %v7808, %v7807
    %v9656 = vpack.c.bf16 %v7847, %v7846
    %v9657 = vpack.c.bf16 %v7886, %v7885
    %v9658 = vpack.c.bf16 %v8549, %v8548
    %v9659 = vpack.c.bf16 %v8588, %v8587
    %v9660 = vpack.c.bf16 %v8627, %v8626
    %v9661 = vpack.c.bf16 %v8666, %v8665
    %v9662 = vpack.c.bf16 %v9329, %v9328
    %v9663 = vpack.c.bf16 %v9368, %v9367
    %v9664 = vpack.c.bf16 %v9407, %v9406
    %v9665 = vpack.c.bf16 %v9446, %v9445
    %v9666 = vpack.c.bf16 %v7106, %v7105
    %v9667 = vpack.c.bf16 %v7771, %v7770
    %v9668 = vpack.c.bf16 %v7810, %v7809
    %v9669 = vpack.c.bf16 %v7849, %v7848
    %v9670 = vpack.c.bf16 %v7888, %v7887
    %v9671 = vpack.c.bf16 %v8551, %v8550
    %v9672 = vpack.c.bf16 %v8590, %v8589
    %v9673 = vpack.c.bf16 %v8629, %v8628
    %v9674 = vpack.c.bf16 %v8668, %v8667
    %v9675 = vpack.c.bf16 %v9331, %v9330
    %v9676 = vpack.c.bf16 %v9370, %v9369
    %v9677 = vpack.c.bf16 %v9409, %v9408
    %v9678 = vpack.c.bf16 %v9448, %v9447
    %v9679 = vpack.c.bf16 %v7108, %v7107
    %v9680 = vpack.c.bf16 %v7773, %v7772
    %v9681 = vpack.c.bf16 %v7812, %v7811
    %v9682 = vpack.c.bf16 %v7851, %v7850
    %v9683 = vpack.c.bf16 %v7890, %v7889
    %v9684 = vpack.c.bf16 %v8553, %v8552
    %v9685 = vpack.c.bf16 %v8592, %v8591
    %v9686 = vpack.c.bf16 %v8631, %v8630
    %v9687 = vpack.c.bf16 %v8670, %v8669
    %v9688 = vpack.c.bf16 %v9333, %v9332
    %v9689 = vpack.c.bf16 %v9372, %v9371
    %v9690 = vpack.c.bf16 %v9411, %v9410
    %v9691 = vpack.c.bf16 %v9450, %v9449
    %v9692 = vpack.c.bf16 %v7110, %v7109
    %v9693 = vpack.c.bf16 %v7775, %v7774
    %v9694 = vpack.c.bf16 %v7814, %v7813
    %v9695 = vpack.c.bf16 %v7853, %v7852
    %v9696 = vpack.c.bf16 %v7892, %v7891
    %v9697 = vpack.c.bf16 %v8555, %v8554
    %v9698 = vpack.c.bf16 %v8594, %v8593
    %v9699 = vpack.c.bf16 %v8633, %v8632
    %v9700 = vpack.c.bf16 %v8672, %v8671
    %v9701 = vpack.c.bf16 %v9335, %v9334
    %v9702 = vpack.c.bf16 %v9374, %v9373
    %v9703 = vpack.c.bf16 %v9413, %v9412
    %v9704 = vpack.c.bf16 %v9452, %v9451
    %v9705 = vpack.c.bf16 %v7112, %v7111
    %v9706 = vpack.c.bf16 %v7777, %v7776
    %v9707 = vpack.c.bf16 %v7816, %v7815
    %v9708 = vpack.c.bf16 %v7855, %v7854
    %v9709 = vpack.c.bf16 %v7894, %v7893
    %v9710 = vpack.c.bf16 %v8557, %v8556
    %v9711 = vpack.c.bf16 %v8596, %v8595
    %v9712 = vpack.c.bf16 %v8635, %v8634
    %v9713 = vpack.c.bf16 %v8674, %v8673
    %v9714 = vpack.c.bf16 %v9337, %v9336
    %v9715 = vpack.c.bf16 %v9376, %v9375
    %v9716 = vpack.c.bf16 %v9415, %v9414
    %v9717 = vpack.c.bf16 %v9454, %v9453
    %v9718 = vpack.c.bf16 %v7114, %v7113
    %v9719 = vpack.c.bf16 %v7779, %v7778
    %v9720 = vpack.c.bf16 %v7818, %v7817
    %v9721 = vpack.c.bf16 %v7857, %v7856
    %v9722 = vpack.c.bf16 %v7896, %v7895
    %v9723 = vpack.c.bf16 %v8559, %v8558
    %v9724 = vpack.c.bf16 %v8598, %v8597
    %v9725 = vpack.c.bf16 %v8637, %v8636
    %v9726 = vpack.c.bf16 %v8676, %v8675
    %v9727 = vpack.c.bf16 %v9339, %v9338
    %v9728 = vpack.c.bf16 %v9378, %v9377
    %v9729 = vpack.c.bf16 %v9417, %v9416
    %v9730 = vpack.c.bf16 %v9456, %v9455
    %v9731 = vpack.c.bf16 %v7116, %v7115
    %v9732 = vpack.c.bf16 %v7780, %v7780
    %v9733 = vpack.c.bf16 %v7819, %v7819
    %v9734 = vpack.c.bf16 %v7858, %v7858
    %v9735 = vpack.c.bf16 %v7897, %v7897
    %v9736 = vpack.c.bf16 %v8560, %v8560
    %v9737 = vpack.c.bf16 %v8599, %v8599
    %v9738 = vpack.c.bf16 %v8638, %v8638
    %v9739 = vpack.c.bf16 %v8677, %v8677
    %v9740 = vpack.c.bf16 %v9340, %v9340
    %v9741 = vpack.c.bf16 %v9379, %v9379
    %v9742 = vpack.c.bf16 %v9418, %v9418
    %v9743 = vpack.c.bf16 %v9457, %v9457
    %v9744 = vpack.c.bf16 %v7117, %v7117
    %v9941 = vunpack.c.l.b16 %v9458
    %v9942 = vunpack.c.l.b16 %v9459
    %v9943 = vunpack.c.l.b16 %v9460
    %v9944 = vunpack.c.l.b16 %v9461
    %v9945 = vunpack.c.l.b16 %v9462
    %v9946 = vunpack.c.l.b16 %v9463
    %v9947 = vunpack.c.l.b16 %v9464
    %v9948 = vunpack.c.l.b16 %v9465
    %v9949 = vunpack.c.l.b16 %v9466
    %v9950 = vunpack.c.l.b16 %v9467
    %v9951 = vunpack.c.l.b16 %v9468
    %v9952 = vunpack.c.l.b16 %v9469
    %v9953 = vunpack.c.l.b16 %v9470
    %v9954 = vunpack.c.l.b16 %v9471
    %v9955 = vunpack.c.l.b16 %v9472
    %v9956 = vunpack.c.l.b16 %v9473
    %v9957 = vunpack.c.l.b16 %v9474
    %v9958 = vunpack.c.l.b16 %v9475
    %v9959 = vunpack.c.l.b16 %v9476
    %v9960 = vunpack.c.l.b16 %v9477
    %v9961 = vunpack.c.l.b16 %v9478
    %v9962 = vunpack.c.l.b16 %v9479
    %v9963 = vunpack.c.l.b16 %v9480
    %v9964 = vunpack.c.l.b16 %v9481
    %v9965 = vunpack.c.l.b16 %v9482
    %v9966 = vunpack.c.l.b16 %v9483
    %v9967 = vunpack.c.l.b16 %v9484
    %v9968 = vunpack.c.l.b16 %v9485
    %v9969 = vunpack.c.l.b16 %v9486
    %v9970 = vunpack.c.l.b16 %v9487
    %v9971 = vunpack.c.l.b16 %v9488
    %v9972 = vunpack.c.l.b16 %v9489
    %v9973 = vunpack.c.l.b16 %v9490
    %v9974 = vunpack.c.l.b16 %v9491
    %v9975 = vunpack.c.l.b16 %v9492
    %v9976 = vunpack.c.l.b16 %v9493
    %v9977 = vunpack.c.l.b16 %v9494
    %v9978 = vunpack.c.l.b16 %v9495
    %v9979 = vunpack.c.l.b16 %v9496
    %v9980 = vunpack.c.l.b16 %v9497
    %v9981 = vunpack.c.l.b16 %v9498
    %v9982 = vunpack.c.l.b16 %v9499
    %v9983 = vunpack.c.l.b16 %v9500
    %v9984 = vunpack.c.l.b16 %v9501
    %v9985 = vunpack.c.l.b16 %v9502
    %v9986 = vunpack.c.l.b16 %v9503
    %v9987 = vunpack.c.l.b16 %v9504
    %v9988 = vunpack.c.l.b16 %v9505
    %v9989 = vunpack.c.l.b16 %v9506
    %v9990 = vunpack.c.l.b16 %v9507
    %v9991 = vunpack.c.l.b16 %v9508
    %v9992 = vunpack.c.l.b16 %v9509
    %v9993 = vunpack.c.l.b16 %v9510
    %v9994 = vunpack.c.l.b16 %v9511
    %v9995 = vunpack.c.l.b16 %v9512
    %v9996 = vunpack.c.l.b16 %v9513
    %v9997 = vunpack.c.l.b16 %v9514
    %v9998 = vunpack.c.l.b16 %v9515
    %v9999 = vunpack.c.l.b16 %v9516
    %v10000 = vunpack.c.l.b16 %v9517
    %v10001 = vunpack.c.l.b16 %v9518
    %v10002 = vunpack.c.l.b16 %v9519
    %v10003 = vunpack.c.l.b16 %v9520
    %v10004 = vunpack.c.l.b16 %v9521
    %v10005 = vunpack.c.l.b16 %v9522
    %v10006 = vunpack.c.l.b16 %v9523
    %v10007 = vunpack.c.l.b16 %v9524
    %v10008 = vunpack.c.l.b16 %v9525
    %v10009 = vunpack.c.l.b16 %v9526
    %v10010 = vunpack.c.l.b16 %v9527
    %v10011 = vunpack.c.l.b16 %v9528
    %v10012 = vunpack.c.l.b16 %v9529
    %v10013 = vunpack.c.l.b16 %v9530
    %v10014 = vunpack.c.l.b16 %v9531
    %v10015 = vunpack.c.l.b16 %v9532
    %v10016 = vunpack.c.l.b16 %v9533
    %v10017 = vunpack.c.l.b16 %v9534
    %v10018 = vunpack.c.l.b16 %v9535
    %v10019 = vunpack.c.l.b16 %v9536
    %v10020 = vunpack.c.l.b16 %v9537
    %v10021 = vunpack.c.l.b16 %v9538
    %v10022 = vunpack.c.l.b16 %v9539
    %v10023 = vunpack.c.l.b16 %v9540
    %v10024 = vunpack.c.l.b16 %v9541
    %v10025 = vunpack.c.l.b16 %v9542
    %v10026 = vunpack.c.l.b16 %v9543
    %v10027 = vunpack.c.l.b16 %v9544
    %v10028 = vunpack.c.l.b16 %v9545
    %v10029 = vunpack.c.l.b16 %v9546
    %v10030 = vunpack.c.l.b16 %v9547
    %v10031 = vunpack.c.l.b16 %v9548
    %v10032 = vunpack.c.l.b16 %v9549
    %v10033 = vunpack.c.l.b16 %v9550
    %v10034 = vunpack.c.l.b16 %v9551
    %v10035 = vunpack.c.l.b16 %v9552
    %v10036 = vunpack.c.l.b16 %v9553
    %v10037 = vunpack.c.l.b16 %v9554
    %v10038 = vunpack.c.l.b16 %v9555
    %v10039 = vunpack.c.l.b16 %v9556
    %v10040 = vunpack.c.l.b16 %v9557
    %v10041 = vunpack.c.l.b16 %v9558
    %v10042 = vunpack.c.l.b16 %v9559
    %v10043 = vunpack.c.l.b16 %v9560
    %v10044 = vunpack.c.l.b16 %v9561
    %v10045 = vunpack.c.l.b16 %v9562
    %v10046 = vunpack.c.l.b16 %v9563
    %v10047 = vunpack.c.l.b16 %v9564
    %v10048 = vunpack.c.l.b16 %v9565
    %v10049 = vunpack.c.l.b16 %v9566
    %v10050 = vunpack.c.l.b16 %v9567
    %v10051 = vunpack.c.l.b16 %v9568
    %v10052 = vunpack.c.l.b16 %v9569
    %v10053 = vunpack.c.l.b16 %v9570
    %v10054 = vunpack.c.l.b16 %v9571
    %v10055 = vunpack.c.l.b16 %v9572
    %v10056 = vunpack.c.l.b16 %v9573
    %v10057 = vunpack.c.l.b16 %v9574
    %v10058 = vunpack.c.l.b16 %v9575
    %v10059 = vunpack.c.l.b16 %v9576
    %v10060 = vunpack.c.l.b16 %v9577
    %v10061 = vunpack.c.l.b16 %v9578
    %v10062 = vunpack.c.l.b16 %v9579
    %v10063 = vunpack.c.l.b16 %v9580
    %v10064 = vunpack.c.l.b16 %v9581
    %v10065 = vunpack.c.l.b16 %v9582
    %v10066 = vunpack.c.l.b16 %v9583
    %v10067 = vunpack.c.l.b16 %v9584
    %v10068 = vunpack.c.l.b16 %v9585
    %v10069 = vunpack.c.l.b16 %v9586
    %v10070 = vunpack.c.l.b16 %v9587
    %v10071 = vunpack.c.l.b16 %v9588
    %v10072 = vunpack.c.l.b16 %v9589
    %v10073 = vunpack.c.l.b16 %v9590
    %v10074 = vunpack.c.l.b16 %v9591
    %v10075 = vunpack.c.l.b16 %v9592
    %v10076 = vunpack.c.l.b16 %v9593
    %v10077 = vunpack.c.l.b16 %v9594
    %v10078 = vunpack.c.l.b16 %v9595
    %v10079 = vunpack.c.l.b16 %v9596
    %v10080 = vunpack.c.l.b16 %v9597
    %v10081 = vunpack.c.l.b16 %v9598
    %v10082 = vunpack.c.l.b16 %v9599
    %v10083 = vunpack.c.l.b16 %v9600
    %v10084 = vunpack.c.l.b16 %v9601
    %v10085 = vunpack.c.l.b16 %v9602
    %v10086 = vunpack.c.l.b16 %v9603
    %v10087 = vunpack.c.l.b16 %v9604
    %v10088 = vunpack.c.l.b16 %v9605
    %v10089 = vunpack.c.l.b16 %v9606
    %v10090 = vunpack.c.l.b16 %v9607
    %v10091 = vunpack.c.l.b16 %v9608
    %v10092 = vunpack.c.l.b16 %v9609
    %v10093 = vunpack.c.l.b16 %v9610
    %v10094 = vunpack.c.l.b16 %v9611
    %v10095 = vunpack.c.l.b16 %v9612
    %v10096 = vunpack.c.l.b16 %v9613
    %v10097 = vunpack.c.l.b16 %v9614
    %v10098 = vunpack.c.l.b16 %v9615
    %v10099 = vunpack.c.l.b16 %v9616
    %v10100 = vunpack.c.l.b16 %v9617
    %v10101 = vunpack.c.l.b16 %v9618
    %v10102 = vunpack.c.l.b16 %v9619
    %v10103 = vunpack.c.l.b16 %v9620
    %v10104 = vunpack.c.l.b16 %v9621
    %v10105 = vunpack.c.l.b16 %v9622
    %v10106 = vunpack.c.l.b16 %v9623
    %v10107 = vunpack.c.l.b16 %v9624
    %v10108 = vunpack.c.l.b16 %v9625
    %v10109 = vunpack.c.l.b16 %v9626
    %v10110 = vunpack.c.l.b16 %v9627
    %v10111 = vunpack.c.l.b16 %v9628
    %v10112 = vunpack.c.l.b16 %v9629
    %v10113 = vunpack.c.l.b16 %v9630
    %v10114 = vunpack.c.l.b16 %v9631
    %v10115 = vunpack.c.l.b16 %v9632
    %v10116 = vunpack.c.l.b16 %v9633
    %v10117 = vunpack.c.l.b16 %v9634
    %v10118 = vunpack.c.l.b16 %v9635
    %v10119 = vunpack.c.l.b16 %v9636
    %v10120 = vunpack.c.l.b16 %v9637
    %v10121 = vunpack.c.l.b16 %v9638
    %v10122 = vunpack.c.l.b16 %v9639
    %v10123 = vunpack.c.l.b16 %v9640
    %v10124 = vunpack.c.l.b16 %v9641
    %v10125 = vunpack.c.l.b16 %v9642
    %v10126 = vunpack.c.l.b16 %v9643
    %v10127 = vunpack.c.l.b16 %v9644
    %v10128 = vunpack.c.l.b16 %v9645
    %v10129 = vunpack.c.l.b16 %v9646
    %v10130 = vunpack.c.l.b16 %v9647
    %v10131 = vunpack.c.l.b16 %v9648
    %v10132 = vunpack.c.l.b16 %v9649
    %v10133 = vunpack.c.l.b16 %v9650
    %v10134 = vunpack.c.l.b16 %v9651
    %v10135 = vunpack.c.l.b16 %v9652
    %v10136 = vunpack.c.l.b16 %v9653
    %v10137 = vpack.c.b16 %v9942, %v9941
    %v10138 = vpack.c.b16 %v9944, %v9943
    %v10139 = vpack.c.b16 %v9946, %v9945
    %v10140 = vpack.c.b16 %v9948, %v9947
    %v10141 = vpack.c.b16 %v9950, %v9949
    %v10142 = vpack.c.b16 %v9952, %v9951
    %v10143 = vpack.c.b16 %v9954, %v9953
    %v10144 = vpack.c.b16 %v9956, %v9955
    %v10145 = vpack.c.b16 %v9958, %v9957
    %v10146 = vpack.c.b16 %v9960, %v9959
    %v10147 = vpack.c.b16 %v9962, %v9961
    %v10148 = vpack.c.b16 %v9964, %v9963
    %v10149 = vpack.c.b16 %v9966, %v9965
    %v10150 = vpack.c.b16 %v9968, %v9967
    %v10151 = vpack.c.b16 %v9970, %v9969
    %v10152 = vpack.c.b16 %v9972, %v9971
    %v10153 = vpack.c.b16 %v9974, %v9973
    %v10154 = vpack.c.b16 %v9976, %v9975
    %v10155 = vpack.c.b16 %v9978, %v9977
    %v10156 = vpack.c.b16 %v9980, %v9979
    %v10157 = vpack.c.b16 %v9982, %v9981
    %v10158 = vpack.c.b16 %v9984, %v9983
    %v10159 = vpack.c.b16 %v9986, %v9985
    %v10160 = vpack.c.b16 %v9988, %v9987
    %v10161 = vpack.c.b16 %v9990, %v9989
    %v10162 = vpack.c.b16 %v9992, %v9991
    %v10163 = vpack.c.b16 %v9994, %v9993
    %v10164 = vpack.c.b16 %v9996, %v9995
    %v10165 = vpack.c.b16 %v9998, %v9997
    %v10166 = vpack.c.b16 %v10000, %v9999
    %v10167 = vpack.c.b16 %v10002, %v10001
    %v10168 = vpack.c.b16 %v10004, %v10003
    %v10169 = vpack.c.b16 %v10006, %v10005
    %v10170 = vpack.c.b16 %v10008, %v10007
    %v10171 = vpack.c.b16 %v10010, %v10009
    %v10172 = vpack.c.b16 %v10012, %v10011
    %v10173 = vpack.c.b16 %v10014, %v10013
    %v10174 = vpack.c.b16 %v10016, %v10015
    %v10175 = vpack.c.b16 %v10018, %v10017
    %v10176 = vpack.c.b16 %v10020, %v10019
    %v10177 = vpack.c.b16 %v10022, %v10021
    %v10178 = vpack.c.b16 %v10024, %v10023
    %v10179 = vpack.c.b16 %v10026, %v10025
    %v10180 = vpack.c.b16 %v10028, %v10027
    %v10181 = vpack.c.b16 %v10030, %v10029
    %v10182 = vpack.c.b16 %v10032, %v10031
    %v10183 = vpack.c.b16 %v10034, %v10033
    %v10184 = vpack.c.b16 %v10036, %v10035
    %v10185 = vpack.c.b16 %v10038, %v10037
    %v10186 = vpack.c.b16 %v10040, %v10039
    %v10187 = vpack.c.b16 %v10042, %v10041
    %v10188 = vpack.c.b16 %v10044, %v10043
    %v10189 = vpack.c.b16 %v10046, %v10045
    %v10190 = vpack.c.b16 %v10048, %v10047
    %v10191 = vpack.c.b16 %v10050, %v10049
    %v10192 = vpack.c.b16 %v10052, %v10051
    %v10193 = vpack.c.b16 %v10054, %v10053
    %v10194 = vpack.c.b16 %v10056, %v10055
    %v10195 = vpack.c.b16 %v10058, %v10057
    %v10196 = vpack.c.b16 %v10060, %v10059
    %v10197 = vpack.c.b16 %v10062, %v10061
    %v10198 = vpack.c.b16 %v10064, %v10063
    %v10199 = vpack.c.b16 %v10066, %v10065
    %v10200 = vpack.c.b16 %v10068, %v10067
    %v10201 = vpack.c.b16 %v10070, %v10069
    %v10202 = vpack.c.b16 %v10072, %v10071
    %v10203 = vpack.c.b16 %v10074, %v10073
    %v10204 = vpack.c.b16 %v10076, %v10075
    %v10205 = vpack.c.b16 %v10078, %v10077
    %v10206 = vpack.c.b16 %v10080, %v10079
    %v10207 = vpack.c.b16 %v10082, %v10081
    %v10208 = vpack.c.b16 %v10084, %v10083
    %v10209 = vpack.c.b16 %v10086, %v10085
    %v10210 = vpack.c.b16 %v10088, %v10087
    %v10211 = vpack.c.b16 %v10090, %v10089
    %v10212 = vpack.c.b16 %v10092, %v10091
    %v10213 = vpack.c.b16 %v10094, %v10093
    %v10214 = vpack.c.b16 %v10096, %v10095
    %v10215 = vpack.c.b16 %v10098, %v10097
    %v10216 = vpack.c.b16 %v10100, %v10099
    %v10217 = vpack.c.b16 %v10102, %v10101
    %v10218 = vpack.c.b16 %v10104, %v10103
    %v10219 = vpack.c.b16 %v10106, %v10105
    %v10220 = vpack.c.b16 %v10108, %v10107
    %v10221 = vpack.c.b16 %v10110, %v10109
    %v10222 = vpack.c.b16 %v10112, %v10111
    %v10223 = vpack.c.b16 %v10114, %v10113
    %v10224 = vpack.c.b16 %v10116, %v10115
    %v10225 = vpack.c.b16 %v10118, %v10117
    %v10226 = vpack.c.b16 %v10120, %v10119
    %v10227 = vpack.c.b16 %v10122, %v10121
    %v10228 = vpack.c.b16 %v10124, %v10123
    %v10229 = vpack.c.b16 %v10126, %v10125
    %v10230 = vpack.c.b16 %v10128, %v10127
    %v10231 = vpack.c.b16 %v10130, %v10129
    %v10232 = vpack.c.b16 %v10132, %v10131
    %v10233 = vpack.c.b16 %v10134, %v10133
    %v10234 = vpack.c.b16 %v10136, %v10135
    %v10334 = vsel %vm1511, %v9666, 0
    %v10337 = vsel %vm1511, %v9679, 0
    %v10340 = vsel %vm1511, %v9692, 0
    %v10343 = vsel %vm1511, %v9705, 0
    %v10346 = vsel %vm1511, %v9718, 0
    %v10349 = vsel %vm1511, %v9731, 0
    %v10352 = vsel %vm1511, %v9744, 0
    %10354 = vmatprep.subr.bf16.mxu0 0
    %10355 = vmatpush1.bf16.msra.mxu0 %v10137
    %10356 = vmatprep.subr.bf16.mxu0 0
    %10357 = vmatpush1.bf16.msra.mxu0 %v10138
    %10358 = vmatprep.subr.bf16.mxu0 0
    %10359 = vmatpush1.bf16.msra.mxu0 %v10139
    %10360 = vmatprep.subr.bf16.mxu0 0
    %10361 = vmatpush1.bf16.msra.mxu0 %v10140
    %10362 = vmatprep.subr.bf16.mxu0 0
    %10363 = vmatpush1.bf16.msra.mxu0 %v10141
    %10364 = vmatprep.subr.bf16.mxu0 0
    %10365 = vmatpush1.bf16.msra.mxu0 %v10142
    %10366 = vmatprep.subr.bf16.mxu0 0
    %10367 = vmatpush1.bf16.msra.mxu0 %v10143
    %10368 = vmatprep.subr.bf16.mxu0 0
    %10369 = vmatpush1.bf16.msra.mxu0 %v10144
    %10370 = vmatprep.subr.bf16.mxu0 0
    %10371 = vmatpush1.bf16.msra.mxu0 %v10145
    %10372 = vmatprep.subr.bf16.mxu0 0
    %10373 = vmatpush1.bf16.msra.mxu0 %v10146
    %10374 = vmatprep.subr.bf16.mxu0 0
    %10375 = vmatpush1.bf16.msra.mxu0 %v10147
    %10376 = vmatprep.subr.bf16.mxu0 0
    %10377 = vmatpush1.bf16.msra.mxu0 %v10148
    %10378 = vmatprep.subr.bf16.mxu0 0
    %10379 = vmatpush1.bf16.msra.mxu0 %v10149
    %10380 = vmatprep.subr.bf16.mxu0 0
    %10381 = vmatpush1.bf16.msra.mxu0 %v10150
    %10382 = vmatprep.subr.bf16.mxu0 0
    %10383 = vmatpush1.bf16.msra.mxu0 %v10151
    %10384 = vmatprep.subr.bf16.mxu0 0
    %10385 = vmatpush1.bf16.msra.mxu0 %v10152
    %10386 = vmatprep.mubr.bf16.mxu0 %v9655
    %10387 = vmatmul.mubr.bf16.gmra.mrb[0].mxu0 %v9654
    %v10388 = vpop.f32.mrb[0].mxu0
    %v10389 = vadd.f32 0.0, %v10388
    %v10390 = vpop.f32.mrb[0].mxu0
    %v10391 = vpop.f32.mrb[0].mxu0
    %v10392 = vadd.f32 0.0, %v10391
    %v10393 = vpop.f32.mrb[0].mxu0
    %10394 = vmatprep.mubr.bf16.mxu0 %v9668
    %10395 = vmatmul.mubr.bf16.gmra.mrb[0].mxu0 %v9667
    %v10396 = vpop.f32.mrb[0].mxu0
    %v10397 = vadd.f32 0.0, %v10396
    %v10398 = vpop.f32.mrb[0].mxu0
    %v10399 = vpop.f32.mrb[0].mxu0
    %v10400 = vadd.f32 0.0, %v10399
    %v10401 = vpop.f32.mrb[0].mxu0
    %10402 = vmatprep.mubr.bf16.mxu0 %v9681
    %10403 = vmatmul.mubr.bf16.gmra.mrb[0].mxu0 %v9680
    %v10404 = vpop.f32.mrb[0].mxu0
    %v10405 = vadd.f32 0.0, %v10404
    %v10406 = vpop.f32.mrb[0].mxu0
    %v10407 = vpop.f32.mrb[0].mxu0
    %v10408 = vadd.f32 0.0, %v10407
    %v10409 = vpop.f32.mrb[0].mxu0
    %10410 = vmatprep.mubr.bf16.mxu0 %v9694
    %10411 = vmatmul.mubr.bf16.gmra.mrb[0].mxu0 %v9693
    %v10412 = vpop.f32.mrb[0].mxu0
    %v10413 = vadd.f32 0.0, %v10412
    %v10414 = vpop.f32.mrb[0].mxu0
    %v10415 = vpop.f32.mrb[0].mxu0
    %v10416 = vadd.f32 0.0, %v10415
    %v10417 = vpop.f32.mrb[0].mxu0
    %10418 = vmatprep.mubr.bf16.mxu0 %v9707
    %10419 = vmatmul.mubr.bf16.gmra.mrb[0].mxu0 %v9706
    %v10420 = vpop.f32.mrb[0].mxu0
    %v10421 = vadd.f32 0.0, %v10420
    %v10422 = vpop.f32.mrb[0].mxu0
    %v10423 = vpop.f32.mrb[0].mxu0
    %v10424 = vadd.f32 0.0, %v10423
    %v10425 = vpop.f32.mrb[0].mxu0
    %10426 = vmatprep.mubr.bf16.mxu0 %v9720
    %10427 = vmatmul.mubr.bf16.gmra.mrb[0].mxu0 %v9719
    %v10428 = vpop.f32.mrb[0].mxu0
    %v10429 = vadd.f32 0.0, %v10428
    %v10430 = vpop.f32.mrb[0].mxu0
    %v10431 = vpop.f32.mrb[0].mxu0
    %v10432 = vadd.f32 0.0, %v10431
    %v10433 = vpop.f32.mrb[0].mxu0
    %10434 = vmatprep.mubr.bf16.mxu0 %v9733
    %10435 = vmatmul.mubr.bf16.gmra.mrb[0].mxu0 %v9732
    %v10436 = vpop.f32.mrb[0].mxu0
    %v10437 = vadd.f32 0.0, %v10436
    %v10438 = vpop.f32.mrb[0].mxu0
    %v10439 = vpop.f32.mrb[0].mxu0
    %v10440 = vpop.f32.mrb[0].mxu0
    %10441 = vdwg.mxu0
    %10442 = vmatprep.subr.bf16.mxu0 0
    %10443 = vmatpush1.bf16.msra.mxu0 %v10153
    %10444 = vmatprep.subr.bf16.mxu0 0
    %10445 = vmatpush1.bf16.msra.mxu0 %v10154
    %10446 = vmatprep.subr.bf16.mxu0 0
    %10447 = vmatpush1.bf16.msra.mxu0 %v10155
    %10448 = vmatprep.subr.bf16.mxu0 0
    %10449 = vmatpush1.bf16.msra.mxu0 %v10156
    %10450 = vmatprep.subr.bf16.mxu0 0
    %10451 = vmatpush1.bf16.msra.mxu0 %v10157
    %10452 = vmatprep.subr.bf16.mxu0 0
    %10453 = vmatpush1.bf16.msra.mxu0 %v10158
    %10454 = vmatprep.subr.bf16.mxu0 0
    %10455 = vmatpush1.bf16.msra.mxu0 %v10159
    %10456 = vmatprep.subr.bf16.mxu0 0
    %10457 = vmatpush1.bf16.msra.mxu0 %v10160
    %10458 = vmatprep.subr.bf16.mxu0 0
    %10459 = vmatpush1.bf16.msra.mxu0 %v10161
    %10460 = vmatprep.subr.bf16.mxu0 0
    %10461 = vmatpush1.bf16.msra.mxu0 %v10162
    %10462 = vmatprep.subr.bf16.mxu0 0
    %10463 = vmatpush1.bf16.msra.mxu0 %v10163
    %10464 = vmatprep.subr.bf16.mxu0 0
    %10465 = vmatpush1.bf16.msra.mxu0 %v10164
    %10466 = vmatprep.subr.bf16.mxu0 0
    %10467 = vmatpush1.bf16.msra.mxu0 %v10165
    %10468 = vmatprep.subr.bf16.mxu0 0
    %10469 = vmatpush1.bf16.msra.mxu0 %v10166
    %10470 = vmatprep.subr.bf16.mxu0 0
    %10471 = vmatpush1.bf16.msra.mxu0 %v10167
    %10472 = vmatprep.subr.bf16.mxu0 0
    %10473 = vmatpush1.bf16.msra.mxu0 %v10168
    %10474 = vmatprep.mubr.bf16.mxu0 %v9657
    %10475 = vmatmul.mubr.bf16.gmra.mrb[0].mxu0 %v9656
    %v10476 = vpop.f32.mrb[0].mxu0
    %v10477 = vadd.f32 %v10389, %v10476
    %v10478 = vpop.f32.mrb[0].mxu0
    %v10479 = vpop.f32.mrb[0].mxu0
    %v10480 = vadd.f32 %v10392, %v10479
    %v10481 = vpop.f32.mrb[0].mxu0
    %10482 = vmatprep.mubr.bf16.mxu0 %v9670
    %10483 = vmatmul.mubr.bf16.gmra.mrb[0].mxu0 %v9669
    %v10484 = vpop.f32.mrb[0].mxu0
    %v10485 = vadd.f32 %v10397, %v10484
    %v10486 = vpop.f32.mrb[0].mxu0
    %v10487 = vpop.f32.mrb[0].mxu0
    %v10488 = vadd.f32 %v10400, %v10487
    %v10489 = vpop.f32.mrb[0].mxu0
    %10490 = vmatprep.mubr.bf16.mxu0 %v9683
    %10491 = vmatmul.mubr.bf16.gmra.mrb[0].mxu0 %v9682
    %v10492 = vpop.f32.mrb[0].mxu0
    %v10493 = vadd.f32 %v10405, %v10492
    %v10494 = vpop.f32.mrb[0].mxu0
    %v10495 = vpop.f32.mrb[0].mxu0
    %v10496 = vadd.f32 %v10408, %v10495
    %v10497 = vpop.f32.mrb[0].mxu0
    %10498 = vmatprep.mubr.bf16.mxu0 %v9696
    %10499 = vmatmul.mubr.bf16.gmra.mrb[0].mxu0 %v9695
    %v10500 = vpop.f32.mrb[0].mxu0
    %v10501 = vadd.f32 %v10413, %v10500
    %v10502 = vpop.f32.mrb[0].mxu0
    %v10503 = vpop.f32.mrb[0].mxu0
    %v10504 = vadd.f32 %v10416, %v10503
    %v10505 = vpop.f32.mrb[0].mxu0
    %10506 = vmatprep.mubr.bf16.mxu0 %v9709
    %10507 = vmatmul.mubr.bf16.gmra.mrb[0].mxu0 %v9708
    %v10508 = vpop.f32.mrb[0].mxu0
    %v10509 = vadd.f32 %v10421, %v10508
    %v10510 = vpop.f32.mrb[0].mxu0
    %v10511 = vpop.f32.mrb[0].mxu0
    %v10512 = vadd.f32 %v10424, %v10511
    %v10513 = vpop.f32.mrb[0].mxu0
    %10514 = vmatprep.mubr.bf16.mxu0 %v9722
    %10515 = vmatmul.mubr.bf16.gmra.mrb[0].mxu0 %v9721
    %v10516 = vpop.f32.mrb[0].mxu0
    %v10517 = vadd.f32 %v10429, %v10516
    %v10518 = vpop.f32.mrb[0].mxu0
    %v10519 = vpop.f32.mrb[0].mxu0
    %v10520 = vadd.f32 %v10432, %v10519
    %v10521 = vpop.f32.mrb[0].mxu0
    %10522 = vmatprep.mubr.bf16.mxu0 %v9735
    %10523 = vmatmul.mubr.bf16.gmra.mrb[0].mxu0 %v9734
    %v10524 = vpop.f32.mrb[0].mxu0
    %v10525 = vadd.f32 %v10437, %v10524
    %v10526 = vpop.f32.mrb[0].mxu0
    %v10527 = vpop.f32.mrb[0].mxu0
    %v10528 = vpop.f32.mrb[0].mxu0
    %10529 = vdwg.mxu0
    %10530 = vmatprep.subr.bf16.mxu0 0
    %10531 = vmatpush1.bf16.msra.mxu0 %v10169
    %10532 = vmatprep.subr.bf16.mxu0 0
    %10533 = vmatpush1.bf16.msra.mxu0 %v10170
    %10534 = vmatprep.subr.bf16.mxu0 0
    %10535 = vmatpush1.bf16.msra.mxu0 %v10171
    %10536 = vmatprep.subr.bf16.mxu0 0
    %10537 = vmatpush1.bf16.msra.mxu0 %v10172
    %10538 = vmatprep.subr.bf16.mxu0 0
    %10539 = vmatpush1.bf16.msra.mxu0 %v10173
    %10540 = vmatprep.subr.bf16.mxu0 0
    %10541 = vmatpush1.bf16.msra.mxu0 %v10174
    %10542 = vmatprep.subr.bf16.mxu0 0
    %10543 = vmatpush1.bf16.msra.mxu0 %v10175
    %10544 = vmatprep.subr.bf16.mxu0 0
    %10545 = vmatpush1.bf16.msra.mxu0 %v10176
    %10546 = vmatprep.subr.bf16.mxu0 0
    %10547 = vmatpush1.bf16.msra.mxu0 %v10177
    %10548 = vmatprep.subr.bf16.mxu0 0
    %10549 = vmatpush1.bf16.msra.mxu0 %v10178
    %10550 = vmatprep.subr.bf16.mxu0 0
    %10551 = vmatpush1.bf16.msra.mxu0 %v10179
    %10552 = vmatprep.subr.bf16.mxu0 0
    %10553 = vmatpush1.bf16.msra.mxu0 %v10180
    %10554 = vmatprep.subr.bf16.mxu0 0
    %10555 = vmatpush1.bf16.msra.mxu0 %v10181
    %10556 = vmatprep.subr.bf16.mxu0 0
    %10557 = vmatpush1.bf16.msra.mxu0 %v10182
    %10558 = vmatprep.subr.bf16.mxu0 0
    %10559 = vmatpush1.bf16.msra.mxu0 %v10183
    %10560 = vmatprep.subr.bf16.mxu0 0
    %10561 = vmatpush1.bf16.msra.mxu0 %v10184
    %10562 = vmatprep.mubr.bf16.mxu0 %v9659
    %10563 = vmatmul.mubr.bf16.gmra.mrb[0].mxu0 %v9658
    %v10564 = vpop.f32.mrb[0].mxu0
    %v10565 = vadd.f32 %v10477, %v10564
    %v10566 = vpop.f32.mrb[0].mxu0
    %v10567 = vpop.f32.mrb[0].mxu0
    %v10568 = vadd.f32 %v10480, %v10567
    %v10569 = vpop.f32.mrb[0].mxu0
    %10570 = vmatprep.mubr.bf16.mxu0 %v9672
    %10571 = vmatmul.mubr.bf16.gmra.mrb[0].mxu0 %v9671
    %v10572 = vpop.f32.mrb[0].mxu0
    %v10573 = vadd.f32 %v10485, %v10572
    %v10574 = vpop.f32.mrb[0].mxu0
    %v10575 = vpop.f32.mrb[0].mxu0
    %v10576 = vadd.f32 %v10488, %v10575
    %v10577 = vpop.f32.mrb[0].mxu0
    %10578 = vmatprep.mubr.bf16.mxu0 %v9685
    %10579 = vmatmul.mubr.bf16.gmra.mrb[0].mxu0 %v9684
    %v10580 = vpop.f32.mrb[0].mxu0
    %v10581 = vadd.f32 %v10493, %v10580
    %v10582 = vpop.f32.mrb[0].mxu0
    %v10583 = vpop.f32.mrb[0].mxu0
    %v10584 = vadd.f32 %v10496, %v10583
    %v10585 = vpop.f32.mrb[0].mxu0
    %10586 = vmatprep.mubr.bf16.mxu0 %v9698
    %10587 = vmatmul.mubr.bf16.gmra.mrb[0].mxu0 %v9697
    %v10588 = vpop.f32.mrb[0].mxu0
    %v10589 = vadd.f32 %v10501, %v10588
    %v10590 = vpop.f32.mrb[0].mxu0
    %v10591 = vpop.f32.mrb[0].mxu0
    %v10592 = vadd.f32 %v10504, %v10591
    %v10593 = vpop.f32.mrb[0].mxu0
    %10594 = vmatprep.mubr.bf16.mxu0 %v9711
    %10595 = vmatmul.mubr.bf16.gmra.mrb[0].mxu0 %v9710
    %v10596 = vpop.f32.mrb[0].mxu0
    %v10597 = vadd.f32 %v10509, %v10596
    %v10598 = vpop.f32.mrb[0].mxu0
    %v10599 = vpop.f32.mrb[0].mxu0
    %v10600 = vadd.f32 %v10512, %v10599
    %v10601 = vpop.f32.mrb[0].mxu0
    %10602 = vmatprep.mubr.bf16.mxu0 %v9724
    %10603 = vmatmul.mubr.bf16.gmra.mrb[0].mxu0 %v9723
    %v10604 = vpop.f32.mrb[0].mxu0
    %v10605 = vadd.f32 %v10517, %v10604
    %v10606 = vpop.f32.mrb[0].mxu0
    %v10607 = vpop.f32.mrb[0].mxu0
    %v10608 = vadd.f32 %v10520, %v10607
    %v10609 = vpop.f32.mrb[0].mxu0
    %10610 = vmatprep.mubr.bf16.mxu0 %v9737
    %10611 = vmatmul.mubr.bf16.gmra.mrb[0].mxu0 %v9736
    %v10612 = vpop.f32.mrb[0].mxu0
    %v10613 = vadd.f32 %v10525, %v10612
    %v10614 = vpop.f32.mrb[0].mxu0
    %v10615 = vpop.f32.mrb[0].mxu0
    %v10616 = vpop.f32.mrb[0].mxu0
    %10617 = vdwg.mxu0
    %10618 = vmatprep.subr.bf16.mxu0 0
    %10619 = vmatpush1.bf16.msra.mxu0 %v10185
    %10620 = vmatprep.subr.bf16.mxu0 0
    %10621 = vmatpush1.bf16.msra.mxu0 %v10186
    %10622 = vmatprep.subr.bf16.mxu0 0
    %10623 = vmatpush1.bf16.msra.mxu0 %v10187
    %10624 = vmatprep.subr.bf16.mxu0 0
    %10625 = vmatpush1.bf16.msra.mxu0 %v10188
    %10626 = vmatprep.subr.bf16.mxu0 0
    %10627 = vmatpush1.bf16.msra.mxu0 %v10189
    %10628 = vmatprep.subr.bf16.mxu0 0
    %10629 = vmatpush1.bf16.msra.mxu0 %v10190
    %10630 = vmatprep.subr.bf16.mxu0 0
    %10631 = vmatpush1.bf16.msra.mxu0 %v10191
    %10632 = vmatprep.subr.bf16.mxu0 0
    %10633 = vmatpush1.bf16.msra.mxu0 %v10192
    %10634 = vmatprep.subr.bf16.mxu0 0
    %10635 = vmatpush1.bf16.msra.mxu0 %v10193
    %10636 = vmatprep.subr.bf16.mxu0 0
    %10637 = vmatpush1.bf16.msra.mxu0 %v10194
    %10638 = vmatprep.subr.bf16.mxu0 0
    %10639 = vmatpush1.bf16.msra.mxu0 %v10195
    %10640 = vmatprep.subr.bf16.mxu0 0
    %10641 = vmatpush1.bf16.msra.mxu0 %v10196
    %10642 = vmatprep.subr.bf16.mxu0 0
    %10643 = vmatpush1.bf16.msra.mxu0 %v10197
    %10644 = vmatprep.subr.bf16.mxu0 0
    %10645 = vmatpush1.bf16.msra.mxu0 %v10198
    %10646 = vmatprep.subr.bf16.mxu0 0
    %10647 = vmatpush1.bf16.msra.mxu0 %v10199
    %10648 = vmatprep.subr.bf16.mxu0 0
    %10649 = vmatpush1.bf16.msra.mxu0 %v10200
    %10650 = vmatprep.mubr.bf16.mxu0 %v9661
    %10651 = vmatmul.mubr.bf16.gmra.mrb[0].mxu0 %v9660
    %v10652 = vpop.f32.mrb[0].mxu0
    %v10653 = vadd.f32 %v10565, %v10652
    %v10654 = vpop.f32.mrb[0].mxu0
    %v10655 = vpop.f32.mrb[0].mxu0
    %v10656 = vadd.f32 %v10568, %v10655
    %v10657 = vpop.f32.mrb[0].mxu0
    %10658 = vmatprep.mubr.bf16.mxu0 %v9674
    %10659 = vmatmul.mubr.bf16.gmra.mrb[0].mxu0 %v9673
    %v10660 = vpop.f32.mrb[0].mxu0
    %v10661 = vadd.f32 %v10573, %v10660
    %v10662 = vpop.f32.mrb[0].mxu0
    %v10663 = vpop.f32.mrb[0].mxu0
    %v10664 = vadd.f32 %v10576, %v10663
    %v10665 = vpop.f32.mrb[0].mxu0
    %10666 = vmatprep.mubr.bf16.mxu0 %v9687
    %10667 = vmatmul.mubr.bf16.gmra.mrb[0].mxu0 %v9686
    %v10668 = vpop.f32.mrb[0].mxu0
    %v10669 = vadd.f32 %v10581, %v10668
    %v10670 = vpop.f32.mrb[0].mxu0
    %v10671 = vpop.f32.mrb[0].mxu0
    %v10672 = vadd.f32 %v10584, %v10671
    %v10673 = vpop.f32.mrb[0].mxu0
    %10674 = vmatprep.mubr.bf16.mxu0 %v9700
    %10675 = vmatmul.mubr.bf16.gmra.mrb[0].mxu0 %v9699
    %v10676 = vpop.f32.mrb[0].mxu0
    %v10677 = vadd.f32 %v10589, %v10676
    %v10678 = vpop.f32.mrb[0].mxu0
    %v10679 = vpop.f32.mrb[0].mxu0
    %v10680 = vadd.f32 %v10592, %v10679
    %v10681 = vpop.f32.mrb[0].mxu0
    %10682 = vmatprep.mubr.bf16.mxu0 %v9713
    %10683 = vmatmul.mubr.bf16.gmra.mrb[0].mxu0 %v9712
    %v10684 = vpop.f32.mrb[0].mxu0
    %v10685 = vadd.f32 %v10597, %v10684
    %v10686 = vpop.f32.mrb[0].mxu0
    %v10687 = vpop.f32.mrb[0].mxu0
    %v10688 = vadd.f32 %v10600, %v10687
    %v10689 = vpop.f32.mrb[0].mxu0
    %10690 = vmatprep.mubr.bf16.mxu0 %v9726
    %10691 = vmatmul.mubr.bf16.gmra.mrb[0].mxu0 %v9725
    %v10692 = vpop.f32.mrb[0].mxu0
    %v10693 = vadd.f32 %v10605, %v10692
    %v10694 = vpop.f32.mrb[0].mxu0
    %v10695 = vpop.f32.mrb[0].mxu0
    %v10696 = vadd.f32 %v10608, %v10695
    %v10697 = vpop.f32.mrb[0].mxu0
    %10698 = vmatprep.mubr.bf16.mxu0 %v9739
    %10699 = vmatmul.mubr.bf16.gmra.mrb[0].mxu0 %v9738
    %v10700 = vpop.f32.mrb[0].mxu0
    %v10701 = vadd.f32 %v10613, %v10700
    %v10702 = vpop.f32.mrb[0].mxu0
    %v10703 = vpop.f32.mrb[0].mxu0
    %v10704 = vpop.f32.mrb[0].mxu0
    %10705 = vdwg.mxu0
    %10706 = vmatprep.subr.bf16.mxu0 0
    %10707 = vmatpush1.bf16.msra.mxu0 %v10201
    %10708 = vmatprep.subr.bf16.mxu0 0
    %10709 = vmatpush1.bf16.msra.mxu0 %v10202
    %10710 = vmatprep.subr.bf16.mxu0 0
    %10711 = vmatpush1.bf16.msra.mxu0 %v10203
    %10712 = vmatprep.subr.bf16.mxu0 0
    %10713 = vmatpush1.bf16.msra.mxu0 %v10204
    %10714 = vmatprep.subr.bf16.mxu0 0
    %10715 = vmatpush1.bf16.msra.mxu0 %v10205
    %10716 = vmatprep.subr.bf16.mxu0 0
    %10717 = vmatpush1.bf16.msra.mxu0 %v10206
    %10718 = vmatprep.subr.bf16.mxu0 0
    %10719 = vmatpush1.bf16.msra.mxu0 %v10207
    %10720 = vmatprep.subr.bf16.mxu0 0
    %10721 = vmatpush1.bf16.msra.mxu0 %v10208
    %10722 = vmatprep.subr.bf16.mxu0 0
    %10723 = vmatpush1.bf16.msra.mxu0 %v10209
    %10724 = vmatprep.subr.bf16.mxu0 0
    %10725 = vmatpush1.bf16.msra.mxu0 %v10210
    %10726 = vmatprep.subr.bf16.mxu0 0
    %10727 = vmatpush1.bf16.msra.mxu0 %v10211
    %10728 = vmatprep.subr.bf16.mxu0 0
    %10729 = vmatpush1.bf16.msra.mxu0 %v10212
    %10730 = vmatprep.subr.bf16.mxu0 0
    %10731 = vmatpush1.bf16.msra.mxu0 %v10213
    %10732 = vmatprep.subr.bf16.mxu0 0
    %10733 = vmatpush1.bf16.msra.mxu0 %v10214
    %10734 = vmatprep.subr.bf16.mxu0 0
    %10735 = vmatpush1.bf16.msra.mxu0 %v10215
    %10736 = vmatprep.subr.bf16.mxu0 0
    %10737 = vmatpush1.bf16.msra.mxu0 %v10216
    %10738 = vmatprep.mubr.bf16.mxu0 %v9663
    %10739 = vmatmul.mubr.bf16.gmra.mrb[0].mxu0 %v9662
    %v10740 = vpop.f32.mrb[0].mxu0
    %v10741 = vadd.f32 %v10653, %v10740
    %v10742 = vpop.f32.mrb[0].mxu0
    %v10743 = vpop.f32.mrb[0].mxu0
    %v10744 = vadd.f32 %v10656, %v10743
    %v10745 = vpop.f32.mrb[0].mxu0
    %10746 = vmatprep.mubr.bf16.mxu0 %v9676
    %10747 = vmatmul.mubr.bf16.gmra.mrb[0].mxu0 %v9675
    %v10748 = vpop.f32.mrb[0].mxu0
    %v10749 = vadd.f32 %v10661, %v10748
    %v10750 = vpop.f32.mrb[0].mxu0
    %v10751 = vpop.f32.mrb[0].mxu0
    %v10752 = vadd.f32 %v10664, %v10751
    %v10753 = vpop.f32.mrb[0].mxu0
    %10754 = vmatprep.mubr.bf16.mxu0 %v9689
    %10755 = vmatmul.mubr.bf16.gmra.mrb[0].mxu0 %v9688
    %v10756 = vpop.f32.mrb[0].mxu0
    %v10757 = vadd.f32 %v10669, %v10756
    %v10758 = vpop.f32.mrb[0].mxu0
    %v10759 = vpop.f32.mrb[0].mxu0
    %v10760 = vadd.f32 %v10672, %v10759
    %v10761 = vpop.f32.mrb[0].mxu0
    %10762 = vmatprep.mubr.bf16.mxu0 %v9702
    %10763 = vmatmul.mubr.bf16.gmra.mrb[0].mxu0 %v9701
    %v10764 = vpop.f32.mrb[0].mxu0
    %v10765 = vadd.f32 %v10677, %v10764
    %v10766 = vpop.f32.mrb[0].mxu0
    %v10767 = vpop.f32.mrb[0].mxu0
    %v10768 = vadd.f32 %v10680, %v10767
    %v10769 = vpop.f32.mrb[0].mxu0
    %10770 = vmatprep.mubr.bf16.mxu0 %v9715
    %10771 = vmatmul.mubr.bf16.gmra.mrb[0].mxu0 %v9714
    %v10772 = vpop.f32.mrb[0].mxu0
    %v10773 = vadd.f32 %v10685, %v10772
    %v10774 = vpop.f32.mrb[0].mxu0
    %v10775 = vpop.f32.mrb[0].mxu0
    %v10776 = vadd.f32 %v10688, %v10775
    %v10777 = vpop.f32.mrb[0].mxu0
    %10778 = vmatprep.mubr.bf16.mxu0 %v9728
    %10779 = vmatmul.mubr.bf16.gmra.mrb[0].mxu0 %v9727
    %v10780 = vpop.f32.mrb[0].mxu0
    %v10781 = vadd.f32 %v10693, %v10780
    %v10782 = vpop.f32.mrb[0].mxu0
    %v10783 = vpop.f32.mrb[0].mxu0
    %v10784 = vadd.f32 %v10696, %v10783
    %v10785 = vpop.f32.mrb[0].mxu0
    %10786 = vmatprep.mubr.bf16.mxu0 %v9741
    %10787 = vmatmul.mubr.bf16.gmra.mrb[0].mxu0 %v9740
    %v10788 = vpop.f32.mrb[0].mxu0
    %v10789 = vadd.f32 %v10701, %v10788
    %v10790 = vpop.f32.mrb[0].mxu0
    %v10791 = vpop.f32.mrb[0].mxu0
    %v10792 = vpop.f32.mrb[0].mxu0
    %10793 = vdwg.mxu0
    %10794 = vmatprep.subr.bf16.mxu0 0
    %10795 = vmatpush1.bf16.msra.mxu0 %v10217
    %10796 = vmatprep.subr.bf16.mxu0 0
    %10797 = vmatpush1.bf16.msra.mxu0 %v10218
    %10798 = vmatprep.subr.bf16.mxu0 0
    %10799 = vmatpush1.bf16.msra.mxu0 %v10219
    %10800 = vmatprep.subr.bf16.mxu0 0
    %10801 = vmatpush1.bf16.msra.mxu0 %v10220
    %10802 = vmatprep.subr.bf16.mxu0 0
    %10803 = vmatpush1.bf16.msra.mxu0 %v10221
    %10804 = vmatprep.subr.bf16.mxu0 0
    %10805 = vmatpush1.bf16.msra.mxu0 %v10222
    %10806 = vmatprep.subr.bf16.mxu0 0
    %10807 = vmatpush1.bf16.msra.mxu0 %v10223
    %10808 = vmatprep.subr.bf16.mxu0 0
    %10809 = vmatpush1.bf16.msra.mxu0 %v10224
    %10810 = vmatprep.subr.bf16.mxu0 0
    %10811 = vmatpush1.bf16.msra.mxu0 %v10225
    %10812 = vmatprep.subr.bf16.mxu0 0
    %10813 = vmatpush1.bf16.msra.mxu0 %v10226
    %10814 = vmatprep.subr.bf16.mxu0 0
    %10815 = vmatpush1.bf16.msra.mxu0 %v10227
    %10816 = vmatprep.subr.bf16.mxu0 0
    %10817 = vmatpush1.bf16.msra.mxu0 %v10228
    %10818 = vmatprep.subr.bf16.mxu0 0
    %10819 = vmatpush1.bf16.msra.mxu0 %v10229
    %10820 = vmatprep.subr.bf16.mxu0 0
    %10821 = vmatpush1.bf16.msra.mxu0 %v10230
    %10822 = vmatprep.subr.bf16.mxu0 0
    %10823 = vmatpush1.bf16.msra.mxu0 %v10231
    %10824 = vmatprep.subr.bf16.mxu0 0
    %10825 = vmatpush1.bf16.msra.mxu0 %v10232
    %10826 = vmatprep.mubr.bf16.mxu0 %v9665
    %10827 = vmatmul.mubr.bf16.gmra.mrb[0].mxu0 %v9664
    %v10828 = vpop.f32.mrb[0].mxu0
    %v10829 = vadd.f32 %v10741, %v10828
    %v10830 = vpop.f32.mrb[0].mxu0
    %v10831 = vpop.f32.mrb[0].mxu0
    %v10832 = vadd.f32 %v10744, %v10831
    %v10833 = vpop.f32.mrb[0].mxu0
    %10834 = vmatprep.mubr.bf16.mxu0 %v9678
    %10835 = vmatmul.mubr.bf16.gmra.mrb[0].mxu0 %v9677
    %v10836 = vpop.f32.mrb[0].mxu0
    %v10837 = vadd.f32 %v10749, %v10836
    %v10838 = vpop.f32.mrb[0].mxu0
    %v10839 = vpop.f32.mrb[0].mxu0
    %v10840 = vadd.f32 %v10752, %v10839
    %v10841 = vpop.f32.mrb[0].mxu0
    %10842 = vmatprep.mubr.bf16.mxu0 %v9691
    %10843 = vmatmul.mubr.bf16.gmra.mrb[0].mxu0 %v9690
    %v10844 = vpop.f32.mrb[0].mxu0
    %v10845 = vadd.f32 %v10757, %v10844
    %v10846 = vpop.f32.mrb[0].mxu0
    %v10847 = vpop.f32.mrb[0].mxu0
    %v10848 = vadd.f32 %v10760, %v10847
    %v10849 = vpop.f32.mrb[0].mxu0
    %10850 = vmatprep.mubr.bf16.mxu0 %v9704
    %10851 = vmatmul.mubr.bf16.gmra.mrb[0].mxu0 %v9703
    %v10852 = vpop.f32.mrb[0].mxu0
    %v10853 = vadd.f32 %v10765, %v10852
    %v10854 = vpop.f32.mrb[0].mxu0
    %v10855 = vpop.f32.mrb[0].mxu0
    %v10856 = vadd.f32 %v10768, %v10855
    %v10857 = vpop.f32.mrb[0].mxu0
    %10858 = vmatprep.mubr.bf16.mxu0 %v9717
    %10859 = vmatmul.mubr.bf16.gmra.mrb[0].mxu0 %v9716
    %v10860 = vpop.f32.mrb[0].mxu0
    %v10861 = vadd.f32 %v10773, %v10860
    %v10862 = vpop.f32.mrb[0].mxu0
    %v10863 = vpop.f32.mrb[0].mxu0
    %v10864 = vadd.f32 %v10776, %v10863
    %v10865 = vpop.f32.mrb[0].mxu0
    %10866 = vmatprep.mubr.bf16.mxu0 %v9730
    %10867 = vmatmul.mubr.bf16.gmra.mrb[0].mxu0 %v9729
    %v10868 = vpop.f32.mrb[0].mxu0
    %v10869 = vadd.f32 %v10781, %v10868
    %v10870 = vpop.f32.mrb[0].mxu0
    %v10871 = vpop.f32.mrb[0].mxu0
    %v10872 = vadd.f32 %v10784, %v10871
    %v10873 = vpop.f32.mrb[0].mxu0
    %10874 = vmatprep.mubr.bf16.mxu0 %v9743
    %10875 = vmatmul.mubr.bf16.gmra.mrb[0].mxu0 %v9742
    %v10876 = vpop.f32.mrb[0].mxu0
    %v10877 = vadd.f32 %v10789, %v10876
    %v10878 = vpop.f32.mrb[0].mxu0
    %v10879 = vpop.f32.mrb[0].mxu0
    %v10880 = vpop.f32.mrb[0].mxu0
    %10881 = vdwg.mxu0
    %10882 = vmatprep.subr.bf16.mxu0 0
    %10883 = vmatpush1.bf16.msra.mxu0 %v10233
    %10884 = vmatprep.subr.bf16.mxu0 0
    %10885 = vmatpush1.bf16.msra.mxu0 %v10234
    %10886 = vmatprep.subr.bf16.mxu0 0
    %10887 = vmatpush1.bf16.msra.mxu0 0
    %10888 = vmatprep.subr.bf16.mxu0 0
    %10889 = vmatpush1.bf16.msra.mxu0 0
    %10890 = vmatprep.subr.bf16.mxu0 0
    %10891 = vmatpush1.bf16.msra.mxu0 0
    %10892 = vmatprep.subr.bf16.mxu0 0
    %10893 = vmatpush1.bf16.msra.mxu0 0
    %10894 = vmatprep.subr.bf16.mxu0 0
    %10895 = vmatpush1.bf16.msra.mxu0 0
    %10896 = vmatprep.subr.bf16.mxu0 0
    %10897 = vmatpush1.bf16.msra.mxu0 0
    %10898 = vmatprep.subr.bf16.mxu0 0
    %10899 = vmatpush1.bf16.msra.mxu0 0
    %10900 = vmatprep.subr.bf16.mxu0 0
    %10901 = vmatpush1.bf16.msra.mxu0 0
    %10902 = vmatprep.subr.bf16.mxu0 0
    %10903 = vmatpush1.bf16.msra.mxu0 0
    %10904 = vmatprep.subr.bf16.mxu0 0
    %10905 = vmatpush1.bf16.msra.mxu0 0
    %10906 = vmatprep.subr.bf16.mxu0 0
    %10907 = vmatpush1.bf16.msra.mxu0 0
    %10908 = vmatprep.subr.bf16.mxu0 0
    %10909 = vmatpush1.bf16.msra.mxu0 0
    %10910 = vmatprep.subr.bf16.mxu0 0
    %10911 = vmatpush1.bf16.msra.mxu0 0
    %10912 = vmatprep.subr.bf16.mxu0 0
    %10913 = vmatpush1.bf16.msra.mxu0 0
    %10914 = vmatprep.mubr.bf16.mxu0 0
    %10915 = vmatmul.mubr.bf16.gmra.mrb[0].mxu0 %v10334
    %v10916 = vpop.f32.mrb[0].mxu0
    %v10917 = vadd.f32 %v10829, %v10916
    %v10918 = vpop.f32.mrb[0].mxu0
    %v10919 = vpop.f32.mrb[0].mxu0
    %v10920 = vadd.f32 %v10832, %v10919
    %v10921 = vpop.f32.mrb[0].mxu0
    %10922 = vmatprep.mubr.bf16.mxu0 0
    %10923 = vmatmul.mubr.bf16.gmra.mrb[0].mxu0 %v10337
    %v10924 = vpop.f32.mrb[0].mxu0
    %v10925 = vadd.f32 %v10837, %v10924
    %v10926 = vpop.f32.mrb[0].mxu0
    %v10927 = vpop.f32.mrb[0].mxu0
    %v10928 = vadd.f32 %v10840, %v10927
    %v10929 = vpop.f32.mrb[0].mxu0
    %10930 = vmatprep.mubr.bf16.mxu0 0
    %10931 = vmatmul.mubr.bf16.gmra.mrb[0].mxu0 %v10340
    %v10932 = vpop.f32.mrb[0].mxu0
    %v10933 = vadd.f32 %v10845, %v10932
    %v10934 = vpop.f32.mrb[0].mxu0
    %v10935 = vpop.f32.mrb[0].mxu0
    %v10936 = vadd.f32 %v10848, %v10935
    %v10937 = vpop.f32.mrb[0].mxu0
    %10938 = vmatprep.mubr.bf16.mxu0 0
    %10939 = vmatmul.mubr.bf16.gmra.mrb[0].mxu0 %v10343
    %v10940 = vpop.f32.mrb[0].mxu0
    %v10941 = vadd.f32 %v10853, %v10940
    %v10942 = vpop.f32.mrb[0].mxu0
    %v10943 = vpop.f32.mrb[0].mxu0
    %v10944 = vadd.f32 %v10856, %v10943
    %v10945 = vpop.f32.mrb[0].mxu0
    %10946 = vmatprep.mubr.bf16.mxu0 0
    %10947 = vmatmul.mubr.bf16.gmra.mrb[0].mxu0 %v10346
    %v10948 = vpop.f32.mrb[0].mxu0
    %v10949 = vadd.f32 %v10861, %v10948
    %v10950 = vpop.f32.mrb[0].mxu0
    %v10951 = vpop.f32.mrb[0].mxu0
    %v10952 = vadd.f32 %v10864, %v10951
    %v10953 = vpop.f32.mrb[0].mxu0
    %10954 = vmatprep.mubr.bf16.mxu0 0
    %10955 = vmatmul.mubr.bf16.gmra.mrb[0].mxu0 %v10349
    %v10956 = vpop.f32.mrb[0].mxu0
    %v10957 = vadd.f32 %v10869, %v10956
    %v10958 = vpop.f32.mrb[0].mxu0
    %v10959 = vpop.f32.mrb[0].mxu0
    %v10960 = vadd.f32 %v10872, %v10959
    %v10961 = vpop.f32.mrb[0].mxu0
    %10962 = vmatprep.mubr.bf16.mxu0 0
    %10963 = vmatmul.mubr.bf16.gmra.mrb[0].mxu0 %v10352
    %v10964 = vpop.f32.mrb[0].mxu0
    %v10965 = vadd.f32 %v10877, %v10964
    %v10966 = vpop.f32.mrb[0].mxu0
    %v10967 = vpop.f32.mrb[0].mxu0
    %v10968 = vpop.f32.mrb[0].mxu0
    %10969 = vdwg.mxu0
    %v10970 = vld [vmem:[%s9] sm:$0x3]
    %v10971 = vld [vmem:[%s11] sm:$0x1]
    %v10973 = vlaneseq
    %v10974 = vshrl.u32 %v10973, 7
    %v10975 = vsub.s32 0, %v10974
    %v10976 = vrot.slane %v10971, %v10975
    %vm10978 = vcmask 801792
    %v10980 = vsel %vm10978, %v10970, 0
    %v10983 = vsel %vm84, %v10965, 0
    %10985 = vmatprep.subr.mxu0 0.0
    %10986 = vmatpush1.msra.mxu0 %v10917
    %10987 = vmatprep.subr.mxu0 0.0
    %10988 = vmatpush1.msra.mxu0 %v10920
    %10989 = vmatprep.subr.mxu0 0.0
    %10990 = vmatpush1.msra.mxu0 %v10925
    %10991 = vmatprep.subr.mxu0 0.0
    %10992 = vmatpush1.msra.mxu0 %v10928
    %10993 = vmatprep.subr.mxu0 0.0
    %10994 = vmatpush1.msra.mxu0 %v10933
    %10995 = vmatprep.subr.mxu0 0.0
    %10996 = vmatpush1.msra.mxu0 %v10936
    %10997 = vmatprep.subr.mxu0 0.0
    %10998 = vmatpush1.msra.mxu0 %v10941
    %10999 = vmatprep.subr.mxu0 0.0
    %11000 = vmatpush1.msra.mxu0 %v10944
    %11001 = vmatprep.subr.mxu0 0.0
    %11002 = vmatpush1.msra.mxu0 %v10949
    %11003 = vmatprep.subr.mxu0 0.0
    %11004 = vmatpush1.msra.mxu0 %v10952
    %11005 = vmatprep.subr.mxu0 0.0
    %11006 = vmatpush1.msra.mxu0 %v10957
    %11007 = vmatprep.subr.mxu0 0.0
    %11008 = vmatpush1.msra.mxu0 %v10960
    %11009 = vmatprep.subr.mxu0 0.0
    %11010 = vmatpush1.msra.mxu0 %v10983
    %11011 = vmatprep.subr.mxu0 0.0
    %11012 = vmatpush1.msra.mxu0 0.0
    %11013 = vmatprep.subr.mxu0 0.0
    %11014 = vmatpush1.msra.mxu0 0.0
    %11015 = vmatprep.subr.mxu0 0.0
    %11016 = vmatpush1.msra.mxu0 0.0
    %11017 = vmatprep.subr.mxu0 0.0
    %11018 = vmatpush1.msra.mxu0 0.0
    %11019 = vmatprep.subr.mxu0 0.0
    %11020 = vmatpush1.msra.mxu0 0.0
    %11021 = vmatprep.subr.mxu0 0.0
    %11022 = vmatpush1.msra.mxu0 0.0
    %11023 = vmatprep.subr.mxu0 0.0
    %11024 = vmatpush1.msra.mxu0 0.0
    %11025 = vmatprep.subr.mxu0 0.0
    %11026 = vmatpush1.msra.mxu0 0.0
    %11027 = vmatprep.subr.mxu0 0.0
    %11028 = vmatpush1.msra.mxu0 0.0
    %11029 = vmatprep.subr.mxu0 0.0
    %11030 = vmatpush1.msra.mxu0 0.0
    %11031 = vmatprep.subr.mxu0 0.0
    %11032 = vmatpush1.msra.mxu0 0.0
    %11033 = vmatprep.subr.mxu0 0.0
    %11034 = vmatpush1.msra.mxu0 0.0
    %11035 = vmatprep.subr.mxu0 0.0
    %11036 = vmatpush1.msra.mxu0 0.0
    %11037 = vmatprep.subr.mxu0 0.0
    %11038 = vmatpush1.msra.mxu0 0.0
    %11039 = vmatprep.subr.mxu0 0.0
    %11040 = vmatpush1.msra.mxu0 0.0
    %11041 = vmatprep.subr.mxu0 0.0
    %11042 = vmatpush1.msra.mxu0 0.0
    %11043 = vmatprep.subr.mxu0 0.0
    %11044 = vmatpush1.msra.mxu0 0.0
    %11045 = vmatprep.subr.mxu0 0.0
    %11046 = vmatpush1.msra.mxu0 0.0
    %11047 = vmatprep.subr.mxu0 0.0
    %11048 = vmatpush1.msra.mxu0 0.0
    %11049 = vmatprep.mubr.f32.mxu0 0.0
    %11050 = vmatmul.mubr.f32.gmra.mrb[0].mxu0 %v10980
    %v11051 = vpop.f32.mrb[0].mxu0
    %v11052 = vadd.f32 %v10976, %v11051
    %v11053 = vpop.f32.mrb[0].mxu0
    %11054 = vdwg.mxu0
    %v11055 = vld [vmem:[%s14] sm:$0x3]
    %v11056 = vld [vmem:[%s12] sm:$0xf]
    %v11057 = vld [vmem:[%s12 + $0x4] sm:$0xf]
    %v11058 = vld [vmem:[%s12 + $0x8] sm:$0xf]
    %v11059 = vld [vmem:[%s12 + $0xc] sm:$0xf]
    %v11060 = vpack.c.bf16 %v11055, %v11055
    %v11061 = vld [vmem:[%s13] sm:$0x1]
    %v11063 = vlaneseq
    %v11064 = vshrl.u32 %v11063, 7
    %v11065 = vsub.s32 0, %v11064
    %v11066 = vrot.slane %v11061, %v11065
    %v11072 = vunpack.c.l.b16 %v11056
    %v11073 = vunpack.c.l.b16 %v11057
    %v11074 = vunpack.c.l.b16 %v11058
    %v11075 = vunpack.c.l.b16 %v11059
    %v11076 = vpack.c.b16 %v11073, %v11072
    %v11077 = vpack.c.b16 %v11075, %v11074
    %v11081 = vsel %vm1511, %v11060, 0
    %11083 = vmatprep.subr.bf16.mxu0 0
    %11084 = vmatpush1.bf16.msra.mxu0 %v11076
    %11085 = vmatprep.subr.bf16.mxu0 0
    %11086 = vmatpush1.bf16.msra.mxu0 %v11077
    %11087 = vmatprep.subr.bf16.mxu0 0
    %11088 = vmatpush1.bf16.msra.mxu0 0
    %11089 = vmatprep.subr.bf16.mxu0 0
    %11090 = vmatpush1.bf16.msra.mxu0 0
    %11091 = vmatprep.subr.bf16.mxu0 0
    %11092 = vmatpush1.bf16.msra.mxu0 0
    %11093 = vmatprep.subr.bf16.mxu0 0
    %11094 = vmatpush1.bf16.msra.mxu0 0
    %11095 = vmatprep.subr.bf16.mxu0 0
    %11096 = vmatpush1.bf16.msra.mxu0 0
    %11097 = vmatprep.subr.bf16.mxu0 0
    %11098 = vmatpush1.bf16.msra.mxu0 0
    %11099 = vmatprep.subr.bf16.mxu0 0
    %11100 = vmatpush1.bf16.msra.mxu0 0
    %11101 = vmatprep.subr.bf16.mxu0 0
    %11102 = vmatpush1.bf16.msra.mxu0 0
    %11103 = vmatprep.subr.bf16.mxu0 0
    %11104 = vmatpush1.bf16.msra.mxu0 0
    %11105 = vmatprep.subr.bf16.mxu0 0
    %11106 = vmatpush1.bf16.msra.mxu0 0
    %11107 = vmatprep.subr.bf16.mxu0 0
    %11108 = vmatpush1.bf16.msra.mxu0 0
    %11109 = vmatprep.subr.bf16.mxu0 0
    %11110 = vmatpush1.bf16.msra.mxu0 0
    %11111 = vmatprep.subr.bf16.mxu0 0
    %11112 = vmatpush1.bf16.msra.mxu0 0
    %11113 = vmatprep.subr.bf16.mxu0 0
    %11114 = vmatpush1.bf16.msra.mxu0 0
    %11115 = vmatprep.mubr.bf16.mxu0 0
    %11116 = vmatmul.mubr.bf16.gmra.mrb[0].mxu0 %v11081
    %v11117 = vpop.f32.mrb[0].mxu0
    %v11118 = vadd.f32 %v11066, %v11117
    %v11119 = vpop.f32.mrb[0].mxu0
    %v11120 = vpop.f32.mrb[0].mxu0
    %v11121 = vpop.f32.mrb[0].mxu0
    %11122 = vdwg.mxu0
    %v11123 = vadd.f32 %v11052, %v11118
    %v11124 = vsub.f32 0.0, %v11123
    %v11125 = vmul.f32 %v11124, 1.442695
    %v11126 = vpow.pop %v11125
    %v11127 = vadd.f32 %v11126, 1.0
    %v11128 = vrcp.pop %v11127
    %v11129 = vmul.f32 1.0, %v11128
    %11131 = vrot.lane.b32.xlu0 %v11118, 64
    %v11132 = vpop.permute.xlu0 %11131
    %v11134 = vmul.f32 %v11129, %v11132
    %11136 = vrot.lane.b32.xlu0 %v11134, 64
    %v11137 = vpop.permute.xlu0 %11136
    %v11139 = vadd.f32 %v11052, %v11137
    %v11140 = vtanh.pop %v11139
    %v11141 = vsub.f32 1.0, %v11129
    %11143 = vrot.lane.b32.xlu0 %v11140, 96
    %v11144 = vpop.permute.xlu0 %11143
    %v11146 = vmul.f32 %v11141, %v11144
    %11148 = vrot.lane.b32.xlu0 %v11055, 32
    %v11149 = vpop.permute.xlu0 %11148
    %v11151 = vmul.f32 %v11129, %v11149
    %v11152 = vadd.f32 %v11146, %v11151
    %v11153 = vld [vmem:[%s15] sm:$0xf]
    %v11154 = vld [vmem:[%s15 + $0x4] sm:$0xf]
    %v11155 = vld [vmem:[%s15 + $0x8] sm:$0xf]
    %v11156 = vld [vmem:[%s15 + $0xc] sm:$0xf]
    %v11157 = vpack.c.bf16 %v11152, %v11152
    %v11158 = vld [vmem:[%s16] sm:$0x1]
    %v11160 = vlaneseq
    %v11161 = vshrl.u32 %v11160, 7
    %v11162 = vsub.s32 0, %v11161
    %v11163 = vrot.slane %v11158, %v11162
    %11166 = vrot.lane.b32.xlu0 %v11157, 96
    %v11167 = vpop.permute.xlu0 %11166
    %v11172 = vunpack.c.l.b16 %v11153
    %v11173 = vunpack.c.l.b16 %v11154
    %v11174 = vunpack.c.l.b16 %v11155
    %v11175 = vunpack.c.l.b16 %v11156
    %v11176 = vpack.c.b16 %v11173, %v11172
    %v11177 = vpack.c.b16 %v11175, %v11174
    %v11181 = vsel %vm1511, %v11167, 0
    %11183 = vmatprep.subr.bf16.mxu0 0
    %11184 = vmatpush1.bf16.msra.mxu0 %v11176
    %11185 = vmatprep.subr.bf16.mxu0 0
    %11186 = vmatpush1.bf16.msra.mxu0 %v11177
    %11187 = vmatprep.subr.bf16.mxu0 0
    %11188 = vmatpush1.bf16.msra.mxu0 0
    %11189 = vmatprep.subr.bf16.mxu0 0
    %11190 = vmatpush1.bf16.msra.mxu0 0
    %11191 = vmatprep.subr.bf16.mxu0 0
    %11192 = vmatpush1.bf16.msra.mxu0 0
    %11193 = vmatprep.subr.bf16.mxu0 0
    %11194 = vmatpush1.bf16.msra.mxu0 0
    %11195 = vmatprep.subr.bf16.mxu0 0
    %11196 = vmatpush1.bf16.msra.mxu0 0
    %11197 = vmatprep.subr.bf16.mxu0 0
    %11198 = vmatpush1.bf16.msra.mxu0 0
    %11199 = vmatprep.subr.bf16.mxu0 0
    %11200 = vmatpush1.bf16.msra.mxu0 0
    %11201 = vmatprep.subr.bf16.mxu0 0
    %11202 = vmatpush1.bf16.msra.mxu0 0
    %11203 = vmatprep.subr.bf16.mxu0 0
    %11204 = vmatpush1.bf16.msra.mxu0 0
    %11205 = vmatprep.subr.bf16.mxu0 0
    %11206 = vmatpush1.bf16.msra.mxu0 0
    %11207 = vmatprep.subr.bf16.mxu0 0
    %11208 = vmatpush1.bf16.msra.mxu0 0
    %11209 = vmatprep.subr.bf16.mxu0 0
    %11210 = vmatpush1.bf16.msra.mxu0 0
    %11211 = vmatprep.subr.bf16.mxu0 0
    %11212 = vmatpush1.bf16.msra.mxu0 0
    %11213 = vmatprep.subr.bf16.mxu0 0
    %11214 = vmatpush1.bf16.msra.mxu0 0
    %11215 = vmatprep.mubr.bf16.mxu0 0
    %11216 = vmatmul.mubr.bf16.gmra.mrb[0].mxu0 %v11181
    %v11217 = vpop.f32.mrb[0].mxu0
    %v11218 = vadd.f32 %v11163, %v11217
    %v11219 = vpop.f32.mrb[0].mxu0
    %v11220 = vpop.f32.mrb[0].mxu0
    %v11221 = vpop.f32.mrb[0].mxu0
    %11222 = vdwg.mxu0
    %11224 = vrot.lane.b32.xlu0 %v11152, 102
    %v11225 = vpop.permute.xlu0 %11224
    %vm11227 = vcmask 48128
    %v11228 = vsel %vm11227, %v11218, %v11225
    %vm11229 = vcmask 310272
    %v11230 = vsel %vm11229, %v11228, 0.0
    %11231 = vst [vmem:[#allocation2] sm:$0x3] %v11230
    // Predicated region
    $region70: #{tpu_custom_call.1} parent=1 // pred_check
      _
    $region71: #{tpu_custom_call.1} parent=1 // pred_check_branch
      %11233 = sbr.rel (0) target = $region73
    $region72: #{tpu_custom_call.1} parent=1 // pred_region
      %s11235 = ssub.s32 32, 32
      %11236 = vsyncadd [#allocation3], %s11235
      %s11238 = sshll.u32 [#allocation2], 4
      %s11239 = int_to_ptr.vmem [resolvable:$true] %s11238
      %11241 = dma.vmem_to_hbm [thread:$0]  %s11239, 32, %s17, [#allocation3]
    $region73: #{tpu_custom_call.1} parent=1 // pred_fallthru
      _
    // Predicated region
    $region74: #{tpu_custom_call.1} parent=1 // pred_check
      _
    $region75: #{tpu_custom_call.1} parent=1 // pred_check_branch
      %11243 = sbr.rel (0) target = $region77
    $region76: #{tpu_custom_call.1} parent=1 // pred_region
      %11244 = dma.done [#allocation3], 32
    $region77: #{tpu_custom_call.1} parent=1 // pred_fallthru
      _
    %11245 = vsyncpa [#allocation3], 1

</llo_original>
